<compile_context>
chip_gen: v7x
topology: tpu7x:2x2x1
jax: 0.10.0
libtpu: 0.0.40
codegen_flags: <defaults>
</compile_context>

<pallas_src>
import functools

import jax
import jax.numpy as jnp
from jax import lax
from jax.experimental import pallas as pl
from jax.experimental.pallas import tpu as pltpu

K = 7      # conv kernel size
PAD = 3    # reflect padding


def _pixel_attention_kernel(w_ref, b_ref, x_ref, p_ref, o_ref, xp_s, pp_s, *, H, W, LBLK):
    # w_ref : VMEM (2*K*K, LBLK) f32  row = t*K*K + kh*K + kw ; lane l = b*C + c -> weight[c, t, kh, kw]
    # b_ref : VMEM (1, LBLK)     f32  bias broadcast to lanes
    # x_ref : VMEM (H, W, LBLK)       unpadded x slab,      lane l = b*C + c
    # p_ref : VMEM (H, W, LBLK)       unpadded pattn1 slab
    # o_ref : VMEM (H, W, LBLK)
    # xp_s / pp_s : VMEM (H+2*PAD, W+2*PAD, LBLK) f32 scratch (reflect-padded planes).

    # --- 1) build reflect-padded planes in VMEM (fused padding, single cast to f32) ---
    for src_ref, pad_s in ((x_ref, xp_s), (p_ref, pp_s)):
        pad_s[PAD:PAD + H, PAD:PAD + W, :] = src_ref[...].astype(jnp.float32)
        for i in range(PAD):  # top / bottom halo rows (reflect, edge not repeated)
            pad_s[pl.ds(i, 1), PAD:PAD + W, :] = src_ref[pl.ds(PAD - i, 1), :, :].astype(jnp.float32)
            pad_s[pl.ds(PAD + H + i, 1), PAD:PAD + W, :] = src_ref[pl.ds(H - 2 - i, 1), :, :].astype(jnp.float32)
        for j in range(PAD):  # left / right halo cols (read already-padded rows -> corners correct)
            pad_s[:, pl.ds(j, 1), :] = pad_s[:, pl.ds(2 * PAD - j, 1), :]
            pad_s[:, pl.ds(PAD + W + j, 1), :] = pad_s[:, pl.ds(PAD + W - 2 - j, 1), :]

    # --- 2) 7x7 taps: one sublane-offset slab load per kw, reused across the 7 kh row shifts ---
    acc = jnp.zeros((H, W, LBLK), jnp.float32) + b_ref[...]
    for kw in range(K):
        sx = xp_s[:, kw:kw + W, :]      # (Hp, W, LBLK): the only cross-sublane load for this kw
        sp = pp_s[:, kw:kw + W, :]
        for kh in range(K):
            wx = w_ref[pl.ds(kh * K + kw, 1), :]            # (1, LBLK), t = 0 (x taps)
            wp = w_ref[pl.ds(K * K + kh * K + kw, 1), :]    # (1, LBLK), t = 1 (pattn1 taps)
            acc = acc + wx * sx[kh:kh + H] + wp * sp[kh:kh + H]

    o_ref[...] = jax.nn.sigmoid(acc).astype(o_ref.dtype)


def pixel_attention(x, pattn1, weight, bias):
    """x, pattn1: (B, C, H, W); weight: (C, 2, 7, 7); bias: (C,). Returns (B, C, H, W) f32."""
    B, C, H, W = x.shape
    assert H > PAD and W > PAD, "reflect padding requires H, W >= 4"
    L = B * C
    Hp, Wp = H + 2 * PAD, W + 2 * PAD

    # Lane-dense relayout: (B, C, H, W) -> (H, W, B*C); lane l = b*C + c.
    x_r = jnp.transpose(x, (2, 3, 0, 1)).reshape(H, W, L)
    p_r = jnp.transpose(pattn1, (2, 3, 0, 1)).reshape(H, W, L)

    # Per-tap lane weight vectors / lane bias (weights differ per lane -> VMEM, not SMEM).
    w_lane = jnp.transpose(weight.astype(jnp.float32), (1, 2, 3, 0)).reshape(2 * K * K, C)
    w_lane = jnp.tile(w_lane, (1, B))                             # (2*K*K, L)
    b_lane = jnp.tile(bias.astype(jnp.float32), B).reshape(1, L)  # (1, L)

    # Lane tiling: one step covers everything unless B*C is large; then split in
    # 128-lane multiples, keeping VMEM bounded and (when possible) >= 2 grid steps
    # so the second TensorCore on v7x gets work.
    if L >= 128 and L % 128 == 0:
        lblk = 128

        def _vmem_bytes(lb):  # f32: double-buffered x/p/o slabs + padded scratch + weights
            return 4 * lb * (3 * 2 * H * W + 2 * Hp * Wp + 2 * (2 * K * K + 1))

        lane_cap = L // 2 if L >= 256 else L
        while (L % (lblk * 2) == 0 and lblk * 2 <= lane_cap
               and _vmem_bytes(lblk * 2) <= 20 * 1024 * 1024):
            lblk *= 2
    else:
        lblk = L
    grid = (L // lblk,)
    # TODO(synk): very large H*W planes would additionally need spatial tiling with an
    # explicit halo exchange; not needed at these sizes.

    kernel = functools.partial(_pixel_attention_kernel, H=H, W=W, LBLK=lblk)

    out_r = pl.pallas_call(
        kernel,
        out_shape=jax.ShapeDtypeStruct((H, W, L), jnp.float32),
        grid=grid,
        in_specs=[
            pl.BlockSpec((2 * K * K, lblk), lambda i: (0, i)),   # tap weights (VMEM lane vectors)
            pl.BlockSpec((1, lblk), lambda i: (0, i)),           # bias
            pl.BlockSpec((H, W, lblk), lambda i: (0, 0, i)),     # x slab (unpadded)
            pl.BlockSpec((H, W, lblk), lambda i: (0, 0, i)),     # pattn1 slab (unpadded)
        ],
        out_specs=pl.BlockSpec((H, W, lblk), lambda i: (0, 0, i)),
        scratch_shapes=[
            pltpu.VMEM((Hp, Wp, lblk), jnp.float32),
            pltpu.VMEM((Hp, Wp, lblk), jnp.float32),
        ],
        compiler_params=pltpu.CompilerParams(
            dimension_semantics=("parallel",),
            vmem_limit_bytes=48 * 1024 * 1024,
        ),
    )(w_lane, b_lane, x_r, p_r)

    # Back to NCHW.
    return out_r.reshape(H, W, B, C).transpose(2, 3, 0, 1)


def reference(x, pattn1, weight, bias):
    """Pure-JAX reference mirroring the PyTorch forward exactly."""
    B, C, H, W = x.shape
    x2 = jnp.stack([x, pattn1], axis=2).reshape(B, 2 * C, H, W)  # b (c t) h w, interleaved
    x2p = jnp.pad(x2, ((0, 0), (0, 0), (PAD, PAD), (PAD, PAD)), mode="reflect")
    out = lax.conv_general_dilated(
        x2p, weight, window_strides=(1, 1), padding="VALID",
        dimension_numbers=("NCHW", "OIHW", "NCHW"),
        feature_group_count=C)
    return jax.nn.sigmoid(out + bias[None, :, None, None])


if __name__ == "__main__":
    B, dim, H, W = 2, 4, 16, 16
    key = jax.random.PRNGKey(0)
    k1, k2, k3, k4 = jax.random.split(key, 4)

    x = jax.random.normal(k1, (B, dim, H, W), jnp.float32)
    pattn1 = jax.random.normal(k2, (B, dim, H, W), jnp.float32)
    # Deterministic synthetic parameters (Conv2d(2*dim, dim, 7, groups=dim, bias=True)).
    weight = jax.random.normal(k3, (dim, 2, K, K), jnp.float32) * 0.1
    bias = jax.random.normal(k4, (dim,), jnp.float32) * 0.1

    out = pixel_attention(x, pattn1, weight, bias)
    jax.block_until_ready(out)

    ref = reference(x, pattn1, weight, bias)
    assert out.shape == (B, dim, H, W)
    assert jnp.allclose(out, ref, atol=1e-5, rtol=1e-5)
    print("KERNEL_OK")
</pallas_src>

<mosaic_0001>
module attributes {stable_mosaic.version = 11 : i64} {
  func.func @_pixel_attention_kernel(%arg0: i32, %arg1: memref<98x8xf32, #tpu.memory_space<vmem>>, %arg2: memref<1x8xf32, #tpu.memory_space<vmem>>, %arg3: memref<16x16x8xf32, #tpu.memory_space<vmem>>, %arg4: memref<16x16x8xf32, #tpu.memory_space<vmem>>, %arg5: memref<16x16x8xf32, #tpu.memory_space<vmem>>, %arg6: memref<22x22x8xf32, #tpu.memory_space<vmem>>, %arg7: memref<22x22x8xf32, #tpu.memory_space<vmem>>) attributes {dimension_semantics = [#tpu.dimension_semantics<parallel>], iteration_bounds = array<i64: 1>, scalar_prefetch = 0 : i64, scratch_operands = 2 : i64, tpu.core_type = #tpu.core_type<tc>, window_params = [{transform_indices = @transform_0, window_bounds = array<i64: 98, 8>}, {transform_indices = @transform_1, window_bounds = array<i64: 1, 8>}, {transform_indices = @transform_2, window_bounds = array<i64: 16, 16, 8>}, {transform_indices = @transform_3, window_bounds = array<i64: 16, 16, 8>}, {transform_indices = @transform_4, window_bounds = array<i64: 16, 16, 8>}]} {
    %c0 = arith.constant 0 : index
    %c0_0 = arith.constant 0 : index
    %c0_1 = arith.constant 0 : index
    %0 = vector.load %arg3[%c0, %c0_0, %c0_1] : memref<16x16x8xf32, #tpu.memory_space<vmem>>, vector<16x16x8xf32>
    %c3 = arith.constant 3 : index
    %c3_2 = arith.constant 3 : index
    %c0_3 = arith.constant 0 : index
    %1 = vector.load %arg6[%c3, %c3_2, %c0_3] : memref<22x22x8xf32, #tpu.memory_space<vmem>>, vector<16x16x8xf32>
    tpu.vector_store %arg6[%c3, %c3_2, %c0_3], %0 {strides = array<i32>} : memref<22x22x8xf32, #tpu.memory_space<vmem>>, vector<16x16x8xf32>,
    %c3_4 = arith.constant 3 : index
    %c0_5 = arith.constant 0 : index
    %c0_6 = arith.constant 0 : index
    %2 = vector.load %arg3[%c3_4, %c0_5, %c0_6] : memref<16x16x8xf32, #tpu.memory_space<vmem>>, vector<1x16x8xf32>
    %c0_7 = arith.constant 0 : index
    %c3_8 = arith.constant 3 : index
    %c0_9 = arith.constant 0 : index
    %3 = vector.load %arg6[%c0_7, %c3_8, %c0_9] : memref<22x22x8xf32, #tpu.memory_space<vmem>>, vector<1x16x8xf32>
    tpu.vector_store %arg6[%c0_7, %c3_8, %c0_9], %2 {strides = array<i32>} : memref<22x22x8xf32, #tpu.memory_space<vmem>>, vector<1x16x8xf32>,
    %c14 = arith.constant 14 : index
    %c0_10 = arith.constant 0 : index
    %c0_11 = arith.constant 0 : index
    %4 = vector.load %arg3[%c14, %c0_10, %c0_11] : memref<16x16x8xf32, #tpu.memory_space<vmem>>, vector<1x16x8xf32>
    %c19 = arith.constant 19 : index
    %c3_12 = arith.constant 3 : index
    %c0_13 = arith.constant 0 : index
    %5 = vector.load %arg6[%c19, %c3_12, %c0_13] : memref<22x22x8xf32, #tpu.memory_space<vmem>>, vector<1x16x8xf32>
    tpu.vector_store %arg6[%c19, %c3_12, %c0_13], %4 {strides = array<i32>} : memref<22x22x8xf32, #tpu.memory_space<vmem>>, vector<1x16x8xf32>,
    %c2 = arith.constant 2 : index
    %c0_14 = arith.constant 0 : index
    %c0_15 = arith.constant 0 : index
    %6 = vector.load %arg3[%c2, %c0_14, %c0_15] : memref<16x16x8xf32, #tpu.memory_space<vmem>>, vector<1x16x8xf32>
    %c1 = arith.constant 1 : index
    %c3_16 = arith.constant 3 : index
    %c0_17 = arith.constant 0 : index
    %7 = vector.load %arg6[%c1, %c3_16, %c0_17] : memref<22x22x8xf32, #tpu.memory_space<vmem>>, vector<1x16x8xf32>
    tpu.vector_store %arg6[%c1, %c3_16, %c0_17], %6 {strides = array<i32>} : memref<22x22x8xf32, #tpu.memory_space<vmem>>, vector<1x16x8xf32>,
    %c13 = arith.constant 13 : index
    %c0_18 = arith.constant 0 : index
    %c0_19 = arith.constant 0 : index
    %8 = vector.load %arg3[%c13, %c0_18, %c0_19] : memref<16x16x8xf32, #tpu.memory_space<vmem>>, vector<1x16x8xf32>
    %c20 = arith.constant 20 : index
    %c3_20 = arith.constant 3 : index
    %c0_21 = arith.constant 0 : index
    %9 = vector.load %arg6[%c20, %c3_20, %c0_21] : memref<22x22x8xf32, #tpu.memory_space<vmem>>, vector<1x16x8xf32>
    tpu.vector_store %arg6[%c20, %c3_20, %c0_21], %8 {strides = array<i32>} : memref<22x22x8xf32, #tpu.memory_space<vmem>>, vector<1x16x8xf32>,
    %c1_22 = arith.constant 1 : index
    %c0_23 = arith.constant 0 : index
    %c0_24 = arith.constant 0 : index
    %10 = vector.load %arg3[%c1_22, %c0_23, %c0_24] : memref<16x16x8xf32, #tpu.memory_space<vmem>>, vector<1x16x8xf32>
    %c2_25 = arith.constant 2 : index
    %c3_26 = arith.constant 3 : index
    %c0_27 = arith.constant 0 : index
    %11 = vector.load %arg6[%c2_25, %c3_26, %c0_27] : memref<22x22x8xf32, #tpu.memory_space<vmem>>, vector<1x16x8xf32>
    tpu.vector_store %arg6[%c2_25, %c3_26, %c0_27], %10 {strides = array<i32>} : memref<22x22x8xf32, #tpu.memory_space<vmem>>, vector<1x16x8xf32>,
    %c12 = arith.constant 12 : index
    %c0_28 = arith.constant 0 : index
    %c0_29 = arith.constant 0 : index
    %12 = vector.load %arg3[%c12, %c0_28, %c0_29] : memref<16x16x8xf32, #tpu.memory_space<vmem>>, vector<1x16x8xf32>
    %c21 = arith.constant 21 : index
    %c3_30 = arith.constant 3 : index
    %c0_31 = arith.constant 0 : index
    %13 = vector.load %arg6[%c21, %c3_30, %c0_31] : memref<22x22x8xf32, #tpu.memory_space<vmem>>, vector<1x16x8xf32>
    tpu.vector_store %arg6[%c21, %c3_30, %c0_31], %12 {strides = array<i32>} : memref<22x22x8xf32, #tpu.memory_space<vmem>>, vector<1x16x8xf32>,
    %c0_32 = arith.constant 0 : index
    %c6 = arith.constant 6 : index
    %c0_33 = arith.constant 0 : index
    %14 = vector.load %arg6[%c0_32, %c6, %c0_33] : memref<22x22x8xf32, #tpu.memory_space<vmem>>, vector<22x1x8xf32>
    %c0_34 = arith.constant 0 : index
    %c0_35 = arith.constant 0 : index
    %c0_36 = arith.constant 0 : index
    %15 = vector.load %arg6[%c0_34, %c0_35, %c0_36] : memref<22x22x8xf32, #tpu.memory_space<vmem>>, vector<22x1x8xf32>
    tpu.vector_store %arg6[%c0_34, %c0_35, %c0_36], %14 {strides = array<i32>} : memref<22x22x8xf32, #tpu.memory_space<vmem>>, vector<22x1x8xf32>,
    %c0_37 = arith.constant 0 : index
    %c17 = arith.constant 17 : index
    %c0_38 = arith.constant 0 : index
    %16 = vector.load %arg6[%c0_37, %c17, %c0_38] : memref<22x22x8xf32, #tpu.memory_space<vmem>>, vector<22x1x8xf32>
    %c0_39 = arith.constant 0 : index
    %c19_40 = arith.constant 19 : index
    %c0_41 = arith.constant 0 : index
    %17 = vector.load %arg6[%c0_39, %c19_40, %c0_41] : memref<22x22x8xf32, #tpu.memory_space<vmem>>, vector<22x1x8xf32>
    tpu.vector_store %arg6[%c0_39, %c19_40, %c0_41], %16 {strides = array<i32>} : memref<22x22x8xf32, #tpu.memory_space<vmem>>, vector<22x1x8xf32>,
    %c0_42 = arith.constant 0 : index
    %c5 = arith.constant 5 : index
    %c0_43 = arith.constant 0 : index
    %18 = vector.load %arg6[%c0_42, %c5, %c0_43] : memref<22x22x8xf32, #tpu.memory_space<vmem>>, vector<22x1x8xf32>
    %c0_44 = arith.constant 0 : index
    %c1_45 = arith.constant 1 : index
    %c0_46 = arith.constant 0 : index
    %19 = vector.load %arg6[%c0_44, %c1_45, %c0_46] : memref<22x22x8xf32, #tpu.memory_space<vmem>>, vector<22x1x8xf32>
    tpu.vector_store %arg6[%c0_44, %c1_45, %c0_46], %18 {strides = array<i32>} : memref<22x22x8xf32, #tpu.memory_space<vmem>>, vector<22x1x8xf32>,
    %c0_47 = arith.constant 0 : index
    %c16 = arith.constant 16 : index
    %c0_48 = arith.constant 0 : index
    %20 = vector.load %arg6[%c0_47, %c16, %c0_48] : memref<22x22x8xf32, #tpu.memory_space<vmem>>, vector<22x1x8xf32>
    %c0_49 = arith.constant 0 : index
    %c20_50 = arith.constant 20 : index
    %c0_51 = arith.constant 0 : index
    %21 = vector.load %arg6[%c0_49, %c20_50, %c0_51] : memref<22x22x8xf32, #tpu.memory_space<vmem>>, vector<22x1x8xf32>
    tpu.vector_store %arg6[%c0_49, %c20_50, %c0_51], %20 {strides = array<i32>} : memref<22x22x8xf32, #tpu.memory_space<vmem>>, vector<22x1x8xf32>,
    %c0_52 = arith.constant 0 : index
    %c4 = arith.constant 4 : index
    %c0_53 = arith.constant 0 : index
    %22 = vector.load %arg6[%c0_52, %c4, %c0_53] : memref<22x22x8xf32, #tpu.memory_space<vmem>>, vector<22x1x8xf32>
    %c0_54 = arith.constant 0 : index
    %c2_55 = arith.constant 2 : index
    %c0_56 = arith.constant 0 : index
    %23 = vector.load %arg6[%c0_54, %c2_55, %c0_56] : memref<22x22x8xf32, #tpu.memory_space<vmem>>, vector<22x1x8xf32>
    tpu.vector_store %arg6[%c0_54, %c2_55, %c0_56], %22 {strides = array<i32>} : memref<22x22x8xf32, #tpu.memory_space<vmem>>, vector<22x1x8xf32>,
    %c0_57 = arith.constant 0 : index
    %c15 = arith.constant 15 : index
    %c0_58 = arith.constant 0 : index
    %24 = vector.load %arg6[%c0_57, %c15, %c0_58] : memref<22x22x8xf32, #tpu.memory_space<vmem>>, vector<22x1x8xf32>
    %c0_59 = arith.constant 0 : index
    %c21_60 = arith.constant 21 : index
    %c0_61 = arith.constant 0 : index
    %25 = vector.load %arg6[%c0_59, %c21_60, %c0_61] : memref<22x22x8xf32, #tpu.memory_space<vmem>>, vector<22x1x8xf32>
    tpu.vector_store %arg6[%c0_59, %c21_60, %c0_61], %24 {strides = array<i32>} : memref<22x22x8xf32, #tpu.memory_space<vmem>>, vector<22x1x8xf32>,
    %c0_62 = arith.constant 0 : index
    %c0_63 = arith.constant 0 : index
    %c0_64 = arith.constant 0 : index
    %26 = vector.load %arg4[%c0_62, %c0_63, %c0_64] : memref<16x16x8xf32, #tpu.memory_space<vmem>>, vector<16x16x8xf32>
    %c3_65 = arith.constant 3 : index
    %c3_66 = arith.constant 3 : index
    %c0_67 = arith.constant 0 : index
    %27 = vector.load %arg7[%c3_65, %c3_66, %c0_67] : memref<22x22x8xf32, #tpu.memory_space<vmem>>, vector<16x16x8xf32>
    tpu.vector_store %arg7[%c3_65, %c3_66, %c0_67], %26 {strides = array<i32>} : memref<22x22x8xf32, #tpu.memory_space<vmem>>, vector<16x16x8xf32>,
    %c3_68 = arith.constant 3 : index
    %c0_69 = arith.constant 0 : index
    %c0_70 = arith.constant 0 : index
    %28 = vector.load %arg4[%c3_68, %c0_69, %c0_70] : memref<16x16x8xf32, #tpu.memory_space<vmem>>, vector<1x16x8xf32>
    %c0_71 = arith.constant 0 : index
    %c3_72 = arith.constant 3 : index
    %c0_73 = arith.constant 0 : index
    %29 = vector.load %arg7[%c0_71, %c3_72, %c0_73] : memref<22x22x8xf32, #tpu.memory_space<vmem>>, vector<1x16x8xf32>
    tpu.vector_store %arg7[%c0_71, %c3_72, %c0_73], %28 {strides = array<i32>} : memref<22x22x8xf32, #tpu.memory_space<vmem>>, vector<1x16x8xf32>,
    %c14_74 = arith.constant 14 : index
    %c0_75 = arith.constant 0 : index
    %c0_76 = arith.constant 0 : index
    %30 = vector.load %arg4[%c14_74, %c0_75, %c0_76] : memref<16x16x8xf32, #tpu.memory_space<vmem>>, vector<1x16x8xf32>
    %c19_77 = arith.constant 19 : index
    %c3_78 = arith.constant 3 : index
    %c0_79 = arith.constant 0 : index
    %31 = vector.load %arg7[%c19_77, %c3_78, %c0_79] : memref<22x22x8xf32, #tpu.memory_space<vmem>>, vector<1x16x8xf32>
    tpu.vector_store %arg7[%c19_77, %c3_78, %c0_79], %30 {strides = array<i32>} : memref<22x22x8xf32, #tpu.memory_space<vmem>>, vector<1x16x8xf32>,
    %c2_80 = arith.constant 2 : index
    %c0_81 = arith.constant 0 : index
    %c0_82 = arith.constant 0 : index
    %32 = vector.load %arg4[%c2_80, %c0_81, %c0_82] : memref<16x16x8xf32, #tpu.memory_space<vmem>>, vector<1x16x8xf32>
    %c1_83 = arith.constant 1 : index
    %c3_84 = arith.constant 3 : index
    %c0_85 = arith.constant 0 : index
    %33 = vector.load %arg7[%c1_83, %c3_84, %c0_85] : memref<22x22x8xf32, #tpu.memory_space<vmem>>, vector<1x16x8xf32>
    tpu.vector_store %arg7[%c1_83, %c3_84, %c0_85], %32 {strides = array<i32>} : memref<22x22x8xf32, #tpu.memory_space<vmem>>, vector<1x16x8xf32>,
    %c13_86 = arith.constant 13 : index
    %c0_87 = arith.constant 0 : index
    %c0_88 = arith.constant 0 : index
    %34 = vector.load %arg4[%c13_86, %c0_87, %c0_88] : memref<16x16x8xf32, #tpu.memory_space<vmem>>, vector<1x16x8xf32>
    %c20_89 = arith.constant 20 : index
    %c3_90 = arith.constant 3 : index
    %c0_91 = arith.constant 0 : index
    %35 = vector.load %arg7[%c20_89, %c3_90, %c0_91] : memref<22x22x8xf32, #tpu.memory_space<vmem>>, vector<1x16x8xf32>
    tpu.vector_store %arg7[%c20_89, %c3_90, %c0_91], %34 {strides = array<i32>} : memref<22x22x8xf32, #tpu.memory_space<vmem>>, vector<1x16x8xf32>,
    %c1_92 = arith.constant 1 : index
    %c0_93 = arith.constant 0 : index
    %c0_94 = arith.constant 0 : index
    %36 = vector.load %arg4[%c1_92, %c0_93, %c0_94] : memref<16x16x8xf32, #tpu.memory_space<vmem>>, vector<1x16x8xf32>
    %c2_95 = arith.constant 2 : index
    %c3_96 = arith.constant 3 : index
    %c0_97 = arith.constant 0 : index
    %37 = vector.load %arg7[%c2_95, %c3_96, %c0_97] : memref<22x22x8xf32, #tpu.memory_space<vmem>>, vector<1x16x8xf32>
    tpu.vector_store %arg7[%c2_95, %c3_96, %c0_97], %36 {strides = array<i32>} : memref<22x22x8xf32, #tpu.memory_space<vmem>>, vector<1x16x8xf32>,
    %c12_98 = arith.constant 12 : index
    %c0_99 = arith.constant 0 : index
    %c0_100 = arith.constant 0 : index
    %38 = vector.load %arg4[%c12_98, %c0_99, %c0_100] : memref<16x16x8xf32, #tpu.memory_space<vmem>>, vector<1x16x8xf32>
    %c21_101 = arith.constant 21 : index
    %c3_102 = arith.constant 3 : index
    %c0_103 = arith.constant 0 : index
    %39 = vector.load %arg7[%c21_101, %c3_102, %c0_103] : memref<22x22x8xf32, #tpu.memory_space<vmem>>, vector<1x16x8xf32>
    tpu.vector_store %arg7[%c21_101, %c3_102, %c0_103], %38 {strides = array<i32>} : memref<22x22x8xf32, #tpu.memory_space<vmem>>, vector<1x16x8xf32>,
    %c0_104 = arith.constant 0 : index
    %c6_105 = arith.constant 6 : index
    %c0_106 = arith.constant 0 : index
    %40 = vector.load %arg7[%c0_104, %c6_105, %c0_106] : memref<22x22x8xf32, #tpu.memory_space<vmem>>, vector<22x1x8xf32>
    %c0_107 = arith.constant 0 : index
    %c0_108 = arith.constant 0 : index
    %c0_109 = arith.constant 0 : index
    %41 = vector.load %arg7[%c0_107, %c0_108, %c0_109] : memref<22x22x8xf32, #tpu.memory_space<vmem>>, vector<22x1x8xf32>
    tpu.vector_store %arg7[%c0_107, %c0_108, %c0_109], %40 {strides = array<i32>} : memref<22x22x8xf32, #tpu.memory_space<vmem>>, vector<22x1x8xf32>,
    %c0_110 = arith.constant 0 : index
    %c17_111 = arith.constant 17 : index
    %c0_112 = arith.constant 0 : index
    %42 = vector.load %arg7[%c0_110, %c17_111, %c0_112] : memref<22x22x8xf32, #tpu.memory_space<vmem>>, vector<22x1x8xf32>
    %c0_113 = arith.constant 0 : index
    %c19_114 = arith.constant 19 : index
    %c0_115 = arith.constant 0 : index
    %43 = vector.load %arg7[%c0_113, %c19_114, %c0_115] : memref<22x22x8xf32, #tpu.memory_space<vmem>>, vector<22x1x8xf32>
    tpu.vector_store %arg7[%c0_113, %c19_114, %c0_115], %42 {strides = array<i32>} : memref<22x22x8xf32, #tpu.memory_space<vmem>>, vector<22x1x8xf32>,
    %c0_116 = arith.constant 0 : index
    %c5_117 = arith.constant 5 : index
    %c0_118 = arith.constant 0 : index
    %44 = vector.load %arg7[%c0_116, %c5_117, %c0_118] : memref<22x22x8xf32, #tpu.memory_space<vmem>>, vector<22x1x8xf32>
    %c0_119 = arith.constant 0 : index
    %c1_120 = arith.constant 1 : index
    %c0_121 = arith.constant 0 : index
    %45 = vector.load %arg7[%c0_119, %c1_120, %c0_121] : memref<22x22x8xf32, #tpu.memory_space<vmem>>, vector<22x1x8xf32>
    tpu.vector_store %arg7[%c0_119, %c1_120, %c0_121], %44 {strides = array<i32>} : memref<22x22x8xf32, #tpu.memory_space<vmem>>, vector<22x1x8xf32>,
    %c0_122 = arith.constant 0 : index
    %c16_123 = arith.constant 16 : index
    %c0_124 = arith.constant 0 : index
    %46 = vector.load %arg7[%c0_122, %c16_123, %c0_124] : memref<22x22x8xf32, #tpu.memory_space<vmem>>, vector<22x1x8xf32>
    %c0_125 = arith.constant 0 : index
    %c20_126 = arith.constant 20 : index
    %c0_127 = arith.constant 0 : index
    %47 = vector.load %arg7[%c0_125, %c20_126, %c0_127] : memref<22x22x8xf32, #tpu.memory_space<vmem>>, vector<22x1x8xf32>
    tpu.vector_store %arg7[%c0_125, %c20_126, %c0_127], %46 {strides = array<i32>} : memref<22x22x8xf32, #tpu.memory_space<vmem>>, vector<22x1x8xf32>,
    %c0_128 = arith.constant 0 : index
    %c4_129 = arith.constant 4 : index
    %c0_130 = arith.constant 0 : index
    %48 = vector.load %arg7[%c0_128, %c4_129, %c0_130] : memref<22x22x8xf32, #tpu.memory_space<vmem>>, vector<22x1x8xf32>
    %c0_131 = arith.constant 0 : index
    %c2_132 = arith.constant 2 : index
    %c0_133 = arith.constant 0 : index
    %49 = vector.load %arg7[%c0_131, %c2_132, %c0_133] : memref<22x22x8xf32, #tpu.memory_space<vmem>>, vector<22x1x8xf32>
    tpu.vector_store %arg7[%c0_131, %c2_132, %c0_133], %48 {strides = array<i32>} : memref<22x22x8xf32, #tpu.memory_space<vmem>>, vector<22x1x8xf32>,
    %c0_134 = arith.constant 0 : index
    %c15_135 = arith.constant 15 : index
    %c0_136 = arith.constant 0 : index
    %50 = vector.load %arg7[%c0_134, %c15_135, %c0_136] : memref<22x22x8xf32, #tpu.memory_space<vmem>>, vector<22x1x8xf32>
    %c0_137 = arith.constant 0 : index
    %c21_138 = arith.constant 21 : index
    %c0_139 = arith.constant 0 : index
    %51 = vector.load %arg7[%c0_137, %c21_138, %c0_139] : memref<22x22x8xf32, #tpu.memory_space<vmem>>, vector<22x1x8xf32>
    tpu.vector_store %arg7[%c0_137, %c21_138, %c0_139], %50 {strides = array<i32>} : memref<22x22x8xf32, #tpu.memory_space<vmem>>, vector<22x1x8xf32>,
    %cst = arith.constant 0.000000e+00 : f32
    %52 = vector.broadcast %cst : f32 to vector<16x16x8xf32>
    %c0_140 = arith.constant 0 : index
    %c0_141 = arith.constant 0 : index
    %53 = vector.load %arg2[%c0_140, %c0_141] : memref<1x8xf32, #tpu.memory_space<vmem>>, vector<1x8xf32>
    %54 = vector.shape_cast %53 : vector<1x8xf32> to vector<1x1x8xf32>
    %55 = vector.broadcast %54 : vector<1x1x8xf32> to vector<16x16x8xf32>
    %56 = arith.addf %52, %55 : vector<16x16x8xf32>
    %c0_142 = arith.constant 0 : index
    %c0_143 = arith.constant 0 : index
    %c0_144 = arith.constant 0 : index
    %57 = vector.load %arg6[%c0_142, %c0_143, %c0_144] : memref<22x22x8xf32, #tpu.memory_space<vmem>>, vector<22x16x8xf32>
    %c0_145 = arith.constant 0 : index
    %c0_146 = arith.constant 0 : index
    %c0_147 = arith.constant 0 : index
    %58 = vector.load %arg7[%c0_145, %c0_146, %c0_147] : memref<22x22x8xf32, #tpu.memory_space<vmem>>, vector<22x16x8xf32>
    %c0_148 = arith.constant 0 : index
    %c0_149 = arith.constant 0 : index
    %59 = vector.load %arg1[%c0_148, %c0_149] : memref<98x8xf32, #tpu.memory_space<vmem>>, vector<1x8xf32>
    %c49 = arith.constant 49 : index
    %c0_150 = arith.constant 0 : index
    %60 = vector.load %arg1[%c49, %c0_150] : memref<98x8xf32, #tpu.memory_space<vmem>>, vector<1x8xf32>
    %61 = vector.extract_strided_slice %57 {offsets = [0, 0, 0], sizes = [16, 16, 8], strides = [1, 1, 1]} : vector<22x16x8xf32> to vector<16x16x8xf32>
    %62 = vector.shape_cast %59 : vector<1x8xf32> to vector<1x1x8xf32>
    %63 = vector.broadcast %62 : vector<1x1x8xf32> to vector<16x16x8xf32>
    %64 = arith.mulf %63, %61 : vector<16x16x8xf32>
    %65 = arith.addf %56, %64 : vector<16x16x8xf32>
    %66 = vector.extract_strided_slice %58 {offsets = [0, 0, 0], sizes = [16, 16, 8], strides = [1, 1, 1]} : vector<22x16x8xf32> to vector<16x16x8xf32>
    %67 = vector.shape_cast %60 : vector<1x8xf32> to vector<1x1x8xf32>
    %68 = vector.broadcast %67 : vector<1x1x8xf32> to vector<16x16x8xf32>
    %69 = arith.mulf %68, %66 : vector<16x16x8xf32>
    %70 = arith.addf %65, %69 : vector<16x16x8xf32>
    %c7 = arith.constant 7 : index
    %c0_151 = arith.constant 0 : index
    %71 = vector.load %arg1[%c7, %c0_151] : memref<98x8xf32, #tpu.memory_space<vmem>>, vector<1x8xf32>
    %c56 = arith.constant 56 : index
    %c0_152 = arith.constant 0 : index
    %72 = vector.load %arg1[%c56, %c0_152] : memref<98x8xf32, #tpu.memory_space<vmem>>, vector<1x8xf32>
    %73 = vector.extract_strided_slice %57 {offsets = [1, 0, 0], sizes = [16, 16, 8], strides = [1, 1, 1]} : vector<22x16x8xf32> to vector<16x16x8xf32>
    %74 = vector.shape_cast %71 : vector<1x8xf32> to vector<1x1x8xf32>
    %75 = vector.broadcast %74 : vector<1x1x8xf32> to vector<16x16x8xf32>
    %76 = arith.mulf %75, %73 : vector<16x16x8xf32>
    %77 = arith.addf %70, %76 : vector<16x16x8xf32>
    %78 = vector.extract_strided_slice %58 {offsets = [1, 0, 0], sizes = [16, 16, 8], strides = [1, 1, 1]} : vector<22x16x8xf32> to vector<16x16x8xf32>
    %79 = vector.shape_cast %72 : vector<1x8xf32> to vector<1x1x8xf32>
    %80 = vector.broadcast %79 : vector<1x1x8xf32> to vector<16x16x8xf32>
    %81 = arith.mulf %80, %78 : vector<16x16x8xf32>
    %82 = arith.addf %77, %81 : vector<16x16x8xf32>
    %c14_153 = arith.constant 14 : index
    %c0_154 = arith.constant 0 : index
    %83 = vector.load %arg1[%c14_153, %c0_154] : memref<98x8xf32, #tpu.memory_space<vmem>>, vector<1x8xf32>
    %c63 = arith.constant 63 : index
    %c0_155 = arith.constant 0 : index
    %84 = vector.load %arg1[%c63, %c0_155] : memref<98x8xf32, #tpu.memory_space<vmem>>, vector<1x8xf32>
    %85 = vector.extract_strided_slice %57 {offsets = [2, 0, 0], sizes = [16, 16, 8], strides = [1, 1, 1]} : vector<22x16x8xf32> to vector<16x16x8xf32>
    %86 = vector.shape_cast %83 : vector<1x8xf32> to vector<1x1x8xf32>
    %87 = vector.broadcast %86 : vector<1x1x8xf32> to vector<16x16x8xf32>
    %88 = arith.mulf %87, %85 : vector<16x16x8xf32>
    %89 = arith.addf %82, %88 : vector<16x16x8xf32>
    %90 = vector.extract_strided_slice %58 {offsets = [2, 0, 0], sizes = [16, 16, 8], strides = [1, 1, 1]} : vector<22x16x8xf32> to vector<16x16x8xf32>
    %91 = vector.shape_cast %84 : vector<1x8xf32> to vector<1x1x8xf32>
    %92 = vector.broadcast %91 : vector<1x1x8xf32> to vector<16x16x8xf32>
    %93 = arith.mulf %92, %90 : vector<16x16x8xf32>
    %94 = arith.addf %89, %93 : vector<16x16x8xf32>
    %c21_156 = arith.constant 21 : index
    %c0_157 = arith.constant 0 : index
    %95 = vector.load %arg1[%c21_156, %c0_157] : memref<98x8xf32, #tpu.memory_space<vmem>>, vector<1x8xf32>
    %c70 = arith.constant 70 : index
    %c0_158 = arith.constant 0 : index
    %96 = vector.load %arg1[%c70, %c0_158] : memref<98x8xf32, #tpu.memory_space<vmem>>, vector<1x8xf32>
    %97 = vector.extract_strided_slice %57 {offsets = [3, 0, 0], sizes = [16, 16, 8], strides = [1, 1, 1]} : vector<22x16x8xf32> to vector<16x16x8xf32>
    %98 = vector.shape_cast %95 : vector<1x8xf32> to vector<1x1x8xf32>
    %99 = vector.broadcast %98 : vector<1x1x8xf32> to vector<16x16x8xf32>
    %100 = arith.mulf %99, %97 : vector<16x16x8xf32>
    %101 = arith.addf %94, %100 : vector<16x16x8xf32>
    %102 = vector.extract_strided_slice %58 {offsets = [3, 0, 0], sizes = [16, 16, 8], strides = [1, 1, 1]} : vector<22x16x8xf32> to vector<16x16x8xf32>
    %103 = vector.shape_cast %96 : vector<1x8xf32> to vector<1x1x8xf32>
    %104 = vector.broadcast %103 : vector<1x1x8xf32> to vector<16x16x8xf32>
    %105 = arith.mulf %104, %102 : vector<16x16x8xf32>
    %106 = arith.addf %101, %105 : vector<16x16x8xf32>
    %c28 = arith.constant 28 : index
    %c0_159 = arith.constant 0 : index
    %107 = vector.load %arg1[%c28, %c0_159] : memref<98x8xf32, #tpu.memory_space<vmem>>, vector<1x8xf32>
    %c77 = arith.constant 77 : index
    %c0_160 = arith.constant 0 : index
    %108 = vector.load %arg1[%c77, %c0_160] : memref<98x8xf32, #tpu.memory_space<vmem>>, vector<1x8xf32>
    %109 = vector.extract_strided_slice %57 {offsets = [4, 0, 0], sizes = [16, 16, 8], strides = [1, 1, 1]} : vector<22x16x8xf32> to vector<16x16x8xf32>
    %110 = vector.shape_cast %107 : vector<1x8xf32> to vector<1x1x8xf32>
    %111 = vector.broadcast %110 : vector<1x1x8xf32> to vector<16x16x8xf32>
    %112 = arith.mulf %111, %109 : vector<16x16x8xf32>
    %113 = arith.addf %106, %112 : vector<16x16x8xf32>
    %114 = vector.extract_strided_slice %58 {offsets = [4, 0, 0], sizes = [16, 16, 8], strides = [1, 1, 1]} : vector<22x16x8xf32> to vector<16x16x8xf32>
    %115 = vector.shape_cast %108 : vector<1x8xf32> to vector<1x1x8xf32>
    %116 = vector.broadcast %115 : vector<1x1x8xf32> to vector<16x16x8xf32>
    %117 = arith.mulf %116, %114 : vector<16x16x8xf32>
    %118 = arith.addf %113, %117 : vector<16x16x8xf32>
    %c35 = arith.constant 35 : index
    %c0_161 = arith.constant 0 : index
    %119 = vector.load %arg1[%c35, %c0_161] : memref<98x8xf32, #tpu.memory_space<vmem>>, vector<1x8xf32>
    %c84 = arith.constant 84 : index
    %c0_162 = arith.constant 0 : index
    %120 = vector.load %arg1[%c84, %c0_162] : memref<98x8xf32, #tpu.memory_space<vmem>>, vector<1x8xf32>
    %121 = vector.extract_strided_slice %57 {offsets = [5, 0, 0], sizes = [16, 16, 8], strides = [1, 1, 1]} : vector<22x16x8xf32> to vector<16x16x8xf32>
    %122 = vector.shape_cast %119 : vector<1x8xf32> to vector<1x1x8xf32>
    %123 = vector.broadcast %122 : vector<1x1x8xf32> to vector<16x16x8xf32>
    %124 = arith.mulf %123, %121 : vector<16x16x8xf32>
    %125 = arith.addf %118, %124 : vector<16x16x8xf32>
    %126 = vector.extract_strided_slice %58 {offsets = [5, 0, 0], sizes = [16, 16, 8], strides = [1, 1, 1]} : vector<22x16x8xf32> to vector<16x16x8xf32>
    %127 = vector.shape_cast %120 : vector<1x8xf32> to vector<1x1x8xf32>
    %128 = vector.broadcast %127 : vector<1x1x8xf32> to vector<16x16x8xf32>
    %129 = arith.mulf %128, %126 : vector<16x16x8xf32>
    %130 = arith.addf %125, %129 : vector<16x16x8xf32>
    %c42 = arith.constant 42 : index
    %c0_163 = arith.constant 0 : index
    %131 = vector.load %arg1[%c42, %c0_163] : memref<98x8xf32, #tpu.memory_space<vmem>>, vector<1x8xf32>
    %c91 = arith.constant 91 : index
    %c0_164 = arith.constant 0 : index
    %132 = vector.load %arg1[%c91, %c0_164] : memref<98x8xf32, #tpu.memory_space<vmem>>, vector<1x8xf32>
    %133 = vector.extract_strided_slice %57 {offsets = [6, 0, 0], sizes = [16, 16, 8], strides = [1, 1, 1]} : vector<22x16x8xf32> to vector<16x16x8xf32>
    %134 = vector.shape_cast %131 : vector<1x8xf32> to vector<1x1x8xf32>
    %135 = vector.broadcast %134 : vector<1x1x8xf32> to vector<16x16x8xf32>
    %136 = arith.mulf %135, %133 : vector<16x16x8xf32>
    %137 = arith.addf %130, %136 : vector<16x16x8xf32>
    %138 = vector.extract_strided_slice %58 {offsets = [6, 0, 0], sizes = [16, 16, 8], strides = [1, 1, 1]} : vector<22x16x8xf32> to vector<16x16x8xf32>
    %139 = vector.shape_cast %132 : vector<1x8xf32> to vector<1x1x8xf32>
    %140 = vector.broadcast %139 : vector<1x1x8xf32> to vector<16x16x8xf32>
    %141 = arith.mulf %140, %138 : vector<16x16x8xf32>
    %142 = arith.addf %137, %141 : vector<16x16x8xf32>
    %c0_165 = arith.constant 0 : index
    %c1_166 = arith.constant 1 : index
    %c0_167 = arith.constant 0 : index
    %143 = vector.load %arg6[%c0_165, %c1_166, %c0_167] : memref<22x22x8xf32, #tpu.memory_space<vmem>>, vector<22x16x8xf32>
    %c0_168 = arith.constant 0 : index
    %c1_169 = arith.constant 1 : index
    %c0_170 = arith.constant 0 : index
    %144 = vector.load %arg7[%c0_168, %c1_169, %c0_170] : memref<22x22x8xf32, #tpu.memory_space<vmem>>, vector<22x16x8xf32>
    %c1_171 = arith.constant 1 : index
    %c0_172 = arith.constant 0 : index
    %145 = vector.load %arg1[%c1_171, %c0_172] : memref<98x8xf32, #tpu.memory_space<vmem>>, vector<1x8xf32>
    %c50 = arith.constant 50 : index
    %c0_173 = arith.constant 0 : index
    %146 = vector.load %arg1[%c50, %c0_173] : memref<98x8xf32, #tpu.memory_space<vmem>>, vector<1x8xf32>
    %147 = vector.extract_strided_slice %143 {offsets = [0, 0, 0], sizes = [16, 16, 8], strides = [1, 1, 1]} : vector<22x16x8xf32> to vector<16x16x8xf32>
    %148 = vector.shape_cast %145 : vector<1x8xf32> to vector<1x1x8xf32>
    %149 = vector.broadcast %148 : vector<1x1x8xf32> to vector<16x16x8xf32>
    %150 = arith.mulf %149, %147 : vector<16x16x8xf32>
    %151 = arith.addf %142, %150 : vector<16x16x8xf32>
    %152 = vector.extract_strided_slice %144 {offsets = [0, 0, 0], sizes = [16, 16, 8], strides = [1, 1, 1]} : vector<22x16x8xf32> to vector<16x16x8xf32>
    %153 = vector.shape_cast %146 : vector<1x8xf32> to vector<1x1x8xf32>
    %154 = vector.broadcast %153 : vector<1x1x8xf32> to vector<16x16x8xf32>
    %155 = arith.mulf %154, %152 : vector<16x16x8xf32>
    %156 = arith.addf %151, %155 : vector<16x16x8xf32>
    %c8 = arith.constant 8 : index
    %c0_174 = arith.constant 0 : index
    %157 = vector.load %arg1[%c8, %c0_174] : memref<98x8xf32, #tpu.memory_space<vmem>>, vector<1x8xf32>
    %c57 = arith.constant 57 : index
    %c0_175 = arith.constant 0 : index
    %158 = vector.load %arg1[%c57, %c0_175] : memref<98x8xf32, #tpu.memory_space<vmem>>, vector<1x8xf32>
    %159 = vector.extract_strided_slice %143 {offsets = [1, 0, 0], sizes = [16, 16, 8], strides = [1, 1, 1]} : vector<22x16x8xf32> to vector<16x16x8xf32>
    %160 = vector.shape_cast %157 : vector<1x8xf32> to vector<1x1x8xf32>
    %161 = vector.broadcast %160 : vector<1x1x8xf32> to vector<16x16x8xf32>
    %162 = arith.mulf %161, %159 : vector<16x16x8xf32>
    %163 = arith.addf %156, %162 : vector<16x16x8xf32>
    %164 = vector.extract_strided_slice %144 {offsets = [1, 0, 0], sizes = [16, 16, 8], strides = [1, 1, 1]} : vector<22x16x8xf32> to vector<16x16x8xf32>
    %165 = vector.shape_cast %158 : vector<1x8xf32> to vector<1x1x8xf32>
    %166 = vector.broadcast %165 : vector<1x1x8xf32> to vector<16x16x8xf32>
    %167 = arith.mulf %166, %164 : vector<16x16x8xf32>
    %168 = arith.addf %163, %167 : vector<16x16x8xf32>
    %c15_176 = arith.constant 15 : index
    %c0_177 = arith.constant 0 : index
    %169 = vector.load %arg1[%c15_176, %c0_177] : memref<98x8xf32, #tpu.memory_space<vmem>>, vector<1x8xf32>
    %c64 = arith.constant 64 : index
    %c0_178 = arith.constant 0 : index
    %170 = vector.load %arg1[%c64, %c0_178] : memref<98x8xf32, #tpu.memory_space<vmem>>, vector<1x8xf32>
    %171 = vector.extract_strided_slice %143 {offsets = [2, 0, 0], sizes = [16, 16, 8], strides = [1, 1, 1]} : vector<22x16x8xf32> to vector<16x16x8xf32>
    %172 = vector.shape_cast %169 : vector<1x8xf32> to vector<1x1x8xf32>
    %173 = vector.broadcast %172 : vector<1x1x8xf32> to vector<16x16x8xf32>
    %174 = arith.mulf %173, %171 : vector<16x16x8xf32>
    %175 = arith.addf %168, %174 : vector<16x16x8xf32>
    %176 = vector.extract_strided_slice %144 {offsets = [2, 0, 0], sizes = [16, 16, 8], strides = [1, 1, 1]} : vector<22x16x8xf32> to vector<16x16x8xf32>
    %177 = vector.shape_cast %170 : vector<1x8xf32> to vector<1x1x8xf32>
    %178 = vector.broadcast %177 : vector<1x1x8xf32> to vector<16x16x8xf32>
    %179 = arith.mulf %178, %176 : vector<16x16x8xf32>
    %180 = arith.addf %175, %179 : vector<16x16x8xf32>
    %c22 = arith.constant 22 : index
    %c0_179 = arith.constant 0 : index
    %181 = vector.load %arg1[%c22, %c0_179] : memref<98x8xf32, #tpu.memory_space<vmem>>, vector<1x8xf32>
    %c71 = arith.constant 71 : index
    %c0_180 = arith.constant 0 : index
    %182 = vector.load %arg1[%c71, %c0_180] : memref<98x8xf32, #tpu.memory_space<vmem>>, vector<1x8xf32>
    %183 = vector.extract_strided_slice %143 {offsets = [3, 0, 0], sizes = [16, 16, 8], strides = [1, 1, 1]} : vector<22x16x8xf32> to vector<16x16x8xf32>
    %184 = vector.shape_cast %181 : vector<1x8xf32> to vector<1x1x8xf32>
    %185 = vector.broadcast %184 : vector<1x1x8xf32> to vector<16x16x8xf32>
    %186 = arith.mulf %185, %183 : vector<16x16x8xf32>
    %187 = arith.addf %180, %186 : vector<16x16x8xf32>
    %188 = vector.extract_strided_slice %144 {offsets = [3, 0, 0], sizes = [16, 16, 8], strides = [1, 1, 1]} : vector<22x16x8xf32> to vector<16x16x8xf32>
    %189 = vector.shape_cast %182 : vector<1x8xf32> to vector<1x1x8xf32>
    %190 = vector.broadcast %189 : vector<1x1x8xf32> to vector<16x16x8xf32>
    %191 = arith.mulf %190, %188 : vector<16x16x8xf32>
    %192 = arith.addf %187, %191 : vector<16x16x8xf32>
    %c29 = arith.constant 29 : index
    %c0_181 = arith.constant 0 : index
    %193 = vector.load %arg1[%c29, %c0_181] : memref<98x8xf32, #tpu.memory_space<vmem>>, vector<1x8xf32>
    %c78 = arith.constant 78 : index
    %c0_182 = arith.constant 0 : index
    %194 = vector.load %arg1[%c78, %c0_182] : memref<98x8xf32, #tpu.memory_space<vmem>>, vector<1x8xf32>
    %195 = vector.extract_strided_slice %143 {offsets = [4, 0, 0], sizes = [16, 16, 8], strides = [1, 1, 1]} : vector<22x16x8xf32> to vector<16x16x8xf32>
    %196 = vector.shape_cast %193 : vector<1x8xf32> to vector<1x1x8xf32>
    %197 = vector.broadcast %196 : vector<1x1x8xf32> to vector<16x16x8xf32>
    %198 = arith.mulf %197, %195 : vector<16x16x8xf32>
    %199 = arith.addf %192, %198 : vector<16x16x8xf32>
    %200 = vector.extract_strided_slice %144 {offsets = [4, 0, 0], sizes = [16, 16, 8], strides = [1, 1, 1]} : vector<22x16x8xf32> to vector<16x16x8xf32>
    %201 = vector.shape_cast %194 : vector<1x8xf32> to vector<1x1x8xf32>
    %202 = vector.broadcast %201 : vector<1x1x8xf32> to vector<16x16x8xf32>
    %203 = arith.mulf %202, %200 : vector<16x16x8xf32>
    %204 = arith.addf %199, %203 : vector<16x16x8xf32>
    %c36 = arith.constant 36 : index
    %c0_183 = arith.constant 0 : index
    %205 = vector.load %arg1[%c36, %c0_183] : memref<98x8xf32, #tpu.memory_space<vmem>>, vector<1x8xf32>
    %c85 = arith.constant 85 : index
    %c0_184 = arith.constant 0 : index
    %206 = vector.load %arg1[%c85, %c0_184] : memref<98x8xf32, #tpu.memory_space<vmem>>, vector<1x8xf32>
    %207 = vector.extract_strided_slice %143 {offsets = [5, 0, 0], sizes = [16, 16, 8], strides = [1, 1, 1]} : vector<22x16x8xf32> to vector<16x16x8xf32>
    %208 = vector.shape_cast %205 : vector<1x8xf32> to vector<1x1x8xf32>
    %209 = vector.broadcast %208 : vector<1x1x8xf32> to vector<16x16x8xf32>
    %210 = arith.mulf %209, %207 : vector<16x16x8xf32>
    %211 = arith.addf %204, %210 : vector<16x16x8xf32>
    %212 = vector.extract_strided_slice %144 {offsets = [5, 0, 0], sizes = [16, 16, 8], strides = [1, 1, 1]} : vector<22x16x8xf32> to vector<16x16x8xf32>
    %213 = vector.shape_cast %206 : vector<1x8xf32> to vector<1x1x8xf32>
    %214 = vector.broadcast %213 : vector<1x1x8xf32> to vector<16x16x8xf32>
    %215 = arith.mulf %214, %212 : vector<16x16x8xf32>
    %216 = arith.addf %211, %215 : vector<16x16x8xf32>
    %c43 = arith.constant 43 : index
    %c0_185 = arith.constant 0 : index
    %217 = vector.load %arg1[%c43, %c0_185] : memref<98x8xf32, #tpu.memory_space<vmem>>, vector<1x8xf32>
    %c92 = arith.constant 92 : index
    %c0_186 = arith.constant 0 : index
    %218 = vector.load %arg1[%c92, %c0_186] : memref<98x8xf32, #tpu.memory_space<vmem>>, vector<1x8xf32>
    %219 = vector.extract_strided_slice %143 {offsets = [6, 0, 0], sizes = [16, 16, 8], strides = [1, 1, 1]} : vector<22x16x8xf32> to vector<16x16x8xf32>
    %220 = vector.shape_cast %217 : vector<1x8xf32> to vector<1x1x8xf32>
    %221 = vector.broadcast %220 : vector<1x1x8xf32> to vector<16x16x8xf32>
    %222 = arith.mulf %221, %219 : vector<16x16x8xf32>
    %223 = arith.addf %216, %222 : vector<16x16x8xf32>
    %224 = vector.extract_strided_slice %144 {offsets = [6, 0, 0], sizes = [16, 16, 8], strides = [1, 1, 1]} : vector<22x16x8xf32> to vector<16x16x8xf32>
    %225 = vector.shape_cast %218 : vector<1x8xf32> to vector<1x1x8xf32>
    %226 = vector.broadcast %225 : vector<1x1x8xf32> to vector<16x16x8xf32>
    %227 = arith.mulf %226, %224 : vector<16x16x8xf32>
    %228 = arith.addf %223, %227 : vector<16x16x8xf32>
    %c0_187 = arith.constant 0 : index
    %c2_188 = arith.constant 2 : index
    %c0_189 = arith.constant 0 : index
    %229 = vector.load %arg6[%c0_187, %c2_188, %c0_189] : memref<22x22x8xf32, #tpu.memory_space<vmem>>, vector<22x16x8xf32>
    %c0_190 = arith.constant 0 : index
    %c2_191 = arith.constant 2 : index
    %c0_192 = arith.constant 0 : index
    %230 = vector.load %arg7[%c0_190, %c2_191, %c0_192] : memref<22x22x8xf32, #tpu.memory_space<vmem>>, vector<22x16x8xf32>
    %c2_193 = arith.constant 2 : index
    %c0_194 = arith.constant 0 : index
    %231 = vector.load %arg1[%c2_193, %c0_194] : memref<98x8xf32, #tpu.memory_space<vmem>>, vector<1x8xf32>
    %c51 = arith.constant 51 : index
    %c0_195 = arith.constant 0 : index
    %232 = vector.load %arg1[%c51, %c0_195] : memref<98x8xf32, #tpu.memory_space<vmem>>, vector<1x8xf32>
    %233 = vector.extract_strided_slice %229 {offsets = [0, 0, 0], sizes = [16, 16, 8], strides = [1, 1, 1]} : vector<22x16x8xf32> to vector<16x16x8xf32>
    %234 = vector.shape_cast %231 : vector<1x8xf32> to vector<1x1x8xf32>
    %235 = vector.broadcast %234 : vector<1x1x8xf32> to vector<16x16x8xf32>
    %236 = arith.mulf %235, %233 : vector<16x16x8xf32>
    %237 = arith.addf %228, %236 : vector<16x16x8xf32>
    %238 = vector.extract_strided_slice %230 {offsets = [0, 0, 0], sizes = [16, 16, 8], strides = [1, 1, 1]} : vector<22x16x8xf32> to vector<16x16x8xf32>
    %239 = vector.shape_cast %232 : vector<1x8xf32> to vector<1x1x8xf32>
    %240 = vector.broadcast %239 : vector<1x1x8xf32> to vector<16x16x8xf32>
    %241 = arith.mulf %240, %238 : vector<16x16x8xf32>
    %242 = arith.addf %237, %241 : vector<16x16x8xf32>
    %c9 = arith.constant 9 : index
    %c0_196 = arith.constant 0 : index
    %243 = vector.load %arg1[%c9, %c0_196] : memref<98x8xf32, #tpu.memory_space<vmem>>, vector<1x8xf32>
    %c58 = arith.constant 58 : index
    %c0_197 = arith.constant 0 : index
    %244 = vector.load %arg1[%c58, %c0_197] : memref<98x8xf32, #tpu.memory_space<vmem>>, vector<1x8xf32>
    %245 = vector.extract_strided_slice %229 {offsets = [1, 0, 0], sizes = [16, 16, 8], strides = [1, 1, 1]} : vector<22x16x8xf32> to vector<16x16x8xf32>
    %246 = vector.shape_cast %243 : vector<1x8xf32> to vector<1x1x8xf32>
    %247 = vector.broadcast %246 : vector<1x1x8xf32> to vector<16x16x8xf32>
    %248 = arith.mulf %247, %245 : vector<16x16x8xf32>
    %249 = arith.addf %242, %248 : vector<16x16x8xf32>
    %250 = vector.extract_strided_slice %230 {offsets = [1, 0, 0], sizes = [16, 16, 8], strides = [1, 1, 1]} : vector<22x16x8xf32> to vector<16x16x8xf32>
    %251 = vector.shape_cast %244 : vector<1x8xf32> to vector<1x1x8xf32>
    %252 = vector.broadcast %251 : vector<1x1x8xf32> to vector<16x16x8xf32>
    %253 = arith.mulf %252, %250 : vector<16x16x8xf32>
    %254 = arith.addf %249, %253 : vector<16x16x8xf32>
    %c16_198 = arith.constant 16 : index
    %c0_199 = arith.constant 0 : index
    %255 = vector.load %arg1[%c16_198, %c0_199] : memref<98x8xf32, #tpu.memory_space<vmem>>, vector<1x8xf32>
    %c65 = arith.constant 65 : index
    %c0_200 = arith.constant 0 : index
    %256 = vector.load %arg1[%c65, %c0_200] : memref<98x8xf32, #tpu.memory_space<vmem>>, vector<1x8xf32>
    %257 = vector.extract_strided_slice %229 {offsets = [2, 0, 0], sizes = [16, 16, 8], strides = [1, 1, 1]} : vector<22x16x8xf32> to vector<16x16x8xf32>
    %258 = vector.shape_cast %255 : vector<1x8xf32> to vector<1x1x8xf32>
    %259 = vector.broadcast %258 : vector<1x1x8xf32> to vector<16x16x8xf32>
    %260 = arith.mulf %259, %257 : vector<16x16x8xf32>
    %261 = arith.addf %254, %260 : vector<16x16x8xf32>
    %262 = vector.extract_strided_slice %230 {offsets = [2, 0, 0], sizes = [16, 16, 8], strides = [1, 1, 1]} : vector<22x16x8xf32> to vector<16x16x8xf32>
    %263 = vector.shape_cast %256 : vector<1x8xf32> to vector<1x1x8xf32>
    %264 = vector.broadcast %263 : vector<1x1x8xf32> to vector<16x16x8xf32>
    %265 = arith.mulf %264, %262 : vector<16x16x8xf32>
    %266 = arith.addf %261, %265 : vector<16x16x8xf32>
    %c23 = arith.constant 23 : index
    %c0_201 = arith.constant 0 : index
    %267 = vector.load %arg1[%c23, %c0_201] : memref<98x8xf32, #tpu.memory_space<vmem>>, vector<1x8xf32>
    %c72 = arith.constant 72 : index
    %c0_202 = arith.constant 0 : index
    %268 = vector.load %arg1[%c72, %c0_202] : memref<98x8xf32, #tpu.memory_space<vmem>>, vector<1x8xf32>
    %269 = vector.extract_strided_slice %229 {offsets = [3, 0, 0], sizes = [16, 16, 8], strides = [1, 1, 1]} : vector<22x16x8xf32> to vector<16x16x8xf32>
    %270 = vector.shape_cast %267 : vector<1x8xf32> to vector<1x1x8xf32>
    %271 = vector.broadcast %270 : vector<1x1x8xf32> to vector<16x16x8xf32>
    %272 = arith.mulf %271, %269 : vector<16x16x8xf32>
    %273 = arith.addf %266, %272 : vector<16x16x8xf32>
    %274 = vector.extract_strided_slice %230 {offsets = [3, 0, 0], sizes = [16, 16, 8], strides = [1, 1, 1]} : vector<22x16x8xf32> to vector<16x16x8xf32>
    %275 = vector.shape_cast %268 : vector<1x8xf32> to vector<1x1x8xf32>
    %276 = vector.broadcast %275 : vector<1x1x8xf32> to vector<16x16x8xf32>
    %277 = arith.mulf %276, %274 : vector<16x16x8xf32>
    %278 = arith.addf %273, %277 : vector<16x16x8xf32>
    %c30 = arith.constant 30 : index
    %c0_203 = arith.constant 0 : index
    %279 = vector.load %arg1[%c30, %c0_203] : memref<98x8xf32, #tpu.memory_space<vmem>>, vector<1x8xf32>
    %c79 = arith.constant 79 : index
    %c0_204 = arith.constant 0 : index
    %280 = vector.load %arg1[%c79, %c0_204] : memref<98x8xf32, #tpu.memory_space<vmem>>, vector<1x8xf32>
    %281 = vector.extract_strided_slice %229 {offsets = [4, 0, 0], sizes = [16, 16, 8], strides = [1, 1, 1]} : vector<22x16x8xf32> to vector<16x16x8xf32>
    %282 = vector.shape_cast %279 : vector<1x8xf32> to vector<1x1x8xf32>
    %283 = vector.broadcast %282 : vector<1x1x8xf32> to vector<16x16x8xf32>
    %284 = arith.mulf %283, %281 : vector<16x16x8xf32>
    %285 = arith.addf %278, %284 : vector<16x16x8xf32>
    %286 = vector.extract_strided_slice %230 {offsets = [4, 0, 0], sizes = [16, 16, 8], strides = [1, 1, 1]} : vector<22x16x8xf32> to vector<16x16x8xf32>
    %287 = vector.shape_cast %280 : vector<1x8xf32> to vector<1x1x8xf32>
    %288 = vector.broadcast %287 : vector<1x1x8xf32> to vector<16x16x8xf32>
    %289 = arith.mulf %288, %286 : vector<16x16x8xf32>
    %290 = arith.addf %285, %289 : vector<16x16x8xf32>
    %c37 = arith.constant 37 : index
    %c0_205 = arith.constant 0 : index
    %291 = vector.load %arg1[%c37, %c0_205] : memref<98x8xf32, #tpu.memory_space<vmem>>, vector<1x8xf32>
    %c86 = arith.constant 86 : index
    %c0_206 = arith.constant 0 : index
    %292 = vector.load %arg1[%c86, %c0_206] : memref<98x8xf32, #tpu.memory_space<vmem>>, vector<1x8xf32>
    %293 = vector.extract_strided_slice %229 {offsets = [5, 0, 0], sizes = [16, 16, 8], strides = [1, 1, 1]} : vector<22x16x8xf32> to vector<16x16x8xf32>
    %294 = vector.shape_cast %291 : vector<1x8xf32> to vector<1x1x8xf32>
    %295 = vector.broadcast %294 : vector<1x1x8xf32> to vector<16x16x8xf32>
    %296 = arith.mulf %295, %293 : vector<16x16x8xf32>
    %297 = arith.addf %290, %296 : vector<16x16x8xf32>
    %298 = vector.extract_strided_slice %230 {offsets = [5, 0, 0], sizes = [16, 16, 8], strides = [1, 1, 1]} : vector<22x16x8xf32> to vector<16x16x8xf32>
    %299 = vector.shape_cast %292 : vector<1x8xf32> to vector<1x1x8xf32>
    %300 = vector.broadcast %299 : vector<1x1x8xf32> to vector<16x16x8xf32>
    %301 = arith.mulf %300, %298 : vector<16x16x8xf32>
    %302 = arith.addf %297, %301 : vector<16x16x8xf32>
    %c44 = arith.constant 44 : index
    %c0_207 = arith.constant 0 : index
    %303 = vector.load %arg1[%c44, %c0_207] : memref<98x8xf32, #tpu.memory_space<vmem>>, vector<1x8xf32>
    %c93 = arith.constant 93 : index
    %c0_208 = arith.constant 0 : index
    %304 = vector.load %arg1[%c93, %c0_208] : memref<98x8xf32, #tpu.memory_space<vmem>>, vector<1x8xf32>
    %305 = vector.extract_strided_slice %229 {offsets = [6, 0, 0], sizes = [16, 16, 8], strides = [1, 1, 1]} : vector<22x16x8xf32> to vector<16x16x8xf32>
    %306 = vector.shape_cast %303 : vector<1x8xf32> to vector<1x1x8xf32>
    %307 = vector.broadcast %306 : vector<1x1x8xf32> to vector<16x16x8xf32>
    %308 = arith.mulf %307, %305 : vector<16x16x8xf32>
    %309 = arith.addf %302, %308 : vector<16x16x8xf32>
    %310 = vector.extract_strided_slice %230 {offsets = [6, 0, 0], sizes = [16, 16, 8], strides = [1, 1, 1]} : vector<22x16x8xf32> to vector<16x16x8xf32>
    %311 = vector.shape_cast %304 : vector<1x8xf32> to vector<1x1x8xf32>
    %312 = vector.broadcast %311 : vector<1x1x8xf32> to vector<16x16x8xf32>
    %313 = arith.mulf %312, %310 : vector<16x16x8xf32>
    %314 = arith.addf %309, %313 : vector<16x16x8xf32>
    %c0_209 = arith.constant 0 : index
    %c3_210 = arith.constant 3 : index
    %c0_211 = arith.constant 0 : index
    %315 = vector.load %arg6[%c0_209, %c3_210, %c0_211] : memref<22x22x8xf32, #tpu.memory_space<vmem>>, vector<22x16x8xf32>
    %c0_212 = arith.constant 0 : index
    %c3_213 = arith.constant 3 : index
    %c0_214 = arith.constant 0 : index
    %316 = vector.load %arg7[%c0_212, %c3_213, %c0_214] : memref<22x22x8xf32, #tpu.memory_space<vmem>>, vector<22x16x8xf32>
    %c3_215 = arith.constant 3 : index
    %c0_216 = arith.constant 0 : index
    %317 = vector.load %arg1[%c3_215, %c0_216] : memref<98x8xf32, #tpu.memory_space<vmem>>, vector<1x8xf32>
    %c52 = arith.constant 52 : index
    %c0_217 = arith.constant 0 : index
    %318 = vector.load %arg1[%c52, %c0_217] : memref<98x8xf32, #tpu.memory_space<vmem>>, vector<1x8xf32>
    %319 = vector.extract_strided_slice %315 {offsets = [0, 0, 0], sizes = [16, 16, 8], strides = [1, 1, 1]} : vector<22x16x8xf32> to vector<16x16x8xf32>
    %320 = vector.shape_cast %317 : vector<1x8xf32> to vector<1x1x8xf32>
    %321 = vector.broadcast %320 : vector<1x1x8xf32> to vector<16x16x8xf32>
    %322 = arith.mulf %321, %319 : vector<16x16x8xf32>
    %323 = arith.addf %314, %322 : vector<16x16x8xf32>
    %324 = vector.extract_strided_slice %316 {offsets = [0, 0, 0], sizes = [16, 16, 8], strides = [1, 1, 1]} : vector<22x16x8xf32> to vector<16x16x8xf32>
    %325 = vector.shape_cast %318 : vector<1x8xf32> to vector<1x1x8xf32>
    %326 = vector.broadcast %325 : vector<1x1x8xf32> to vector<16x16x8xf32>
    %327 = arith.mulf %326, %324 : vector<16x16x8xf32>
    %328 = arith.addf %323, %327 : vector<16x16x8xf32>
    %c10 = arith.constant 10 : index
    %c0_218 = arith.constant 0 : index
    %329 = vector.load %arg1[%c10, %c0_218] : memref<98x8xf32, #tpu.memory_space<vmem>>, vector<1x8xf32>
    %c59 = arith.constant 59 : index
    %c0_219 = arith.constant 0 : index
    %330 = vector.load %arg1[%c59, %c0_219] : memref<98x8xf32, #tpu.memory_space<vmem>>, vector<1x8xf32>
    %331 = vector.extract_strided_slice %315 {offsets = [1, 0, 0], sizes = [16, 16, 8], strides = [1, 1, 1]} : vector<22x16x8xf32> to vector<16x16x8xf32>
    %332 = vector.shape_cast %329 : vector<1x8xf32> to vector<1x1x8xf32>
    %333 = vector.broadcast %332 : vector<1x1x8xf32> to vector<16x16x8xf32>
    %334 = arith.mulf %333, %331 : vector<16x16x8xf32>
    %335 = arith.addf %328, %334 : vector<16x16x8xf32>
    %336 = vector.extract_strided_slice %316 {offsets = [1, 0, 0], sizes = [16, 16, 8], strides = [1, 1, 1]} : vector<22x16x8xf32> to vector<16x16x8xf32>
    %337 = vector.shape_cast %330 : vector<1x8xf32> to vector<1x1x8xf32>
    %338 = vector.broadcast %337 : vector<1x1x8xf32> to vector<16x16x8xf32>
    %339 = arith.mulf %338, %336 : vector<16x16x8xf32>
    %340 = arith.addf %335, %339 : vector<16x16x8xf32>
    %c17_220 = arith.constant 17 : index
    %c0_221 = arith.constant 0 : index
    %341 = vector.load %arg1[%c17_220, %c0_221] : memref<98x8xf32, #tpu.memory_space<vmem>>, vector<1x8xf32>
    %c66 = arith.constant 66 : index
    %c0_222 = arith.constant 0 : index
    %342 = vector.load %arg1[%c66, %c0_222] : memref<98x8xf32, #tpu.memory_space<vmem>>, vector<1x8xf32>
    %343 = vector.extract_strided_slice %315 {offsets = [2, 0, 0], sizes = [16, 16, 8], strides = [1, 1, 1]} : vector<22x16x8xf32> to vector<16x16x8xf32>
    %344 = vector.shape_cast %341 : vector<1x8xf32> to vector<1x1x8xf32>
    %345 = vector.broadcast %344 : vector<1x1x8xf32> to vector<16x16x8xf32>
    %346 = arith.mulf %345, %343 : vector<16x16x8xf32>
    %347 = arith.addf %340, %346 : vector<16x16x8xf32>
    %348 = vector.extract_strided_slice %316 {offsets = [2, 0, 0], sizes = [16, 16, 8], strides = [1, 1, 1]} : vector<22x16x8xf32> to vector<16x16x8xf32>
    %349 = vector.shape_cast %342 : vector<1x8xf32> to vector<1x1x8xf32>
    %350 = vector.broadcast %349 : vector<1x1x8xf32> to vector<16x16x8xf32>
    %351 = arith.mulf %350, %348 : vector<16x16x8xf32>
    %352 = arith.addf %347, %351 : vector<16x16x8xf32>
    %c24 = arith.constant 24 : index
    %c0_223 = arith.constant 0 : index
    %353 = vector.load %arg1[%c24, %c0_223] : memref<98x8xf32, #tpu.memory_space<vmem>>, vector<1x8xf32>
    %c73 = arith.constant 73 : index
    %c0_224 = arith.constant 0 : index
    %354 = vector.load %arg1[%c73, %c0_224] : memref<98x8xf32, #tpu.memory_space<vmem>>, vector<1x8xf32>
    %355 = vector.extract_strided_slice %315 {offsets = [3, 0, 0], sizes = [16, 16, 8], strides = [1, 1, 1]} : vector<22x16x8xf32> to vector<16x16x8xf32>
    %356 = vector.shape_cast %353 : vector<1x8xf32> to vector<1x1x8xf32>
    %357 = vector.broadcast %356 : vector<1x1x8xf32> to vector<16x16x8xf32>
    %358 = arith.mulf %357, %355 : vector<16x16x8xf32>
    %359 = arith.addf %352, %358 : vector<16x16x8xf32>
    %360 = vector.extract_strided_slice %316 {offsets = [3, 0, 0], sizes = [16, 16, 8], strides = [1, 1, 1]} : vector<22x16x8xf32> to vector<16x16x8xf32>
    %361 = vector.shape_cast %354 : vector<1x8xf32> to vector<1x1x8xf32>
    %362 = vector.broadcast %361 : vector<1x1x8xf32> to vector<16x16x8xf32>
    %363 = arith.mulf %362, %360 : vector<16x16x8xf32>
    %364 = arith.addf %359, %363 : vector<16x16x8xf32>
    %c31 = arith.constant 31 : index
    %c0_225 = arith.constant 0 : index
    %365 = vector.load %arg1[%c31, %c0_225] : memref<98x8xf32, #tpu.memory_space<vmem>>, vector<1x8xf32>
    %c80 = arith.constant 80 : index
    %c0_226 = arith.constant 0 : index
    %366 = vector.load %arg1[%c80, %c0_226] : memref<98x8xf32, #tpu.memory_space<vmem>>, vector<1x8xf32>
    %367 = vector.extract_strided_slice %315 {offsets = [4, 0, 0], sizes = [16, 16, 8], strides = [1, 1, 1]} : vector<22x16x8xf32> to vector<16x16x8xf32>
    %368 = vector.shape_cast %365 : vector<1x8xf32> to vector<1x1x8xf32>
    %369 = vector.broadcast %368 : vector<1x1x8xf32> to vector<16x16x8xf32>
    %370 = arith.mulf %369, %367 : vector<16x16x8xf32>
    %371 = arith.addf %364, %370 : vector<16x16x8xf32>
    %372 = vector.extract_strided_slice %316 {offsets = [4, 0, 0], sizes = [16, 16, 8], strides = [1, 1, 1]} : vector<22x16x8xf32> to vector<16x16x8xf32>
    %373 = vector.shape_cast %366 : vector<1x8xf32> to vector<1x1x8xf32>
    %374 = vector.broadcast %373 : vector<1x1x8xf32> to vector<16x16x8xf32>
    %375 = arith.mulf %374, %372 : vector<16x16x8xf32>
    %376 = arith.addf %371, %375 : vector<16x16x8xf32>
    %c38 = arith.constant 38 : index
    %c0_227 = arith.constant 0 : index
    %377 = vector.load %arg1[%c38, %c0_227] : memref<98x8xf32, #tpu.memory_space<vmem>>, vector<1x8xf32>
    %c87 = arith.constant 87 : index
    %c0_228 = arith.constant 0 : index
    %378 = vector.load %arg1[%c87, %c0_228] : memref<98x8xf32, #tpu.memory_space<vmem>>, vector<1x8xf32>
    %379 = vector.extract_strided_slice %315 {offsets = [5, 0, 0], sizes = [16, 16, 8], strides = [1, 1, 1]} : vector<22x16x8xf32> to vector<16x16x8xf32>
    %380 = vector.shape_cast %377 : vector<1x8xf32> to vector<1x1x8xf32>
    %381 = vector.broadcast %380 : vector<1x1x8xf32> to vector<16x16x8xf32>
    %382 = arith.mulf %381, %379 : vector<16x16x8xf32>
    %383 = arith.addf %376, %382 : vector<16x16x8xf32>
    %384 = vector.extract_strided_slice %316 {offsets = [5, 0, 0], sizes = [16, 16, 8], strides = [1, 1, 1]} : vector<22x16x8xf32> to vector<16x16x8xf32>
    %385 = vector.shape_cast %378 : vector<1x8xf32> to vector<1x1x8xf32>
    %386 = vector.broadcast %385 : vector<1x1x8xf32> to vector<16x16x8xf32>
    %387 = arith.mulf %386, %384 : vector<16x16x8xf32>
    %388 = arith.addf %383, %387 : vector<16x16x8xf32>
    %c45 = arith.constant 45 : index
    %c0_229 = arith.constant 0 : index
    %389 = vector.load %arg1[%c45, %c0_229] : memref<98x8xf32, #tpu.memory_space<vmem>>, vector<1x8xf32>
    %c94 = arith.constant 94 : index
    %c0_230 = arith.constant 0 : index
    %390 = vector.load %arg1[%c94, %c0_230] : memref<98x8xf32, #tpu.memory_space<vmem>>, vector<1x8xf32>
    %391 = vector.extract_strided_slice %315 {offsets = [6, 0, 0], sizes = [16, 16, 8], strides = [1, 1, 1]} : vector<22x16x8xf32> to vector<16x16x8xf32>
    %392 = vector.shape_cast %389 : vector<1x8xf32> to vector<1x1x8xf32>
    %393 = vector.broadcast %392 : vector<1x1x8xf32> to vector<16x16x8xf32>
    %394 = arith.mulf %393, %391 : vector<16x16x8xf32>
    %395 = arith.addf %388, %394 : vector<16x16x8xf32>
    %396 = vector.extract_strided_slice %316 {offsets = [6, 0, 0], sizes = [16, 16, 8], strides = [1, 1, 1]} : vector<22x16x8xf32> to vector<16x16x8xf32>
    %397 = vector.shape_cast %390 : vector<1x8xf32> to vector<1x1x8xf32>
    %398 = vector.broadcast %397 : vector<1x1x8xf32> to vector<16x16x8xf32>
    %399 = arith.mulf %398, %396 : vector<16x16x8xf32>
    %400 = arith.addf %395, %399 : vector<16x16x8xf32>
    %c0_231 = arith.constant 0 : index
    %c4_232 = arith.constant 4 : index
    %c0_233 = arith.constant 0 : index
    %401 = vector.load %arg6[%c0_231, %c4_232, %c0_233] : memref<22x22x8xf32, #tpu.memory_space<vmem>>, vector<22x16x8xf32>
    %c0_234 = arith.constant 0 : index
    %c4_235 = arith.constant 4 : index
    %c0_236 = arith.constant 0 : index
    %402 = vector.load %arg7[%c0_234, %c4_235, %c0_236] : memref<22x22x8xf32, #tpu.memory_space<vmem>>, vector<22x16x8xf32>
    %c4_237 = arith.constant 4 : index
    %c0_238 = arith.constant 0 : index
    %403 = vector.load %arg1[%c4_237, %c0_238] : memref<98x8xf32, #tpu.memory_space<vmem>>, vector<1x8xf32>
    %c53 = arith.constant 53 : index
    %c0_239 = arith.constant 0 : index
    %404 = vector.load %arg1[%c53, %c0_239] : memref<98x8xf32, #tpu.memory_space<vmem>>, vector<1x8xf32>
    %405 = vector.extract_strided_slice %401 {offsets = [0, 0, 0], sizes = [16, 16, 8], strides = [1, 1, 1]} : vector<22x16x8xf32> to vector<16x16x8xf32>
    %406 = vector.shape_cast %403 : vector<1x8xf32> to vector<1x1x8xf32>
    %407 = vector.broadcast %406 : vector<1x1x8xf32> to vector<16x16x8xf32>
    %408 = arith.mulf %407, %405 : vector<16x16x8xf32>
    %409 = arith.addf %400, %408 : vector<16x16x8xf32>
    %410 = vector.extract_strided_slice %402 {offsets = [0, 0, 0], sizes = [16, 16, 8], strides = [1, 1, 1]} : vector<22x16x8xf32> to vector<16x16x8xf32>
    %411 = vector.shape_cast %404 : vector<1x8xf32> to vector<1x1x8xf32>
    %412 = vector.broadcast %411 : vector<1x1x8xf32> to vector<16x16x8xf32>
    %413 = arith.mulf %412, %410 : vector<16x16x8xf32>
    %414 = arith.addf %409, %413 : vector<16x16x8xf32>
    %c11 = arith.constant 11 : index
    %c0_240 = arith.constant 0 : index
    %415 = vector.load %arg1[%c11, %c0_240] : memref<98x8xf32, #tpu.memory_space<vmem>>, vector<1x8xf32>
    %c60 = arith.constant 60 : index
    %c0_241 = arith.constant 0 : index
    %416 = vector.load %arg1[%c60, %c0_241] : memref<98x8xf32, #tpu.memory_space<vmem>>, vector<1x8xf32>
    %417 = vector.extract_strided_slice %401 {offsets = [1, 0, 0], sizes = [16, 16, 8], strides = [1, 1, 1]} : vector<22x16x8xf32> to vector<16x16x8xf32>
    %418 = vector.shape_cast %415 : vector<1x8xf32> to vector<1x1x8xf32>
    %419 = vector.broadcast %418 : vector<1x1x8xf32> to vector<16x16x8xf32>
    %420 = arith.mulf %419, %417 : vector<16x16x8xf32>
    %421 = arith.addf %414, %420 : vector<16x16x8xf32>
    %422 = vector.extract_strided_slice %402 {offsets = [1, 0, 0], sizes = [16, 16, 8], strides = [1, 1, 1]} : vector<22x16x8xf32> to vector<16x16x8xf32>
    %423 = vector.shape_cast %416 : vector<1x8xf32> to vector<1x1x8xf32>
    %424 = vector.broadcast %423 : vector<1x1x8xf32> to vector<16x16x8xf32>
    %425 = arith.mulf %424, %422 : vector<16x16x8xf32>
    %426 = arith.addf %421, %425 : vector<16x16x8xf32>
    %c18 = arith.constant 18 : index
    %c0_242 = arith.constant 0 : index
    %427 = vector.load %arg1[%c18, %c0_242] : memref<98x8xf32, #tpu.memory_space<vmem>>, vector<1x8xf32>
    %c67 = arith.constant 67 : index
    %c0_243 = arith.constant 0 : index
    %428 = vector.load %arg1[%c67, %c0_243] : memref<98x8xf32, #tpu.memory_space<vmem>>, vector<1x8xf32>
    %429 = vector.extract_strided_slice %401 {offsets = [2, 0, 0], sizes = [16, 16, 8], strides = [1, 1, 1]} : vector<22x16x8xf32> to vector<16x16x8xf32>
    %430 = vector.shape_cast %427 : vector<1x8xf32> to vector<1x1x8xf32>
    %431 = vector.broadcast %430 : vector<1x1x8xf32> to vector<16x16x8xf32>
    %432 = arith.mulf %431, %429 : vector<16x16x8xf32>
    %433 = arith.addf %426, %432 : vector<16x16x8xf32>
    %434 = vector.extract_strided_slice %402 {offsets = [2, 0, 0], sizes = [16, 16, 8], strides = [1, 1, 1]} : vector<22x16x8xf32> to vector<16x16x8xf32>
    %435 = vector.shape_cast %428 : vector<1x8xf32> to vector<1x1x8xf32>
    %436 = vector.broadcast %435 : vector<1x1x8xf32> to vector<16x16x8xf32>
    %437 = arith.mulf %436, %434 : vector<16x16x8xf32>
    %438 = arith.addf %433, %437 : vector<16x16x8xf32>
    %c25 = arith.constant 25 : index
    %c0_244 = arith.constant 0 : index
    %439 = vector.load %arg1[%c25, %c0_244] : memref<98x8xf32, #tpu.memory_space<vmem>>, vector<1x8xf32>
    %c74 = arith.constant 74 : index
    %c0_245 = arith.constant 0 : index
    %440 = vector.load %arg1[%c74, %c0_245] : memref<98x8xf32, #tpu.memory_space<vmem>>, vector<1x8xf32>
    %441 = vector.extract_strided_slice %401 {offsets = [3, 0, 0], sizes = [16, 16, 8], strides = [1, 1, 1]} : vector<22x16x8xf32> to vector<16x16x8xf32>
    %442 = vector.shape_cast %439 : vector<1x8xf32> to vector<1x1x8xf32>
    %443 = vector.broadcast %442 : vector<1x1x8xf32> to vector<16x16x8xf32>
    %444 = arith.mulf %443, %441 : vector<16x16x8xf32>
    %445 = arith.addf %438, %444 : vector<16x16x8xf32>
    %446 = vector.extract_strided_slice %402 {offsets = [3, 0, 0], sizes = [16, 16, 8], strides = [1, 1, 1]} : vector<22x16x8xf32> to vector<16x16x8xf32>
    %447 = vector.shape_cast %440 : vector<1x8xf32> to vector<1x1x8xf32>
    %448 = vector.broadcast %447 : vector<1x1x8xf32> to vector<16x16x8xf32>
    %449 = arith.mulf %448, %446 : vector<16x16x8xf32>
    %450 = arith.addf %445, %449 : vector<16x16x8xf32>
    %c32 = arith.constant 32 : index
    %c0_246 = arith.constant 0 : index
    %451 = vector.load %arg1[%c32, %c0_246] : memref<98x8xf32, #tpu.memory_space<vmem>>, vector<1x8xf32>
    %c81 = arith.constant 81 : index
    %c0_247 = arith.constant 0 : index
    %452 = vector.load %arg1[%c81, %c0_247] : memref<98x8xf32, #tpu.memory_space<vmem>>, vector<1x8xf32>
    %453 = vector.extract_strided_slice %401 {offsets = [4, 0, 0], sizes = [16, 16, 8], strides = [1, 1, 1]} : vector<22x16x8xf32> to vector<16x16x8xf32>
    %454 = vector.shape_cast %451 : vector<1x8xf32> to vector<1x1x8xf32>
    %455 = vector.broadcast %454 : vector<1x1x8xf32> to vector<16x16x8xf32>
    %456 = arith.mulf %455, %453 : vector<16x16x8xf32>
    %457 = arith.addf %450, %456 : vector<16x16x8xf32>
    %458 = vector.extract_strided_slice %402 {offsets = [4, 0, 0], sizes = [16, 16, 8], strides = [1, 1, 1]} : vector<22x16x8xf32> to vector<16x16x8xf32>
    %459 = vector.shape_cast %452 : vector<1x8xf32> to vector<1x1x8xf32>
    %460 = vector.broadcast %459 : vector<1x1x8xf32> to vector<16x16x8xf32>
    %461 = arith.mulf %460, %458 : vector<16x16x8xf32>
    %462 = arith.addf %457, %461 : vector<16x16x8xf32>
    %c39 = arith.constant 39 : index
    %c0_248 = arith.constant 0 : index
    %463 = vector.load %arg1[%c39, %c0_248] : memref<98x8xf32, #tpu.memory_space<vmem>>, vector<1x8xf32>
    %c88 = arith.constant 88 : index
    %c0_249 = arith.constant 0 : index
    %464 = vector.load %arg1[%c88, %c0_249] : memref<98x8xf32, #tpu.memory_space<vmem>>, vector<1x8xf32>
    %465 = vector.extract_strided_slice %401 {offsets = [5, 0, 0], sizes = [16, 16, 8], strides = [1, 1, 1]} : vector<22x16x8xf32> to vector<16x16x8xf32>
    %466 = vector.shape_cast %463 : vector<1x8xf32> to vector<1x1x8xf32>
    %467 = vector.broadcast %466 : vector<1x1x8xf32> to vector<16x16x8xf32>
    %468 = arith.mulf %467, %465 : vector<16x16x8xf32>
    %469 = arith.addf %462, %468 : vector<16x16x8xf32>
    %470 = vector.extract_strided_slice %402 {offsets = [5, 0, 0], sizes = [16, 16, 8], strides = [1, 1, 1]} : vector<22x16x8xf32> to vector<16x16x8xf32>
    %471 = vector.shape_cast %464 : vector<1x8xf32> to vector<1x1x8xf32>
    %472 = vector.broadcast %471 : vector<1x1x8xf32> to vector<16x16x8xf32>
    %473 = arith.mulf %472, %470 : vector<16x16x8xf32>
    %474 = arith.addf %469, %473 : vector<16x16x8xf32>
    %c46 = arith.constant 46 : index
    %c0_250 = arith.constant 0 : index
    %475 = vector.load %arg1[%c46, %c0_250] : memref<98x8xf32, #tpu.memory_space<vmem>>, vector<1x8xf32>
    %c95 = arith.constant 95 : index
    %c0_251 = arith.constant 0 : index
    %476 = vector.load %arg1[%c95, %c0_251] : memref<98x8xf32, #tpu.memory_space<vmem>>, vector<1x8xf32>
    %477 = vector.extract_strided_slice %401 {offsets = [6, 0, 0], sizes = [16, 16, 8], strides = [1, 1, 1]} : vector<22x16x8xf32> to vector<16x16x8xf32>
    %478 = vector.shape_cast %475 : vector<1x8xf32> to vector<1x1x8xf32>
    %479 = vector.broadcast %478 : vector<1x1x8xf32> to vector<16x16x8xf32>
    %480 = arith.mulf %479, %477 : vector<16x16x8xf32>
    %481 = arith.addf %474, %480 : vector<16x16x8xf32>
    %482 = vector.extract_strided_slice %402 {offsets = [6, 0, 0], sizes = [16, 16, 8], strides = [1, 1, 1]} : vector<22x16x8xf32> to vector<16x16x8xf32>
    %483 = vector.shape_cast %476 : vector<1x8xf32> to vector<1x1x8xf32>
    %484 = vector.broadcast %483 : vector<1x1x8xf32> to vector<16x16x8xf32>
    %485 = arith.mulf %484, %482 : vector<16x16x8xf32>
    %486 = arith.addf %481, %485 : vector<16x16x8xf32>
    %c0_252 = arith.constant 0 : index
    %c5_253 = arith.constant 5 : index
    %c0_254 = arith.constant 0 : index
    %487 = vector.load %arg6[%c0_252, %c5_253, %c0_254] : memref<22x22x8xf32, #tpu.memory_space<vmem>>, vector<22x16x8xf32>
    %c0_255 = arith.constant 0 : index
    %c5_256 = arith.constant 5 : index
    %c0_257 = arith.constant 0 : index
    %488 = vector.load %arg7[%c0_255, %c5_256, %c0_257] : memref<22x22x8xf32, #tpu.memory_space<vmem>>, vector<22x16x8xf32>
    %c5_258 = arith.constant 5 : index
    %c0_259 = arith.constant 0 : index
    %489 = vector.load %arg1[%c5_258, %c0_259] : memref<98x8xf32, #tpu.memory_space<vmem>>, vector<1x8xf32>
    %c54 = arith.constant 54 : index
    %c0_260 = arith.constant 0 : index
    %490 = vector.load %arg1[%c54, %c0_260] : memref<98x8xf32, #tpu.memory_space<vmem>>, vector<1x8xf32>
    %491 = vector.extract_strided_slice %487 {offsets = [0, 0, 0], sizes = [16, 16, 8], strides = [1, 1, 1]} : vector<22x16x8xf32> to vector<16x16x8xf32>
    %492 = vector.shape_cast %489 : vector<1x8xf32> to vector<1x1x8xf32>
    %493 = vector.broadcast %492 : vector<1x1x8xf32> to vector<16x16x8xf32>
    %494 = arith.mulf %493, %491 : vector<16x16x8xf32>
    %495 = arith.addf %486, %494 : vector<16x16x8xf32>
    %496 = vector.extract_strided_slice %488 {offsets = [0, 0, 0], sizes = [16, 16, 8], strides = [1, 1, 1]} : vector<22x16x8xf32> to vector<16x16x8xf32>
    %497 = vector.shape_cast %490 : vector<1x8xf32> to vector<1x1x8xf32>
    %498 = vector.broadcast %497 : vector<1x1x8xf32> to vector<16x16x8xf32>
    %499 = arith.mulf %498, %496 : vector<16x16x8xf32>
    %500 = arith.addf %495, %499 : vector<16x16x8xf32>
    %c12_261 = arith.constant 12 : index
    %c0_262 = arith.constant 0 : index
    %501 = vector.load %arg1[%c12_261, %c0_262] : memref<98x8xf32, #tpu.memory_space<vmem>>, vector<1x8xf32>
    %c61 = arith.constant 61 : index
    %c0_263 = arith.constant 0 : index
    %502 = vector.load %arg1[%c61, %c0_263] : memref<98x8xf32, #tpu.memory_space<vmem>>, vector<1x8xf32>
    %503 = vector.extract_strided_slice %487 {offsets = [1, 0, 0], sizes = [16, 16, 8], strides = [1, 1, 1]} : vector<22x16x8xf32> to vector<16x16x8xf32>
    %504 = vector.shape_cast %501 : vector<1x8xf32> to vector<1x1x8xf32>
    %505 = vector.broadcast %504 : vector<1x1x8xf32> to vector<16x16x8xf32>
    %506 = arith.mulf %505, %503 : vector<16x16x8xf32>
    %507 = arith.addf %500, %506 : vector<16x16x8xf32>
    %508 = vector.extract_strided_slice %488 {offsets = [1, 0, 0], sizes = [16, 16, 8], strides = [1, 1, 1]} : vector<22x16x8xf32> to vector<16x16x8xf32>
    %509 = vector.shape_cast %502 : vector<1x8xf32> to vector<1x1x8xf32>
    %510 = vector.broadcast %509 : vector<1x1x8xf32> to vector<16x16x8xf32>
    %511 = arith.mulf %510, %508 : vector<16x16x8xf32>
    %512 = arith.addf %507, %511 : vector<16x16x8xf32>
    %c19_264 = arith.constant 19 : index
    %c0_265 = arith.constant 0 : index
    %513 = vector.load %arg1[%c19_264, %c0_265] : memref<98x8xf32, #tpu.memory_space<vmem>>, vector<1x8xf32>
    %c68 = arith.constant 68 : index
    %c0_266 = arith.constant 0 : index
    %514 = vector.load %arg1[%c68, %c0_266] : memref<98x8xf32, #tpu.memory_space<vmem>>, vector<1x8xf32>
    %515 = vector.extract_strided_slice %487 {offsets = [2, 0, 0], sizes = [16, 16, 8], strides = [1, 1, 1]} : vector<22x16x8xf32> to vector<16x16x8xf32>
    %516 = vector.shape_cast %513 : vector<1x8xf32> to vector<1x1x8xf32>
    %517 = vector.broadcast %516 : vector<1x1x8xf32> to vector<16x16x8xf32>
    %518 = arith.mulf %517, %515 : vector<16x16x8xf32>
    %519 = arith.addf %512, %518 : vector<16x16x8xf32>
    %520 = vector.extract_strided_slice %488 {offsets = [2, 0, 0], sizes = [16, 16, 8], strides = [1, 1, 1]} : vector<22x16x8xf32> to vector<16x16x8xf32>
    %521 = vector.shape_cast %514 : vector<1x8xf32> to vector<1x1x8xf32>
    %522 = vector.broadcast %521 : vector<1x1x8xf32> to vector<16x16x8xf32>
    %523 = arith.mulf %522, %520 : vector<16x16x8xf32>
    %524 = arith.addf %519, %523 : vector<16x16x8xf32>
    %c26 = arith.constant 26 : index
    %c0_267 = arith.constant 0 : index
    %525 = vector.load %arg1[%c26, %c0_267] : memref<98x8xf32, #tpu.memory_space<vmem>>, vector<1x8xf32>
    %c75 = arith.constant 75 : index
    %c0_268 = arith.constant 0 : index
    %526 = vector.load %arg1[%c75, %c0_268] : memref<98x8xf32, #tpu.memory_space<vmem>>, vector<1x8xf32>
    %527 = vector.extract_strided_slice %487 {offsets = [3, 0, 0], sizes = [16, 16, 8], strides = [1, 1, 1]} : vector<22x16x8xf32> to vector<16x16x8xf32>
    %528 = vector.shape_cast %525 : vector<1x8xf32> to vector<1x1x8xf32>
    %529 = vector.broadcast %528 : vector<1x1x8xf32> to vector<16x16x8xf32>
    %530 = arith.mulf %529, %527 : vector<16x16x8xf32>
    %531 = arith.addf %524, %530 : vector<16x16x8xf32>
    %532 = vector.extract_strided_slice %488 {offsets = [3, 0, 0], sizes = [16, 16, 8], strides = [1, 1, 1]} : vector<22x16x8xf32> to vector<16x16x8xf32>
    %533 = vector.shape_cast %526 : vector<1x8xf32> to vector<1x1x8xf32>
    %534 = vector.broadcast %533 : vector<1x1x8xf32> to vector<16x16x8xf32>
    %535 = arith.mulf %534, %532 : vector<16x16x8xf32>
    %536 = arith.addf %531, %535 : vector<16x16x8xf32>
    %c33 = arith.constant 33 : index
    %c0_269 = arith.constant 0 : index
    %537 = vector.load %arg1[%c33, %c0_269] : memref<98x8xf32, #tpu.memory_space<vmem>>, vector<1x8xf32>
    %c82 = arith.constant 82 : index
    %c0_270 = arith.constant 0 : index
    %538 = vector.load %arg1[%c82, %c0_270] : memref<98x8xf32, #tpu.memory_space<vmem>>, vector<1x8xf32>
    %539 = vector.extract_strided_slice %487 {offsets = [4, 0, 0], sizes = [16, 16, 8], strides = [1, 1, 1]} : vector<22x16x8xf32> to vector<16x16x8xf32>
    %540 = vector.shape_cast %537 : vector<1x8xf32> to vector<1x1x8xf32>
    %541 = vector.broadcast %540 : vector<1x1x8xf32> to vector<16x16x8xf32>
    %542 = arith.mulf %541, %539 : vector<16x16x8xf32>
    %543 = arith.addf %536, %542 : vector<16x16x8xf32>
    %544 = vector.extract_strided_slice %488 {offsets = [4, 0, 0], sizes = [16, 16, 8], strides = [1, 1, 1]} : vector<22x16x8xf32> to vector<16x16x8xf32>
    %545 = vector.shape_cast %538 : vector<1x8xf32> to vector<1x1x8xf32>
    %546 = vector.broadcast %545 : vector<1x1x8xf32> to vector<16x16x8xf32>
    %547 = arith.mulf %546, %544 : vector<16x16x8xf32>
    %548 = arith.addf %543, %547 : vector<16x16x8xf32>
    %c40 = arith.constant 40 : index
    %c0_271 = arith.constant 0 : index
    %549 = vector.load %arg1[%c40, %c0_271] : memref<98x8xf32, #tpu.memory_space<vmem>>, vector<1x8xf32>
    %c89 = arith.constant 89 : index
    %c0_272 = arith.constant 0 : index
    %550 = vector.load %arg1[%c89, %c0_272] : memref<98x8xf32, #tpu.memory_space<vmem>>, vector<1x8xf32>
    %551 = vector.extract_strided_slice %487 {offsets = [5, 0, 0], sizes = [16, 16, 8], strides = [1, 1, 1]} : vector<22x16x8xf32> to vector<16x16x8xf32>
    %552 = vector.shape_cast %549 : vector<1x8xf32> to vector<1x1x8xf32>
    %553 = vector.broadcast %552 : vector<1x1x8xf32> to vector<16x16x8xf32>
    %554 = arith.mulf %553, %551 : vector<16x16x8xf32>
    %555 = arith.addf %548, %554 : vector<16x16x8xf32>
    %556 = vector.extract_strided_slice %488 {offsets = [5, 0, 0], sizes = [16, 16, 8], strides = [1, 1, 1]} : vector<22x16x8xf32> to vector<16x16x8xf32>
    %557 = vector.shape_cast %550 : vector<1x8xf32> to vector<1x1x8xf32>
    %558 = vector.broadcast %557 : vector<1x1x8xf32> to vector<16x16x8xf32>
    %559 = arith.mulf %558, %556 : vector<16x16x8xf32>
    %560 = arith.addf %555, %559 : vector<16x16x8xf32>
    %c47 = arith.constant 47 : index
    %c0_273 = arith.constant 0 : index
    %561 = vector.load %arg1[%c47, %c0_273] : memref<98x8xf32, #tpu.memory_space<vmem>>, vector<1x8xf32>
    %c96 = arith.constant 96 : index
    %c0_274 = arith.constant 0 : index
    %562 = vector.load %arg1[%c96, %c0_274] : memref<98x8xf32, #tpu.memory_space<vmem>>, vector<1x8xf32>
    %563 = vector.extract_strided_slice %487 {offsets = [6, 0, 0], sizes = [16, 16, 8], strides = [1, 1, 1]} : vector<22x16x8xf32> to vector<16x16x8xf32>
    %564 = vector.shape_cast %561 : vector<1x8xf32> to vector<1x1x8xf32>
    %565 = vector.broadcast %564 : vector<1x1x8xf32> to vector<16x16x8xf32>
    %566 = arith.mulf %565, %563 : vector<16x16x8xf32>
    %567 = arith.addf %560, %566 : vector<16x16x8xf32>
    %568 = vector.extract_strided_slice %488 {offsets = [6, 0, 0], sizes = [16, 16, 8], strides = [1, 1, 1]} : vector<22x16x8xf32> to vector<16x16x8xf32>
    %569 = vector.shape_cast %562 : vector<1x8xf32> to vector<1x1x8xf32>
    %570 = vector.broadcast %569 : vector<1x1x8xf32> to vector<16x16x8xf32>
    %571 = arith.mulf %570, %568 : vector<16x16x8xf32>
    %572 = arith.addf %567, %571 : vector<16x16x8xf32>
    %c0_275 = arith.constant 0 : index
    %c6_276 = arith.constant 6 : index
    %c0_277 = arith.constant 0 : index
    %573 = vector.load %arg6[%c0_275, %c6_276, %c0_277] : memref<22x22x8xf32, #tpu.memory_space<vmem>>, vector<22x16x8xf32>
    %c0_278 = arith.constant 0 : index
    %c6_279 = arith.constant 6 : index
    %c0_280 = arith.constant 0 : index
    %574 = vector.load %arg7[%c0_278, %c6_279, %c0_280] : memref<22x22x8xf32, #tpu.memory_space<vmem>>, vector<22x16x8xf32>
    %c6_281 = arith.constant 6 : index
    %c0_282 = arith.constant 0 : index
    %575 = vector.load %arg1[%c6_281, %c0_282] : memref<98x8xf32, #tpu.memory_space<vmem>>, vector<1x8xf32>
    %c55 = arith.constant 55 : index
    %c0_283 = arith.constant 0 : index
    %576 = vector.load %arg1[%c55, %c0_283] : memref<98x8xf32, #tpu.memory_space<vmem>>, vector<1x8xf32>
    %577 = vector.extract_strided_slice %573 {offsets = [0, 0, 0], sizes = [16, 16, 8], strides = [1, 1, 1]} : vector<22x16x8xf32> to vector<16x16x8xf32>
    %578 = vector.shape_cast %575 : vector<1x8xf32> to vector<1x1x8xf32>
    %579 = vector.broadcast %578 : vector<1x1x8xf32> to vector<16x16x8xf32>
    %580 = arith.mulf %579, %577 : vector<16x16x8xf32>
    %581 = arith.addf %572, %580 : vector<16x16x8xf32>
    %582 = vector.extract_strided_slice %574 {offsets = [0, 0, 0], sizes = [16, 16, 8], strides = [1, 1, 1]} : vector<22x16x8xf32> to vector<16x16x8xf32>
    %583 = vector.shape_cast %576 : vector<1x8xf32> to vector<1x1x8xf32>
    %584 = vector.broadcast %583 : vector<1x1x8xf32> to vector<16x16x8xf32>
    %585 = arith.mulf %584, %582 : vector<16x16x8xf32>
    %586 = arith.addf %581, %585 : vector<16x16x8xf32>
    %c13_284 = arith.constant 13 : index
    %c0_285 = arith.constant 0 : index
    %587 = vector.load %arg1[%c13_284, %c0_285] : memref<98x8xf32, #tpu.memory_space<vmem>>, vector<1x8xf32>
    %c62 = arith.constant 62 : index
    %c0_286 = arith.constant 0 : index
    %588 = vector.load %arg1[%c62, %c0_286] : memref<98x8xf32, #tpu.memory_space<vmem>>, vector<1x8xf32>
    %589 = vector.extract_strided_slice %573 {offsets = [1, 0, 0], sizes = [16, 16, 8], strides = [1, 1, 1]} : vector<22x16x8xf32> to vector<16x16x8xf32>
    %590 = vector.shape_cast %587 : vector<1x8xf32> to vector<1x1x8xf32>
    %591 = vector.broadcast %590 : vector<1x1x8xf32> to vector<16x16x8xf32>
    %592 = arith.mulf %591, %589 : vector<16x16x8xf32>
    %593 = arith.addf %586, %592 : vector<16x16x8xf32>
    %594 = vector.extract_strided_slice %574 {offsets = [1, 0, 0], sizes = [16, 16, 8], strides = [1, 1, 1]} : vector<22x16x8xf32> to vector<16x16x8xf32>
    %595 = vector.shape_cast %588 : vector<1x8xf32> to vector<1x1x8xf32>
    %596 = vector.broadcast %595 : vector<1x1x8xf32> to vector<16x16x8xf32>
    %597 = arith.mulf %596, %594 : vector<16x16x8xf32>
    %598 = arith.addf %593, %597 : vector<16x16x8xf32>
    %c20_287 = arith.constant 20 : index
    %c0_288 = arith.constant 0 : index
    %599 = vector.load %arg1[%c20_287, %c0_288] : memref<98x8xf32, #tpu.memory_space<vmem>>, vector<1x8xf32>
    %c69 = arith.constant 69 : index
    %c0_289 = arith.constant 0 : index
    %600 = vector.load %arg1[%c69, %c0_289] : memref<98x8xf32, #tpu.memory_space<vmem>>, vector<1x8xf32>
    %601 = vector.extract_strided_slice %573 {offsets = [2, 0, 0], sizes = [16, 16, 8], strides = [1, 1, 1]} : vector<22x16x8xf32> to vector<16x16x8xf32>
    %602 = vector.shape_cast %599 : vector<1x8xf32> to vector<1x1x8xf32>
    %603 = vector.broadcast %602 : vector<1x1x8xf32> to vector<16x16x8xf32>
    %604 = arith.mulf %603, %601 : vector<16x16x8xf32>
    %605 = arith.addf %598, %604 : vector<16x16x8xf32>
    %606 = vector.extract_strided_slice %574 {offsets = [2, 0, 0], sizes = [16, 16, 8], strides = [1, 1, 1]} : vector<22x16x8xf32> to vector<16x16x8xf32>
    %607 = vector.shape_cast %600 : vector<1x8xf32> to vector<1x1x8xf32>
    %608 = vector.broadcast %607 : vector<1x1x8xf32> to vector<16x16x8xf32>
    %609 = arith.mulf %608, %606 : vector<16x16x8xf32>
    %610 = arith.addf %605, %609 : vector<16x16x8xf32>
    %c27 = arith.constant 27 : index
    %c0_290 = arith.constant 0 : index
    %611 = vector.load %arg1[%c27, %c0_290] : memref<98x8xf32, #tpu.memory_space<vmem>>, vector<1x8xf32>
    %c76 = arith.constant 76 : index
    %c0_291 = arith.constant 0 : index
    %612 = vector.load %arg1[%c76, %c0_291] : memref<98x8xf32, #tpu.memory_space<vmem>>, vector<1x8xf32>
    %613 = vector.extract_strided_slice %573 {offsets = [3, 0, 0], sizes = [16, 16, 8], strides = [1, 1, 1]} : vector<22x16x8xf32> to vector<16x16x8xf32>
    %614 = vector.shape_cast %611 : vector<1x8xf32> to vector<1x1x8xf32>
    %615 = vector.broadcast %614 : vector<1x1x8xf32> to vector<16x16x8xf32>
    %616 = arith.mulf %615, %613 : vector<16x16x8xf32>
    %617 = arith.addf %610, %616 : vector<16x16x8xf32>
    %618 = vector.extract_strided_slice %574 {offsets = [3, 0, 0], sizes = [16, 16, 8], strides = [1, 1, 1]} : vector<22x16x8xf32> to vector<16x16x8xf32>
    %619 = vector.shape_cast %612 : vector<1x8xf32> to vector<1x1x8xf32>
    %620 = vector.broadcast %619 : vector<1x1x8xf32> to vector<16x16x8xf32>
    %621 = arith.mulf %620, %618 : vector<16x16x8xf32>
    %622 = arith.addf %617, %621 : vector<16x16x8xf32>
    %c34 = arith.constant 34 : index
    %c0_292 = arith.constant 0 : index
    %623 = vector.load %arg1[%c34, %c0_292] : memref<98x8xf32, #tpu.memory_space<vmem>>, vector<1x8xf32>
    %c83 = arith.constant 83 : index
    %c0_293 = arith.constant 0 : index
    %624 = vector.load %arg1[%c83, %c0_293] : memref<98x8xf32, #tpu.memory_space<vmem>>, vector<1x8xf32>
    %625 = vector.extract_strided_slice %573 {offsets = [4, 0, 0], sizes = [16, 16, 8], strides = [1, 1, 1]} : vector<22x16x8xf32> to vector<16x16x8xf32>
    %626 = vector.shape_cast %623 : vector<1x8xf32> to vector<1x1x8xf32>
    %627 = vector.broadcast %626 : vector<1x1x8xf32> to vector<16x16x8xf32>
    %628 = arith.mulf %627, %625 : vector<16x16x8xf32>
    %629 = arith.addf %622, %628 : vector<16x16x8xf32>
    %630 = vector.extract_strided_slice %574 {offsets = [4, 0, 0], sizes = [16, 16, 8], strides = [1, 1, 1]} : vector<22x16x8xf32> to vector<16x16x8xf32>
    %631 = vector.shape_cast %624 : vector<1x8xf32> to vector<1x1x8xf32>
    %632 = vector.broadcast %631 : vector<1x1x8xf32> to vector<16x16x8xf32>
    %633 = arith.mulf %632, %630 : vector<16x16x8xf32>
    %634 = arith.addf %629, %633 : vector<16x16x8xf32>
    %c41 = arith.constant 41 : index
    %c0_294 = arith.constant 0 : index
    %635 = vector.load %arg1[%c41, %c0_294] : memref<98x8xf32, #tpu.memory_space<vmem>>, vector<1x8xf32>
    %c90 = arith.constant 90 : index
    %c0_295 = arith.constant 0 : index
    %636 = vector.load %arg1[%c90, %c0_295] : memref<98x8xf32, #tpu.memory_space<vmem>>, vector<1x8xf32>
    %637 = vector.extract_strided_slice %573 {offsets = [5, 0, 0], sizes = [16, 16, 8], strides = [1, 1, 1]} : vector<22x16x8xf32> to vector<16x16x8xf32>
    %638 = vector.shape_cast %635 : vector<1x8xf32> to vector<1x1x8xf32>
    %639 = vector.broadcast %638 : vector<1x1x8xf32> to vector<16x16x8xf32>
    %640 = arith.mulf %639, %637 : vector<16x16x8xf32>
    %641 = arith.addf %634, %640 : vector<16x16x8xf32>
    %642 = vector.extract_strided_slice %574 {offsets = [5, 0, 0], sizes = [16, 16, 8], strides = [1, 1, 1]} : vector<22x16x8xf32> to vector<16x16x8xf32>
    %643 = vector.shape_cast %636 : vector<1x8xf32> to vector<1x1x8xf32>
    %644 = vector.broadcast %643 : vector<1x1x8xf32> to vector<16x16x8xf32>
    %645 = arith.mulf %644, %642 : vector<16x16x8xf32>
    %646 = arith.addf %641, %645 : vector<16x16x8xf32>
    %c48 = arith.constant 48 : index
    %c0_296 = arith.constant 0 : index
    %647 = vector.load %arg1[%c48, %c0_296] : memref<98x8xf32, #tpu.memory_space<vmem>>, vector<1x8xf32>
    %c97 = arith.constant 97 : index
    %c0_297 = arith.constant 0 : index
    %648 = vector.load %arg1[%c97, %c0_297] : memref<98x8xf32, #tpu.memory_space<vmem>>, vector<1x8xf32>
    %649 = vector.extract_strided_slice %573 {offsets = [6, 0, 0], sizes = [16, 16, 8], strides = [1, 1, 1]} : vector<22x16x8xf32> to vector<16x16x8xf32>
    %650 = vector.shape_cast %647 : vector<1x8xf32> to vector<1x1x8xf32>
    %651 = vector.broadcast %650 : vector<1x1x8xf32> to vector<16x16x8xf32>
    %652 = arith.mulf %651, %649 : vector<16x16x8xf32>
    %653 = arith.addf %646, %652 : vector<16x16x8xf32>
    %654 = vector.extract_strided_slice %574 {offsets = [6, 0, 0], sizes = [16, 16, 8], strides = [1, 1, 1]} : vector<22x16x8xf32> to vector<16x16x8xf32>
    %655 = vector.shape_cast %648 : vector<1x8xf32> to vector<1x1x8xf32>
    %656 = vector.broadcast %655 : vector<1x1x8xf32> to vector<16x16x8xf32>
    %657 = arith.mulf %656, %654 : vector<16x16x8xf32>
    %658 = arith.addf %653, %657 : vector<16x16x8xf32>
    %659 = arith.negf %658 : vector<16x16x8xf32>
    %660 = math.exp %659 : vector<16x16x8xf32>
    %cst_298 = arith.constant 1.000000e+00 : f32
    %661 = vector.broadcast %cst_298 : f32 to vector<16x16x8xf32>
    %662 = arith.addf %661, %660 : vector<16x16x8xf32>
    %663 = arith.divf %661, %662 : vector<16x16x8xf32>
    %c0_299 = arith.constant 0 : index
    %c0_300 = arith.constant 0 : index
    %c0_301 = arith.constant 0 : index
    %664 = vector.load %arg5[%c0_299, %c0_300, %c0_301] : memref<16x16x8xf32, #tpu.memory_space<vmem>>, vector<16x16x8xf32>
    tpu.vector_store %arg5[%c0_299, %c0_300, %c0_301], %663 {strides = array<i32>} : memref<16x16x8xf32, #tpu.memory_space<vmem>>, vector<16x16x8xf32>,
    return
  }
  func.func @transform_0(%arg0: i32) -> (i32, i32) {
    %c0_i32 = arith.constant 0 : i32
    %c0_i32_0 = arith.constant 0 : i32
    return %c0_i32, %arg0 : i32, i32
  }
  func.func @transform_1(%arg0: i32) -> (i32, i32) {
    %c0_i32 = arith.constant 0 : i32
    %c0_i32_0 = arith.constant 0 : i32
    return %c0_i32, %arg0 : i32, i32
  }
  func.func @transform_2(%arg0: i32) -> (i32, i32, i32) {
    %c0_i32 = arith.constant 0 : i32
    %c0_i32_0 = arith.constant 0 : i32
    %c0_i32_1 = arith.constant 0 : i32
    return %c0_i32, %c0_i32_0, %arg0 : i32, i32, i32
  }
  func.func @transform_3(%arg0: i32) -> (i32, i32, i32) {
    %c0_i32 = arith.constant 0 : i32
    %c0_i32_0 = arith.constant 0 : i32
    %c0_i32_1 = arith.constant 0 : i32
    return %c0_i32, %c0_i32_0, %arg0 : i32, i32, i32
  }
  func.func @transform_4(%arg0: i32) -> (i32, i32, i32) {
    %c0_i32 = arith.constant 0 : i32
    %c0_i32_0 = arith.constant 0 : i32
    %c0_i32_1 = arith.constant 0 : i32
    return %c0_i32, %c0_i32_0, %arg0 : i32, i32, i32
  }
}

</mosaic_0001>

<llo_original>
// kernel: tpu_custom_call.1
$region0: #{tpu_custom_call.1}
  #allocation0 [shape = 'u32[]', space=smem, size = 0x4, offset = 0x4, fixed_abs, tag = 'smem constant byte address 0x4 - core index']
  #allocation1 [shape = 'u32[144,128]{1,0:T(1,128)}', space=vmem, size = 0x12000, scoped, tag = 'internal scratch']
  #allocation2 [shape = 'f32[22,22,8]{2,1,0:T(8,128)}', space=vmem, size = 0x42000, scoped, tag = 'scratch operand']
  #allocation3 [shape = 'f32[22,22,8]{2,1,0:T(8,128)}', space=vmem, size = 0x42000, scoped, tag = 'scratch operand']
  %s0 = inlined_call_operand.vmem [shape: f32[98,8], index: 0, kind: input, shape index: {}]
  %s1 = inlined_call_operand.vmem [shape: f32[1,8], index: 1, kind: input, shape index: {}]
  %s2 = inlined_call_operand.vmem [shape: f32[16,16,8], index: 2, kind: input, shape index: {}]
  %s3 = inlined_call_operand.vmem [shape: f32[16,16,8], index: 3, kind: input, shape index: {}]
  %s4 = inlined_call_operand.vmem [shape: f32[16,16,8], index: 4, kind: output, shape index: {}]
  %s5 = sld [smem:[#allocation0]]
  $region26: #{tpu_custom_call.1} parent=0
    _
  %s7 = ssub.s32 1, %s5
  %s8 = scalar_select 0, %s7, %s5
  // Predicated region
  $region2: #{tpu_custom_call.1} parent=0 // pred_check
    _
  $region3: #{tpu_custom_call.1} parent=0 // pred_check_branch
    %10 = sbr.rel (0) target = $region5
  $region4: #{tpu_custom_call.1} parent=0 // pred_region
    _
  $region5: #{tpu_custom_call.1} parent=0 // pred_fallthru
    _
  // Predicated region
  $region6: #{tpu_custom_call.1} parent=0 // pred_check
    _
  $region7: #{tpu_custom_call.1} parent=0 // pred_check_branch
    %12 = sbr.rel (0) target = $region9
  $region8: #{tpu_custom_call.1} parent=0 // pred_region
    _
  $region9: #{tpu_custom_call.1} parent=0 // pred_fallthru
    _
  // Predicated region
  $region10: #{tpu_custom_call.1} parent=0 // pred_check
    _
  $region11: #{tpu_custom_call.1} parent=0 // pred_check_branch
    %14 = sbr.rel (0) target = $region13
  $region12: #{tpu_custom_call.1} parent=0 // pred_region
    _
  $region13: #{tpu_custom_call.1} parent=0 // pred_fallthru
    _
  // Predicated region
  $region14: #{tpu_custom_call.1} parent=0 // pred_check
    _
  $region15: #{tpu_custom_call.1} parent=0 // pred_check_branch
    %16 = sbr.rel (0) target = $region17
  $region16: #{tpu_custom_call.1} parent=0 // pred_region
    _
  $region17: #{tpu_custom_call.1} parent=0 // pred_fallthru
    _
  %v17 = vld [vmem:[%s2] sm:$0xff]
  %v18 = vld [vmem:[%s2 + $0x8] sm:$0xff]
  %v19 = vld [vmem:[%s2 + $0x10] sm:$0xff]
  %v20 = vld [vmem:[%s2 + $0x18] sm:$0xff]
  %v21 = vld [vmem:[%s2 + $0x20] sm:$0xff]
  %v22 = vld [vmem:[%s2 + $0x28] sm:$0xff]
  %v23 = vld [vmem:[%s2 + $0x30] sm:$0xff]
  %v24 = vld [vmem:[%s2 + $0x38] sm:$0xff]
  %v25 = vld [vmem:[%s2 + $0x40] sm:$0xff]
  %v26 = vld [vmem:[%s2 + $0x48] sm:$0xff]
  %v27 = vld [vmem:[%s2 + $0x50] sm:$0xff]
  %v28 = vld [vmem:[%s2 + $0x58] sm:$0xff]
  %v29 = vld [vmem:[%s2 + $0x60] sm:$0xff]
  %v30 = vld [vmem:[%s2 + $0x68] sm:$0xff]
  %v31 = vld [vmem:[%s2 + $0x70] sm:$0xff]
  %v32 = vld [vmem:[%s2 + $0x78] sm:$0xff]
  %v33 = vld [vmem:[%s2 + $0x80] sm:$0xff]
  %v34 = vld [vmem:[%s2 + $0x88] sm:$0xff]
  %v35 = vld [vmem:[%s2 + $0x90] sm:$0xff]
  %v36 = vld [vmem:[%s2 + $0x98] sm:$0xff]
  %v37 = vld [vmem:[%s2 + $0xa0] sm:$0xff]
  %v38 = vld [vmem:[%s2 + $0xa8] sm:$0xff]
  %v39 = vld [vmem:[%s2 + $0xb0] sm:$0xff]
  %v40 = vld [vmem:[%s2 + $0xb8] sm:$0xff]
  %v41 = vld [vmem:[%s2 + $0xc0] sm:$0xff]
  %v42 = vld [vmem:[%s2 + $0xc8] sm:$0xff]
  %v43 = vld [vmem:[%s2 + $0xd0] sm:$0xff]
  %v44 = vld [vmem:[%s2 + $0xd8] sm:$0xff]
  %v45 = vld [vmem:[%s2 + $0xe0] sm:$0xff]
  %v46 = vld [vmem:[%s2 + $0xe8] sm:$0xff]
  %v47 = vld [vmem:[%s2 + $0xf0] sm:$0xff]
  %v48 = vld [vmem:[%s2 + $0xf8] sm:$0xff]
  %s49 = scalar_lea.vmem [#allocation2], 72
  %vm50 = vcmask 64512
  %51 = vst.msk [vmem:[%s49 + $0x3] sm:$0xff] %vm50, %v17
  %52 = vst.msk [vmem:[%s49 + $0xb] sm:$0xff] %vm50, %v18
  %53 = vst.msk [vmem:[%s49 + $0x1b] sm:$0xff] %vm50, %v19
  %54 = vst.msk [vmem:[%s49 + $0x23] sm:$0xff] %vm50, %v20
  %55 = vst.msk [vmem:[%s49 + $0x33] sm:$0xff] %vm50, %v21
  %56 = vst.msk [vmem:[%s49 + $0x3b] sm:$0xff] %vm50, %v22
  %57 = vst.msk [vmem:[%s49 + $0x4b] sm:$0xff] %vm50, %v23
  %58 = vst.msk [vmem:[%s49 + $0x53] sm:$0xff] %vm50, %v24
  %59 = vst.msk [vmem:[%s49 + $0x63] sm:$0xff] %vm50, %v25
  %60 = vst.msk [vmem:[%s49 + $0x6b] sm:$0xff] %vm50, %v26
  %61 = vst.msk [vmem:[%s49 + $0x7b] sm:$0xff] %vm50, %v27
  %62 = vst.msk [vmem:[%s49 + $0x83] sm:$0xff] %vm50, %v28
  %63 = vst.msk [vmem:[%s49 + $0x93] sm:$0xff] %vm50, %v29
  %64 = vst.msk [vmem:[%s49 + $0x9b] sm:$0xff] %vm50, %v30
  %65 = vst.msk [vmem:[%s49 + $0xab] sm:$0xff] %vm50, %v31
  %66 = vst.msk [vmem:[%s49 + $0xb3] sm:$0xff] %vm50, %v32
  %67 = vst.msk [vmem:[%s49 + $0xc3] sm:$0xff] %vm50, %v33
  %68 = vst.msk [vmem:[%s49 + $0xcb] sm:$0xff] %vm50, %v34
  %69 = vst.msk [vmem:[%s49 + $0xdb] sm:$0xff] %vm50, %v35
  %70 = vst.msk [vmem:[%s49 + $0xe3] sm:$0xff] %vm50, %v36
  %71 = vst.msk [vmem:[%s49 + $0xf3] sm:$0xff] %vm50, %v37
  %72 = vst.msk [vmem:[%s49 + $0xfb] sm:$0xff] %vm50, %v38
  %73 = vst.msk [vmem:[%s49 + $0x10b] sm:$0xff] %vm50, %v39
  %74 = vst.msk [vmem:[%s49 + $0x113] sm:$0xff] %vm50, %v40
  %75 = vst.msk [vmem:[%s49 + $0x123] sm:$0xff] %vm50, %v41
  %76 = vst.msk [vmem:[%s49 + $0x12b] sm:$0xff] %vm50, %v42
  %77 = vst.msk [vmem:[%s49 + $0x13b] sm:$0xff] %vm50, %v43
  %78 = vst.msk [vmem:[%s49 + $0x143] sm:$0xff] %vm50, %v44
  %79 = vst.msk [vmem:[%s49 + $0x153] sm:$0xff] %vm50, %v45
  %80 = vst.msk [vmem:[%s49 + $0x15b] sm:$0xff] %vm50, %v46
  %81 = vst.msk [vmem:[%s49 + $0x16b] sm:$0xff] %vm50, %v47
  %82 = vst.msk [vmem:[%s49 + $0x173] sm:$0xff] %vm50, %v48
  %s83 = scalar_lea.vmem %s2, 48
  %v84 = vld [vmem:[%s83] sm:$0xff]
  %v85 = vld [vmem:[%s83 + $0x8] sm:$0xff]
  %86 = vst.msk [vmem:[#allocation2 + $0x3] sm:$0xff] %vm50, %v84
  %87 = vst.msk [vmem:[#allocation2 + $0xb] sm:$0xff] %vm50, %v85
  %s88 = scalar_lea.vmem %s2, 224
  %v89 = vld [vmem:[%s88] sm:$0xff]
  %v90 = vld [vmem:[%s88 + $0x8] sm:$0xff]
  %s91 = scalar_lea.vmem [#allocation2], 456
  %92 = vst.msk [vmem:[%s91 + $0x3] sm:$0xff] %vm50, %v89
  %93 = vst.msk [vmem:[%s91 + $0xb] sm:$0xff] %vm50, %v90
  %s94 = scalar_lea.vmem %s2, 32
  %v95 = vld [vmem:[%s94] sm:$0xff]
  %v96 = vld [vmem:[%s94 + $0x8] sm:$0xff]
  %s97 = scalar_lea.vmem [#allocation2], 24
  %98 = vst.msk [vmem:[%s97 + $0x3] sm:$0xff] %vm50, %v95
  %99 = vst.msk [vmem:[%s97 + $0xb] sm:$0xff] %vm50, %v96
  %s100 = scalar_lea.vmem %s2, 208
  %v101 = vld [vmem:[%s100] sm:$0xff]
  %v102 = vld [vmem:[%s100 + $0x8] sm:$0xff]
  %s103 = scalar_lea.vmem [#allocation2], 480
  %104 = vst.msk [vmem:[%s103 + $0x3] sm:$0xff] %vm50, %v101
  %105 = vst.msk [vmem:[%s103 + $0xb] sm:$0xff] %vm50, %v102
  %s106 = scalar_lea.vmem %s2, 16
  %v107 = vld [vmem:[%s106] sm:$0xff]
  %v108 = vld [vmem:[%s106 + $0x8] sm:$0xff]
  %s109 = scalar_lea.vmem [#allocation2], 48
  %110 = vst.msk [vmem:[%s109 + $0x3] sm:$0xff] %vm50, %v107
  %111 = vst.msk [vmem:[%s109 + $0xb] sm:$0xff] %vm50, %v108
  %s112 = scalar_lea.vmem %s2, 192
  %v113 = vld [vmem:[%s112] sm:$0xff]
  %v114 = vld [vmem:[%s112 + $0x8] sm:$0xff]
  %s115 = scalar_lea.vmem [#allocation2], 504
  %116 = vst.msk [vmem:[%s115 + $0x3] sm:$0xff] %vm50, %v113
  %117 = vst.msk [vmem:[%s115 + $0xb] sm:$0xff] %vm50, %v114
  %v118 = vld [vmem:[#allocation2 + $0x6] sm:$0x1]
  %v119 = vld [vmem:[#allocation2 + $0x1e] sm:$0x1]
  %v120 = vld [vmem:[#allocation2 + $0x36] sm:$0x1]
  %v121 = vld [vmem:[#allocation2 + $0x4e] sm:$0x1]
  %v122 = vld [vmem:[#allocation2 + $0x66] sm:$0x1]
  %v123 = vld [vmem:[#allocation2 + $0x7e] sm:$0x1]
  %v124 = vld [vmem:[#allocation2 + $0x96] sm:$0x1]
  %v125 = vld [vmem:[#allocation2 + $0xae] sm:$0x1]
  %v126 = vld [vmem:[#allocation2 + $0xc6] sm:$0x1]
  %v127 = vld [vmem:[#allocation2 + $0xde] sm:$0x1]
  %v128 = vld [vmem:[#allocation2 + $0xf6] sm:$0x1]
  %v129 = vld [vmem:[#allocation2 + $0x10e] sm:$0x1]
  %v130 = vld [vmem:[#allocation2 + $0x126] sm:$0x1]
  %v131 = vld [vmem:[#allocation2 + $0x13e] sm:$0x1]
  %v132 = vld [vmem:[#allocation2 + $0x156] sm:$0x1]
  %v133 = vld [vmem:[#allocation2 + $0x16e] sm:$0x1]
  %v134 = vld [vmem:[#allocation2 + $0x186] sm:$0x1]
  %v135 = vld [vmem:[#allocation2 + $0x19e] sm:$0x1]
  %v136 = vld [vmem:[#allocation2 + $0x1b6] sm:$0x1]
  %v137 = vld [vmem:[#allocation2 + $0x1ce] sm:$0x1]
  %v138 = vld [vmem:[#allocation2 + $0x1e6] sm:$0x1]
  %v139 = vld [vmem:[#allocation2 + $0x1fe] sm:$0x1]
  %vm140 = vcmask 57344
  %141 = vst.msk [vmem:[#allocation2] sm:$0x1] %vm140, %v118
  %142 = vst.msk [vmem:[#allocation2 + $0x18] sm:$0x1] %vm140, %v119
  %143 = vst.msk [vmem:[#allocation2 + $0x30] sm:$0x1] %vm140, %v120
  %144 = vst.msk [vmem:[#allocation2 + $0x48] sm:$0x1] %vm140, %v121
  %145 = vst.msk [vmem:[#allocation2 + $0x60] sm:$0x1] %vm140, %v122
  %146 = vst.msk [vmem:[#allocation2 + $0x78] sm:$0x1] %vm140, %v123
  %147 = vst.msk [vmem:[#allocation2 + $0x90] sm:$0x1] %vm140, %v124
  %148 = vst.msk [vmem:[#allocation2 + $0xa8] sm:$0x1] %vm140, %v125
  %149 = vst.msk [vmem:[#allocation2 + $0xc0] sm:$0x1] %vm140, %v126
  %150 = vst.msk [vmem:[#allocation2 + $0xd8] sm:$0x1] %vm140, %v127
  %151 = vst.msk [vmem:[#allocation2 + $0xf0] sm:$0x1] %vm140, %v128
  %152 = vst.msk [vmem:[#allocation2 + $0x108] sm:$0x1] %vm140, %v129
  %153 = vst.msk [vmem:[#allocation2 + $0x120] sm:$0x1] %vm140, %v130
  %154 = vst.msk [vmem:[#allocation2 + $0x138] sm:$0x1] %vm140, %v131
  %155 = vst.msk [vmem:[#allocation2 + $0x150] sm:$0x1] %vm140, %v132
  %156 = vst.msk [vmem:[#allocation2 + $0x168] sm:$0x1] %vm140, %v133
  %157 = vst.msk [vmem:[#allocation2 + $0x180] sm:$0x1] %vm140, %v134
  %158 = vst.msk [vmem:[#allocation2 + $0x198] sm:$0x1] %vm140, %v135
  %159 = vst.msk [vmem:[#allocation2 + $0x1b0] sm:$0x1] %vm140, %v136
  %160 = vst.msk [vmem:[#allocation2 + $0x1c8] sm:$0x1] %vm140, %v137
  %161 = vst.msk [vmem:[#allocation2 + $0x1e0] sm:$0x1] %vm140, %v138
  %162 = vst.msk [vmem:[#allocation2 + $0x1f8] sm:$0x1] %vm140, %v139
  %v163 = vld [vmem:[#allocation2 + $0x11] sm:$0x1]
  %v164 = vld [vmem:[#allocation2 + $0x29] sm:$0x1]
  %v165 = vld [vmem:[#allocation2 + $0x41] sm:$0x1]
  %v166 = vld [vmem:[#allocation2 + $0x59] sm:$0x1]
  %v167 = vld [vmem:[#allocation2 + $0x71] sm:$0x1]
  %v168 = vld [vmem:[#allocation2 + $0x89] sm:$0x1]
  %v169 = vld [vmem:[#allocation2 + $0xa1] sm:$0x1]
  %v170 = vld [vmem:[#allocation2 + $0xb9] sm:$0x1]
  %v171 = vld [vmem:[#allocation2 + $0xd1] sm:$0x1]
  %v172 = vld [vmem:[#allocation2 + $0xe9] sm:$0x1]
  %v173 = vld [vmem:[#allocation2 + $0x101] sm:$0x1]
  %v174 = vld [vmem:[#allocation2 + $0x119] sm:$0x1]
  %v175 = vld [vmem:[#allocation2 + $0x131] sm:$0x1]
  %v176 = vld [vmem:[#allocation2 + $0x149] sm:$0x1]
  %v177 = vld [vmem:[#allocation2 + $0x161] sm:$0x1]
  %v178 = vld [vmem:[#allocation2 + $0x179] sm:$0x1]
  %v179 = vld [vmem:[#allocation2 + $0x191] sm:$0x1]
  %v180 = vld [vmem:[#allocation2 + $0x1a9] sm:$0x1]
  %v181 = vld [vmem:[#allocation2 + $0x1c1] sm:$0x1]
  %v182 = vld [vmem:[#allocation2 + $0x1d9] sm:$0x1]
  %v183 = vld [vmem:[#allocation2 + $0x1f1] sm:$0x1]
  %v184 = vld [vmem:[#allocation2 + $0x209] sm:$0x1]
  %185 = vst.msk [vmem:[#allocation2 + $0x13] sm:$0x1] %vm140, %v163
  %186 = vst.msk [vmem:[#allocation2 + $0x2b] sm:$0x1] %vm140, %v164
  %187 = vst.msk [vmem:[#allocation2 + $0x43] sm:$0x1] %vm140, %v165
  %188 = vst.msk [vmem:[#allocation2 + $0x5b] sm:$0x1] %vm140, %v166
  %189 = vst.msk [vmem:[#allocation2 + $0x73] sm:$0x1] %vm140, %v167
  %190 = vst.msk [vmem:[#allocation2 + $0x8b] sm:$0x1] %vm140, %v168
  %191 = vst.msk [vmem:[#allocation2 + $0xa3] sm:$0x1] %vm140, %v169
  %192 = vst.msk [vmem:[#allocation2 + $0xbb] sm:$0x1] %vm140, %v170
  %193 = vst.msk [vmem:[#allocation2 + $0xd3] sm:$0x1] %vm140, %v171
  %194 = vst.msk [vmem:[#allocation2 + $0xeb] sm:$0x1] %vm140, %v172
  %195 = vst.msk [vmem:[#allocation2 + $0x103] sm:$0x1] %vm140, %v173
  %196 = vst.msk [vmem:[#allocation2 + $0x11b] sm:$0x1] %vm140, %v174
  %197 = vst.msk [vmem:[#allocation2 + $0x133] sm:$0x1] %vm140, %v175
  %198 = vst.msk [vmem:[#allocation2 + $0x14b] sm:$0x1] %vm140, %v176
  %199 = vst.msk [vmem:[#allocation2 + $0x163] sm:$0x1] %vm140, %v177
  %200 = vst.msk [vmem:[#allocation2 + $0x17b] sm:$0x1] %vm140, %v178
  %201 = vst.msk [vmem:[#allocation2 + $0x193] sm:$0x1] %vm140, %v179
  %202 = vst.msk [vmem:[#allocation2 + $0x1ab] sm:$0x1] %vm140, %v180
  %203 = vst.msk [vmem:[#allocation2 + $0x1c3] sm:$0x1] %vm140, %v181
  %204 = vst.msk [vmem:[#allocation2 + $0x1db] sm:$0x1] %vm140, %v182
  %205 = vst.msk [vmem:[#allocation2 + $0x1f3] sm:$0x1] %vm140, %v183
  %206 = vst.msk [vmem:[#allocation2 + $0x20b] sm:$0x1] %vm140, %v184
  %v207 = vld [vmem:[#allocation2 + $0x5] sm:$0x1]
  %v208 = vld [vmem:[#allocation2 + $0x1d] sm:$0x1]
  %v209 = vld [vmem:[#allocation2 + $0x35] sm:$0x1]
  %v210 = vld [vmem:[#allocation2 + $0x4d] sm:$0x1]
  %v211 = vld [vmem:[#allocation2 + $0x65] sm:$0x1]
  %v212 = vld [vmem:[#allocation2 + $0x7d] sm:$0x1]
  %v213 = vld [vmem:[#allocation2 + $0x95] sm:$0x1]
  %v214 = vld [vmem:[#allocation2 + $0xad] sm:$0x1]
  %v215 = vld [vmem:[#allocation2 + $0xc5] sm:$0x1]
  %v216 = vld [vmem:[#allocation2 + $0xdd] sm:$0x1]
  %v217 = vld [vmem:[#allocation2 + $0xf5] sm:$0x1]
  %v218 = vld [vmem:[#allocation2 + $0x10d] sm:$0x1]
  %v219 = vld [vmem:[#allocation2 + $0x125] sm:$0x1]
  %v220 = vld [vmem:[#allocation2 + $0x13d] sm:$0x1]
  %v221 = vld [vmem:[#allocation2 + $0x155] sm:$0x1]
  %v222 = vld [vmem:[#allocation2 + $0x16d] sm:$0x1]
  %v223 = vld [vmem:[#allocation2 + $0x185] sm:$0x1]
  %v224 = vld [vmem:[#allocation2 + $0x19d] sm:$0x1]
  %v225 = vld [vmem:[#allocation2 + $0x1b5] sm:$0x1]
  %v226 = vld [vmem:[#allocation2 + $0x1cd] sm:$0x1]
  %v227 = vld [vmem:[#allocation2 + $0x1e5] sm:$0x1]
  %v228 = vld [vmem:[#allocation2 + $0x1fd] sm:$0x1]
  %229 = vst.msk [vmem:[#allocation2 + $0x1] sm:$0x1] %vm140, %v207
  %230 = vst.msk [vmem:[#allocation2 + $0x19] sm:$0x1] %vm140, %v208
  %231 = vst.msk [vmem:[#allocation2 + $0x31] sm:$0x1] %vm140, %v209
  %232 = vst.msk [vmem:[#allocation2 + $0x49] sm:$0x1] %vm140, %v210
  %233 = vst.msk [vmem:[#allocation2 + $0x61] sm:$0x1] %vm140, %v211
  %234 = vst.msk [vmem:[#allocation2 + $0x79] sm:$0x1] %vm140, %v212
  %235 = vst.msk [vmem:[#allocation2 + $0x91] sm:$0x1] %vm140, %v213
  %236 = vst.msk [vmem:[#allocation2 + $0xa9] sm:$0x1] %vm140, %v214
  %237 = vst.msk [vmem:[#allocation2 + $0xc1] sm:$0x1] %vm140, %v215
  %238 = vst.msk [vmem:[#allocation2 + $0xd9] sm:$0x1] %vm140, %v216
  %239 = vst.msk [vmem:[#allocation2 + $0xf1] sm:$0x1] %vm140, %v217
  %240 = vst.msk [vmem:[#allocation2 + $0x109] sm:$0x1] %vm140, %v218
  %241 = vst.msk [vmem:[#allocation2 + $0x121] sm:$0x1] %vm140, %v219
  %242 = vst.msk [vmem:[#allocation2 + $0x139] sm:$0x1] %vm140, %v220
  %243 = vst.msk [vmem:[#allocation2 + $0x151] sm:$0x1] %vm140, %v221
  %244 = vst.msk [vmem:[#allocation2 + $0x169] sm:$0x1] %vm140, %v222
  %245 = vst.msk [vmem:[#allocation2 + $0x181] sm:$0x1] %vm140, %v223
  %246 = vst.msk [vmem:[#allocation2 + $0x199] sm:$0x1] %vm140, %v224
  %247 = vst.msk [vmem:[#allocation2 + $0x1b1] sm:$0x1] %vm140, %v225
  %248 = vst.msk [vmem:[#allocation2 + $0x1c9] sm:$0x1] %vm140, %v226
  %249 = vst.msk [vmem:[#allocation2 + $0x1e1] sm:$0x1] %vm140, %v227
  %250 = vst.msk [vmem:[#allocation2 + $0x1f9] sm:$0x1] %vm140, %v228
  %v251 = vld [vmem:[#allocation2 + $0x10] sm:$0x1]
  %v252 = vld [vmem:[#allocation2 + $0x28] sm:$0x1]
  %v253 = vld [vmem:[#allocation2 + $0x40] sm:$0x1]
  %v254 = vld [vmem:[#allocation2 + $0x58] sm:$0x1]
  %v255 = vld [vmem:[#allocation2 + $0x70] sm:$0x1]
  %v256 = vld [vmem:[#allocation2 + $0x88] sm:$0x1]
  %v257 = vld [vmem:[#allocation2 + $0xa0] sm:$0x1]
  %v258 = vld [vmem:[#allocation2 + $0xb8] sm:$0x1]
  %v259 = vld [vmem:[#allocation2 + $0xd0] sm:$0x1]
  %v260 = vld [vmem:[#allocation2 + $0xe8] sm:$0x1]
  %v261 = vld [vmem:[#allocation2 + $0x100] sm:$0x1]
  %v262 = vld [vmem:[#allocation2 + $0x118] sm:$0x1]
  %v263 = vld [vmem:[#allocation2 + $0x130] sm:$0x1]
  %v264 = vld [vmem:[#allocation2 + $0x148] sm:$0x1]
  %v265 = vld [vmem:[#allocation2 + $0x160] sm:$0x1]
  %v266 = vld [vmem:[#allocation2 + $0x178] sm:$0x1]
  %v267 = vld [vmem:[#allocation2 + $0x190] sm:$0x1]
  %v268 = vld [vmem:[#allocation2 + $0x1a8] sm:$0x1]
  %v269 = vld [vmem:[#allocation2 + $0x1c0] sm:$0x1]
  %v270 = vld [vmem:[#allocation2 + $0x1d8] sm:$0x1]
  %v271 = vld [vmem:[#allocation2 + $0x1f0] sm:$0x1]
  %v272 = vld [vmem:[#allocation2 + $0x208] sm:$0x1]
  %273 = vst.msk [vmem:[#allocation2 + $0x14] sm:$0x1] %vm140, %v251
  %274 = vst.msk [vmem:[#allocation2 + $0x2c] sm:$0x1] %vm140, %v252
  %275 = vst.msk [vmem:[#allocation2 + $0x44] sm:$0x1] %vm140, %v253
  %276 = vst.msk [vmem:[#allocation2 + $0x5c] sm:$0x1] %vm140, %v254
  %277 = vst.msk [vmem:[#allocation2 + $0x74] sm:$0x1] %vm140, %v255
  %278 = vst.msk [vmem:[#allocation2 + $0x8c] sm:$0x1] %vm140, %v256
  %279 = vst.msk [vmem:[#allocation2 + $0xa4] sm:$0x1] %vm140, %v257
  %280 = vst.msk [vmem:[#allocation2 + $0xbc] sm:$0x1] %vm140, %v258
  %281 = vst.msk [vmem:[#allocation2 + $0xd4] sm:$0x1] %vm140, %v259
  %282 = vst.msk [vmem:[#allocation2 + $0xec] sm:$0x1] %vm140, %v260
  %283 = vst.msk [vmem:[#allocation2 + $0x104] sm:$0x1] %vm140, %v261
  %284 = vst.msk [vmem:[#allocation2 + $0x11c] sm:$0x1] %vm140, %v262
  %285 = vst.msk [vmem:[#allocation2 + $0x134] sm:$0x1] %vm140, %v263
  %286 = vst.msk [vmem:[#allocation2 + $0x14c] sm:$0x1] %vm140, %v264
  %287 = vst.msk [vmem:[#allocation2 + $0x164] sm:$0x1] %vm140, %v265
  %288 = vst.msk [vmem:[#allocation2 + $0x17c] sm:$0x1] %vm140, %v266
  %289 = vst.msk [vmem:[#allocation2 + $0x194] sm:$0x1] %vm140, %v267
  %290 = vst.msk [vmem:[#allocation2 + $0x1ac] sm:$0x1] %vm140, %v268
  %291 = vst.msk [vmem:[#allocation2 + $0x1c4] sm:$0x1] %vm140, %v269
  %292 = vst.msk [vmem:[#allocation2 + $0x1dc] sm:$0x1] %vm140, %v270
  %293 = vst.msk [vmem:[#allocation2 + $0x1f4] sm:$0x1] %vm140, %v271
  %294 = vst.msk [vmem:[#allocation2 + $0x20c] sm:$0x1] %vm140, %v272
  %v295 = vld [vmem:[#allocation2 + $0x4] sm:$0x1]
  %v296 = vld [vmem:[#allocation2 + $0x1c] sm:$0x1]
  %v297 = vld [vmem:[#allocation2 + $0x34] sm:$0x1]
  %v298 = vld [vmem:[#allocation2 + $0x4c] sm:$0x1]
  %v299 = vld [vmem:[#allocation2 + $0x64] sm:$0x1]
  %v300 = vld [vmem:[#allocation2 + $0x7c] sm:$0x1]
  %v301 = vld [vmem:[#allocation2 + $0x94] sm:$0x1]
  %v302 = vld [vmem:[#allocation2 + $0xac] sm:$0x1]
  %v303 = vld [vmem:[#allocation2 + $0xc4] sm:$0x1]
  %v304 = vld [vmem:[#allocation2 + $0xdc] sm:$0x1]
  %v305 = vld [vmem:[#allocation2 + $0xf4] sm:$0x1]
  %v306 = vld [vmem:[#allocation2 + $0x10c] sm:$0x1]
  %v307 = vld [vmem:[#allocation2 + $0x124] sm:$0x1]
  %v308 = vld [vmem:[#allocation2 + $0x13c] sm:$0x1]
  %v309 = vld [vmem:[#allocation2 + $0x154] sm:$0x1]
  %v310 = vld [vmem:[#allocation2 + $0x16c] sm:$0x1]
  %v311 = vld [vmem:[#allocation2 + $0x184] sm:$0x1]
  %v312 = vld [vmem:[#allocation2 + $0x19c] sm:$0x1]
  %v313 = vld [vmem:[#allocation2 + $0x1b4] sm:$0x1]
  %v314 = vld [vmem:[#allocation2 + $0x1cc] sm:$0x1]
  %v315 = vld [vmem:[#allocation2 + $0x1e4] sm:$0x1]
  %v316 = vld [vmem:[#allocation2 + $0x1fc] sm:$0x1]
  %317 = vst.msk [vmem:[#allocation2 + $0x2] sm:$0x1] %vm140, %v295
  %318 = vst.msk [vmem:[#allocation2 + $0x1a] sm:$0x1] %vm140, %v296
  %319 = vst.msk [vmem:[#allocation2 + $0x32] sm:$0x1] %vm140, %v297
  %320 = vst.msk [vmem:[#allocation2 + $0x4a] sm:$0x1] %vm140, %v298
  %321 = vst.msk [vmem:[#allocation2 + $0x62] sm:$0x1] %vm140, %v299
  %322 = vst.msk [vmem:[#allocation2 + $0x7a] sm:$0x1] %vm140, %v300
  %323 = vst.msk [vmem:[#allocation2 + $0x92] sm:$0x1] %vm140, %v301
  %324 = vst.msk [vmem:[#allocation2 + $0xaa] sm:$0x1] %vm140, %v302
  %325 = vst.msk [vmem:[#allocation2 + $0xc2] sm:$0x1] %vm140, %v303
  %326 = vst.msk [vmem:[#allocation2 + $0xda] sm:$0x1] %vm140, %v304
  %327 = vst.msk [vmem:[#allocation2 + $0xf2] sm:$0x1] %vm140, %v305
  %328 = vst.msk [vmem:[#allocation2 + $0x10a] sm:$0x1] %vm140, %v306
  %329 = vst.msk [vmem:[#allocation2 + $0x122] sm:$0x1] %vm140, %v307
  %330 = vst.msk [vmem:[#allocation2 + $0x13a] sm:$0x1] %vm140, %v308
  %331 = vst.msk [vmem:[#allocation2 + $0x152] sm:$0x1] %vm140, %v309
  %332 = vst.msk [vmem:[#allocation2 + $0x16a] sm:$0x1] %vm140, %v310
  %333 = vst.msk [vmem:[#allocation2 + $0x182] sm:$0x1] %vm140, %v311
  %334 = vst.msk [vmem:[#allocation2 + $0x19a] sm:$0x1] %vm140, %v312
  %335 = vst.msk [vmem:[#allocation2 + $0x1b2] sm:$0x1] %vm140, %v313
  %336 = vst.msk [vmem:[#allocation2 + $0x1ca] sm:$0x1] %vm140, %v314
  %337 = vst.msk [vmem:[#allocation2 + $0x1e2] sm:$0x1] %vm140, %v315
  %338 = vst.msk [vmem:[#allocation2 + $0x1fa] sm:$0x1] %vm140, %v316
  %v339 = vld [vmem:[#allocation2 + $0xf] sm:$0x1]
  %v340 = vld [vmem:[#allocation2 + $0x27] sm:$0x1]
  %v341 = vld [vmem:[#allocation2 + $0x3f] sm:$0x1]
  %v342 = vld [vmem:[#allocation2 + $0x57] sm:$0x1]
  %v343 = vld [vmem:[#allocation2 + $0x6f] sm:$0x1]
  %v344 = vld [vmem:[#allocation2 + $0x87] sm:$0x1]
  %v345 = vld [vmem:[#allocation2 + $0x9f] sm:$0x1]
  %v346 = vld [vmem:[#allocation2 + $0xb7] sm:$0x1]
  %v347 = vld [vmem:[#allocation2 + $0xcf] sm:$0x1]
  %v348 = vld [vmem:[#allocation2 + $0xe7] sm:$0x1]
  %v349 = vld [vmem:[#allocation2 + $0xff] sm:$0x1]
  %v350 = vld [vmem:[#allocation2 + $0x117] sm:$0x1]
  %v351 = vld [vmem:[#allocation2 + $0x12f] sm:$0x1]
  %v352 = vld [vmem:[#allocation2 + $0x147] sm:$0x1]
  %v353 = vld [vmem:[#allocation2 + $0x15f] sm:$0x1]
  %v354 = vld [vmem:[#allocation2 + $0x177] sm:$0x1]
  %v355 = vld [vmem:[#allocation2 + $0x18f] sm:$0x1]
  %v356 = vld [vmem:[#allocation2 + $0x1a7] sm:$0x1]
  %v357 = vld [vmem:[#allocation2 + $0x1bf] sm:$0x1]
  %v358 = vld [vmem:[#allocation2 + $0x1d7] sm:$0x1]
  %v359 = vld [vmem:[#allocation2 + $0x1ef] sm:$0x1]
  %v360 = vld [vmem:[#allocation2 + $0x207] sm:$0x1]
  %361 = vst.msk [vmem:[#allocation2 + $0x15] sm:$0x1] %vm140, %v339
  %362 = vst.msk [vmem:[#allocation2 + $0x2d] sm:$0x1] %vm140, %v340
  %363 = vst.msk [vmem:[#allocation2 + $0x45] sm:$0x1] %vm140, %v341
  %364 = vst.msk [vmem:[#allocation2 + $0x5d] sm:$0x1] %vm140, %v342
  %365 = vst.msk [vmem:[#allocation2 + $0x75] sm:$0x1] %vm140, %v343
  %366 = vst.msk [vmem:[#allocation2 + $0x8d] sm:$0x1] %vm140, %v344
  %367 = vst.msk [vmem:[#allocation2 + $0xa5] sm:$0x1] %vm140, %v345
  %368 = vst.msk [vmem:[#allocation2 + $0xbd] sm:$0x1] %vm140, %v346
  %369 = vst.msk [vmem:[#allocation2 + $0xd5] sm:$0x1] %vm140, %v347
  %370 = vst.msk [vmem:[#allocation2 + $0xed] sm:$0x1] %vm140, %v348
  %371 = vst.msk [vmem:[#allocation2 + $0x105] sm:$0x1] %vm140, %v349
  %372 = vst.msk [vmem:[#allocation2 + $0x11d] sm:$0x1] %vm140, %v350
  %373 = vst.msk [vmem:[#allocation2 + $0x135] sm:$0x1] %vm140, %v351
  %374 = vst.msk [vmem:[#allocation2 + $0x14d] sm:$0x1] %vm140, %v352
  %375 = vst.msk [vmem:[#allocation2 + $0x165] sm:$0x1] %vm140, %v353
  %376 = vst.msk [vmem:[#allocation2 + $0x17d] sm:$0x1] %vm140, %v354
  %377 = vst.msk [vmem:[#allocation2 + $0x195] sm:$0x1] %vm140, %v355
  %378 = vst.msk [vmem:[#allocation2 + $0x1ad] sm:$0x1] %vm140, %v356
  %379 = vst.msk [vmem:[#allocation2 + $0x1c5] sm:$0x1] %vm140, %v357
  %380 = vst.msk [vmem:[#allocation2 + $0x1dd] sm:$0x1] %vm140, %v358
  %381 = vst.msk [vmem:[#allocation2 + $0x1f5] sm:$0x1] %vm140, %v359
  %382 = vst.msk [vmem:[#allocation2 + $0x20d] sm:$0x1] %vm140, %v360
  %v383 = vld [vmem:[%s3] sm:$0xff]
  %v384 = vld [vmem:[%s3 + $0x8] sm:$0xff]
  %v385 = vld [vmem:[%s3 + $0x10] sm:$0xff]
  %v386 = vld [vmem:[%s3 + $0x18] sm:$0xff]
  %v387 = vld [vmem:[%s3 + $0x20] sm:$0xff]
  %v388 = vld [vmem:[%s3 + $0x28] sm:$0xff]
  %v389 = vld [vmem:[%s3 + $0x30] sm:$0xff]
  %v390 = vld [vmem:[%s3 + $0x38] sm:$0xff]
  %v391 = vld [vmem:[%s3 + $0x40] sm:$0xff]
  %v392 = vld [vmem:[%s3 + $0x48] sm:$0xff]
  %v393 = vld [vmem:[%s3 + $0x50] sm:$0xff]
  %v394 = vld [vmem:[%s3 + $0x58] sm:$0xff]
  %v395 = vld [vmem:[%s3 + $0x60] sm:$0xff]
  %v396 = vld [vmem:[%s3 + $0x68] sm:$0xff]
  %v397 = vld [vmem:[%s3 + $0x70] sm:$0xff]
  %v398 = vld [vmem:[%s3 + $0x78] sm:$0xff]
  %v399 = vld [vmem:[%s3 + $0x80] sm:$0xff]
  %v400 = vld [vmem:[%s3 + $0x88] sm:$0xff]
  %v401 = vld [vmem:[%s3 + $0x90] sm:$0xff]
  %v402 = vld [vmem:[%s3 + $0x98] sm:$0xff]
  %v403 = vld [vmem:[%s3 + $0xa0] sm:$0xff]
  %v404 = vld [vmem:[%s3 + $0xa8] sm:$0xff]
  %v405 = vld [vmem:[%s3 + $0xb0] sm:$0xff]
  %v406 = vld [vmem:[%s3 + $0xb8] sm:$0xff]
  %v407 = vld [vmem:[%s3 + $0xc0] sm:$0xff]
  %v408 = vld [vmem:[%s3 + $0xc8] sm:$0xff]
  %v409 = vld [vmem:[%s3 + $0xd0] sm:$0xff]
  %v410 = vld [vmem:[%s3 + $0xd8] sm:$0xff]
  %v411 = vld [vmem:[%s3 + $0xe0] sm:$0xff]
  %v412 = vld [vmem:[%s3 + $0xe8] sm:$0xff]
  %v413 = vld [vmem:[%s3 + $0xf0] sm:$0xff]
  %v414 = vld [vmem:[%s3 + $0xf8] sm:$0xff]
  %s415 = scalar_lea.vmem [#allocation3], 72
  %416 = vst.msk [vmem:[%s415 + $0x3] sm:$0xff] %vm50, %v383
  %417 = vst.msk [vmem:[%s415 + $0xb] sm:$0xff] %vm50, %v384
  %418 = vst.msk [vmem:[%s415 + $0x1b] sm:$0xff] %vm50, %v385
  %419 = vst.msk [vmem:[%s415 + $0x23] sm:$0xff] %vm50, %v386
  %420 = vst.msk [vmem:[%s415 + $0x33] sm:$0xff] %vm50, %v387
  %421 = vst.msk [vmem:[%s415 + $0x3b] sm:$0xff] %vm50, %v388
  %422 = vst.msk [vmem:[%s415 + $0x4b] sm:$0xff] %vm50, %v389
  %423 = vst.msk [vmem:[%s415 + $0x53] sm:$0xff] %vm50, %v390
  %424 = vst.msk [vmem:[%s415 + $0x63] sm:$0xff] %vm50, %v391
  %425 = vst.msk [vmem:[%s415 + $0x6b] sm:$0xff] %vm50, %v392
  %426 = vst.msk [vmem:[%s415 + $0x7b] sm:$0xff] %vm50, %v393
  %427 = vst.msk [vmem:[%s415 + $0x83] sm:$0xff] %vm50, %v394
  %428 = vst.msk [vmem:[%s415 + $0x93] sm:$0xff] %vm50, %v395
  %429 = vst.msk [vmem:[%s415 + $0x9b] sm:$0xff] %vm50, %v396
  %430 = vst.msk [vmem:[%s415 + $0xab] sm:$0xff] %vm50, %v397
  %431 = vst.msk [vmem:[%s415 + $0xb3] sm:$0xff] %vm50, %v398
  %432 = vst.msk [vmem:[%s415 + $0xc3] sm:$0xff] %vm50, %v399
  %433 = vst.msk [vmem:[%s415 + $0xcb] sm:$0xff] %vm50, %v400
  %434 = vst.msk [vmem:[%s415 + $0xdb] sm:$0xff] %vm50, %v401
  %435 = vst.msk [vmem:[%s415 + $0xe3] sm:$0xff] %vm50, %v402
  %436 = vst.msk [vmem:[%s415 + $0xf3] sm:$0xff] %vm50, %v403
  %437 = vst.msk [vmem:[%s415 + $0xfb] sm:$0xff] %vm50, %v404
  %438 = vst.msk [vmem:[%s415 + $0x10b] sm:$0xff] %vm50, %v405
  %439 = vst.msk [vmem:[%s415 + $0x113] sm:$0xff] %vm50, %v406
  %440 = vst.msk [vmem:[%s415 + $0x123] sm:$0xff] %vm50, %v407
  %441 = vst.msk [vmem:[%s415 + $0x12b] sm:$0xff] %vm50, %v408
  %442 = vst.msk [vmem:[%s415 + $0x13b] sm:$0xff] %vm50, %v409
  %443 = vst.msk [vmem:[%s415 + $0x143] sm:$0xff] %vm50, %v410
  %444 = vst.msk [vmem:[%s415 + $0x153] sm:$0xff] %vm50, %v411
  %445 = vst.msk [vmem:[%s415 + $0x15b] sm:$0xff] %vm50, %v412
  %446 = vst.msk [vmem:[%s415 + $0x16b] sm:$0xff] %vm50, %v413
  %447 = vst.msk [vmem:[%s415 + $0x173] sm:$0xff] %vm50, %v414
  %s448 = scalar_lea.vmem %s3, 48
  %v449 = vld [vmem:[%s448] sm:$0xff]
  %v450 = vld [vmem:[%s448 + $0x8] sm:$0xff]
  %451 = vst.msk [vmem:[#allocation3 + $0x3] sm:$0xff] %vm50, %v449
  %452 = vst.msk [vmem:[#allocation3 + $0xb] sm:$0xff] %vm50, %v450
  %s453 = scalar_lea.vmem %s3, 224
  %v454 = vld [vmem:[%s453] sm:$0xff]
  %v455 = vld [vmem:[%s453 + $0x8] sm:$0xff]
  %s456 = scalar_lea.vmem [#allocation3], 456
  %457 = vst.msk [vmem:[%s456 + $0x3] sm:$0xff] %vm50, %v454
  %458 = vst.msk [vmem:[%s456 + $0xb] sm:$0xff] %vm50, %v455
  %s459 = scalar_lea.vmem %s3, 32
  %v460 = vld [vmem:[%s459] sm:$0xff]
  %v461 = vld [vmem:[%s459 + $0x8] sm:$0xff]
  %s462 = scalar_lea.vmem [#allocation3], 24
  %463 = vst.msk [vmem:[%s462 + $0x3] sm:$0xff] %vm50, %v460
  %464 = vst.msk [vmem:[%s462 + $0xb] sm:$0xff] %vm50, %v461
  %s465 = scalar_lea.vmem %s3, 208
  %v466 = vld [vmem:[%s465] sm:$0xff]
  %v467 = vld [vmem:[%s465 + $0x8] sm:$0xff]
  %s468 = scalar_lea.vmem [#allocation3], 480
  %469 = vst.msk [vmem:[%s468 + $0x3] sm:$0xff] %vm50, %v466
  %470 = vst.msk [vmem:[%s468 + $0xb] sm:$0xff] %vm50, %v467
  %s471 = scalar_lea.vmem %s3, 16
  %v472 = vld [vmem:[%s471] sm:$0xff]
  %v473 = vld [vmem:[%s471 + $0x8] sm:$0xff]
  %s474 = scalar_lea.vmem [#allocation3], 48
  %475 = vst.msk [vmem:[%s474 + $0x3] sm:$0xff] %vm50, %v472
  %476 = vst.msk [vmem:[%s474 + $0xb] sm:$0xff] %vm50, %v473
  %s477 = scalar_lea.vmem %s3, 192
  %v478 = vld [vmem:[%s477] sm:$0xff]
  %v479 = vld [vmem:[%s477 + $0x8] sm:$0xff]
  %s480 = scalar_lea.vmem [#allocation3], 504
  %481 = vst.msk [vmem:[%s480 + $0x3] sm:$0xff] %vm50, %v478
  %482 = vst.msk [vmem:[%s480 + $0xb] sm:$0xff] %vm50, %v479
  %v483 = vld [vmem:[#allocation3 + $0x6] sm:$0x1]
  %v484 = vld [vmem:[#allocation3 + $0x1e] sm:$0x1]
  %v485 = vld [vmem:[#allocation3 + $0x36] sm:$0x1]
  %v486 = vld [vmem:[#allocation3 + $0x4e] sm:$0x1]
  %v487 = vld [vmem:[#allocation3 + $0x66] sm:$0x1]
  %v488 = vld [vmem:[#allocation3 + $0x7e] sm:$0x1]
  %v489 = vld [vmem:[#allocation3 + $0x96] sm:$0x1]
  %v490 = vld [vmem:[#allocation3 + $0xae] sm:$0x1]
  %v491 = vld [vmem:[#allocation3 + $0xc6] sm:$0x1]
  %v492 = vld [vmem:[#allocation3 + $0xde] sm:$0x1]
  %v493 = vld [vmem:[#allocation3 + $0xf6] sm:$0x1]
  %v494 = vld [vmem:[#allocation3 + $0x10e] sm:$0x1]
  %v495 = vld [vmem:[#allocation3 + $0x126] sm:$0x1]
  %v496 = vld [vmem:[#allocation3 + $0x13e] sm:$0x1]
  %v497 = vld [vmem:[#allocation3 + $0x156] sm:$0x1]
  %v498 = vld [vmem:[#allocation3 + $0x16e] sm:$0x1]
  %v499 = vld [vmem:[#allocation3 + $0x186] sm:$0x1]
  %v500 = vld [vmem:[#allocation3 + $0x19e] sm:$0x1]
  %v501 = vld [vmem:[#allocation3 + $0x1b6] sm:$0x1]
  %v502 = vld [vmem:[#allocation3 + $0x1ce] sm:$0x1]
  %v503 = vld [vmem:[#allocation3 + $0x1e6] sm:$0x1]
  %v504 = vld [vmem:[#allocation3 + $0x1fe] sm:$0x1]
  %505 = vst.msk [vmem:[#allocation3] sm:$0x1] %vm140, %v483
  %506 = vst.msk [vmem:[#allocation3 + $0x18] sm:$0x1] %vm140, %v484
  %507 = vst.msk [vmem:[#allocation3 + $0x30] sm:$0x1] %vm140, %v485
  %508 = vst.msk [vmem:[#allocation3 + $0x48] sm:$0x1] %vm140, %v486
  %509 = vst.msk [vmem:[#allocation3 + $0x60] sm:$0x1] %vm140, %v487
  %510 = vst.msk [vmem:[#allocation3 + $0x78] sm:$0x1] %vm140, %v488
  %511 = vst.msk [vmem:[#allocation3 + $0x90] sm:$0x1] %vm140, %v489
  %512 = vst.msk [vmem:[#allocation3 + $0xa8] sm:$0x1] %vm140, %v490
  %513 = vst.msk [vmem:[#allocation3 + $0xc0] sm:$0x1] %vm140, %v491
  %514 = vst.msk [vmem:[#allocation3 + $0xd8] sm:$0x1] %vm140, %v492
  %515 = vst.msk [vmem:[#allocation3 + $0xf0] sm:$0x1] %vm140, %v493
  %516 = vst.msk [vmem:[#allocation3 + $0x108] sm:$0x1] %vm140, %v494
  %517 = vst.msk [vmem:[#allocation3 + $0x120] sm:$0x1] %vm140, %v495
  %518 = vst.msk [vmem:[#allocation3 + $0x138] sm:$0x1] %vm140, %v496
  %519 = vst.msk [vmem:[#allocation3 + $0x150] sm:$0x1] %vm140, %v497
  %520 = vst.msk [vmem:[#allocation3 + $0x168] sm:$0x1] %vm140, %v498
  %521 = vst.msk [vmem:[#allocation3 + $0x180] sm:$0x1] %vm140, %v499
  %522 = vst.msk [vmem:[#allocation3 + $0x198] sm:$0x1] %vm140, %v500
  %523 = vst.msk [vmem:[#allocation3 + $0x1b0] sm:$0x1] %vm140, %v501
  %524 = vst.msk [vmem:[#allocation3 + $0x1c8] sm:$0x1] %vm140, %v502
  %525 = vst.msk [vmem:[#allocation3 + $0x1e0] sm:$0x1] %vm140, %v503
  %526 = vst.msk [vmem:[#allocation3 + $0x1f8] sm:$0x1] %vm140, %v504
  %v527 = vld [vmem:[#allocation3 + $0x11] sm:$0x1]
  %v528 = vld [vmem:[#allocation3 + $0x29] sm:$0x1]
  %v529 = vld [vmem:[#allocation3 + $0x41] sm:$0x1]
  %v530 = vld [vmem:[#allocation3 + $0x59] sm:$0x1]
  %v531 = vld [vmem:[#allocation3 + $0x71] sm:$0x1]
  %v532 = vld [vmem:[#allocation3 + $0x89] sm:$0x1]
  %v533 = vld [vmem:[#allocation3 + $0xa1] sm:$0x1]
  %v534 = vld [vmem:[#allocation3 + $0xb9] sm:$0x1]
  %v535 = vld [vmem:[#allocation3 + $0xd1] sm:$0x1]
  %v536 = vld [vmem:[#allocation3 + $0xe9] sm:$0x1]
  %v537 = vld [vmem:[#allocation3 + $0x101] sm:$0x1]
  %v538 = vld [vmem:[#allocation3 + $0x119] sm:$0x1]
  %v539 = vld [vmem:[#allocation3 + $0x131] sm:$0x1]
  %v540 = vld [vmem:[#allocation3 + $0x149] sm:$0x1]
  %v541 = vld [vmem:[#allocation3 + $0x161] sm:$0x1]
  %v542 = vld [vmem:[#allocation3 + $0x179] sm:$0x1]
  %v543 = vld [vmem:[#allocation3 + $0x191] sm:$0x1]
  %v544 = vld [vmem:[#allocation3 + $0x1a9] sm:$0x1]
  %v545 = vld [vmem:[#allocation3 + $0x1c1] sm:$0x1]
  %v546 = vld [vmem:[#allocation3 + $0x1d9] sm:$0x1]
  %v547 = vld [vmem:[#allocation3 + $0x1f1] sm:$0x1]
  %v548 = vld [vmem:[#allocation3 + $0x209] sm:$0x1]
  %549 = vst.msk [vmem:[#allocation3 + $0x13] sm:$0x1] %vm140, %v527
  %550 = vst.msk [vmem:[#allocation3 + $0x2b] sm:$0x1] %vm140, %v528
  %551 = vst.msk [vmem:[#allocation3 + $0x43] sm:$0x1] %vm140, %v529
  %552 = vst.msk [vmem:[#allocation3 + $0x5b] sm:$0x1] %vm140, %v530
  %553 = vst.msk [vmem:[#allocation3 + $0x73] sm:$0x1] %vm140, %v531
  %554 = vst.msk [vmem:[#allocation3 + $0x8b] sm:$0x1] %vm140, %v532
  %555 = vst.msk [vmem:[#allocation3 + $0xa3] sm:$0x1] %vm140, %v533
  %556 = vst.msk [vmem:[#allocation3 + $0xbb] sm:$0x1] %vm140, %v534
  %557 = vst.msk [vmem:[#allocation3 + $0xd3] sm:$0x1] %vm140, %v535
  %558 = vst.msk [vmem:[#allocation3 + $0xeb] sm:$0x1] %vm140, %v536
  %559 = vst.msk [vmem:[#allocation3 + $0x103] sm:$0x1] %vm140, %v537
  %560 = vst.msk [vmem:[#allocation3 + $0x11b] sm:$0x1] %vm140, %v538
  %561 = vst.msk [vmem:[#allocation3 + $0x133] sm:$0x1] %vm140, %v539
  %562 = vst.msk [vmem:[#allocation3 + $0x14b] sm:$0x1] %vm140, %v540
  %563 = vst.msk [vmem:[#allocation3 + $0x163] sm:$0x1] %vm140, %v541
  %564 = vst.msk [vmem:[#allocation3 + $0x17b] sm:$0x1] %vm140, %v542
  %565 = vst.msk [vmem:[#allocation3 + $0x193] sm:$0x1] %vm140, %v543
  %566 = vst.msk [vmem:[#allocation3 + $0x1ab] sm:$0x1] %vm140, %v544
  %567 = vst.msk [vmem:[#allocation3 + $0x1c3] sm:$0x1] %vm140, %v545
  %568 = vst.msk [vmem:[#allocation3 + $0x1db] sm:$0x1] %vm140, %v546
  %569 = vst.msk [vmem:[#allocation3 + $0x1f3] sm:$0x1] %vm140, %v547
  %570 = vst.msk [vmem:[#allocation3 + $0x20b] sm:$0x1] %vm140, %v548
  %v571 = vld [vmem:[#allocation3 + $0x5] sm:$0x1]
  %v572 = vld [vmem:[#allocation3 + $0x1d] sm:$0x1]
  %v573 = vld [vmem:[#allocation3 + $0x35] sm:$0x1]
  %v574 = vld [vmem:[#allocation3 + $0x4d] sm:$0x1]
  %v575 = vld [vmem:[#allocation3 + $0x65] sm:$0x1]
  %v576 = vld [vmem:[#allocation3 + $0x7d] sm:$0x1]
  %v577 = vld [vmem:[#allocation3 + $0x95] sm:$0x1]
  %v578 = vld [vmem:[#allocation3 + $0xad] sm:$0x1]
  %v579 = vld [vmem:[#allocation3 + $0xc5] sm:$0x1]
  %v580 = vld [vmem:[#allocation3 + $0xdd] sm:$0x1]
  %v581 = vld [vmem:[#allocation3 + $0xf5] sm:$0x1]
  %v582 = vld [vmem:[#allocation3 + $0x10d] sm:$0x1]
  %v583 = vld [vmem:[#allocation3 + $0x125] sm:$0x1]
  %v584 = vld [vmem:[#allocation3 + $0x13d] sm:$0x1]
  %v585 = vld [vmem:[#allocation3 + $0x155] sm:$0x1]
  %v586 = vld [vmem:[#allocation3 + $0x16d] sm:$0x1]
  %v587 = vld [vmem:[#allocation3 + $0x185] sm:$0x1]
  %v588 = vld [vmem:[#allocation3 + $0x19d] sm:$0x1]
  %v589 = vld [vmem:[#allocation3 + $0x1b5] sm:$0x1]
  %v590 = vld [vmem:[#allocation3 + $0x1cd] sm:$0x1]
  %v591 = vld [vmem:[#allocation3 + $0x1e5] sm:$0x1]
  %v592 = vld [vmem:[#allocation3 + $0x1fd] sm:$0x1]
  %593 = vst.msk [vmem:[#allocation3 + $0x1] sm:$0x1] %vm140, %v571
  %594 = vst.msk [vmem:[#allocation3 + $0x19] sm:$0x1] %vm140, %v572
  %595 = vst.msk [vmem:[#allocation3 + $0x31] sm:$0x1] %vm140, %v573
  %596 = vst.msk [vmem:[#allocation3 + $0x49] sm:$0x1] %vm140, %v574
  %597 = vst.msk [vmem:[#allocation3 + $0x61] sm:$0x1] %vm140, %v575
  %598 = vst.msk [vmem:[#allocation3 + $0x79] sm:$0x1] %vm140, %v576
  %599 = vst.msk [vmem:[#allocation3 + $0x91] sm:$0x1] %vm140, %v577
  %600 = vst.msk [vmem:[#allocation3 + $0xa9] sm:$0x1] %vm140, %v578
  %601 = vst.msk [vmem:[#allocation3 + $0xc1] sm:$0x1] %vm140, %v579
  %602 = vst.msk [vmem:[#allocation3 + $0xd9] sm:$0x1] %vm140, %v580
  %603 = vst.msk [vmem:[#allocation3 + $0xf1] sm:$0x1] %vm140, %v581
  %604 = vst.msk [vmem:[#allocation3 + $0x109] sm:$0x1] %vm140, %v582
  %605 = vst.msk [vmem:[#allocation3 + $0x121] sm:$0x1] %vm140, %v583
  %606 = vst.msk [vmem:[#allocation3 + $0x139] sm:$0x1] %vm140, %v584
  %607 = vst.msk [vmem:[#allocation3 + $0x151] sm:$0x1] %vm140, %v585
  %608 = vst.msk [vmem:[#allocation3 + $0x169] sm:$0x1] %vm140, %v586
  %609 = vst.msk [vmem:[#allocation3 + $0x181] sm:$0x1] %vm140, %v587
  %610 = vst.msk [vmem:[#allocation3 + $0x199] sm:$0x1] %vm140, %v588
  %611 = vst.msk [vmem:[#allocation3 + $0x1b1] sm:$0x1] %vm140, %v589
  %612 = vst.msk [vmem:[#allocation3 + $0x1c9] sm:$0x1] %vm140, %v590
  %613 = vst.msk [vmem:[#allocation3 + $0x1e1] sm:$0x1] %vm140, %v591
  %614 = vst.msk [vmem:[#allocation3 + $0x1f9] sm:$0x1] %vm140, %v592
  %v615 = vld [vmem:[#allocation3 + $0x10] sm:$0x1]
  %v616 = vld [vmem:[#allocation3 + $0x28] sm:$0x1]
  %v617 = vld [vmem:[#allocation3 + $0x40] sm:$0x1]
  %v618 = vld [vmem:[#allocation3 + $0x58] sm:$0x1]
  %v619 = vld [vmem:[#allocation3 + $0x70] sm:$0x1]
  %v620 = vld [vmem:[#allocation3 + $0x88] sm:$0x1]
  %v621 = vld [vmem:[#allocation3 + $0xa0] sm:$0x1]
  %v622 = vld [vmem:[#allocation3 + $0xb8] sm:$0x1]
  %v623 = vld [vmem:[#allocation3 + $0xd0] sm:$0x1]
  %v624 = vld [vmem:[#allocation3 + $0xe8] sm:$0x1]
  %v625 = vld [vmem:[#allocation3 + $0x100] sm:$0x1]
  %v626 = vld [vmem:[#allocation3 + $0x118] sm:$0x1]
  %v627 = vld [vmem:[#allocation3 + $0x130] sm:$0x1]
  %v628 = vld [vmem:[#allocation3 + $0x148] sm:$0x1]
  %v629 = vld [vmem:[#allocation3 + $0x160] sm:$0x1]
  %v630 = vld [vmem:[#allocation3 + $0x178] sm:$0x1]
  %v631 = vld [vmem:[#allocation3 + $0x190] sm:$0x1]
  %v632 = vld [vmem:[#allocation3 + $0x1a8] sm:$0x1]
  %v633 = vld [vmem:[#allocation3 + $0x1c0] sm:$0x1]
  %v634 = vld [vmem:[#allocation3 + $0x1d8] sm:$0x1]
  %v635 = vld [vmem:[#allocation3 + $0x1f0] sm:$0x1]
  %v636 = vld [vmem:[#allocation3 + $0x208] sm:$0x1]
  %637 = vst.msk [vmem:[#allocation3 + $0x14] sm:$0x1] %vm140, %v615
  %638 = vst.msk [vmem:[#allocation3 + $0x2c] sm:$0x1] %vm140, %v616
  %639 = vst.msk [vmem:[#allocation3 + $0x44] sm:$0x1] %vm140, %v617
  %640 = vst.msk [vmem:[#allocation3 + $0x5c] sm:$0x1] %vm140, %v618
  %641 = vst.msk [vmem:[#allocation3 + $0x74] sm:$0x1] %vm140, %v619
  %642 = vst.msk [vmem:[#allocation3 + $0x8c] sm:$0x1] %vm140, %v620
  %643 = vst.msk [vmem:[#allocation3 + $0xa4] sm:$0x1] %vm140, %v621
  %644 = vst.msk [vmem:[#allocation3 + $0xbc] sm:$0x1] %vm140, %v622
  %645 = vst.msk [vmem:[#allocation3 + $0xd4] sm:$0x1] %vm140, %v623
  %646 = vst.msk [vmem:[#allocation3 + $0xec] sm:$0x1] %vm140, %v624
  %647 = vst.msk [vmem:[#allocation3 + $0x104] sm:$0x1] %vm140, %v625
  %648 = vst.msk [vmem:[#allocation3 + $0x11c] sm:$0x1] %vm140, %v626
  %649 = vst.msk [vmem:[#allocation3 + $0x134] sm:$0x1] %vm140, %v627
  %650 = vst.msk [vmem:[#allocation3 + $0x14c] sm:$0x1] %vm140, %v628
  %651 = vst.msk [vmem:[#allocation3 + $0x164] sm:$0x1] %vm140, %v629
  %652 = vst.msk [vmem:[#allocation3 + $0x17c] sm:$0x1] %vm140, %v630
  %653 = vst.msk [vmem:[#allocation3 + $0x194] sm:$0x1] %vm140, %v631
  %654 = vst.msk [vmem:[#allocation3 + $0x1ac] sm:$0x1] %vm140, %v632
  %655 = vst.msk [vmem:[#allocation3 + $0x1c4] sm:$0x1] %vm140, %v633
  %656 = vst.msk [vmem:[#allocation3 + $0x1dc] sm:$0x1] %vm140, %v634
  %657 = vst.msk [vmem:[#allocation3 + $0x1f4] sm:$0x1] %vm140, %v635
  %658 = vst.msk [vmem:[#allocation3 + $0x20c] sm:$0x1] %vm140, %v636
  %v659 = vld [vmem:[#allocation3 + $0x4] sm:$0x1]
  %v660 = vld [vmem:[#allocation3 + $0x1c] sm:$0x1]
  %v661 = vld [vmem:[#allocation3 + $0x34] sm:$0x1]
  %v662 = vld [vmem:[#allocation3 + $0x4c] sm:$0x1]
  %v663 = vld [vmem:[#allocation3 + $0x64] sm:$0x1]
  %v664 = vld [vmem:[#allocation3 + $0x7c] sm:$0x1]
  %v665 = vld [vmem:[#allocation3 + $0x94] sm:$0x1]
  %v666 = vld [vmem:[#allocation3 + $0xac] sm:$0x1]
  %v667 = vld [vmem:[#allocation3 + $0xc4] sm:$0x1]
  %v668 = vld [vmem:[#allocation3 + $0xdc] sm:$0x1]
  %v669 = vld [vmem:[#allocation3 + $0xf4] sm:$0x1]
  %v670 = vld [vmem:[#allocation3 + $0x10c] sm:$0x1]
  %v671 = vld [vmem:[#allocation3 + $0x124] sm:$0x1]
  %v672 = vld [vmem:[#allocation3 + $0x13c] sm:$0x1]
  %v673 = vld [vmem:[#allocation3 + $0x154] sm:$0x1]
  %v674 = vld [vmem:[#allocation3 + $0x16c] sm:$0x1]
  %v675 = vld [vmem:[#allocation3 + $0x184] sm:$0x1]
  %v676 = vld [vmem:[#allocation3 + $0x19c] sm:$0x1]
  %v677 = vld [vmem:[#allocation3 + $0x1b4] sm:$0x1]
  %v678 = vld [vmem:[#allocation3 + $0x1cc] sm:$0x1]
  %v679 = vld [vmem:[#allocation3 + $0x1e4] sm:$0x1]
  %v680 = vld [vmem:[#allocation3 + $0x1fc] sm:$0x1]
  %681 = vst.msk [vmem:[#allocation3 + $0x2] sm:$0x1] %vm140, %v659
  %682 = vst.msk [vmem:[#allocation3 + $0x1a] sm:$0x1] %vm140, %v660
  %683 = vst.msk [vmem:[#allocation3 + $0x32] sm:$0x1] %vm140, %v661
  %684 = vst.msk [vmem:[#allocation3 + $0x4a] sm:$0x1] %vm140, %v662
  %685 = vst.msk [vmem:[#allocation3 + $0x62] sm:$0x1] %vm140, %v663
  %686 = vst.msk [vmem:[#allocation3 + $0x7a] sm:$0x1] %vm140, %v664
  %687 = vst.msk [vmem:[#allocation3 + $0x92] sm:$0x1] %vm140, %v665
  %688 = vst.msk [vmem:[#allocation3 + $0xaa] sm:$0x1] %vm140, %v666
  %689 = vst.msk [vmem:[#allocation3 + $0xc2] sm:$0x1] %vm140, %v667
  %690 = vst.msk [vmem:[#allocation3 + $0xda] sm:$0x1] %vm140, %v668
  %691 = vst.msk [vmem:[#allocation3 + $0xf2] sm:$0x1] %vm140, %v669
  %692 = vst.msk [vmem:[#allocation3 + $0x10a] sm:$0x1] %vm140, %v670
  %693 = vst.msk [vmem:[#allocation3 + $0x122] sm:$0x1] %vm140, %v671
  %694 = vst.msk [vmem:[#allocation3 + $0x13a] sm:$0x1] %vm140, %v672
  %695 = vst.msk [vmem:[#allocation3 + $0x152] sm:$0x1] %vm140, %v673
  %696 = vst.msk [vmem:[#allocation3 + $0x16a] sm:$0x1] %vm140, %v674
  %697 = vst.msk [vmem:[#allocation3 + $0x182] sm:$0x1] %vm140, %v675
  %698 = vst.msk [vmem:[#allocation3 + $0x19a] sm:$0x1] %vm140, %v676
  %699 = vst.msk [vmem:[#allocation3 + $0x1b2] sm:$0x1] %vm140, %v677
  %700 = vst.msk [vmem:[#allocation3 + $0x1ca] sm:$0x1] %vm140, %v678
  %701 = vst.msk [vmem:[#allocation3 + $0x1e2] sm:$0x1] %vm140, %v679
  %702 = vst.msk [vmem:[#allocation3 + $0x1fa] sm:$0x1] %vm140, %v680
  %v703 = vld [vmem:[#allocation3 + $0xf] sm:$0x1]
  %v704 = vld [vmem:[#allocation3 + $0x27] sm:$0x1]
  %v705 = vld [vmem:[#allocation3 + $0x3f] sm:$0x1]
  %v706 = vld [vmem:[#allocation3 + $0x57] sm:$0x1]
  %v707 = vld [vmem:[#allocation3 + $0x6f] sm:$0x1]
  %v708 = vld [vmem:[#allocation3 + $0x87] sm:$0x1]
  %v709 = vld [vmem:[#allocation3 + $0x9f] sm:$0x1]
  %v710 = vld [vmem:[#allocation3 + $0xb7] sm:$0x1]
  %v711 = vld [vmem:[#allocation3 + $0xcf] sm:$0x1]
  %v712 = vld [vmem:[#allocation3 + $0xe7] sm:$0x1]
  %v713 = vld [vmem:[#allocation3 + $0xff] sm:$0x1]
  %v714 = vld [vmem:[#allocation3 + $0x117] sm:$0x1]
  %v715 = vld [vmem:[#allocation3 + $0x12f] sm:$0x1]
  %v716 = vld [vmem:[#allocation3 + $0x147] sm:$0x1]
  %v717 = vld [vmem:[#allocation3 + $0x15f] sm:$0x1]
  %v718 = vld [vmem:[#allocation3 + $0x177] sm:$0x1]
  %v719 = vld [vmem:[#allocation3 + $0x18f] sm:$0x1]
  %v720 = vld [vmem:[#allocation3 + $0x1a7] sm:$0x1]
  %v721 = vld [vmem:[#allocation3 + $0x1bf] sm:$0x1]
  %v722 = vld [vmem:[#allocation3 + $0x1d7] sm:$0x1]
  %v723 = vld [vmem:[#allocation3 + $0x1ef] sm:$0x1]
  %v724 = vld [vmem:[#allocation3 + $0x207] sm:$0x1]
  %725 = vst.msk [vmem:[#allocation3 + $0x15] sm:$0x1] %vm140, %v703
  %726 = vst.msk [vmem:[#allocation3 + $0x2d] sm:$0x1] %vm140, %v704
  %727 = vst.msk [vmem:[#allocation3 + $0x45] sm:$0x1] %vm140, %v705
  %728 = vst.msk [vmem:[#allocation3 + $0x5d] sm:$0x1] %vm140, %v706
  %729 = vst.msk [vmem:[#allocation3 + $0x75] sm:$0x1] %vm140, %v707
  %730 = vst.msk [vmem:[#allocation3 + $0x8d] sm:$0x1] %vm140, %v708
  %731 = vst.msk [vmem:[#allocation3 + $0xa5] sm:$0x1] %vm140, %v709
  %732 = vst.msk [vmem:[#allocation3 + $0xbd] sm:$0x1] %vm140, %v710
  %733 = vst.msk [vmem:[#allocation3 + $0xd5] sm:$0x1] %vm140, %v711
  %734 = vst.msk [vmem:[#allocation3 + $0xed] sm:$0x1] %vm140, %v712
  %735 = vst.msk [vmem:[#allocation3 + $0x105] sm:$0x1] %vm140, %v713
  %736 = vst.msk [vmem:[#allocation3 + $0x11d] sm:$0x1] %vm140, %v714
  %737 = vst.msk [vmem:[#allocation3 + $0x135] sm:$0x1] %vm140, %v715
  %738 = vst.msk [vmem:[#allocation3 + $0x14d] sm:$0x1] %vm140, %v716
  %739 = vst.msk [vmem:[#allocation3 + $0x165] sm:$0x1] %vm140, %v717
  %740 = vst.msk [vmem:[#allocation3 + $0x17d] sm:$0x1] %vm140, %v718
  %741 = vst.msk [vmem:[#allocation3 + $0x195] sm:$0x1] %vm140, %v719
  %742 = vst.msk [vmem:[#allocation3 + $0x1ad] sm:$0x1] %vm140, %v720
  %743 = vst.msk [vmem:[#allocation3 + $0x1c5] sm:$0x1] %vm140, %v721
  %744 = vst.msk [vmem:[#allocation3 + $0x1dd] sm:$0x1] %vm140, %v722
  %745 = vst.msk [vmem:[#allocation3 + $0x1f5] sm:$0x1] %vm140, %v723
  %746 = vst.msk [vmem:[#allocation3 + $0x20d] sm:$0x1] %vm140, %v724
  %v747 = vld [vmem:[%s1] sm:$0x1]
  %v749 = vlaneseq
  %v750 = vshrl.u32 %v749, 7
  %v751 = vsub.s32 0, %v750
  %v752 = vrot.slane %v747, %v751
  %v754 = vadd.f32 %v752, 0.0
  %v755 = vld [vmem:[#allocation2] sm:$0xff]
  %v756 = vld [vmem:[#allocation2 + $0x8] sm:$0xff]
  %v757 = vld [vmem:[#allocation2 + $0x18] sm:$0xff]
  %v758 = vld [vmem:[#allocation2 + $0x20] sm:$0xff]
  %v759 = vld [vmem:[#allocation2 + $0x30] sm:$0xff]
  %v760 = vld [vmem:[#allocation2 + $0x38] sm:$0xff]
  %v761 = vld [vmem:[#allocation2 + $0x48] sm:$0xff]
  %v762 = vld [vmem:[#allocation2 + $0x50] sm:$0xff]
  %v763 = vld [vmem:[#allocation2 + $0x60] sm:$0xff]
  %v764 = vld [vmem:[#allocation2 + $0x68] sm:$0xff]
  %v765 = vld [vmem:[#allocation2 + $0x78] sm:$0xff]
  %v766 = vld [vmem:[#allocation2 + $0x80] sm:$0xff]
  %v767 = vld [vmem:[#allocation2 + $0x90] sm:$0xff]
  %v768 = vld [vmem:[#allocation2 + $0x98] sm:$0xff]
  %v769 = vld [vmem:[#allocation2 + $0xa8] sm:$0xff]
  %v770 = vld [vmem:[#allocation2 + $0xb0] sm:$0xff]
  %v771 = vld [vmem:[#allocation2 + $0xc0] sm:$0xff]
  %v772 = vld [vmem:[#allocation2 + $0xc8] sm:$0xff]
  %v773 = vld [vmem:[#allocation2 + $0xd8] sm:$0xff]
  %v774 = vld [vmem:[#allocation2 + $0xe0] sm:$0xff]
  %v775 = vld [vmem:[#allocation2 + $0xf0] sm:$0xff]
  %v776 = vld [vmem:[#allocation2 + $0xf8] sm:$0xff]
  %v777 = vld [vmem:[#allocation2 + $0x108] sm:$0xff]
  %v778 = vld [vmem:[#allocation2 + $0x110] sm:$0xff]
  %v779 = vld [vmem:[#allocation2 + $0x120] sm:$0xff]
  %v780 = vld [vmem:[#allocation2 + $0x128] sm:$0xff]
  %v781 = vld [vmem:[#allocation2 + $0x138] sm:$0xff]
  %v782 = vld [vmem:[#allocation2 + $0x140] sm:$0xff]
  %v783 = vld [vmem:[#allocation2 + $0x150] sm:$0xff]
  %v784 = vld [vmem:[#allocation2 + $0x158] sm:$0xff]
  %v785 = vld [vmem:[#allocation2 + $0x168] sm:$0xff]
  %v786 = vld [vmem:[#allocation2 + $0x170] sm:$0xff]
  %v787 = vld [vmem:[#allocation2 + $0x180] sm:$0xff]
  %v788 = vld [vmem:[#allocation2 + $0x188] sm:$0xff]
  %v789 = vld [vmem:[#allocation2 + $0x198] sm:$0xff]
  %v790 = vld [vmem:[#allocation2 + $0x1a0] sm:$0xff]
  %v791 = vld [vmem:[#allocation2 + $0x1b0] sm:$0xff]
  %v792 = vld [vmem:[#allocation2 + $0x1b8] sm:$0xff]
  %v793 = vld [vmem:[#allocation2 + $0x1c8] sm:$0xff]
  %v794 = vld [vmem:[#allocation2 + $0x1d0] sm:$0xff]
  %v795 = vld [vmem:[#allocation2 + $0x1e0] sm:$0xff]
  %v796 = vld [vmem:[#allocation2 + $0x1e8] sm:$0xff]
  %v797 = vld [vmem:[#allocation2 + $0x1f8] sm:$0xff]
  %v798 = vld [vmem:[#allocation2 + $0x200] sm:$0xff]
  %v799 = vld [vmem:[#allocation3] sm:$0xff]
  %v800 = vld [vmem:[#allocation3 + $0x8] sm:$0xff]
  %v801 = vld [vmem:[#allocation3 + $0x18] sm:$0xff]
  %v802 = vld [vmem:[#allocation3 + $0x20] sm:$0xff]
  %v803 = vld [vmem:[#allocation3 + $0x30] sm:$0xff]
  %v804 = vld [vmem:[#allocation3 + $0x38] sm:$0xff]
  %v805 = vld [vmem:[#allocation3 + $0x48] sm:$0xff]
  %v806 = vld [vmem:[#allocation3 + $0x50] sm:$0xff]
  %v807 = vld [vmem:[#allocation3 + $0x60] sm:$0xff]
  %v808 = vld [vmem:[#allocation3 + $0x68] sm:$0xff]
  %v809 = vld [vmem:[#allocation3 + $0x78] sm:$0xff]
  %v810 = vld [vmem:[#allocation3 + $0x80] sm:$0xff]
  %v811 = vld [vmem:[#allocation3 + $0x90] sm:$0xff]
  %v812 = vld [vmem:[#allocation3 + $0x98] sm:$0xff]
  %v813 = vld [vmem:[#allocation3 + $0xa8] sm:$0xff]
  %v814 = vld [vmem:[#allocation3 + $0xb0] sm:$0xff]
  %v815 = vld [vmem:[#allocation3 + $0xc0] sm:$0xff]
  %v816 = vld [vmem:[#allocation3 + $0xc8] sm:$0xff]
  %v817 = vld [vmem:[#allocation3 + $0xd8] sm:$0xff]
  %v818 = vld [vmem:[#allocation3 + $0xe0] sm:$0xff]
  %v819 = vld [vmem:[#allocation3 + $0xf0] sm:$0xff]
  %v820 = vld [vmem:[#allocation3 + $0xf8] sm:$0xff]
  %v821 = vld [vmem:[#allocation3 + $0x108] sm:$0xff]
  %v822 = vld [vmem:[#allocation3 + $0x110] sm:$0xff]
  %v823 = vld [vmem:[#allocation3 + $0x120] sm:$0xff]
  %v824 = vld [vmem:[#allocation3 + $0x128] sm:$0xff]
  %v825 = vld [vmem:[#allocation3 + $0x138] sm:$0xff]
  %v826 = vld [vmem:[#allocation3 + $0x140] sm:$0xff]
  %v827 = vld [vmem:[#allocation3 + $0x150] sm:$0xff]
  %v828 = vld [vmem:[#allocation3 + $0x158] sm:$0xff]
  %v829 = vld [vmem:[#allocation3 + $0x168] sm:$0xff]
  %v830 = vld [vmem:[#allocation3 + $0x170] sm:$0xff]
  %v831 = vld [vmem:[#allocation3 + $0x180] sm:$0xff]
  %v832 = vld [vmem:[#allocation3 + $0x188] sm:$0xff]
  %v833 = vld [vmem:[#allocation3 + $0x198] sm:$0xff]
  %v834 = vld [vmem:[#allocation3 + $0x1a0] sm:$0xff]
  %v835 = vld [vmem:[#allocation3 + $0x1b0] sm:$0xff]
  %v836 = vld [vmem:[#allocation3 + $0x1b8] sm:$0xff]
  %v837 = vld [vmem:[#allocation3 + $0x1c8] sm:$0xff]
  %v838 = vld [vmem:[#allocation3 + $0x1d0] sm:$0xff]
  %v839 = vld [vmem:[#allocation3 + $0x1e0] sm:$0xff]
  %v840 = vld [vmem:[#allocation3 + $0x1e8] sm:$0xff]
  %v841 = vld [vmem:[#allocation3 + $0x1f8] sm:$0xff]
  %v842 = vld [vmem:[#allocation3 + $0x200] sm:$0xff]
  %v843 = vld [vmem:[%s0] sm:$0x1]
  %v844 = vld [vmem:[%s0 + $0x31] sm:$0x1]
  %v845 = vlaneseq
  %v846 = vshrl.u32 %v845, 7
  %v847 = vsub.s32 0, %v846
  %v848 = vrot.slane %v843, %v847
  %v849 = vmul.f32 %v848, %v755
  %v850 = vmul.f32 %v848, %v756
  %v851 = vmul.f32 %v848, %v757
  %v852 = vmul.f32 %v848, %v758
  %v853 = vmul.f32 %v848, %v759
  %v854 = vmul.f32 %v848, %v760
  %v855 = vmul.f32 %v848, %v761
  %v856 = vmul.f32 %v848, %v762
  %v857 = vmul.f32 %v848, %v763
  %v858 = vmul.f32 %v848, %v764
  %v859 = vmul.f32 %v848, %v765
  %v860 = vmul.f32 %v848, %v766
  %v861 = vmul.f32 %v848, %v767
  %v862 = vmul.f32 %v848, %v768
  %v863 = vmul.f32 %v848, %v769
  %v864 = vmul.f32 %v848, %v770
  %v865 = vmul.f32 %v848, %v771
  %v866 = vmul.f32 %v848, %v772
  %v867 = vmul.f32 %v848, %v773
  %v868 = vmul.f32 %v848, %v774
  %v869 = vmul.f32 %v848, %v775
  %v870 = vmul.f32 %v848, %v776
  %v871 = vmul.f32 %v848, %v777
  %v872 = vmul.f32 %v848, %v778
  %v873 = vmul.f32 %v848, %v779
  %v874 = vmul.f32 %v848, %v780
  %v875 = vmul.f32 %v848, %v781
  %v876 = vmul.f32 %v848, %v782
  %v877 = vmul.f32 %v848, %v783
  %v878 = vmul.f32 %v848, %v784
  %v879 = vmul.f32 %v848, %v785
  %v880 = vmul.f32 %v848, %v786
  %v881 = vadd.f32 %v754, %v849
  %v882 = vadd.f32 %v754, %v850
  %v883 = vadd.f32 %v754, %v851
  %v884 = vadd.f32 %v754, %v852
  %v885 = vadd.f32 %v754, %v853
  %v886 = vadd.f32 %v754, %v854
  %v887 = vadd.f32 %v754, %v855
  %v888 = vadd.f32 %v754, %v856
  %v889 = vadd.f32 %v754, %v857
  %v890 = vadd.f32 %v754, %v858
  %v891 = vadd.f32 %v754, %v859
  %v892 = vadd.f32 %v754, %v860
  %v893 = vadd.f32 %v754, %v861
  %v894 = vadd.f32 %v754, %v862
  %v895 = vadd.f32 %v754, %v863
  %v896 = vadd.f32 %v754, %v864
  %v897 = vadd.f32 %v754, %v865
  %v898 = vadd.f32 %v754, %v866
  %v899 = vadd.f32 %v754, %v867
  %v900 = vadd.f32 %v754, %v868
  %v901 = vadd.f32 %v754, %v869
  %v902 = vadd.f32 %v754, %v870
  %v903 = vadd.f32 %v754, %v871
  %v904 = vadd.f32 %v754, %v872
  %v905 = vadd.f32 %v754, %v873
  %v906 = vadd.f32 %v754, %v874
  %v907 = vadd.f32 %v754, %v875
  %v908 = vadd.f32 %v754, %v876
  %v909 = vadd.f32 %v754, %v877
  %v910 = vadd.f32 %v754, %v878
  %v911 = vadd.f32 %v754, %v879
  %v912 = vadd.f32 %v754, %v880
  %v913 = vlaneseq
  %v914 = vshrl.u32 %v913, 7
  %v915 = vsub.s32 0, %v914
  %v916 = vrot.slane %v844, %v915
  %v917 = vmul.f32 %v916, %v799
  %v918 = vmul.f32 %v916, %v800
  %v919 = vmul.f32 %v916, %v801
  %v920 = vmul.f32 %v916, %v802
  %v921 = vmul.f32 %v916, %v803
  %v922 = vmul.f32 %v916, %v804
  %v923 = vmul.f32 %v916, %v805
  %v924 = vmul.f32 %v916, %v806
  %v925 = vmul.f32 %v916, %v807
  %v926 = vmul.f32 %v916, %v808
  %v927 = vmul.f32 %v916, %v809
  %v928 = vmul.f32 %v916, %v810
  %v929 = vmul.f32 %v916, %v811
  %v930 = vmul.f32 %v916, %v812
  %v931 = vmul.f32 %v916, %v813
  %v932 = vmul.f32 %v916, %v814
  %v933 = vmul.f32 %v916, %v815
  %v934 = vmul.f32 %v916, %v816
  %v935 = vmul.f32 %v916, %v817
  %v936 = vmul.f32 %v916, %v818
  %v937 = vmul.f32 %v916, %v819
  %v938 = vmul.f32 %v916, %v820
  %v939 = vmul.f32 %v916, %v821
  %v940 = vmul.f32 %v916, %v822
  %v941 = vmul.f32 %v916, %v823
  %v942 = vmul.f32 %v916, %v824
  %v943 = vmul.f32 %v916, %v825
  %v944 = vmul.f32 %v916, %v826
  %v945 = vmul.f32 %v916, %v827
  %v946 = vmul.f32 %v916, %v828
  %v947 = vmul.f32 %v916, %v829
  %v948 = vmul.f32 %v916, %v830
  %v949 = vadd.f32 %v881, %v917
  %v950 = vadd.f32 %v882, %v918
  %v951 = vadd.f32 %v883, %v919
  %v952 = vadd.f32 %v884, %v920
  %v953 = vadd.f32 %v885, %v921
  %v954 = vadd.f32 %v886, %v922
  %v955 = vadd.f32 %v887, %v923
  %v956 = vadd.f32 %v888, %v924
  %v957 = vadd.f32 %v889, %v925
  %v958 = vadd.f32 %v890, %v926
  %v959 = vadd.f32 %v891, %v927
  %v960 = vadd.f32 %v892, %v928
  %v961 = vadd.f32 %v893, %v929
  %v962 = vadd.f32 %v894, %v930
  %v963 = vadd.f32 %v895, %v931
  %v964 = vadd.f32 %v896, %v932
  %v965 = vadd.f32 %v897, %v933
  %v966 = vadd.f32 %v898, %v934
  %v967 = vadd.f32 %v899, %v935
  %v968 = vadd.f32 %v900, %v936
  %v969 = vadd.f32 %v901, %v937
  %v970 = vadd.f32 %v902, %v938
  %v971 = vadd.f32 %v903, %v939
  %v972 = vadd.f32 %v904, %v940
  %v973 = vadd.f32 %v905, %v941
  %v974 = vadd.f32 %v906, %v942
  %v975 = vadd.f32 %v907, %v943
  %v976 = vadd.f32 %v908, %v944
  %v977 = vadd.f32 %v909, %v945
  %v978 = vadd.f32 %v910, %v946
  %v979 = vadd.f32 %v911, %v947
  %v980 = vadd.f32 %v912, %v948
  %v981 = vld [vmem:[%s0 + $0x7] sm:$0x1]
  %v982 = vld [vmem:[%s0 + $0x38] sm:$0x1]
  %v983 = vlaneseq
  %v984 = vshrl.u32 %v983, 7
  %v985 = vsub.s32 0, %v984
  %v986 = vrot.slane %v981, %v985
  %v987 = vmul.f32 %v986, %v757
  %v988 = vmul.f32 %v986, %v758
  %v989 = vmul.f32 %v986, %v759
  %v990 = vmul.f32 %v986, %v760
  %v991 = vmul.f32 %v986, %v761
  %v992 = vmul.f32 %v986, %v762
  %v993 = vmul.f32 %v986, %v763
  %v994 = vmul.f32 %v986, %v764
  %v995 = vmul.f32 %v986, %v765
  %v996 = vmul.f32 %v986, %v766
  %v997 = vmul.f32 %v986, %v767
  %v998 = vmul.f32 %v986, %v768
  %v999 = vmul.f32 %v986, %v769
  %v1000 = vmul.f32 %v986, %v770
  %v1001 = vmul.f32 %v986, %v771
  %v1002 = vmul.f32 %v986, %v772
  %v1003 = vmul.f32 %v986, %v773
  %v1004 = vmul.f32 %v986, %v774
  %v1005 = vmul.f32 %v986, %v775
  %v1006 = vmul.f32 %v986, %v776
  %v1007 = vmul.f32 %v986, %v777
  %v1008 = vmul.f32 %v986, %v778
  %v1009 = vmul.f32 %v986, %v779
  %v1010 = vmul.f32 %v986, %v780
  %v1011 = vmul.f32 %v986, %v781
  %v1012 = vmul.f32 %v986, %v782
  %v1013 = vmul.f32 %v986, %v783
  %v1014 = vmul.f32 %v986, %v784
  %v1015 = vmul.f32 %v986, %v785
  %v1016 = vmul.f32 %v986, %v786
  %v1017 = vmul.f32 %v986, %v787
  %v1018 = vmul.f32 %v986, %v788
  %v1019 = vadd.f32 %v949, %v987
  %v1020 = vadd.f32 %v950, %v988
  %v1021 = vadd.f32 %v951, %v989
  %v1022 = vadd.f32 %v952, %v990
  %v1023 = vadd.f32 %v953, %v991
  %v1024 = vadd.f32 %v954, %v992
  %v1025 = vadd.f32 %v955, %v993
  %v1026 = vadd.f32 %v956, %v994
  %v1027 = vadd.f32 %v957, %v995
  %v1028 = vadd.f32 %v958, %v996
  %v1029 = vadd.f32 %v959, %v997
  %v1030 = vadd.f32 %v960, %v998
  %v1031 = vadd.f32 %v961, %v999
  %v1032 = vadd.f32 %v962, %v1000
  %v1033 = vadd.f32 %v963, %v1001
  %v1034 = vadd.f32 %v964, %v1002
  %v1035 = vadd.f32 %v965, %v1003
  %v1036 = vadd.f32 %v966, %v1004
  %v1037 = vadd.f32 %v967, %v1005
  %v1038 = vadd.f32 %v968, %v1006
  %v1039 = vadd.f32 %v969, %v1007
  %v1040 = vadd.f32 %v970, %v1008
  %v1041 = vadd.f32 %v971, %v1009
  %v1042 = vadd.f32 %v972, %v1010
  %v1043 = vadd.f32 %v973, %v1011
  %v1044 = vadd.f32 %v974, %v1012
  %v1045 = vadd.f32 %v975, %v1013
  %v1046 = vadd.f32 %v976, %v1014
  %v1047 = vadd.f32 %v977, %v1015
  %v1048 = vadd.f32 %v978, %v1016
  %v1049 = vadd.f32 %v979, %v1017
  %v1050 = vadd.f32 %v980, %v1018
  %v1051 = vlaneseq
  %v1052 = vshrl.u32 %v1051, 7
  %v1053 = vsub.s32 0, %v1052
  %v1054 = vrot.slane %v982, %v1053
  %v1055 = vmul.f32 %v1054, %v801
  %v1056 = vmul.f32 %v1054, %v802
  %v1057 = vmul.f32 %v1054, %v803
  %v1058 = vmul.f32 %v1054, %v804
  %v1059 = vmul.f32 %v1054, %v805
  %v1060 = vmul.f32 %v1054, %v806
  %v1061 = vmul.f32 %v1054, %v807
  %v1062 = vmul.f32 %v1054, %v808
  %v1063 = vmul.f32 %v1054, %v809
  %v1064 = vmul.f32 %v1054, %v810
  %v1065 = vmul.f32 %v1054, %v811
  %v1066 = vmul.f32 %v1054, %v812
  %v1067 = vmul.f32 %v1054, %v813
  %v1068 = vmul.f32 %v1054, %v814
  %v1069 = vmul.f32 %v1054, %v815
  %v1070 = vmul.f32 %v1054, %v816
  %v1071 = vmul.f32 %v1054, %v817
  %v1072 = vmul.f32 %v1054, %v818
  %v1073 = vmul.f32 %v1054, %v819
  %v1074 = vmul.f32 %v1054, %v820
  %v1075 = vmul.f32 %v1054, %v821
  %v1076 = vmul.f32 %v1054, %v822
  %v1077 = vmul.f32 %v1054, %v823
  %v1078 = vmul.f32 %v1054, %v824
  %v1079 = vmul.f32 %v1054, %v825
  %v1080 = vmul.f32 %v1054, %v826
  %v1081 = vmul.f32 %v1054, %v827
  %v1082 = vmul.f32 %v1054, %v828
  %v1083 = vmul.f32 %v1054, %v829
  %v1084 = vmul.f32 %v1054, %v830
  %v1085 = vmul.f32 %v1054, %v831
  %v1086 = vmul.f32 %v1054, %v832
  %v1087 = vadd.f32 %v1019, %v1055
  %v1088 = vadd.f32 %v1020, %v1056
  %v1089 = vadd.f32 %v1021, %v1057
  %v1090 = vadd.f32 %v1022, %v1058
  %v1091 = vadd.f32 %v1023, %v1059
  %v1092 = vadd.f32 %v1024, %v1060
  %v1093 = vadd.f32 %v1025, %v1061
  %v1094 = vadd.f32 %v1026, %v1062
  %v1095 = vadd.f32 %v1027, %v1063
  %v1096 = vadd.f32 %v1028, %v1064
  %v1097 = vadd.f32 %v1029, %v1065
  %v1098 = vadd.f32 %v1030, %v1066
  %v1099 = vadd.f32 %v1031, %v1067
  %v1100 = vadd.f32 %v1032, %v1068
  %v1101 = vadd.f32 %v1033, %v1069
  %v1102 = vadd.f32 %v1034, %v1070
  %v1103 = vadd.f32 %v1035, %v1071
  %v1104 = vadd.f32 %v1036, %v1072
  %v1105 = vadd.f32 %v1037, %v1073
  %v1106 = vadd.f32 %v1038, %v1074
  %v1107 = vadd.f32 %v1039, %v1075
  %v1108 = vadd.f32 %v1040, %v1076
  %v1109 = vadd.f32 %v1041, %v1077
  %v1110 = vadd.f32 %v1042, %v1078
  %v1111 = vadd.f32 %v1043, %v1079
  %v1112 = vadd.f32 %v1044, %v1080
  %v1113 = vadd.f32 %v1045, %v1081
  %v1114 = vadd.f32 %v1046, %v1082
  %v1115 = vadd.f32 %v1047, %v1083
  %v1116 = vadd.f32 %v1048, %v1084
  %v1117 = vadd.f32 %v1049, %v1085
  %v1118 = vadd.f32 %v1050, %v1086
  %v1119 = vld [vmem:[%s0 + $0xe] sm:$0x1]
  %v1120 = vld [vmem:[%s0 + $0x3f] sm:$0x1]
  %v1121 = vlaneseq
  %v1122 = vshrl.u32 %v1121, 7
  %v1123 = vsub.s32 0, %v1122
  %v1124 = vrot.slane %v1119, %v1123
  %v1125 = vmul.f32 %v1124, %v759
  %v1126 = vmul.f32 %v1124, %v760
  %v1127 = vmul.f32 %v1124, %v761
  %v1128 = vmul.f32 %v1124, %v762
  %v1129 = vmul.f32 %v1124, %v763
  %v1130 = vmul.f32 %v1124, %v764
  %v1131 = vmul.f32 %v1124, %v765
  %v1132 = vmul.f32 %v1124, %v766
  %v1133 = vmul.f32 %v1124, %v767
  %v1134 = vmul.f32 %v1124, %v768
  %v1135 = vmul.f32 %v1124, %v769
  %v1136 = vmul.f32 %v1124, %v770
  %v1137 = vmul.f32 %v1124, %v771
  %v1138 = vmul.f32 %v1124, %v772
  %v1139 = vmul.f32 %v1124, %v773
  %v1140 = vmul.f32 %v1124, %v774
  %v1141 = vmul.f32 %v1124, %v775
  %v1142 = vmul.f32 %v1124, %v776
  %v1143 = vmul.f32 %v1124, %v777
  %v1144 = vmul.f32 %v1124, %v778
  %v1145 = vmul.f32 %v1124, %v779
  %v1146 = vmul.f32 %v1124, %v780
  %v1147 = vmul.f32 %v1124, %v781
  %v1148 = vmul.f32 %v1124, %v782
  %v1149 = vmul.f32 %v1124, %v783
  %v1150 = vmul.f32 %v1124, %v784
  %v1151 = vmul.f32 %v1124, %v785
  %v1152 = vmul.f32 %v1124, %v786
  %v1153 = vmul.f32 %v1124, %v787
  %v1154 = vmul.f32 %v1124, %v788
  %v1155 = vmul.f32 %v1124, %v789
  %v1156 = vmul.f32 %v1124, %v790
  %v1157 = vadd.f32 %v1087, %v1125
  %v1158 = vadd.f32 %v1088, %v1126
  %v1159 = vadd.f32 %v1089, %v1127
  %v1160 = vadd.f32 %v1090, %v1128
  %v1161 = vadd.f32 %v1091, %v1129
  %v1162 = vadd.f32 %v1092, %v1130
  %v1163 = vadd.f32 %v1093, %v1131
  %v1164 = vadd.f32 %v1094, %v1132
  %v1165 = vadd.f32 %v1095, %v1133
  %v1166 = vadd.f32 %v1096, %v1134
  %v1167 = vadd.f32 %v1097, %v1135
  %v1168 = vadd.f32 %v1098, %v1136
  %v1169 = vadd.f32 %v1099, %v1137
  %v1170 = vadd.f32 %v1100, %v1138
  %v1171 = vadd.f32 %v1101, %v1139
  %v1172 = vadd.f32 %v1102, %v1140
  %v1173 = vadd.f32 %v1103, %v1141
  %v1174 = vadd.f32 %v1104, %v1142
  %v1175 = vadd.f32 %v1105, %v1143
  %v1176 = vadd.f32 %v1106, %v1144
  %v1177 = vadd.f32 %v1107, %v1145
  %v1178 = vadd.f32 %v1108, %v1146
  %v1179 = vadd.f32 %v1109, %v1147
  %v1180 = vadd.f32 %v1110, %v1148
  %v1181 = vadd.f32 %v1111, %v1149
  %v1182 = vadd.f32 %v1112, %v1150
  %v1183 = vadd.f32 %v1113, %v1151
  %v1184 = vadd.f32 %v1114, %v1152
  %v1185 = vadd.f32 %v1115, %v1153
  %v1186 = vadd.f32 %v1116, %v1154
  %v1187 = vadd.f32 %v1117, %v1155
  %v1188 = vadd.f32 %v1118, %v1156
  %v1189 = vlaneseq
  %v1190 = vshrl.u32 %v1189, 7
  %v1191 = vsub.s32 0, %v1190
  %v1192 = vrot.slane %v1120, %v1191
  %v1193 = vmul.f32 %v1192, %v803
  %v1194 = vmul.f32 %v1192, %v804
  %v1195 = vmul.f32 %v1192, %v805
  %v1196 = vmul.f32 %v1192, %v806
  %v1197 = vmul.f32 %v1192, %v807
  %v1198 = vmul.f32 %v1192, %v808
  %v1199 = vmul.f32 %v1192, %v809
  %v1200 = vmul.f32 %v1192, %v810
  %v1201 = vmul.f32 %v1192, %v811
  %v1202 = vmul.f32 %v1192, %v812
  %v1203 = vmul.f32 %v1192, %v813
  %v1204 = vmul.f32 %v1192, %v814
  %v1205 = vmul.f32 %v1192, %v815
  %v1206 = vmul.f32 %v1192, %v816
  %v1207 = vmul.f32 %v1192, %v817
  %v1208 = vmul.f32 %v1192, %v818
  %v1209 = vmul.f32 %v1192, %v819
  %v1210 = vmul.f32 %v1192, %v820
  %v1211 = vmul.f32 %v1192, %v821
  %v1212 = vmul.f32 %v1192, %v822
  %v1213 = vmul.f32 %v1192, %v823
  %v1214 = vmul.f32 %v1192, %v824
  %v1215 = vmul.f32 %v1192, %v825
  %v1216 = vmul.f32 %v1192, %v826
  %v1217 = vmul.f32 %v1192, %v827
  %v1218 = vmul.f32 %v1192, %v828
  %v1219 = vmul.f32 %v1192, %v829
  %v1220 = vmul.f32 %v1192, %v830
  %v1221 = vmul.f32 %v1192, %v831
  %v1222 = vmul.f32 %v1192, %v832
  %v1223 = vmul.f32 %v1192, %v833
  %v1224 = vmul.f32 %v1192, %v834
  %v1225 = vadd.f32 %v1157, %v1193
  %v1226 = vadd.f32 %v1158, %v1194
  %v1227 = vadd.f32 %v1159, %v1195
  %v1228 = vadd.f32 %v1160, %v1196
  %v1229 = vadd.f32 %v1161, %v1197
  %v1230 = vadd.f32 %v1162, %v1198
  %v1231 = vadd.f32 %v1163, %v1199
  %v1232 = vadd.f32 %v1164, %v1200
  %v1233 = vadd.f32 %v1165, %v1201
  %v1234 = vadd.f32 %v1166, %v1202
  %v1235 = vadd.f32 %v1167, %v1203
  %v1236 = vadd.f32 %v1168, %v1204
  %v1237 = vadd.f32 %v1169, %v1205
  %v1238 = vadd.f32 %v1170, %v1206
  %v1239 = vadd.f32 %v1171, %v1207
  %v1240 = vadd.f32 %v1172, %v1208
  %v1241 = vadd.f32 %v1173, %v1209
  %v1242 = vadd.f32 %v1174, %v1210
  %v1243 = vadd.f32 %v1175, %v1211
  %v1244 = vadd.f32 %v1176, %v1212
  %v1245 = vadd.f32 %v1177, %v1213
  %v1246 = vadd.f32 %v1178, %v1214
  %v1247 = vadd.f32 %v1179, %v1215
  %v1248 = vadd.f32 %v1180, %v1216
  %v1249 = vadd.f32 %v1181, %v1217
  %v1250 = vadd.f32 %v1182, %v1218
  %v1251 = vadd.f32 %v1183, %v1219
  %v1252 = vadd.f32 %v1184, %v1220
  %v1253 = vadd.f32 %v1185, %v1221
  %v1254 = vadd.f32 %v1186, %v1222
  %v1255 = vadd.f32 %v1187, %v1223
  %v1256 = vadd.f32 %v1188, %v1224
  %v1257 = vld [vmem:[%s0 + $0x15] sm:$0x1]
  %v1258 = vld [vmem:[%s0 + $0x46] sm:$0x1]
  %v1259 = vlaneseq
  %v1260 = vshrl.u32 %v1259, 7
  %v1261 = vsub.s32 0, %v1260
  %v1262 = vrot.slane %v1257, %v1261
  %v1263 = vmul.f32 %v1262, %v761
  %v1264 = vmul.f32 %v1262, %v762
  %v1265 = vmul.f32 %v1262, %v763
  %v1266 = vmul.f32 %v1262, %v764
  %v1267 = vmul.f32 %v1262, %v765
  %v1268 = vmul.f32 %v1262, %v766
  %v1269 = vmul.f32 %v1262, %v767
  %v1270 = vmul.f32 %v1262, %v768
  %v1271 = vmul.f32 %v1262, %v769
  %v1272 = vmul.f32 %v1262, %v770
  %v1273 = vmul.f32 %v1262, %v771
  %v1274 = vmul.f32 %v1262, %v772
  %v1275 = vmul.f32 %v1262, %v773
  %v1276 = vmul.f32 %v1262, %v774
  %v1277 = vmul.f32 %v1262, %v775
  %v1278 = vmul.f32 %v1262, %v776
  %v1279 = vmul.f32 %v1262, %v777
  %v1280 = vmul.f32 %v1262, %v778
  %v1281 = vmul.f32 %v1262, %v779
  %v1282 = vmul.f32 %v1262, %v780
  %v1283 = vmul.f32 %v1262, %v781
  %v1284 = vmul.f32 %v1262, %v782
  %v1285 = vmul.f32 %v1262, %v783
  %v1286 = vmul.f32 %v1262, %v784
  %v1287 = vmul.f32 %v1262, %v785
  %v1288 = vmul.f32 %v1262, %v786
  %v1289 = vmul.f32 %v1262, %v787
  %v1290 = vmul.f32 %v1262, %v788
  %v1291 = vmul.f32 %v1262, %v789
  %v1292 = vmul.f32 %v1262, %v790
  %v1293 = vmul.f32 %v1262, %v791
  %v1294 = vmul.f32 %v1262, %v792
  %v1295 = vadd.f32 %v1225, %v1263
  %v1296 = vadd.f32 %v1226, %v1264
  %v1297 = vadd.f32 %v1227, %v1265
  %v1298 = vadd.f32 %v1228, %v1266
  %v1299 = vadd.f32 %v1229, %v1267
  %v1300 = vadd.f32 %v1230, %v1268
  %v1301 = vadd.f32 %v1231, %v1269
  %v1302 = vadd.f32 %v1232, %v1270
  %v1303 = vadd.f32 %v1233, %v1271
  %v1304 = vadd.f32 %v1234, %v1272
  %v1305 = vadd.f32 %v1235, %v1273
  %v1306 = vadd.f32 %v1236, %v1274
  %v1307 = vadd.f32 %v1237, %v1275
  %v1308 = vadd.f32 %v1238, %v1276
  %v1309 = vadd.f32 %v1239, %v1277
  %v1310 = vadd.f32 %v1240, %v1278
  %v1311 = vadd.f32 %v1241, %v1279
  %v1312 = vadd.f32 %v1242, %v1280
  %v1313 = vadd.f32 %v1243, %v1281
  %v1314 = vadd.f32 %v1244, %v1282
  %v1315 = vadd.f32 %v1245, %v1283
  %v1316 = vadd.f32 %v1246, %v1284
  %v1317 = vadd.f32 %v1247, %v1285
  %v1318 = vadd.f32 %v1248, %v1286
  %v1319 = vadd.f32 %v1249, %v1287
  %v1320 = vadd.f32 %v1250, %v1288
  %v1321 = vadd.f32 %v1251, %v1289
  %v1322 = vadd.f32 %v1252, %v1290
  %v1323 = vadd.f32 %v1253, %v1291
  %v1324 = vadd.f32 %v1254, %v1292
  %v1325 = vadd.f32 %v1255, %v1293
  %v1326 = vadd.f32 %v1256, %v1294
  %v1327 = vlaneseq
  %v1328 = vshrl.u32 %v1327, 7
  %v1329 = vsub.s32 0, %v1328
  %v1330 = vrot.slane %v1258, %v1329
  %v1331 = vmul.f32 %v1330, %v805
  %v1332 = vmul.f32 %v1330, %v806
  %v1333 = vmul.f32 %v1330, %v807
  %v1334 = vmul.f32 %v1330, %v808
  %v1335 = vmul.f32 %v1330, %v809
  %v1336 = vmul.f32 %v1330, %v810
  %v1337 = vmul.f32 %v1330, %v811
  %v1338 = vmul.f32 %v1330, %v812
  %v1339 = vmul.f32 %v1330, %v813
  %v1340 = vmul.f32 %v1330, %v814
  %v1341 = vmul.f32 %v1330, %v815
  %v1342 = vmul.f32 %v1330, %v816
  %v1343 = vmul.f32 %v1330, %v817
  %v1344 = vmul.f32 %v1330, %v818
  %v1345 = vmul.f32 %v1330, %v819
  %v1346 = vmul.f32 %v1330, %v820
  %v1347 = vmul.f32 %v1330, %v821
  %v1348 = vmul.f32 %v1330, %v822
  %v1349 = vmul.f32 %v1330, %v823
  %v1350 = vmul.f32 %v1330, %v824
  %v1351 = vmul.f32 %v1330, %v825
  %v1352 = vmul.f32 %v1330, %v826
  %v1353 = vmul.f32 %v1330, %v827
  %v1354 = vmul.f32 %v1330, %v828
  %v1355 = vmul.f32 %v1330, %v829
  %v1356 = vmul.f32 %v1330, %v830
  %v1357 = vmul.f32 %v1330, %v831
  %v1358 = vmul.f32 %v1330, %v832
  %v1359 = vmul.f32 %v1330, %v833
  %v1360 = vmul.f32 %v1330, %v834
  %v1361 = vmul.f32 %v1330, %v835
  %v1362 = vmul.f32 %v1330, %v836
  %v1363 = vadd.f32 %v1295, %v1331
  %v1364 = vadd.f32 %v1296, %v1332
  %v1365 = vadd.f32 %v1297, %v1333
  %v1366 = vadd.f32 %v1298, %v1334
  %v1367 = vadd.f32 %v1299, %v1335
  %v1368 = vadd.f32 %v1300, %v1336
  %v1369 = vadd.f32 %v1301, %v1337
  %v1370 = vadd.f32 %v1302, %v1338
  %v1371 = vadd.f32 %v1303, %v1339
  %v1372 = vadd.f32 %v1304, %v1340
  %v1373 = vadd.f32 %v1305, %v1341
  %v1374 = vadd.f32 %v1306, %v1342
  %v1375 = vadd.f32 %v1307, %v1343
  %v1376 = vadd.f32 %v1308, %v1344
  %v1377 = vadd.f32 %v1309, %v1345
  %v1378 = vadd.f32 %v1310, %v1346
  %v1379 = vadd.f32 %v1311, %v1347
  %v1380 = vadd.f32 %v1312, %v1348
  %v1381 = vadd.f32 %v1313, %v1349
  %v1382 = vadd.f32 %v1314, %v1350
  %v1383 = vadd.f32 %v1315, %v1351
  %v1384 = vadd.f32 %v1316, %v1352
  %v1385 = vadd.f32 %v1317, %v1353
  %v1386 = vadd.f32 %v1318, %v1354
  %v1387 = vadd.f32 %v1319, %v1355
  %v1388 = vadd.f32 %v1320, %v1356
  %v1389 = vadd.f32 %v1321, %v1357
  %v1390 = vadd.f32 %v1322, %v1358
  %v1391 = vadd.f32 %v1323, %v1359
  %v1392 = vadd.f32 %v1324, %v1360
  %v1393 = vadd.f32 %v1325, %v1361
  %v1394 = vadd.f32 %v1326, %v1362
  %v1395 = vld [vmem:[%s0 + $0x1c] sm:$0x1]
  %v1396 = vld [vmem:[%s0 + $0x4d] sm:$0x1]
  %v1397 = vlaneseq
  %v1398 = vshrl.u32 %v1397, 7
  %v1399 = vsub.s32 0, %v1398
  %v1400 = vrot.slane %v1395, %v1399
  %v1401 = vmul.f32 %v1400, %v763
  %v1402 = vmul.f32 %v1400, %v764
  %v1403 = vmul.f32 %v1400, %v765
  %v1404 = vmul.f32 %v1400, %v766
  %v1405 = vmul.f32 %v1400, %v767
  %v1406 = vmul.f32 %v1400, %v768
  %v1407 = vmul.f32 %v1400, %v769
  %v1408 = vmul.f32 %v1400, %v770
  %v1409 = vmul.f32 %v1400, %v771
  %v1410 = vmul.f32 %v1400, %v772
  %v1411 = vmul.f32 %v1400, %v773
  %v1412 = vmul.f32 %v1400, %v774
  %v1413 = vmul.f32 %v1400, %v775
  %v1414 = vmul.f32 %v1400, %v776
  %v1415 = vmul.f32 %v1400, %v777
  %v1416 = vmul.f32 %v1400, %v778
  %v1417 = vmul.f32 %v1400, %v779
  %v1418 = vmul.f32 %v1400, %v780
  %v1419 = vmul.f32 %v1400, %v781
  %v1420 = vmul.f32 %v1400, %v782
  %v1421 = vmul.f32 %v1400, %v783
  %v1422 = vmul.f32 %v1400, %v784
  %v1423 = vmul.f32 %v1400, %v785
  %v1424 = vmul.f32 %v1400, %v786
  %v1425 = vmul.f32 %v1400, %v787
  %v1426 = vmul.f32 %v1400, %v788
  %v1427 = vmul.f32 %v1400, %v789
  %v1428 = vmul.f32 %v1400, %v790
  %v1429 = vmul.f32 %v1400, %v791
  %v1430 = vmul.f32 %v1400, %v792
  %v1431 = vmul.f32 %v1400, %v793
  %v1432 = vmul.f32 %v1400, %v794
  %v1433 = vadd.f32 %v1363, %v1401
  %v1434 = vadd.f32 %v1364, %v1402
  %v1435 = vadd.f32 %v1365, %v1403
  %v1436 = vadd.f32 %v1366, %v1404
  %v1437 = vadd.f32 %v1367, %v1405
  %v1438 = vadd.f32 %v1368, %v1406
  %v1439 = vadd.f32 %v1369, %v1407
  %v1440 = vadd.f32 %v1370, %v1408
  %v1441 = vadd.f32 %v1371, %v1409
  %v1442 = vadd.f32 %v1372, %v1410
  %v1443 = vadd.f32 %v1373, %v1411
  %v1444 = vadd.f32 %v1374, %v1412
  %v1445 = vadd.f32 %v1375, %v1413
  %v1446 = vadd.f32 %v1376, %v1414
  %v1447 = vadd.f32 %v1377, %v1415
  %v1448 = vadd.f32 %v1378, %v1416
  %v1449 = vadd.f32 %v1379, %v1417
  %v1450 = vadd.f32 %v1380, %v1418
  %v1451 = vadd.f32 %v1381, %v1419
  %v1452 = vadd.f32 %v1382, %v1420
  %v1453 = vadd.f32 %v1383, %v1421
  %v1454 = vadd.f32 %v1384, %v1422
  %v1455 = vadd.f32 %v1385, %v1423
  %v1456 = vadd.f32 %v1386, %v1424
  %v1457 = vadd.f32 %v1387, %v1425
  %v1458 = vadd.f32 %v1388, %v1426
  %v1459 = vadd.f32 %v1389, %v1427
  %v1460 = vadd.f32 %v1390, %v1428
  %v1461 = vadd.f32 %v1391, %v1429
  %v1462 = vadd.f32 %v1392, %v1430
  %v1463 = vadd.f32 %v1393, %v1431
  %v1464 = vadd.f32 %v1394, %v1432
  %v1465 = vlaneseq
  %v1466 = vshrl.u32 %v1465, 7
  %v1467 = vsub.s32 0, %v1466
  %v1468 = vrot.slane %v1396, %v1467
  %v1469 = vmul.f32 %v1468, %v807
  %v1470 = vmul.f32 %v1468, %v808
  %v1471 = vmul.f32 %v1468, %v809
  %v1472 = vmul.f32 %v1468, %v810
  %v1473 = vmul.f32 %v1468, %v811
  %v1474 = vmul.f32 %v1468, %v812
  %v1475 = vmul.f32 %v1468, %v813
  %v1476 = vmul.f32 %v1468, %v814
  %v1477 = vmul.f32 %v1468, %v815
  %v1478 = vmul.f32 %v1468, %v816
  %v1479 = vmul.f32 %v1468, %v817
  %v1480 = vmul.f32 %v1468, %v818
  %v1481 = vmul.f32 %v1468, %v819
  %v1482 = vmul.f32 %v1468, %v820
  %v1483 = vmul.f32 %v1468, %v821
  %v1484 = vmul.f32 %v1468, %v822
  %v1485 = vmul.f32 %v1468, %v823
  %v1486 = vmul.f32 %v1468, %v824
  %v1487 = vmul.f32 %v1468, %v825
  %v1488 = vmul.f32 %v1468, %v826
  %v1489 = vmul.f32 %v1468, %v827
  %v1490 = vmul.f32 %v1468, %v828
  %v1491 = vmul.f32 %v1468, %v829
  %v1492 = vmul.f32 %v1468, %v830
  %v1493 = vmul.f32 %v1468, %v831
  %v1494 = vmul.f32 %v1468, %v832
  %v1495 = vmul.f32 %v1468, %v833
  %v1496 = vmul.f32 %v1468, %v834
  %v1497 = vmul.f32 %v1468, %v835
  %v1498 = vmul.f32 %v1468, %v836
  %v1499 = vmul.f32 %v1468, %v837
  %v1500 = vmul.f32 %v1468, %v838
  %v1501 = vadd.f32 %v1433, %v1469
  %v1502 = vadd.f32 %v1434, %v1470
  %v1503 = vadd.f32 %v1435, %v1471
  %v1504 = vadd.f32 %v1436, %v1472
  %v1505 = vadd.f32 %v1437, %v1473
  %v1506 = vadd.f32 %v1438, %v1474
  %v1507 = vadd.f32 %v1439, %v1475
  %v1508 = vadd.f32 %v1440, %v1476
  %v1509 = vadd.f32 %v1441, %v1477
  %v1510 = vadd.f32 %v1442, %v1478
  %v1511 = vadd.f32 %v1443, %v1479
  %v1512 = vadd.f32 %v1444, %v1480
  %v1513 = vadd.f32 %v1445, %v1481
  %v1514 = vadd.f32 %v1446, %v1482
  %v1515 = vadd.f32 %v1447, %v1483
  %v1516 = vadd.f32 %v1448, %v1484
  %v1517 = vadd.f32 %v1449, %v1485
  %v1518 = vadd.f32 %v1450, %v1486
  %v1519 = vadd.f32 %v1451, %v1487
  %v1520 = vadd.f32 %v1452, %v1488
  %v1521 = vadd.f32 %v1453, %v1489
  %v1522 = vadd.f32 %v1454, %v1490
  %v1523 = vadd.f32 %v1455, %v1491
  %v1524 = vadd.f32 %v1456, %v1492
  %v1525 = vadd.f32 %v1457, %v1493
  %v1526 = vadd.f32 %v1458, %v1494
  %v1527 = vadd.f32 %v1459, %v1495
  %v1528 = vadd.f32 %v1460, %v1496
  %v1529 = vadd.f32 %v1461, %v1497
  %v1530 = vadd.f32 %v1462, %v1498
  %v1531 = vadd.f32 %v1463, %v1499
  %v1532 = vadd.f32 %v1464, %v1500
  %v1533 = vld [vmem:[%s0 + $0x23] sm:$0x1]
  %v1534 = vld [vmem:[%s0 + $0x54] sm:$0x1]
  %v1535 = vlaneseq
  %v1536 = vshrl.u32 %v1535, 7
  %v1537 = vsub.s32 0, %v1536
  %v1538 = vrot.slane %v1533, %v1537
  %v1539 = vmul.f32 %v1538, %v765
  %v1540 = vmul.f32 %v1538, %v766
  %v1541 = vmul.f32 %v1538, %v767
  %v1542 = vmul.f32 %v1538, %v768
  %v1543 = vmul.f32 %v1538, %v769
  %v1544 = vmul.f32 %v1538, %v770
  %v1545 = vmul.f32 %v1538, %v771
  %v1546 = vmul.f32 %v1538, %v772
  %v1547 = vmul.f32 %v1538, %v773
  %v1548 = vmul.f32 %v1538, %v774
  %v1549 = vmul.f32 %v1538, %v775
  %v1550 = vmul.f32 %v1538, %v776
  %v1551 = vmul.f32 %v1538, %v777
  %v1552 = vmul.f32 %v1538, %v778
  %v1553 = vmul.f32 %v1538, %v779
  %v1554 = vmul.f32 %v1538, %v780
  %v1555 = vmul.f32 %v1538, %v781
  %v1556 = vmul.f32 %v1538, %v782
  %v1557 = vmul.f32 %v1538, %v783
  %v1558 = vmul.f32 %v1538, %v784
  %v1559 = vmul.f32 %v1538, %v785
  %v1560 = vmul.f32 %v1538, %v786
  %v1561 = vmul.f32 %v1538, %v787
  %v1562 = vmul.f32 %v1538, %v788
  %v1563 = vmul.f32 %v1538, %v789
  %v1564 = vmul.f32 %v1538, %v790
  %v1565 = vmul.f32 %v1538, %v791
  %v1566 = vmul.f32 %v1538, %v792
  %v1567 = vmul.f32 %v1538, %v793
  %v1568 = vmul.f32 %v1538, %v794
  %v1569 = vmul.f32 %v1538, %v795
  %v1570 = vmul.f32 %v1538, %v796
  %v1571 = vadd.f32 %v1501, %v1539
  %v1572 = vadd.f32 %v1502, %v1540
  %v1573 = vadd.f32 %v1503, %v1541
  %v1574 = vadd.f32 %v1504, %v1542
  %v1575 = vadd.f32 %v1505, %v1543
  %v1576 = vadd.f32 %v1506, %v1544
  %v1577 = vadd.f32 %v1507, %v1545
  %v1578 = vadd.f32 %v1508, %v1546
  %v1579 = vadd.f32 %v1509, %v1547
  %v1580 = vadd.f32 %v1510, %v1548
  %v1581 = vadd.f32 %v1511, %v1549
  %v1582 = vadd.f32 %v1512, %v1550
  %v1583 = vadd.f32 %v1513, %v1551
  %v1584 = vadd.f32 %v1514, %v1552
  %v1585 = vadd.f32 %v1515, %v1553
  %v1586 = vadd.f32 %v1516, %v1554
  %v1587 = vadd.f32 %v1517, %v1555
  %v1588 = vadd.f32 %v1518, %v1556
  %v1589 = vadd.f32 %v1519, %v1557
  %v1590 = vadd.f32 %v1520, %v1558
  %v1591 = vadd.f32 %v1521, %v1559
  %v1592 = vadd.f32 %v1522, %v1560
  %v1593 = vadd.f32 %v1523, %v1561
  %v1594 = vadd.f32 %v1524, %v1562
  %v1595 = vadd.f32 %v1525, %v1563
  %v1596 = vadd.f32 %v1526, %v1564
  %v1597 = vadd.f32 %v1527, %v1565
  %v1598 = vadd.f32 %v1528, %v1566
  %v1599 = vadd.f32 %v1529, %v1567
  %v1600 = vadd.f32 %v1530, %v1568
  %v1601 = vadd.f32 %v1531, %v1569
  %v1602 = vadd.f32 %v1532, %v1570
  %v1603 = vlaneseq
  %v1604 = vshrl.u32 %v1603, 7
  %v1605 = vsub.s32 0, %v1604
  %v1606 = vrot.slane %v1534, %v1605
  %v1607 = vmul.f32 %v1606, %v809
  %v1608 = vmul.f32 %v1606, %v810
  %v1609 = vmul.f32 %v1606, %v811
  %v1610 = vmul.f32 %v1606, %v812
  %v1611 = vmul.f32 %v1606, %v813
  %v1612 = vmul.f32 %v1606, %v814
  %v1613 = vmul.f32 %v1606, %v815
  %v1614 = vmul.f32 %v1606, %v816
  %v1615 = vmul.f32 %v1606, %v817
  %v1616 = vmul.f32 %v1606, %v818
  %v1617 = vmul.f32 %v1606, %v819
  %v1618 = vmul.f32 %v1606, %v820
  %v1619 = vmul.f32 %v1606, %v821
  %v1620 = vmul.f32 %v1606, %v822
  %v1621 = vmul.f32 %v1606, %v823
  %v1622 = vmul.f32 %v1606, %v824
  %v1623 = vmul.f32 %v1606, %v825
  %v1624 = vmul.f32 %v1606, %v826
  %v1625 = vmul.f32 %v1606, %v827
  %v1626 = vmul.f32 %v1606, %v828
  %v1627 = vmul.f32 %v1606, %v829
  %v1628 = vmul.f32 %v1606, %v830
  %v1629 = vmul.f32 %v1606, %v831
  %v1630 = vmul.f32 %v1606, %v832
  %v1631 = vmul.f32 %v1606, %v833
  %v1632 = vmul.f32 %v1606, %v834
  %v1633 = vmul.f32 %v1606, %v835
  %v1634 = vmul.f32 %v1606, %v836
  %v1635 = vmul.f32 %v1606, %v837
  %v1636 = vmul.f32 %v1606, %v838
  %v1637 = vmul.f32 %v1606, %v839
  %v1638 = vmul.f32 %v1606, %v840
  %v1639 = vadd.f32 %v1571, %v1607
  %v1640 = vadd.f32 %v1572, %v1608
  %v1641 = vadd.f32 %v1573, %v1609
  %v1642 = vadd.f32 %v1574, %v1610
  %v1643 = vadd.f32 %v1575, %v1611
  %v1644 = vadd.f32 %v1576, %v1612
  %v1645 = vadd.f32 %v1577, %v1613
  %v1646 = vadd.f32 %v1578, %v1614
  %v1647 = vadd.f32 %v1579, %v1615
  %v1648 = vadd.f32 %v1580, %v1616
  %v1649 = vadd.f32 %v1581, %v1617
  %v1650 = vadd.f32 %v1582, %v1618
  %v1651 = vadd.f32 %v1583, %v1619
  %v1652 = vadd.f32 %v1584, %v1620
  %v1653 = vadd.f32 %v1585, %v1621
  %v1654 = vadd.f32 %v1586, %v1622
  %v1655 = vadd.f32 %v1587, %v1623
  %v1656 = vadd.f32 %v1588, %v1624
  %v1657 = vadd.f32 %v1589, %v1625
  %v1658 = vadd.f32 %v1590, %v1626
  %v1659 = vadd.f32 %v1591, %v1627
  %v1660 = vadd.f32 %v1592, %v1628
  %v1661 = vadd.f32 %v1593, %v1629
  %v1662 = vadd.f32 %v1594, %v1630
  %v1663 = vadd.f32 %v1595, %v1631
  %v1664 = vadd.f32 %v1596, %v1632
  %v1665 = vadd.f32 %v1597, %v1633
  %v1666 = vadd.f32 %v1598, %v1634
  %v1667 = vadd.f32 %v1599, %v1635
  %v1668 = vadd.f32 %v1600, %v1636
  %v1669 = vadd.f32 %v1601, %v1637
  %v1670 = vadd.f32 %v1602, %v1638
  %v1671 = vld [vmem:[%s0 + $0x2a] sm:$0x1]
  %v1672 = vld [vmem:[%s0 + $0x5b] sm:$0x1]
  %v1673 = vlaneseq
  %v1674 = vshrl.u32 %v1673, 7
  %v1675 = vsub.s32 0, %v1674
  %v1676 = vrot.slane %v1671, %v1675
  %v1677 = vmul.f32 %v1676, %v767
  %v1678 = vmul.f32 %v1676, %v768
  %v1679 = vmul.f32 %v1676, %v769
  %v1680 = vmul.f32 %v1676, %v770
  %v1681 = vmul.f32 %v1676, %v771
  %v1682 = vmul.f32 %v1676, %v772
  %v1683 = vmul.f32 %v1676, %v773
  %v1684 = vmul.f32 %v1676, %v774
  %v1685 = vmul.f32 %v1676, %v775
  %v1686 = vmul.f32 %v1676, %v776
  %v1687 = vmul.f32 %v1676, %v777
  %v1688 = vmul.f32 %v1676, %v778
  %v1689 = vmul.f32 %v1676, %v779
  %v1690 = vmul.f32 %v1676, %v780
  %v1691 = vmul.f32 %v1676, %v781
  %v1692 = vmul.f32 %v1676, %v782
  %v1693 = vmul.f32 %v1676, %v783
  %v1694 = vmul.f32 %v1676, %v784
  %v1695 = vmul.f32 %v1676, %v785
  %v1696 = vmul.f32 %v1676, %v786
  %v1697 = vmul.f32 %v1676, %v787
  %v1698 = vmul.f32 %v1676, %v788
  %v1699 = vmul.f32 %v1676, %v789
  %v1700 = vmul.f32 %v1676, %v790
  %v1701 = vmul.f32 %v1676, %v791
  %v1702 = vmul.f32 %v1676, %v792
  %v1703 = vmul.f32 %v1676, %v793
  %v1704 = vmul.f32 %v1676, %v794
  %v1705 = vmul.f32 %v1676, %v795
  %v1706 = vmul.f32 %v1676, %v796
  %v1707 = vmul.f32 %v1676, %v797
  %v1708 = vmul.f32 %v1676, %v798
  %v1709 = vadd.f32 %v1639, %v1677
  %v1710 = vadd.f32 %v1640, %v1678
  %v1711 = vadd.f32 %v1641, %v1679
  %v1712 = vadd.f32 %v1642, %v1680
  %v1713 = vadd.f32 %v1643, %v1681
  %v1714 = vadd.f32 %v1644, %v1682
  %v1715 = vadd.f32 %v1645, %v1683
  %v1716 = vadd.f32 %v1646, %v1684
  %v1717 = vadd.f32 %v1647, %v1685
  %v1718 = vadd.f32 %v1648, %v1686
  %v1719 = vadd.f32 %v1649, %v1687
  %v1720 = vadd.f32 %v1650, %v1688
  %v1721 = vadd.f32 %v1651, %v1689
  %v1722 = vadd.f32 %v1652, %v1690
  %v1723 = vadd.f32 %v1653, %v1691
  %v1724 = vadd.f32 %v1654, %v1692
  %v1725 = vadd.f32 %v1655, %v1693
  %v1726 = vadd.f32 %v1656, %v1694
  %v1727 = vadd.f32 %v1657, %v1695
  %v1728 = vadd.f32 %v1658, %v1696
  %v1729 = vadd.f32 %v1659, %v1697
  %v1730 = vadd.f32 %v1660, %v1698
  %v1731 = vadd.f32 %v1661, %v1699
  %v1732 = vadd.f32 %v1662, %v1700
  %v1733 = vadd.f32 %v1663, %v1701
  %v1734 = vadd.f32 %v1664, %v1702
  %v1735 = vadd.f32 %v1665, %v1703
  %v1736 = vadd.f32 %v1666, %v1704
  %v1737 = vadd.f32 %v1667, %v1705
  %v1738 = vadd.f32 %v1668, %v1706
  %v1739 = vadd.f32 %v1669, %v1707
  %v1740 = vadd.f32 %v1670, %v1708
  %v1741 = vlaneseq
  %v1742 = vshrl.u32 %v1741, 7
  %v1743 = vsub.s32 0, %v1742
  %v1744 = vrot.slane %v1672, %v1743
  %v1745 = vmul.f32 %v1744, %v811
  %v1746 = vmul.f32 %v1744, %v812
  %v1747 = vmul.f32 %v1744, %v813
  %v1748 = vmul.f32 %v1744, %v814
  %v1749 = vmul.f32 %v1744, %v815
  %v1750 = vmul.f32 %v1744, %v816
  %v1751 = vmul.f32 %v1744, %v817
  %v1752 = vmul.f32 %v1744, %v818
  %v1753 = vmul.f32 %v1744, %v819
  %v1754 = vmul.f32 %v1744, %v820
  %v1755 = vmul.f32 %v1744, %v821
  %v1756 = vmul.f32 %v1744, %v822
  %v1757 = vmul.f32 %v1744, %v823
  %v1758 = vmul.f32 %v1744, %v824
  %v1759 = vmul.f32 %v1744, %v825
  %v1760 = vmul.f32 %v1744, %v826
  %v1761 = vmul.f32 %v1744, %v827
  %v1762 = vmul.f32 %v1744, %v828
  %v1763 = vmul.f32 %v1744, %v829
  %v1764 = vmul.f32 %v1744, %v830
  %v1765 = vmul.f32 %v1744, %v831
  %v1766 = vmul.f32 %v1744, %v832
  %v1767 = vmul.f32 %v1744, %v833
  %v1768 = vmul.f32 %v1744, %v834
  %v1769 = vmul.f32 %v1744, %v835
  %v1770 = vmul.f32 %v1744, %v836
  %v1771 = vmul.f32 %v1744, %v837
  %v1772 = vmul.f32 %v1744, %v838
  %v1773 = vmul.f32 %v1744, %v839
  %v1774 = vmul.f32 %v1744, %v840
  %v1775 = vmul.f32 %v1744, %v841
  %v1776 = vmul.f32 %v1744, %v842
  %v1777 = vadd.f32 %v1709, %v1745
  %v1778 = vadd.f32 %v1710, %v1746
  %v1779 = vadd.f32 %v1711, %v1747
  %v1780 = vadd.f32 %v1712, %v1748
  %v1781 = vadd.f32 %v1713, %v1749
  %v1782 = vadd.f32 %v1714, %v1750
  %v1783 = vadd.f32 %v1715, %v1751
  %v1784 = vadd.f32 %v1716, %v1752
  %v1785 = vadd.f32 %v1717, %v1753
  %v1786 = vadd.f32 %v1718, %v1754
  %v1787 = vadd.f32 %v1719, %v1755
  %v1788 = vadd.f32 %v1720, %v1756
  %v1789 = vadd.f32 %v1721, %v1757
  %v1790 = vadd.f32 %v1722, %v1758
  %v1791 = vadd.f32 %v1723, %v1759
  %v1792 = vadd.f32 %v1724, %v1760
  %v1793 = vadd.f32 %v1725, %v1761
  %v1794 = vadd.f32 %v1726, %v1762
  %v1795 = vadd.f32 %v1727, %v1763
  %v1796 = vadd.f32 %v1728, %v1764
  %v1797 = vadd.f32 %v1729, %v1765
  %v1798 = vadd.f32 %v1730, %v1766
  %v1799 = vadd.f32 %v1731, %v1767
  %v1800 = vadd.f32 %v1732, %v1768
  %v1801 = vadd.f32 %v1733, %v1769
  %v1802 = vadd.f32 %v1734, %v1770
  %v1803 = vadd.f32 %v1735, %v1771
  %v1804 = vadd.f32 %v1736, %v1772
  %v1805 = vadd.f32 %v1737, %v1773
  %v1806 = vadd.f32 %v1738, %v1774
  %v1807 = vadd.f32 %v1739, %v1775
  %v1808 = vadd.f32 %v1740, %v1776
  %v1809 = vld [vmem:[#allocation2 + $0x1] sm:$0xff]
  %v1810 = vld [vmem:[#allocation2 + $0x9] sm:$0xff]
  %v1811 = vld [vmem:[#allocation2 + $0x19] sm:$0xff]
  %v1812 = vld [vmem:[#allocation2 + $0x21] sm:$0xff]
  %v1813 = vld [vmem:[#allocation2 + $0x31] sm:$0xff]
  %v1814 = vld [vmem:[#allocation2 + $0x39] sm:$0xff]
  %v1815 = vld [vmem:[#allocation2 + $0x49] sm:$0xff]
  %v1816 = vld [vmem:[#allocation2 + $0x51] sm:$0xff]
  %v1817 = vld [vmem:[#allocation2 + $0x61] sm:$0xff]
  %v1818 = vld [vmem:[#allocation2 + $0x69] sm:$0xff]
  %v1819 = vld [vmem:[#allocation2 + $0x79] sm:$0xff]
  %v1820 = vld [vmem:[#allocation2 + $0x81] sm:$0xff]
  %v1821 = vld [vmem:[#allocation2 + $0x91] sm:$0xff]
  %v1822 = vld [vmem:[#allocation2 + $0x99] sm:$0xff]
  %v1823 = vld [vmem:[#allocation2 + $0xa9] sm:$0xff]
  %v1824 = vld [vmem:[#allocation2 + $0xb1] sm:$0xff]
  %v1825 = vld [vmem:[#allocation2 + $0xc1] sm:$0xff]
  %v1826 = vld [vmem:[#allocation2 + $0xc9] sm:$0xff]
  %v1827 = vld [vmem:[#allocation2 + $0xd9] sm:$0xff]
  %v1828 = vld [vmem:[#allocation2 + $0xe1] sm:$0xff]
  %v1829 = vld [vmem:[#allocation2 + $0xf1] sm:$0xff]
  %v1830 = vld [vmem:[#allocation2 + $0xf9] sm:$0xff]
  %v1831 = vld [vmem:[#allocation2 + $0x109] sm:$0xff]
  %v1832 = vld [vmem:[#allocation2 + $0x111] sm:$0xff]
  %v1833 = vld [vmem:[#allocation2 + $0x121] sm:$0xff]
  %v1834 = vld [vmem:[#allocation2 + $0x129] sm:$0xff]
  %v1835 = vld [vmem:[#allocation2 + $0x139] sm:$0xff]
  %v1836 = vld [vmem:[#allocation2 + $0x141] sm:$0xff]
  %v1837 = vld [vmem:[#allocation2 + $0x151] sm:$0xff]
  %v1838 = vld [vmem:[#allocation2 + $0x159] sm:$0xff]
  %v1839 = vld [vmem:[#allocation2 + $0x169] sm:$0xff]
  %v1840 = vld [vmem:[#allocation2 + $0x171] sm:$0xff]
  %v1841 = vld [vmem:[#allocation2 + $0x181] sm:$0xff]
  %v1842 = vld [vmem:[#allocation2 + $0x189] sm:$0xff]
  %v1843 = vld [vmem:[#allocation2 + $0x199] sm:$0xff]
  %v1844 = vld [vmem:[#allocation2 + $0x1a1] sm:$0xff]
  %v1845 = vld [vmem:[#allocation2 + $0x1b1] sm:$0xff]
  %v1846 = vld [vmem:[#allocation2 + $0x1b9] sm:$0xff]
  %v1847 = vld [vmem:[#allocation2 + $0x1c9] sm:$0xff]
  %v1848 = vld [vmem:[#allocation2 + $0x1d1] sm:$0xff]
  %v1849 = vld [vmem:[#allocation2 + $0x1e1] sm:$0xff]
  %v1850 = vld [vmem:[#allocation2 + $0x1e9] sm:$0xff]
  %v1851 = vld [vmem:[#allocation2 + $0x1f9] sm:$0xff]
  %v1852 = vld [vmem:[#allocation2 + $0x201] sm:$0xff]
  %v1853 = vld [vmem:[#allocation3 + $0x1] sm:$0xff]
  %v1854 = vld [vmem:[#allocation3 + $0x9] sm:$0xff]
  %v1855 = vld [vmem:[#allocation3 + $0x19] sm:$0xff]
  %v1856 = vld [vmem:[#allocation3 + $0x21] sm:$0xff]
  %v1857 = vld [vmem:[#allocation3 + $0x31] sm:$0xff]
  %v1858 = vld [vmem:[#allocation3 + $0x39] sm:$0xff]
  %v1859 = vld [vmem:[#allocation3 + $0x49] sm:$0xff]
  %v1860 = vld [vmem:[#allocation3 + $0x51] sm:$0xff]
  %v1861 = vld [vmem:[#allocation3 + $0x61] sm:$0xff]
  %v1862 = vld [vmem:[#allocation3 + $0x69] sm:$0xff]
  %v1863 = vld [vmem:[#allocation3 + $0x79] sm:$0xff]
  %v1864 = vld [vmem:[#allocation3 + $0x81] sm:$0xff]
  %v1865 = vld [vmem:[#allocation3 + $0x91] sm:$0xff]
  %v1866 = vld [vmem:[#allocation3 + $0x99] sm:$0xff]
  %v1867 = vld [vmem:[#allocation3 + $0xa9] sm:$0xff]
  %v1868 = vld [vmem:[#allocation3 + $0xb1] sm:$0xff]
  %v1869 = vld [vmem:[#allocation3 + $0xc1] sm:$0xff]
  %v1870 = vld [vmem:[#allocation3 + $0xc9] sm:$0xff]
  %v1871 = vld [vmem:[#allocation3 + $0xd9] sm:$0xff]
  %v1872 = vld [vmem:[#allocation3 + $0xe1] sm:$0xff]
  %v1873 = vld [vmem:[#allocation3 + $0xf1] sm:$0xff]
  %v1874 = vld [vmem:[#allocation3 + $0xf9] sm:$0xff]
  %v1875 = vld [vmem:[#allocation3 + $0x109] sm:$0xff]
  %v1876 = vld [vmem:[#allocation3 + $0x111] sm:$0xff]
  %v1877 = vld [vmem:[#allocation3 + $0x121] sm:$0xff]
  %v1878 = vld [vmem:[#allocation3 + $0x129] sm:$0xff]
  %v1879 = vld [vmem:[#allocation3 + $0x139] sm:$0xff]
  %v1880 = vld [vmem:[#allocation3 + $0x141] sm:$0xff]
  %v1881 = vld [vmem:[#allocation3 + $0x151] sm:$0xff]
  %v1882 = vld [vmem:[#allocation3 + $0x159] sm:$0xff]
  %v1883 = vld [vmem:[#allocation3 + $0x169] sm:$0xff]
  %v1884 = vld [vmem:[#allocation3 + $0x171] sm:$0xff]
  %v1885 = vld [vmem:[#allocation3 + $0x181] sm:$0xff]
  %v1886 = vld [vmem:[#allocation3 + $0x189] sm:$0xff]
  %v1887 = vld [vmem:[#allocation3 + $0x199] sm:$0xff]
  %v1888 = vld [vmem:[#allocation3 + $0x1a1] sm:$0xff]
  %v1889 = vld [vmem:[#allocation3 + $0x1b1] sm:$0xff]
  %v1890 = vld [vmem:[#allocation3 + $0x1b9] sm:$0xff]
  %v1891 = vld [vmem:[#allocation3 + $0x1c9] sm:$0xff]
  %v1892 = vld [vmem:[#allocation3 + $0x1d1] sm:$0xff]
  %v1893 = vld [vmem:[#allocation3 + $0x1e1] sm:$0xff]
  %v1894 = vld [vmem:[#allocation3 + $0x1e9] sm:$0xff]
  %v1895 = vld [vmem:[#allocation3 + $0x1f9] sm:$0xff]
  %v1896 = vld [vmem:[#allocation3 + $0x201] sm:$0xff]
  %v1897 = vld [vmem:[%s0 + $0x1] sm:$0x1]
  %v1898 = vld [vmem:[%s0 + $0x32] sm:$0x1]
  %v1899 = vlaneseq
  %v1900 = vshrl.u32 %v1899, 7
  %v1901 = vsub.s32 0, %v1900
  %v1902 = vrot.slane %v1897, %v1901
  %v1903 = vmul.f32 %v1902, %v1809
  %v1904 = vmul.f32 %v1902, %v1810
  %v1905 = vmul.f32 %v1902, %v1811
  %v1906 = vmul.f32 %v1902, %v1812
  %v1907 = vmul.f32 %v1902, %v1813
  %v1908 = vmul.f32 %v1902, %v1814
  %v1909 = vmul.f32 %v1902, %v1815
  %v1910 = vmul.f32 %v1902, %v1816
  %v1911 = vmul.f32 %v1902, %v1817
  %v1912 = vmul.f32 %v1902, %v1818
  %v1913 = vmul.f32 %v1902, %v1819
  %v1914 = vmul.f32 %v1902, %v1820
  %v1915 = vmul.f32 %v1902, %v1821
  %v1916 = vmul.f32 %v1902, %v1822
  %v1917 = vmul.f32 %v1902, %v1823
  %v1918 = vmul.f32 %v1902, %v1824
  %v1919 = vmul.f32 %v1902, %v1825
  %v1920 = vmul.f32 %v1902, %v1826
  %v1921 = vmul.f32 %v1902, %v1827
  %v1922 = vmul.f32 %v1902, %v1828
  %v1923 = vmul.f32 %v1902, %v1829
  %v1924 = vmul.f32 %v1902, %v1830
  %v1925 = vmul.f32 %v1902, %v1831
  %v1926 = vmul.f32 %v1902, %v1832
  %v1927 = vmul.f32 %v1902, %v1833
  %v1928 = vmul.f32 %v1902, %v1834
  %v1929 = vmul.f32 %v1902, %v1835
  %v1930 = vmul.f32 %v1902, %v1836
  %v1931 = vmul.f32 %v1902, %v1837
  %v1932 = vmul.f32 %v1902, %v1838
  %v1933 = vmul.f32 %v1902, %v1839
  %v1934 = vmul.f32 %v1902, %v1840
  %v1935 = vadd.f32 %v1777, %v1903
  %v1936 = vadd.f32 %v1778, %v1904
  %v1937 = vadd.f32 %v1779, %v1905
  %v1938 = vadd.f32 %v1780, %v1906
  %v1939 = vadd.f32 %v1781, %v1907
  %v1940 = vadd.f32 %v1782, %v1908
  %v1941 = vadd.f32 %v1783, %v1909
  %v1942 = vadd.f32 %v1784, %v1910
  %v1943 = vadd.f32 %v1785, %v1911
  %v1944 = vadd.f32 %v1786, %v1912
  %v1945 = vadd.f32 %v1787, %v1913
  %v1946 = vadd.f32 %v1788, %v1914
  %v1947 = vadd.f32 %v1789, %v1915
  %v1948 = vadd.f32 %v1790, %v1916
  %v1949 = vadd.f32 %v1791, %v1917
  %v1950 = vadd.f32 %v1792, %v1918
  %v1951 = vadd.f32 %v1793, %v1919
  %v1952 = vadd.f32 %v1794, %v1920
  %v1953 = vadd.f32 %v1795, %v1921
  %v1954 = vadd.f32 %v1796, %v1922
  %v1955 = vadd.f32 %v1797, %v1923
  %v1956 = vadd.f32 %v1798, %v1924
  %v1957 = vadd.f32 %v1799, %v1925
  %v1958 = vadd.f32 %v1800, %v1926
  %v1959 = vadd.f32 %v1801, %v1927
  %v1960 = vadd.f32 %v1802, %v1928
  %v1961 = vadd.f32 %v1803, %v1929
  %v1962 = vadd.f32 %v1804, %v1930
  %v1963 = vadd.f32 %v1805, %v1931
  %v1964 = vadd.f32 %v1806, %v1932
  %v1965 = vadd.f32 %v1807, %v1933
  %v1966 = vadd.f32 %v1808, %v1934
  %v1967 = vlaneseq
  %v1968 = vshrl.u32 %v1967, 7
  %v1969 = vsub.s32 0, %v1968
  %v1970 = vrot.slane %v1898, %v1969
  %v1971 = vmul.f32 %v1970, %v1853
  %v1972 = vmul.f32 %v1970, %v1854
  %v1973 = vmul.f32 %v1970, %v1855
  %v1974 = vmul.f32 %v1970, %v1856
  %v1975 = vmul.f32 %v1970, %v1857
  %v1976 = vmul.f32 %v1970, %v1858
  %v1977 = vmul.f32 %v1970, %v1859
  %v1978 = vmul.f32 %v1970, %v1860
  %v1979 = vmul.f32 %v1970, %v1861
  %v1980 = vmul.f32 %v1970, %v1862
  %v1981 = vmul.f32 %v1970, %v1863
  %v1982 = vmul.f32 %v1970, %v1864
  %v1983 = vmul.f32 %v1970, %v1865
  %v1984 = vmul.f32 %v1970, %v1866
  %v1985 = vmul.f32 %v1970, %v1867
  %v1986 = vmul.f32 %v1970, %v1868
  %v1987 = vmul.f32 %v1970, %v1869
  %v1988 = vmul.f32 %v1970, %v1870
  %v1989 = vmul.f32 %v1970, %v1871
  %v1990 = vmul.f32 %v1970, %v1872
  %v1991 = vmul.f32 %v1970, %v1873
  %v1992 = vmul.f32 %v1970, %v1874
  %v1993 = vmul.f32 %v1970, %v1875
  %v1994 = vmul.f32 %v1970, %v1876
  %v1995 = vmul.f32 %v1970, %v1877
  %v1996 = vmul.f32 %v1970, %v1878
  %v1997 = vmul.f32 %v1970, %v1879
  %v1998 = vmul.f32 %v1970, %v1880
  %v1999 = vmul.f32 %v1970, %v1881
  %v2000 = vmul.f32 %v1970, %v1882
  %v2001 = vmul.f32 %v1970, %v1883
  %v2002 = vmul.f32 %v1970, %v1884
  %v2003 = vadd.f32 %v1935, %v1971
  %v2004 = vadd.f32 %v1936, %v1972
  %v2005 = vadd.f32 %v1937, %v1973
  %v2006 = vadd.f32 %v1938, %v1974
  %v2007 = vadd.f32 %v1939, %v1975
  %v2008 = vadd.f32 %v1940, %v1976
  %v2009 = vadd.f32 %v1941, %v1977
  %v2010 = vadd.f32 %v1942, %v1978
  %v2011 = vadd.f32 %v1943, %v1979
  %v2012 = vadd.f32 %v1944, %v1980
  %v2013 = vadd.f32 %v1945, %v1981
  %v2014 = vadd.f32 %v1946, %v1982
  %v2015 = vadd.f32 %v1947, %v1983
  %v2016 = vadd.f32 %v1948, %v1984
  %v2017 = vadd.f32 %v1949, %v1985
  %v2018 = vadd.f32 %v1950, %v1986
  %v2019 = vadd.f32 %v1951, %v1987
  %v2020 = vadd.f32 %v1952, %v1988
  %v2021 = vadd.f32 %v1953, %v1989
  %v2022 = vadd.f32 %v1954, %v1990
  %v2023 = vadd.f32 %v1955, %v1991
  %v2024 = vadd.f32 %v1956, %v1992
  %v2025 = vadd.f32 %v1957, %v1993
  %v2026 = vadd.f32 %v1958, %v1994
  %v2027 = vadd.f32 %v1959, %v1995
  %v2028 = vadd.f32 %v1960, %v1996
  %v2029 = vadd.f32 %v1961, %v1997
  %v2030 = vadd.f32 %v1962, %v1998
  %v2031 = vadd.f32 %v1963, %v1999
  %v2032 = vadd.f32 %v1964, %v2000
  %v2033 = vadd.f32 %v1965, %v2001
  %v2034 = vadd.f32 %v1966, %v2002
  %v2035 = vld [vmem:[%s0 + $0x8] sm:$0x1]
  %v2036 = vld [vmem:[%s0 + $0x39] sm:$0x1]
  %v2037 = vlaneseq
  %v2038 = vshrl.u32 %v2037, 7
  %v2039 = vsub.s32 0, %v2038
  %v2040 = vrot.slane %v2035, %v2039
  %v2041 = vmul.f32 %v2040, %v1811
  %v2042 = vmul.f32 %v2040, %v1812
  %v2043 = vmul.f32 %v2040, %v1813
  %v2044 = vmul.f32 %v2040, %v1814
  %v2045 = vmul.f32 %v2040, %v1815
  %v2046 = vmul.f32 %v2040, %v1816
  %v2047 = vmul.f32 %v2040, %v1817
  %v2048 = vmul.f32 %v2040, %v1818
  %v2049 = vmul.f32 %v2040, %v1819
  %v2050 = vmul.f32 %v2040, %v1820
  %v2051 = vmul.f32 %v2040, %v1821
  %v2052 = vmul.f32 %v2040, %v1822
  %v2053 = vmul.f32 %v2040, %v1823
  %v2054 = vmul.f32 %v2040, %v1824
  %v2055 = vmul.f32 %v2040, %v1825
  %v2056 = vmul.f32 %v2040, %v1826
  %v2057 = vmul.f32 %v2040, %v1827
  %v2058 = vmul.f32 %v2040, %v1828
  %v2059 = vmul.f32 %v2040, %v1829
  %v2060 = vmul.f32 %v2040, %v1830
  %v2061 = vmul.f32 %v2040, %v1831
  %v2062 = vmul.f32 %v2040, %v1832
  %v2063 = vmul.f32 %v2040, %v1833
  %v2064 = vmul.f32 %v2040, %v1834
  %v2065 = vmul.f32 %v2040, %v1835
  %v2066 = vmul.f32 %v2040, %v1836
  %v2067 = vmul.f32 %v2040, %v1837
  %v2068 = vmul.f32 %v2040, %v1838
  %v2069 = vmul.f32 %v2040, %v1839
  %v2070 = vmul.f32 %v2040, %v1840
  %v2071 = vmul.f32 %v2040, %v1841
  %v2072 = vmul.f32 %v2040, %v1842
  %v2073 = vadd.f32 %v2003, %v2041
  %v2074 = vadd.f32 %v2004, %v2042
  %v2075 = vadd.f32 %v2005, %v2043
  %v2076 = vadd.f32 %v2006, %v2044
  %v2077 = vadd.f32 %v2007, %v2045
  %v2078 = vadd.f32 %v2008, %v2046
  %v2079 = vadd.f32 %v2009, %v2047
  %v2080 = vadd.f32 %v2010, %v2048
  %v2081 = vadd.f32 %v2011, %v2049
  %v2082 = vadd.f32 %v2012, %v2050
  %v2083 = vadd.f32 %v2013, %v2051
  %v2084 = vadd.f32 %v2014, %v2052
  %v2085 = vadd.f32 %v2015, %v2053
  %v2086 = vadd.f32 %v2016, %v2054
  %v2087 = vadd.f32 %v2017, %v2055
  %v2088 = vadd.f32 %v2018, %v2056
  %v2089 = vadd.f32 %v2019, %v2057
  %v2090 = vadd.f32 %v2020, %v2058
  %v2091 = vadd.f32 %v2021, %v2059
  %v2092 = vadd.f32 %v2022, %v2060
  %v2093 = vadd.f32 %v2023, %v2061
  %v2094 = vadd.f32 %v2024, %v2062
  %v2095 = vadd.f32 %v2025, %v2063
  %v2096 = vadd.f32 %v2026, %v2064
  %v2097 = vadd.f32 %v2027, %v2065
  %v2098 = vadd.f32 %v2028, %v2066
  %v2099 = vadd.f32 %v2029, %v2067
  %v2100 = vadd.f32 %v2030, %v2068
  %v2101 = vadd.f32 %v2031, %v2069
  %v2102 = vadd.f32 %v2032, %v2070
  %v2103 = vadd.f32 %v2033, %v2071
  %v2104 = vadd.f32 %v2034, %v2072
  %v2105 = vlaneseq
  %v2106 = vshrl.u32 %v2105, 7
  %v2107 = vsub.s32 0, %v2106
  %v2108 = vrot.slane %v2036, %v2107
  %v2109 = vmul.f32 %v2108, %v1855
  %v2110 = vmul.f32 %v2108, %v1856
  %v2111 = vmul.f32 %v2108, %v1857
  %v2112 = vmul.f32 %v2108, %v1858
  %v2113 = vmul.f32 %v2108, %v1859
  %v2114 = vmul.f32 %v2108, %v1860
  %v2115 = vmul.f32 %v2108, %v1861
  %v2116 = vmul.f32 %v2108, %v1862
  %v2117 = vmul.f32 %v2108, %v1863
  %v2118 = vmul.f32 %v2108, %v1864
  %v2119 = vmul.f32 %v2108, %v1865
  %v2120 = vmul.f32 %v2108, %v1866
  %v2121 = vmul.f32 %v2108, %v1867
  %v2122 = vmul.f32 %v2108, %v1868
  %v2123 = vmul.f32 %v2108, %v1869
  %v2124 = vmul.f32 %v2108, %v1870
  %v2125 = vmul.f32 %v2108, %v1871
  %v2126 = vmul.f32 %v2108, %v1872
  %v2127 = vmul.f32 %v2108, %v1873
  %v2128 = vmul.f32 %v2108, %v1874
  %v2129 = vmul.f32 %v2108, %v1875
  %v2130 = vmul.f32 %v2108, %v1876
  %v2131 = vmul.f32 %v2108, %v1877
  %v2132 = vmul.f32 %v2108, %v1878
  %v2133 = vmul.f32 %v2108, %v1879
  %v2134 = vmul.f32 %v2108, %v1880
  %v2135 = vmul.f32 %v2108, %v1881
  %v2136 = vmul.f32 %v2108, %v1882
  %v2137 = vmul.f32 %v2108, %v1883
  %v2138 = vmul.f32 %v2108, %v1884
  %v2139 = vmul.f32 %v2108, %v1885
  %v2140 = vmul.f32 %v2108, %v1886
  %v2141 = vadd.f32 %v2073, %v2109
  %v2142 = vadd.f32 %v2074, %v2110
  %v2143 = vadd.f32 %v2075, %v2111
  %v2144 = vadd.f32 %v2076, %v2112
  %v2145 = vadd.f32 %v2077, %v2113
  %v2146 = vadd.f32 %v2078, %v2114
  %v2147 = vadd.f32 %v2079, %v2115
  %v2148 = vadd.f32 %v2080, %v2116
  %v2149 = vadd.f32 %v2081, %v2117
  %v2150 = vadd.f32 %v2082, %v2118
  %v2151 = vadd.f32 %v2083, %v2119
  %v2152 = vadd.f32 %v2084, %v2120
  %v2153 = vadd.f32 %v2085, %v2121
  %v2154 = vadd.f32 %v2086, %v2122
  %v2155 = vadd.f32 %v2087, %v2123
  %v2156 = vadd.f32 %v2088, %v2124
  %v2157 = vadd.f32 %v2089, %v2125
  %v2158 = vadd.f32 %v2090, %v2126
  %v2159 = vadd.f32 %v2091, %v2127
  %v2160 = vadd.f32 %v2092, %v2128
  %v2161 = vadd.f32 %v2093, %v2129
  %v2162 = vadd.f32 %v2094, %v2130
  %v2163 = vadd.f32 %v2095, %v2131
  %v2164 = vadd.f32 %v2096, %v2132
  %v2165 = vadd.f32 %v2097, %v2133
  %v2166 = vadd.f32 %v2098, %v2134
  %v2167 = vadd.f32 %v2099, %v2135
  %v2168 = vadd.f32 %v2100, %v2136
  %v2169 = vadd.f32 %v2101, %v2137
  %v2170 = vadd.f32 %v2102, %v2138
  %v2171 = vadd.f32 %v2103, %v2139
  %v2172 = vadd.f32 %v2104, %v2140
  %v2173 = vld [vmem:[%s0 + $0xf] sm:$0x1]
  %v2174 = vld [vmem:[%s0 + $0x40] sm:$0x1]
  %v2175 = vlaneseq
  %v2176 = vshrl.u32 %v2175, 7
  %v2177 = vsub.s32 0, %v2176
  %v2178 = vrot.slane %v2173, %v2177
  %v2179 = vmul.f32 %v2178, %v1813
  %v2180 = vmul.f32 %v2178, %v1814
  %v2181 = vmul.f32 %v2178, %v1815
  %v2182 = vmul.f32 %v2178, %v1816
  %v2183 = vmul.f32 %v2178, %v1817
  %v2184 = vmul.f32 %v2178, %v1818
  %v2185 = vmul.f32 %v2178, %v1819
  %v2186 = vmul.f32 %v2178, %v1820
  %v2187 = vmul.f32 %v2178, %v1821
  %v2188 = vmul.f32 %v2178, %v1822
  %v2189 = vmul.f32 %v2178, %v1823
  %v2190 = vmul.f32 %v2178, %v1824
  %v2191 = vmul.f32 %v2178, %v1825
  %v2192 = vmul.f32 %v2178, %v1826
  %v2193 = vmul.f32 %v2178, %v1827
  %v2194 = vmul.f32 %v2178, %v1828
  %v2195 = vmul.f32 %v2178, %v1829
  %v2196 = vmul.f32 %v2178, %v1830
  %v2197 = vmul.f32 %v2178, %v1831
  %v2198 = vmul.f32 %v2178, %v1832
  %v2199 = vmul.f32 %v2178, %v1833
  %v2200 = vmul.f32 %v2178, %v1834
  %v2201 = vmul.f32 %v2178, %v1835
  %v2202 = vmul.f32 %v2178, %v1836
  %v2203 = vmul.f32 %v2178, %v1837
  %v2204 = vmul.f32 %v2178, %v1838
  %v2205 = vmul.f32 %v2178, %v1839
  %v2206 = vmul.f32 %v2178, %v1840
  %v2207 = vmul.f32 %v2178, %v1841
  %v2208 = vmul.f32 %v2178, %v1842
  %v2209 = vmul.f32 %v2178, %v1843
  %v2210 = vmul.f32 %v2178, %v1844
  %v2211 = vadd.f32 %v2141, %v2179
  %v2212 = vadd.f32 %v2142, %v2180
  %v2213 = vadd.f32 %v2143, %v2181
  %v2214 = vadd.f32 %v2144, %v2182
  %v2215 = vadd.f32 %v2145, %v2183
  %v2216 = vadd.f32 %v2146, %v2184
  %v2217 = vadd.f32 %v2147, %v2185
  %v2218 = vadd.f32 %v2148, %v2186
  %v2219 = vadd.f32 %v2149, %v2187
  %v2220 = vadd.f32 %v2150, %v2188
  %v2221 = vadd.f32 %v2151, %v2189
  %v2222 = vadd.f32 %v2152, %v2190
  %v2223 = vadd.f32 %v2153, %v2191
  %v2224 = vadd.f32 %v2154, %v2192
  %v2225 = vadd.f32 %v2155, %v2193
  %v2226 = vadd.f32 %v2156, %v2194
  %v2227 = vadd.f32 %v2157, %v2195
  %v2228 = vadd.f32 %v2158, %v2196
  %v2229 = vadd.f32 %v2159, %v2197
  %v2230 = vadd.f32 %v2160, %v2198
  %v2231 = vadd.f32 %v2161, %v2199
  %v2232 = vadd.f32 %v2162, %v2200
  %v2233 = vadd.f32 %v2163, %v2201
  %v2234 = vadd.f32 %v2164, %v2202
  %v2235 = vadd.f32 %v2165, %v2203
  %v2236 = vadd.f32 %v2166, %v2204
  %v2237 = vadd.f32 %v2167, %v2205
  %v2238 = vadd.f32 %v2168, %v2206
  %v2239 = vadd.f32 %v2169, %v2207
  %v2240 = vadd.f32 %v2170, %v2208
  %v2241 = vadd.f32 %v2171, %v2209
  %v2242 = vadd.f32 %v2172, %v2210
  %v2243 = vlaneseq
  %v2244 = vshrl.u32 %v2243, 7
  %v2245 = vsub.s32 0, %v2244
  %v2246 = vrot.slane %v2174, %v2245
  %v2247 = vmul.f32 %v2246, %v1857
  %v2248 = vmul.f32 %v2246, %v1858
  %v2249 = vmul.f32 %v2246, %v1859
  %v2250 = vmul.f32 %v2246, %v1860
  %v2251 = vmul.f32 %v2246, %v1861
  %v2252 = vmul.f32 %v2246, %v1862
  %v2253 = vmul.f32 %v2246, %v1863
  %v2254 = vmul.f32 %v2246, %v1864
  %v2255 = vmul.f32 %v2246, %v1865
  %v2256 = vmul.f32 %v2246, %v1866
  %v2257 = vmul.f32 %v2246, %v1867
  %v2258 = vmul.f32 %v2246, %v1868
  %v2259 = vmul.f32 %v2246, %v1869
  %v2260 = vmul.f32 %v2246, %v1870
  %v2261 = vmul.f32 %v2246, %v1871
  %v2262 = vmul.f32 %v2246, %v1872
  %v2263 = vmul.f32 %v2246, %v1873
  %v2264 = vmul.f32 %v2246, %v1874
  %v2265 = vmul.f32 %v2246, %v1875
  %v2266 = vmul.f32 %v2246, %v1876
  %v2267 = vmul.f32 %v2246, %v1877
  %v2268 = vmul.f32 %v2246, %v1878
  %v2269 = vmul.f32 %v2246, %v1879
  %v2270 = vmul.f32 %v2246, %v1880
  %v2271 = vmul.f32 %v2246, %v1881
  %v2272 = vmul.f32 %v2246, %v1882
  %v2273 = vmul.f32 %v2246, %v1883
  %v2274 = vmul.f32 %v2246, %v1884
  %v2275 = vmul.f32 %v2246, %v1885
  %v2276 = vmul.f32 %v2246, %v1886
  %v2277 = vmul.f32 %v2246, %v1887
  %v2278 = vmul.f32 %v2246, %v1888
  %v2279 = vadd.f32 %v2211, %v2247
  %v2280 = vadd.f32 %v2212, %v2248
  %v2281 = vadd.f32 %v2213, %v2249
  %v2282 = vadd.f32 %v2214, %v2250
  %v2283 = vadd.f32 %v2215, %v2251
  %v2284 = vadd.f32 %v2216, %v2252
  %v2285 = vadd.f32 %v2217, %v2253
  %v2286 = vadd.f32 %v2218, %v2254
  %v2287 = vadd.f32 %v2219, %v2255
  %v2288 = vadd.f32 %v2220, %v2256
  %v2289 = vadd.f32 %v2221, %v2257
  %v2290 = vadd.f32 %v2222, %v2258
  %v2291 = vadd.f32 %v2223, %v2259
  %v2292 = vadd.f32 %v2224, %v2260
  %v2293 = vadd.f32 %v2225, %v2261
  %v2294 = vadd.f32 %v2226, %v2262
  %v2295 = vadd.f32 %v2227, %v2263
  %v2296 = vadd.f32 %v2228, %v2264
  %v2297 = vadd.f32 %v2229, %v2265
  %v2298 = vadd.f32 %v2230, %v2266
  %v2299 = vadd.f32 %v2231, %v2267
  %v2300 = vadd.f32 %v2232, %v2268
  %v2301 = vadd.f32 %v2233, %v2269
  %v2302 = vadd.f32 %v2234, %v2270
  %v2303 = vadd.f32 %v2235, %v2271
  %v2304 = vadd.f32 %v2236, %v2272
  %v2305 = vadd.f32 %v2237, %v2273
  %v2306 = vadd.f32 %v2238, %v2274
  %v2307 = vadd.f32 %v2239, %v2275
  %v2308 = vadd.f32 %v2240, %v2276
  %v2309 = vadd.f32 %v2241, %v2277
  %v2310 = vadd.f32 %v2242, %v2278
  %v2311 = vld [vmem:[%s0 + $0x16] sm:$0x1]
  %v2312 = vld [vmem:[%s0 + $0x47] sm:$0x1]
  %v2313 = vlaneseq
  %v2314 = vshrl.u32 %v2313, 7
  %v2315 = vsub.s32 0, %v2314
  %v2316 = vrot.slane %v2311, %v2315
  %v2317 = vmul.f32 %v2316, %v1815
  %v2318 = vmul.f32 %v2316, %v1816
  %v2319 = vmul.f32 %v2316, %v1817
  %v2320 = vmul.f32 %v2316, %v1818
  %v2321 = vmul.f32 %v2316, %v1819
  %v2322 = vmul.f32 %v2316, %v1820
  %v2323 = vmul.f32 %v2316, %v1821
  %v2324 = vmul.f32 %v2316, %v1822
  %v2325 = vmul.f32 %v2316, %v1823
  %v2326 = vmul.f32 %v2316, %v1824
  %v2327 = vmul.f32 %v2316, %v1825
  %v2328 = vmul.f32 %v2316, %v1826
  %v2329 = vmul.f32 %v2316, %v1827
  %v2330 = vmul.f32 %v2316, %v1828
  %v2331 = vmul.f32 %v2316, %v1829
  %v2332 = vmul.f32 %v2316, %v1830
  %v2333 = vmul.f32 %v2316, %v1831
  %v2334 = vmul.f32 %v2316, %v1832
  %v2335 = vmul.f32 %v2316, %v1833
  %v2336 = vmul.f32 %v2316, %v1834
  %v2337 = vmul.f32 %v2316, %v1835
  %v2338 = vmul.f32 %v2316, %v1836
  %v2339 = vmul.f32 %v2316, %v1837
  %v2340 = vmul.f32 %v2316, %v1838
  %v2341 = vmul.f32 %v2316, %v1839
  %v2342 = vmul.f32 %v2316, %v1840
  %v2343 = vmul.f32 %v2316, %v1841
  %v2344 = vmul.f32 %v2316, %v1842
  %v2345 = vmul.f32 %v2316, %v1843
  %v2346 = vmul.f32 %v2316, %v1844
  %v2347 = vmul.f32 %v2316, %v1845
  %v2348 = vmul.f32 %v2316, %v1846
  %v2349 = vadd.f32 %v2279, %v2317
  %v2350 = vadd.f32 %v2280, %v2318
  %v2351 = vadd.f32 %v2281, %v2319
  %v2352 = vadd.f32 %v2282, %v2320
  %v2353 = vadd.f32 %v2283, %v2321
  %v2354 = vadd.f32 %v2284, %v2322
  %v2355 = vadd.f32 %v2285, %v2323
  %v2356 = vadd.f32 %v2286, %v2324
  %v2357 = vadd.f32 %v2287, %v2325
  %v2358 = vadd.f32 %v2288, %v2326
  %v2359 = vadd.f32 %v2289, %v2327
  %v2360 = vadd.f32 %v2290, %v2328
  %v2361 = vadd.f32 %v2291, %v2329
  %v2362 = vadd.f32 %v2292, %v2330
  %v2363 = vadd.f32 %v2293, %v2331
  %v2364 = vadd.f32 %v2294, %v2332
  %v2365 = vadd.f32 %v2295, %v2333
  %v2366 = vadd.f32 %v2296, %v2334
  %v2367 = vadd.f32 %v2297, %v2335
  %v2368 = vadd.f32 %v2298, %v2336
  %v2369 = vadd.f32 %v2299, %v2337
  %v2370 = vadd.f32 %v2300, %v2338
  %v2371 = vadd.f32 %v2301, %v2339
  %v2372 = vadd.f32 %v2302, %v2340
  %v2373 = vadd.f32 %v2303, %v2341
  %v2374 = vadd.f32 %v2304, %v2342
  %v2375 = vadd.f32 %v2305, %v2343
  %v2376 = vadd.f32 %v2306, %v2344
  %v2377 = vadd.f32 %v2307, %v2345
  %v2378 = vadd.f32 %v2308, %v2346
  %v2379 = vadd.f32 %v2309, %v2347
  %v2380 = vadd.f32 %v2310, %v2348
  %v2381 = vlaneseq
  %v2382 = vshrl.u32 %v2381, 7
  %v2383 = vsub.s32 0, %v2382
  %v2384 = vrot.slane %v2312, %v2383
  %v2385 = vmul.f32 %v2384, %v1859
  %v2386 = vmul.f32 %v2384, %v1860
  %v2387 = vmul.f32 %v2384, %v1861
  %v2388 = vmul.f32 %v2384, %v1862
  %v2389 = vmul.f32 %v2384, %v1863
  %v2390 = vmul.f32 %v2384, %v1864
  %v2391 = vmul.f32 %v2384, %v1865
  %v2392 = vmul.f32 %v2384, %v1866
  %v2393 = vmul.f32 %v2384, %v1867
  %v2394 = vmul.f32 %v2384, %v1868
  %v2395 = vmul.f32 %v2384, %v1869
  %v2396 = vmul.f32 %v2384, %v1870
  %v2397 = vmul.f32 %v2384, %v1871
  %v2398 = vmul.f32 %v2384, %v1872
  %v2399 = vmul.f32 %v2384, %v1873
  %v2400 = vmul.f32 %v2384, %v1874
  %v2401 = vmul.f32 %v2384, %v1875
  %v2402 = vmul.f32 %v2384, %v1876
  %v2403 = vmul.f32 %v2384, %v1877
  %v2404 = vmul.f32 %v2384, %v1878
  %v2405 = vmul.f32 %v2384, %v1879
  %v2406 = vmul.f32 %v2384, %v1880
  %v2407 = vmul.f32 %v2384, %v1881
  %v2408 = vmul.f32 %v2384, %v1882
  %v2409 = vmul.f32 %v2384, %v1883
  %v2410 = vmul.f32 %v2384, %v1884
  %v2411 = vmul.f32 %v2384, %v1885
  %v2412 = vmul.f32 %v2384, %v1886
  %v2413 = vmul.f32 %v2384, %v1887
  %v2414 = vmul.f32 %v2384, %v1888
  %v2415 = vmul.f32 %v2384, %v1889
  %v2416 = vmul.f32 %v2384, %v1890
  %v2417 = vadd.f32 %v2349, %v2385
  %v2418 = vadd.f32 %v2350, %v2386
  %v2419 = vadd.f32 %v2351, %v2387
  %v2420 = vadd.f32 %v2352, %v2388
  %v2421 = vadd.f32 %v2353, %v2389
  %v2422 = vadd.f32 %v2354, %v2390
  %v2423 = vadd.f32 %v2355, %v2391
  %v2424 = vadd.f32 %v2356, %v2392
  %v2425 = vadd.f32 %v2357, %v2393
  %v2426 = vadd.f32 %v2358, %v2394
  %v2427 = vadd.f32 %v2359, %v2395
  %v2428 = vadd.f32 %v2360, %v2396
  %v2429 = vadd.f32 %v2361, %v2397
  %v2430 = vadd.f32 %v2362, %v2398
  %v2431 = vadd.f32 %v2363, %v2399
  %v2432 = vadd.f32 %v2364, %v2400
  %v2433 = vadd.f32 %v2365, %v2401
  %v2434 = vadd.f32 %v2366, %v2402
  %v2435 = vadd.f32 %v2367, %v2403
  %v2436 = vadd.f32 %v2368, %v2404
  %v2437 = vadd.f32 %v2369, %v2405
  %v2438 = vadd.f32 %v2370, %v2406
  %v2439 = vadd.f32 %v2371, %v2407
  %v2440 = vadd.f32 %v2372, %v2408
  %v2441 = vadd.f32 %v2373, %v2409
  %v2442 = vadd.f32 %v2374, %v2410
  %v2443 = vadd.f32 %v2375, %v2411
  %v2444 = vadd.f32 %v2376, %v2412
  %v2445 = vadd.f32 %v2377, %v2413
  %v2446 = vadd.f32 %v2378, %v2414
  %v2447 = vadd.f32 %v2379, %v2415
  %v2448 = vadd.f32 %v2380, %v2416
  %v2449 = vld [vmem:[%s0 + $0x1d] sm:$0x1]
  %v2450 = vld [vmem:[%s0 + $0x4e] sm:$0x1]
  %v2451 = vlaneseq
  %v2452 = vshrl.u32 %v2451, 7
  %v2453 = vsub.s32 0, %v2452
  %v2454 = vrot.slane %v2449, %v2453
  %v2455 = vmul.f32 %v2454, %v1817
  %v2456 = vmul.f32 %v2454, %v1818
  %v2457 = vmul.f32 %v2454, %v1819
  %v2458 = vmul.f32 %v2454, %v1820
  %v2459 = vmul.f32 %v2454, %v1821
  %v2460 = vmul.f32 %v2454, %v1822
  %v2461 = vmul.f32 %v2454, %v1823
  %v2462 = vmul.f32 %v2454, %v1824
  %v2463 = vmul.f32 %v2454, %v1825
  %v2464 = vmul.f32 %v2454, %v1826
  %v2465 = vmul.f32 %v2454, %v1827
  %v2466 = vmul.f32 %v2454, %v1828
  %v2467 = vmul.f32 %v2454, %v1829
  %v2468 = vmul.f32 %v2454, %v1830
  %v2469 = vmul.f32 %v2454, %v1831
  %v2470 = vmul.f32 %v2454, %v1832
  %v2471 = vmul.f32 %v2454, %v1833
  %v2472 = vmul.f32 %v2454, %v1834
  %v2473 = vmul.f32 %v2454, %v1835
  %v2474 = vmul.f32 %v2454, %v1836
  %v2475 = vmul.f32 %v2454, %v1837
  %v2476 = vmul.f32 %v2454, %v1838
  %v2477 = vmul.f32 %v2454, %v1839
  %v2478 = vmul.f32 %v2454, %v1840
  %v2479 = vmul.f32 %v2454, %v1841
  %v2480 = vmul.f32 %v2454, %v1842
  %v2481 = vmul.f32 %v2454, %v1843
  %v2482 = vmul.f32 %v2454, %v1844
  %v2483 = vmul.f32 %v2454, %v1845
  %v2484 = vmul.f32 %v2454, %v1846
  %v2485 = vmul.f32 %v2454, %v1847
  %v2486 = vmul.f32 %v2454, %v1848
  %v2487 = vadd.f32 %v2417, %v2455
  %v2488 = vadd.f32 %v2418, %v2456
  %v2489 = vadd.f32 %v2419, %v2457
  %v2490 = vadd.f32 %v2420, %v2458
  %v2491 = vadd.f32 %v2421, %v2459
  %v2492 = vadd.f32 %v2422, %v2460
  %v2493 = vadd.f32 %v2423, %v2461
  %v2494 = vadd.f32 %v2424, %v2462
  %v2495 = vadd.f32 %v2425, %v2463
  %v2496 = vadd.f32 %v2426, %v2464
  %v2497 = vadd.f32 %v2427, %v2465
  %v2498 = vadd.f32 %v2428, %v2466
  %v2499 = vadd.f32 %v2429, %v2467
  %v2500 = vadd.f32 %v2430, %v2468
  %v2501 = vadd.f32 %v2431, %v2469
  %v2502 = vadd.f32 %v2432, %v2470
  %v2503 = vadd.f32 %v2433, %v2471
  %v2504 = vadd.f32 %v2434, %v2472
  %v2505 = vadd.f32 %v2435, %v2473
  %v2506 = vadd.f32 %v2436, %v2474
  %v2507 = vadd.f32 %v2437, %v2475
  %v2508 = vadd.f32 %v2438, %v2476
  %v2509 = vadd.f32 %v2439, %v2477
  %v2510 = vadd.f32 %v2440, %v2478
  %v2511 = vadd.f32 %v2441, %v2479
  %v2512 = vadd.f32 %v2442, %v2480
  %v2513 = vadd.f32 %v2443, %v2481
  %v2514 = vadd.f32 %v2444, %v2482
  %v2515 = vadd.f32 %v2445, %v2483
  %v2516 = vadd.f32 %v2446, %v2484
  %v2517 = vadd.f32 %v2447, %v2485
  %v2518 = vadd.f32 %v2448, %v2486
  %v2519 = vlaneseq
  %v2520 = vshrl.u32 %v2519, 7
  %v2521 = vsub.s32 0, %v2520
  %v2522 = vrot.slane %v2450, %v2521
  %v2523 = vmul.f32 %v2522, %v1861
  %v2524 = vmul.f32 %v2522, %v1862
  %v2525 = vmul.f32 %v2522, %v1863
  %v2526 = vmul.f32 %v2522, %v1864
  %v2527 = vmul.f32 %v2522, %v1865
  %v2528 = vmul.f32 %v2522, %v1866
  %v2529 = vmul.f32 %v2522, %v1867
  %v2530 = vmul.f32 %v2522, %v1868
  %v2531 = vmul.f32 %v2522, %v1869
  %v2532 = vmul.f32 %v2522, %v1870
  %v2533 = vmul.f32 %v2522, %v1871
  %v2534 = vmul.f32 %v2522, %v1872
  %v2535 = vmul.f32 %v2522, %v1873
  %v2536 = vmul.f32 %v2522, %v1874
  %v2537 = vmul.f32 %v2522, %v1875
  %v2538 = vmul.f32 %v2522, %v1876
  %v2539 = vmul.f32 %v2522, %v1877
  %v2540 = vmul.f32 %v2522, %v1878
  %v2541 = vmul.f32 %v2522, %v1879
  %v2542 = vmul.f32 %v2522, %v1880
  %v2543 = vmul.f32 %v2522, %v1881
  %v2544 = vmul.f32 %v2522, %v1882
  %v2545 = vmul.f32 %v2522, %v1883
  %v2546 = vmul.f32 %v2522, %v1884
  %v2547 = vmul.f32 %v2522, %v1885
  %v2548 = vmul.f32 %v2522, %v1886
  %v2549 = vmul.f32 %v2522, %v1887
  %v2550 = vmul.f32 %v2522, %v1888
  %v2551 = vmul.f32 %v2522, %v1889
  %v2552 = vmul.f32 %v2522, %v1890
  %v2553 = vmul.f32 %v2522, %v1891
  %v2554 = vmul.f32 %v2522, %v1892
  %v2555 = vadd.f32 %v2487, %v2523
  %v2556 = vadd.f32 %v2488, %v2524
  %v2557 = vadd.f32 %v2489, %v2525
  %v2558 = vadd.f32 %v2490, %v2526
  %v2559 = vadd.f32 %v2491, %v2527
  %v2560 = vadd.f32 %v2492, %v2528
  %v2561 = vadd.f32 %v2493, %v2529
  %v2562 = vadd.f32 %v2494, %v2530
  %v2563 = vadd.f32 %v2495, %v2531
  %v2564 = vadd.f32 %v2496, %v2532
  %v2565 = vadd.f32 %v2497, %v2533
  %v2566 = vadd.f32 %v2498, %v2534
  %v2567 = vadd.f32 %v2499, %v2535
  %v2568 = vadd.f32 %v2500, %v2536
  %v2569 = vadd.f32 %v2501, %v2537
  %v2570 = vadd.f32 %v2502, %v2538
  %v2571 = vadd.f32 %v2503, %v2539
  %v2572 = vadd.f32 %v2504, %v2540
  %v2573 = vadd.f32 %v2505, %v2541
  %v2574 = vadd.f32 %v2506, %v2542
  %v2575 = vadd.f32 %v2507, %v2543
  %v2576 = vadd.f32 %v2508, %v2544
  %v2577 = vadd.f32 %v2509, %v2545
  %v2578 = vadd.f32 %v2510, %v2546
  %v2579 = vadd.f32 %v2511, %v2547
  %v2580 = vadd.f32 %v2512, %v2548
  %v2581 = vadd.f32 %v2513, %v2549
  %v2582 = vadd.f32 %v2514, %v2550
  %v2583 = vadd.f32 %v2515, %v2551
  %v2584 = vadd.f32 %v2516, %v2552
  %v2585 = vadd.f32 %v2517, %v2553
  %v2586 = vadd.f32 %v2518, %v2554
  %v2587 = vld [vmem:[%s0 + $0x24] sm:$0x1]
  %v2588 = vld [vmem:[%s0 + $0x55] sm:$0x1]
  %v2589 = vlaneseq
  %v2590 = vshrl.u32 %v2589, 7
  %v2591 = vsub.s32 0, %v2590
  %v2592 = vrot.slane %v2587, %v2591
  %v2593 = vmul.f32 %v2592, %v1819
  %v2594 = vmul.f32 %v2592, %v1820
  %v2595 = vmul.f32 %v2592, %v1821
  %v2596 = vmul.f32 %v2592, %v1822
  %v2597 = vmul.f32 %v2592, %v1823
  %v2598 = vmul.f32 %v2592, %v1824
  %v2599 = vmul.f32 %v2592, %v1825
  %v2600 = vmul.f32 %v2592, %v1826
  %v2601 = vmul.f32 %v2592, %v1827
  %v2602 = vmul.f32 %v2592, %v1828
  %v2603 = vmul.f32 %v2592, %v1829
  %v2604 = vmul.f32 %v2592, %v1830
  %v2605 = vmul.f32 %v2592, %v1831
  %v2606 = vmul.f32 %v2592, %v1832
  %v2607 = vmul.f32 %v2592, %v1833
  %v2608 = vmul.f32 %v2592, %v1834
  %v2609 = vmul.f32 %v2592, %v1835
  %v2610 = vmul.f32 %v2592, %v1836
  %v2611 = vmul.f32 %v2592, %v1837
  %v2612 = vmul.f32 %v2592, %v1838
  %v2613 = vmul.f32 %v2592, %v1839
  %v2614 = vmul.f32 %v2592, %v1840
  %v2615 = vmul.f32 %v2592, %v1841
  %v2616 = vmul.f32 %v2592, %v1842
  %v2617 = vmul.f32 %v2592, %v1843
  %v2618 = vmul.f32 %v2592, %v1844
  %v2619 = vmul.f32 %v2592, %v1845
  %v2620 = vmul.f32 %v2592, %v1846
  %v2621 = vmul.f32 %v2592, %v1847
  %v2622 = vmul.f32 %v2592, %v1848
  %v2623 = vmul.f32 %v2592, %v1849
  %v2624 = vmul.f32 %v2592, %v1850
  %v2625 = vadd.f32 %v2555, %v2593
  %v2626 = vadd.f32 %v2556, %v2594
  %v2627 = vadd.f32 %v2557, %v2595
  %v2628 = vadd.f32 %v2558, %v2596
  %v2629 = vadd.f32 %v2559, %v2597
  %v2630 = vadd.f32 %v2560, %v2598
  %v2631 = vadd.f32 %v2561, %v2599
  %v2632 = vadd.f32 %v2562, %v2600
  %v2633 = vadd.f32 %v2563, %v2601
  %v2634 = vadd.f32 %v2564, %v2602
  %v2635 = vadd.f32 %v2565, %v2603
  %v2636 = vadd.f32 %v2566, %v2604
  %v2637 = vadd.f32 %v2567, %v2605
  %v2638 = vadd.f32 %v2568, %v2606
  %v2639 = vadd.f32 %v2569, %v2607
  %v2640 = vadd.f32 %v2570, %v2608
  %v2641 = vadd.f32 %v2571, %v2609
  %v2642 = vadd.f32 %v2572, %v2610
  %v2643 = vadd.f32 %v2573, %v2611
  %v2644 = vadd.f32 %v2574, %v2612
  %v2645 = vadd.f32 %v2575, %v2613
  %v2646 = vadd.f32 %v2576, %v2614
  %v2647 = vadd.f32 %v2577, %v2615
  %v2648 = vadd.f32 %v2578, %v2616
  %v2649 = vadd.f32 %v2579, %v2617
  %v2650 = vadd.f32 %v2580, %v2618
  %v2651 = vadd.f32 %v2581, %v2619
  %v2652 = vadd.f32 %v2582, %v2620
  %v2653 = vadd.f32 %v2583, %v2621
  %v2654 = vadd.f32 %v2584, %v2622
  %v2655 = vadd.f32 %v2585, %v2623
  %v2656 = vadd.f32 %v2586, %v2624
  %v2657 = vlaneseq
  %v2658 = vshrl.u32 %v2657, 7
  %v2659 = vsub.s32 0, %v2658
  %v2660 = vrot.slane %v2588, %v2659
  %v2661 = vmul.f32 %v2660, %v1863
  %v2662 = vmul.f32 %v2660, %v1864
  %v2663 = vmul.f32 %v2660, %v1865
  %v2664 = vmul.f32 %v2660, %v1866
  %v2665 = vmul.f32 %v2660, %v1867
  %v2666 = vmul.f32 %v2660, %v1868
  %v2667 = vmul.f32 %v2660, %v1869
  %v2668 = vmul.f32 %v2660, %v1870
  %v2669 = vmul.f32 %v2660, %v1871
  %v2670 = vmul.f32 %v2660, %v1872
  %v2671 = vmul.f32 %v2660, %v1873
  %v2672 = vmul.f32 %v2660, %v1874
  %v2673 = vmul.f32 %v2660, %v1875
  %v2674 = vmul.f32 %v2660, %v1876
  %v2675 = vmul.f32 %v2660, %v1877
  %v2676 = vmul.f32 %v2660, %v1878
  %v2677 = vmul.f32 %v2660, %v1879
  %v2678 = vmul.f32 %v2660, %v1880
  %v2679 = vmul.f32 %v2660, %v1881
  %v2680 = vmul.f32 %v2660, %v1882
  %v2681 = vmul.f32 %v2660, %v1883
  %v2682 = vmul.f32 %v2660, %v1884
  %v2683 = vmul.f32 %v2660, %v1885
  %v2684 = vmul.f32 %v2660, %v1886
  %v2685 = vmul.f32 %v2660, %v1887
  %v2686 = vmul.f32 %v2660, %v1888
  %v2687 = vmul.f32 %v2660, %v1889
  %v2688 = vmul.f32 %v2660, %v1890
  %v2689 = vmul.f32 %v2660, %v1891
  %v2690 = vmul.f32 %v2660, %v1892
  %v2691 = vmul.f32 %v2660, %v1893
  %v2692 = vmul.f32 %v2660, %v1894
  %v2693 = vadd.f32 %v2625, %v2661
  %v2694 = vadd.f32 %v2626, %v2662
  %v2695 = vadd.f32 %v2627, %v2663
  %v2696 = vadd.f32 %v2628, %v2664
  %v2697 = vadd.f32 %v2629, %v2665
  %v2698 = vadd.f32 %v2630, %v2666
  %v2699 = vadd.f32 %v2631, %v2667
  %v2700 = vadd.f32 %v2632, %v2668
  %v2701 = vadd.f32 %v2633, %v2669
  %v2702 = vadd.f32 %v2634, %v2670
  %v2703 = vadd.f32 %v2635, %v2671
  %v2704 = vadd.f32 %v2636, %v2672
  %v2705 = vadd.f32 %v2637, %v2673
  %v2706 = vadd.f32 %v2638, %v2674
  %v2707 = vadd.f32 %v2639, %v2675
  %v2708 = vadd.f32 %v2640, %v2676
  %v2709 = vadd.f32 %v2641, %v2677
  %v2710 = vadd.f32 %v2642, %v2678
  %v2711 = vadd.f32 %v2643, %v2679
  %v2712 = vadd.f32 %v2644, %v2680
  %v2713 = vadd.f32 %v2645, %v2681
  %v2714 = vadd.f32 %v2646, %v2682
  %v2715 = vadd.f32 %v2647, %v2683
  %v2716 = vadd.f32 %v2648, %v2684
  %v2717 = vadd.f32 %v2649, %v2685
  %v2718 = vadd.f32 %v2650, %v2686
  %v2719 = vadd.f32 %v2651, %v2687
  %v2720 = vadd.f32 %v2652, %v2688
  %v2721 = vadd.f32 %v2653, %v2689
  %v2722 = vadd.f32 %v2654, %v2690
  %v2723 = vadd.f32 %v2655, %v2691
  %v2724 = vadd.f32 %v2656, %v2692
  %v2725 = vld [vmem:[%s0 + $0x2b] sm:$0x1]
  %v2726 = vld [vmem:[%s0 + $0x5c] sm:$0x1]
  %v2727 = vlaneseq
  %v2728 = vshrl.u32 %v2727, 7
  %v2729 = vsub.s32 0, %v2728
  %v2730 = vrot.slane %v2725, %v2729
  %v2731 = vmul.f32 %v2730, %v1821
  %v2732 = vmul.f32 %v2730, %v1822
  %v2733 = vmul.f32 %v2730, %v1823
  %v2734 = vmul.f32 %v2730, %v1824
  %v2735 = vmul.f32 %v2730, %v1825
  %v2736 = vmul.f32 %v2730, %v1826
  %v2737 = vmul.f32 %v2730, %v1827
  %v2738 = vmul.f32 %v2730, %v1828
  %v2739 = vmul.f32 %v2730, %v1829
  %v2740 = vmul.f32 %v2730, %v1830
  %v2741 = vmul.f32 %v2730, %v1831
  %v2742 = vmul.f32 %v2730, %v1832
  %v2743 = vmul.f32 %v2730, %v1833
  %v2744 = vmul.f32 %v2730, %v1834
  %v2745 = vmul.f32 %v2730, %v1835
  %v2746 = vmul.f32 %v2730, %v1836
  %v2747 = vmul.f32 %v2730, %v1837
  %v2748 = vmul.f32 %v2730, %v1838
  %v2749 = vmul.f32 %v2730, %v1839
  %v2750 = vmul.f32 %v2730, %v1840
  %v2751 = vmul.f32 %v2730, %v1841
  %v2752 = vmul.f32 %v2730, %v1842
  %v2753 = vmul.f32 %v2730, %v1843
  %v2754 = vmul.f32 %v2730, %v1844
  %v2755 = vmul.f32 %v2730, %v1845
  %v2756 = vmul.f32 %v2730, %v1846
  %v2757 = vmul.f32 %v2730, %v1847
  %v2758 = vmul.f32 %v2730, %v1848
  %v2759 = vmul.f32 %v2730, %v1849
  %v2760 = vmul.f32 %v2730, %v1850
  %v2761 = vmul.f32 %v2730, %v1851
  %v2762 = vmul.f32 %v2730, %v1852
  %v2763 = vadd.f32 %v2693, %v2731
  %v2764 = vadd.f32 %v2694, %v2732
  %v2765 = vadd.f32 %v2695, %v2733
  %v2766 = vadd.f32 %v2696, %v2734
  %v2767 = vadd.f32 %v2697, %v2735
  %v2768 = vadd.f32 %v2698, %v2736
  %v2769 = vadd.f32 %v2699, %v2737
  %v2770 = vadd.f32 %v2700, %v2738
  %v2771 = vadd.f32 %v2701, %v2739
  %v2772 = vadd.f32 %v2702, %v2740
  %v2773 = vadd.f32 %v2703, %v2741
  %v2774 = vadd.f32 %v2704, %v2742
  %v2775 = vadd.f32 %v2705, %v2743
  %v2776 = vadd.f32 %v2706, %v2744
  %v2777 = vadd.f32 %v2707, %v2745
  %v2778 = vadd.f32 %v2708, %v2746
  %v2779 = vadd.f32 %v2709, %v2747
  %v2780 = vadd.f32 %v2710, %v2748
  %v2781 = vadd.f32 %v2711, %v2749
  %v2782 = vadd.f32 %v2712, %v2750
  %v2783 = vadd.f32 %v2713, %v2751
  %v2784 = vadd.f32 %v2714, %v2752
  %v2785 = vadd.f32 %v2715, %v2753
  %v2786 = vadd.f32 %v2716, %v2754
  %v2787 = vadd.f32 %v2717, %v2755
  %v2788 = vadd.f32 %v2718, %v2756
  %v2789 = vadd.f32 %v2719, %v2757
  %v2790 = vadd.f32 %v2720, %v2758
  %v2791 = vadd.f32 %v2721, %v2759
  %v2792 = vadd.f32 %v2722, %v2760
  %v2793 = vadd.f32 %v2723, %v2761
  %v2794 = vadd.f32 %v2724, %v2762
  %v2795 = vlaneseq
  %v2796 = vshrl.u32 %v2795, 7
  %v2797 = vsub.s32 0, %v2796
  %v2798 = vrot.slane %v2726, %v2797
  %v2799 = vmul.f32 %v2798, %v1865
  %v2800 = vmul.f32 %v2798, %v1866
  %v2801 = vmul.f32 %v2798, %v1867
  %v2802 = vmul.f32 %v2798, %v1868
  %v2803 = vmul.f32 %v2798, %v1869
  %v2804 = vmul.f32 %v2798, %v1870
  %v2805 = vmul.f32 %v2798, %v1871
  %v2806 = vmul.f32 %v2798, %v1872
  %v2807 = vmul.f32 %v2798, %v1873
  %v2808 = vmul.f32 %v2798, %v1874
  %v2809 = vmul.f32 %v2798, %v1875
  %v2810 = vmul.f32 %v2798, %v1876
  %v2811 = vmul.f32 %v2798, %v1877
  %v2812 = vmul.f32 %v2798, %v1878
  %v2813 = vmul.f32 %v2798, %v1879
  %v2814 = vmul.f32 %v2798, %v1880
  %v2815 = vmul.f32 %v2798, %v1881
  %v2816 = vmul.f32 %v2798, %v1882
  %v2817 = vmul.f32 %v2798, %v1883
  %v2818 = vmul.f32 %v2798, %v1884
  %v2819 = vmul.f32 %v2798, %v1885
  %v2820 = vmul.f32 %v2798, %v1886
  %v2821 = vmul.f32 %v2798, %v1887
  %v2822 = vmul.f32 %v2798, %v1888
  %v2823 = vmul.f32 %v2798, %v1889
  %v2824 = vmul.f32 %v2798, %v1890
  %v2825 = vmul.f32 %v2798, %v1891
  %v2826 = vmul.f32 %v2798, %v1892
  %v2827 = vmul.f32 %v2798, %v1893
  %v2828 = vmul.f32 %v2798, %v1894
  %v2829 = vmul.f32 %v2798, %v1895
  %v2830 = vmul.f32 %v2798, %v1896
  %v2831 = vadd.f32 %v2763, %v2799
  %v2832 = vadd.f32 %v2764, %v2800
  %v2833 = vadd.f32 %v2765, %v2801
  %v2834 = vadd.f32 %v2766, %v2802
  %v2835 = vadd.f32 %v2767, %v2803
  %v2836 = vadd.f32 %v2768, %v2804
  %v2837 = vadd.f32 %v2769, %v2805
  %v2838 = vadd.f32 %v2770, %v2806
  %v2839 = vadd.f32 %v2771, %v2807
  %v2840 = vadd.f32 %v2772, %v2808
  %v2841 = vadd.f32 %v2773, %v2809
  %v2842 = vadd.f32 %v2774, %v2810
  %v2843 = vadd.f32 %v2775, %v2811
  %v2844 = vadd.f32 %v2776, %v2812
  %v2845 = vadd.f32 %v2777, %v2813
  %v2846 = vadd.f32 %v2778, %v2814
  %v2847 = vadd.f32 %v2779, %v2815
  %v2848 = vadd.f32 %v2780, %v2816
  %v2849 = vadd.f32 %v2781, %v2817
  %v2850 = vadd.f32 %v2782, %v2818
  %v2851 = vadd.f32 %v2783, %v2819
  %v2852 = vadd.f32 %v2784, %v2820
  %v2853 = vadd.f32 %v2785, %v2821
  %v2854 = vadd.f32 %v2786, %v2822
  %v2855 = vadd.f32 %v2787, %v2823
  %v2856 = vadd.f32 %v2788, %v2824
  %v2857 = vadd.f32 %v2789, %v2825
  %v2858 = vadd.f32 %v2790, %v2826
  %v2859 = vadd.f32 %v2791, %v2827
  %v2860 = vadd.f32 %v2792, %v2828
  %v2861 = vadd.f32 %v2793, %v2829
  %v2862 = vadd.f32 %v2794, %v2830
  %v2863 = vld [vmem:[#allocation2 + $0x2] sm:$0xff]
  %v2864 = vld [vmem:[#allocation2 + $0xa] sm:$0xff]
  %v2865 = vld [vmem:[#allocation2 + $0x1a] sm:$0xff]
  %v2866 = vld [vmem:[#allocation2 + $0x22] sm:$0xff]
  %v2867 = vld [vmem:[#allocation2 + $0x32] sm:$0xff]
  %v2868 = vld [vmem:[#allocation2 + $0x3a] sm:$0xff]
  %v2869 = vld [vmem:[#allocation2 + $0x4a] sm:$0xff]
  %v2870 = vld [vmem:[#allocation2 + $0x52] sm:$0xff]
  %v2871 = vld [vmem:[#allocation2 + $0x62] sm:$0xff]
  %v2872 = vld [vmem:[#allocation2 + $0x6a] sm:$0xff]
  %v2873 = vld [vmem:[#allocation2 + $0x7a] sm:$0xff]
  %v2874 = vld [vmem:[#allocation2 + $0x82] sm:$0xff]
  %v2875 = vld [vmem:[#allocation2 + $0x92] sm:$0xff]
  %v2876 = vld [vmem:[#allocation2 + $0x9a] sm:$0xff]
  %v2877 = vld [vmem:[#allocation2 + $0xaa] sm:$0xff]
  %v2878 = vld [vmem:[#allocation2 + $0xb2] sm:$0xff]
  %v2879 = vld [vmem:[#allocation2 + $0xc2] sm:$0xff]
  %v2880 = vld [vmem:[#allocation2 + $0xca] sm:$0xff]
  %v2881 = vld [vmem:[#allocation2 + $0xda] sm:$0xff]
  %v2882 = vld [vmem:[#allocation2 + $0xe2] sm:$0xff]
  %v2883 = vld [vmem:[#allocation2 + $0xf2] sm:$0xff]
  %v2884 = vld [vmem:[#allocation2 + $0xfa] sm:$0xff]
  %v2885 = vld [vmem:[#allocation2 + $0x10a] sm:$0xff]
  %v2886 = vld [vmem:[#allocation2 + $0x112] sm:$0xff]
  %v2887 = vld [vmem:[#allocation2 + $0x122] sm:$0xff]
  %v2888 = vld [vmem:[#allocation2 + $0x12a] sm:$0xff]
  %v2889 = vld [vmem:[#allocation2 + $0x13a] sm:$0xff]
  %v2890 = vld [vmem:[#allocation2 + $0x142] sm:$0xff]
  %v2891 = vld [vmem:[#allocation2 + $0x152] sm:$0xff]
  %v2892 = vld [vmem:[#allocation2 + $0x15a] sm:$0xff]
  %v2893 = vld [vmem:[#allocation2 + $0x16a] sm:$0xff]
  %v2894 = vld [vmem:[#allocation2 + $0x172] sm:$0xff]
  %v2895 = vld [vmem:[#allocation2 + $0x182] sm:$0xff]
  %v2896 = vld [vmem:[#allocation2 + $0x18a] sm:$0xff]
  %v2897 = vld [vmem:[#allocation2 + $0x19a] sm:$0xff]
  %v2898 = vld [vmem:[#allocation2 + $0x1a2] sm:$0xff]
  %v2899 = vld [vmem:[#allocation2 + $0x1b2] sm:$0xff]
  %v2900 = vld [vmem:[#allocation2 + $0x1ba] sm:$0xff]
  %v2901 = vld [vmem:[#allocation2 + $0x1ca] sm:$0xff]
  %v2902 = vld [vmem:[#allocation2 + $0x1d2] sm:$0xff]
  %v2903 = vld [vmem:[#allocation2 + $0x1e2] sm:$0xff]
  %v2904 = vld [vmem:[#allocation2 + $0x1ea] sm:$0xff]
  %v2905 = vld [vmem:[#allocation2 + $0x1fa] sm:$0xff]
  %v2906 = vld [vmem:[#allocation2 + $0x202] sm:$0xff]
  %v2907 = vld [vmem:[#allocation3 + $0x2] sm:$0xff]
  %v2908 = vld [vmem:[#allocation3 + $0xa] sm:$0xff]
  %v2909 = vld [vmem:[#allocation3 + $0x1a] sm:$0xff]
  %v2910 = vld [vmem:[#allocation3 + $0x22] sm:$0xff]
  %v2911 = vld [vmem:[#allocation3 + $0x32] sm:$0xff]
  %v2912 = vld [vmem:[#allocation3 + $0x3a] sm:$0xff]
  %v2913 = vld [vmem:[#allocation3 + $0x4a] sm:$0xff]
  %v2914 = vld [vmem:[#allocation3 + $0x52] sm:$0xff]
  %v2915 = vld [vmem:[#allocation3 + $0x62] sm:$0xff]
  %v2916 = vld [vmem:[#allocation3 + $0x6a] sm:$0xff]
  %v2917 = vld [vmem:[#allocation3 + $0x7a] sm:$0xff]
  %v2918 = vld [vmem:[#allocation3 + $0x82] sm:$0xff]
  %v2919 = vld [vmem:[#allocation3 + $0x92] sm:$0xff]
  %v2920 = vld [vmem:[#allocation3 + $0x9a] sm:$0xff]
  %v2921 = vld [vmem:[#allocation3 + $0xaa] sm:$0xff]
  %v2922 = vld [vmem:[#allocation3 + $0xb2] sm:$0xff]
  %v2923 = vld [vmem:[#allocation3 + $0xc2] sm:$0xff]
  %v2924 = vld [vmem:[#allocation3 + $0xca] sm:$0xff]
  %v2925 = vld [vmem:[#allocation3 + $0xda] sm:$0xff]
  %v2926 = vld [vmem:[#allocation3 + $0xe2] sm:$0xff]
  %v2927 = vld [vmem:[#allocation3 + $0xf2] sm:$0xff]
  %v2928 = vld [vmem:[#allocation3 + $0xfa] sm:$0xff]
  %v2929 = vld [vmem:[#allocation3 + $0x10a] sm:$0xff]
  %v2930 = vld [vmem:[#allocation3 + $0x112] sm:$0xff]
  %v2931 = vld [vmem:[#allocation3 + $0x122] sm:$0xff]
  %v2932 = vld [vmem:[#allocation3 + $0x12a] sm:$0xff]
  %v2933 = vld [vmem:[#allocation3 + $0x13a] sm:$0xff]
  %v2934 = vld [vmem:[#allocation3 + $0x142] sm:$0xff]
  %v2935 = vld [vmem:[#allocation3 + $0x152] sm:$0xff]
  %v2936 = vld [vmem:[#allocation3 + $0x15a] sm:$0xff]
  %v2937 = vld [vmem:[#allocation3 + $0x16a] sm:$0xff]
  %v2938 = vld [vmem:[#allocation3 + $0x172] sm:$0xff]
  %v2939 = vld [vmem:[#allocation3 + $0x182] sm:$0xff]
  %v2940 = vld [vmem:[#allocation3 + $0x18a] sm:$0xff]
  %v2941 = vld [vmem:[#allocation3 + $0x19a] sm:$0xff]
  %v2942 = vld [vmem:[#allocation3 + $0x1a2] sm:$0xff]
  %v2943 = vld [vmem:[#allocation3 + $0x1b2] sm:$0xff]
  %v2944 = vld [vmem:[#allocation3 + $0x1ba] sm:$0xff]
  %v2945 = vld [vmem:[#allocation3 + $0x1ca] sm:$0xff]
  %v2946 = vld [vmem:[#allocation3 + $0x1d2] sm:$0xff]
  %v2947 = vld [vmem:[#allocation3 + $0x1e2] sm:$0xff]
  %v2948 = vld [vmem:[#allocation3 + $0x1ea] sm:$0xff]
  %v2949 = vld [vmem:[#allocation3 + $0x1fa] sm:$0xff]
  %v2950 = vld [vmem:[#allocation3 + $0x202] sm:$0xff]
  %v2951 = vld [vmem:[%s0 + $0x2] sm:$0x1]
  %v2952 = vld [vmem:[%s0 + $0x33] sm:$0x1]
  %v2953 = vlaneseq
  %v2954 = vshrl.u32 %v2953, 7
  %v2955 = vsub.s32 0, %v2954
  %v2956 = vrot.slane %v2951, %v2955
  %v2957 = vmul.f32 %v2956, %v2863
  %v2958 = vmul.f32 %v2956, %v2864
  %v2959 = vmul.f32 %v2956, %v2865
  %v2960 = vmul.f32 %v2956, %v2866
  %v2961 = vmul.f32 %v2956, %v2867
  %v2962 = vmul.f32 %v2956, %v2868
  %v2963 = vmul.f32 %v2956, %v2869
  %v2964 = vmul.f32 %v2956, %v2870
  %v2965 = vmul.f32 %v2956, %v2871
  %v2966 = vmul.f32 %v2956, %v2872
  %v2967 = vmul.f32 %v2956, %v2873
  %v2968 = vmul.f32 %v2956, %v2874
  %v2969 = vmul.f32 %v2956, %v2875
  %v2970 = vmul.f32 %v2956, %v2876
  %v2971 = vmul.f32 %v2956, %v2877
  %v2972 = vmul.f32 %v2956, %v2878
  %v2973 = vmul.f32 %v2956, %v2879
  %v2974 = vmul.f32 %v2956, %v2880
  %v2975 = vmul.f32 %v2956, %v2881
  %v2976 = vmul.f32 %v2956, %v2882
  %v2977 = vmul.f32 %v2956, %v2883
  %v2978 = vmul.f32 %v2956, %v2884
  %v2979 = vmul.f32 %v2956, %v2885
  %v2980 = vmul.f32 %v2956, %v2886
  %v2981 = vmul.f32 %v2956, %v2887
  %v2982 = vmul.f32 %v2956, %v2888
  %v2983 = vmul.f32 %v2956, %v2889
  %v2984 = vmul.f32 %v2956, %v2890
  %v2985 = vmul.f32 %v2956, %v2891
  %v2986 = vmul.f32 %v2956, %v2892
  %v2987 = vmul.f32 %v2956, %v2893
  %v2988 = vmul.f32 %v2956, %v2894
  %v2989 = vadd.f32 %v2831, %v2957
  %v2990 = vadd.f32 %v2832, %v2958
  %v2991 = vadd.f32 %v2833, %v2959
  %v2992 = vadd.f32 %v2834, %v2960
  %v2993 = vadd.f32 %v2835, %v2961
  %v2994 = vadd.f32 %v2836, %v2962
  %v2995 = vadd.f32 %v2837, %v2963
  %v2996 = vadd.f32 %v2838, %v2964
  %v2997 = vadd.f32 %v2839, %v2965
  %v2998 = vadd.f32 %v2840, %v2966
  %v2999 = vadd.f32 %v2841, %v2967
  %v3000 = vadd.f32 %v2842, %v2968
  %v3001 = vadd.f32 %v2843, %v2969
  %v3002 = vadd.f32 %v2844, %v2970
  %v3003 = vadd.f32 %v2845, %v2971
  %v3004 = vadd.f32 %v2846, %v2972
  %v3005 = vadd.f32 %v2847, %v2973
  %v3006 = vadd.f32 %v2848, %v2974
  %v3007 = vadd.f32 %v2849, %v2975
  %v3008 = vadd.f32 %v2850, %v2976
  %v3009 = vadd.f32 %v2851, %v2977
  %v3010 = vadd.f32 %v2852, %v2978
  %v3011 = vadd.f32 %v2853, %v2979
  %v3012 = vadd.f32 %v2854, %v2980
  %v3013 = vadd.f32 %v2855, %v2981
  %v3014 = vadd.f32 %v2856, %v2982
  %v3015 = vadd.f32 %v2857, %v2983
  %v3016 = vadd.f32 %v2858, %v2984
  %v3017 = vadd.f32 %v2859, %v2985
  %v3018 = vadd.f32 %v2860, %v2986
  %v3019 = vadd.f32 %v2861, %v2987
  %v3020 = vadd.f32 %v2862, %v2988
  %v3021 = vlaneseq
  %v3022 = vshrl.u32 %v3021, 7
  %v3023 = vsub.s32 0, %v3022
  %v3024 = vrot.slane %v2952, %v3023
  %v3025 = vmul.f32 %v3024, %v2907
  %v3026 = vmul.f32 %v3024, %v2908
  %v3027 = vmul.f32 %v3024, %v2909
  %v3028 = vmul.f32 %v3024, %v2910
  %v3029 = vmul.f32 %v3024, %v2911
  %v3030 = vmul.f32 %v3024, %v2912
  %v3031 = vmul.f32 %v3024, %v2913
  %v3032 = vmul.f32 %v3024, %v2914
  %v3033 = vmul.f32 %v3024, %v2915
  %v3034 = vmul.f32 %v3024, %v2916
  %v3035 = vmul.f32 %v3024, %v2917
  %v3036 = vmul.f32 %v3024, %v2918
  %v3037 = vmul.f32 %v3024, %v2919
  %v3038 = vmul.f32 %v3024, %v2920
  %v3039 = vmul.f32 %v3024, %v2921
  %v3040 = vmul.f32 %v3024, %v2922
  %v3041 = vmul.f32 %v3024, %v2923
  %v3042 = vmul.f32 %v3024, %v2924
  %v3043 = vmul.f32 %v3024, %v2925
  %v3044 = vmul.f32 %v3024, %v2926
  %v3045 = vmul.f32 %v3024, %v2927
  %v3046 = vmul.f32 %v3024, %v2928
  %v3047 = vmul.f32 %v3024, %v2929
  %v3048 = vmul.f32 %v3024, %v2930
  %v3049 = vmul.f32 %v3024, %v2931
  %v3050 = vmul.f32 %v3024, %v2932
  %v3051 = vmul.f32 %v3024, %v2933
  %v3052 = vmul.f32 %v3024, %v2934
  %v3053 = vmul.f32 %v3024, %v2935
  %v3054 = vmul.f32 %v3024, %v2936
  %v3055 = vmul.f32 %v3024, %v2937
  %v3056 = vmul.f32 %v3024, %v2938
  %v3057 = vadd.f32 %v2989, %v3025
  %v3058 = vadd.f32 %v2990, %v3026
  %v3059 = vadd.f32 %v2991, %v3027
  %v3060 = vadd.f32 %v2992, %v3028
  %v3061 = vadd.f32 %v2993, %v3029
  %v3062 = vadd.f32 %v2994, %v3030
  %v3063 = vadd.f32 %v2995, %v3031
  %v3064 = vadd.f32 %v2996, %v3032
  %v3065 = vadd.f32 %v2997, %v3033
  %v3066 = vadd.f32 %v2998, %v3034
  %v3067 = vadd.f32 %v2999, %v3035
  %v3068 = vadd.f32 %v3000, %v3036
  %v3069 = vadd.f32 %v3001, %v3037
  %v3070 = vadd.f32 %v3002, %v3038
  %v3071 = vadd.f32 %v3003, %v3039
  %v3072 = vadd.f32 %v3004, %v3040
  %v3073 = vadd.f32 %v3005, %v3041
  %v3074 = vadd.f32 %v3006, %v3042
  %v3075 = vadd.f32 %v3007, %v3043
  %v3076 = vadd.f32 %v3008, %v3044
  %v3077 = vadd.f32 %v3009, %v3045
  %v3078 = vadd.f32 %v3010, %v3046
  %v3079 = vadd.f32 %v3011, %v3047
  %v3080 = vadd.f32 %v3012, %v3048
  %v3081 = vadd.f32 %v3013, %v3049
  %v3082 = vadd.f32 %v3014, %v3050
  %v3083 = vadd.f32 %v3015, %v3051
  %v3084 = vadd.f32 %v3016, %v3052
  %v3085 = vadd.f32 %v3017, %v3053
  %v3086 = vadd.f32 %v3018, %v3054
  %v3087 = vadd.f32 %v3019, %v3055
  %v3088 = vadd.f32 %v3020, %v3056
  %v3089 = vld [vmem:[%s0 + $0x9] sm:$0x1]
  %v3090 = vld [vmem:[%s0 + $0x3a] sm:$0x1]
  %v3091 = vlaneseq
  %v3092 = vshrl.u32 %v3091, 7
  %v3093 = vsub.s32 0, %v3092
  %v3094 = vrot.slane %v3089, %v3093
  %v3095 = vmul.f32 %v3094, %v2865
  %v3096 = vmul.f32 %v3094, %v2866
  %v3097 = vmul.f32 %v3094, %v2867
  %v3098 = vmul.f32 %v3094, %v2868
  %v3099 = vmul.f32 %v3094, %v2869
  %v3100 = vmul.f32 %v3094, %v2870
  %v3101 = vmul.f32 %v3094, %v2871
  %v3102 = vmul.f32 %v3094, %v2872
  %v3103 = vmul.f32 %v3094, %v2873
  %v3104 = vmul.f32 %v3094, %v2874
  %v3105 = vmul.f32 %v3094, %v2875
  %v3106 = vmul.f32 %v3094, %v2876
  %v3107 = vmul.f32 %v3094, %v2877
  %v3108 = vmul.f32 %v3094, %v2878
  %v3109 = vmul.f32 %v3094, %v2879
  %v3110 = vmul.f32 %v3094, %v2880
  %v3111 = vmul.f32 %v3094, %v2881
  %v3112 = vmul.f32 %v3094, %v2882
  %v3113 = vmul.f32 %v3094, %v2883
  %v3114 = vmul.f32 %v3094, %v2884
  %v3115 = vmul.f32 %v3094, %v2885
  %v3116 = vmul.f32 %v3094, %v2886
  %v3117 = vmul.f32 %v3094, %v2887
  %v3118 = vmul.f32 %v3094, %v2888
  %v3119 = vmul.f32 %v3094, %v2889
  %v3120 = vmul.f32 %v3094, %v2890
  %v3121 = vmul.f32 %v3094, %v2891
  %v3122 = vmul.f32 %v3094, %v2892
  %v3123 = vmul.f32 %v3094, %v2893
  %v3124 = vmul.f32 %v3094, %v2894
  %v3125 = vmul.f32 %v3094, %v2895
  %v3126 = vmul.f32 %v3094, %v2896
  %v3127 = vadd.f32 %v3057, %v3095
  %v3128 = vadd.f32 %v3058, %v3096
  %v3129 = vadd.f32 %v3059, %v3097
  %v3130 = vadd.f32 %v3060, %v3098
  %v3131 = vadd.f32 %v3061, %v3099
  %v3132 = vadd.f32 %v3062, %v3100
  %v3133 = vadd.f32 %v3063, %v3101
  %v3134 = vadd.f32 %v3064, %v3102
  %v3135 = vadd.f32 %v3065, %v3103
  %v3136 = vadd.f32 %v3066, %v3104
  %v3137 = vadd.f32 %v3067, %v3105
  %v3138 = vadd.f32 %v3068, %v3106
  %v3139 = vadd.f32 %v3069, %v3107
  %v3140 = vadd.f32 %v3070, %v3108
  %v3141 = vadd.f32 %v3071, %v3109
  %v3142 = vadd.f32 %v3072, %v3110
  %v3143 = vadd.f32 %v3073, %v3111
  %v3144 = vadd.f32 %v3074, %v3112
  %v3145 = vadd.f32 %v3075, %v3113
  %v3146 = vadd.f32 %v3076, %v3114
  %v3147 = vadd.f32 %v3077, %v3115
  %v3148 = vadd.f32 %v3078, %v3116
  %v3149 = vadd.f32 %v3079, %v3117
  %v3150 = vadd.f32 %v3080, %v3118
  %v3151 = vadd.f32 %v3081, %v3119
  %v3152 = vadd.f32 %v3082, %v3120
  %v3153 = vadd.f32 %v3083, %v3121
  %v3154 = vadd.f32 %v3084, %v3122
  %v3155 = vadd.f32 %v3085, %v3123
  %v3156 = vadd.f32 %v3086, %v3124
  %v3157 = vadd.f32 %v3087, %v3125
  %v3158 = vadd.f32 %v3088, %v3126
  %v3159 = vlaneseq
  %v3160 = vshrl.u32 %v3159, 7
  %v3161 = vsub.s32 0, %v3160
  %v3162 = vrot.slane %v3090, %v3161
  %v3163 = vmul.f32 %v3162, %v2909
  %v3164 = vmul.f32 %v3162, %v2910
  %v3165 = vmul.f32 %v3162, %v2911
  %v3166 = vmul.f32 %v3162, %v2912
  %v3167 = vmul.f32 %v3162, %v2913
  %v3168 = vmul.f32 %v3162, %v2914
  %v3169 = vmul.f32 %v3162, %v2915
  %v3170 = vmul.f32 %v3162, %v2916
  %v3171 = vmul.f32 %v3162, %v2917
  %v3172 = vmul.f32 %v3162, %v2918
  %v3173 = vmul.f32 %v3162, %v2919
  %v3174 = vmul.f32 %v3162, %v2920
  %v3175 = vmul.f32 %v3162, %v2921
  %v3176 = vmul.f32 %v3162, %v2922
  %v3177 = vmul.f32 %v3162, %v2923
  %v3178 = vmul.f32 %v3162, %v2924
  %v3179 = vmul.f32 %v3162, %v2925
  %v3180 = vmul.f32 %v3162, %v2926
  %v3181 = vmul.f32 %v3162, %v2927
  %v3182 = vmul.f32 %v3162, %v2928
  %v3183 = vmul.f32 %v3162, %v2929
  %v3184 = vmul.f32 %v3162, %v2930
  %v3185 = vmul.f32 %v3162, %v2931
  %v3186 = vmul.f32 %v3162, %v2932
  %v3187 = vmul.f32 %v3162, %v2933
  %v3188 = vmul.f32 %v3162, %v2934
  %v3189 = vmul.f32 %v3162, %v2935
  %v3190 = vmul.f32 %v3162, %v2936
  %v3191 = vmul.f32 %v3162, %v2937
  %v3192 = vmul.f32 %v3162, %v2938
  %v3193 = vmul.f32 %v3162, %v2939
  %v3194 = vmul.f32 %v3162, %v2940
  %v3195 = vadd.f32 %v3127, %v3163
  %v3196 = vadd.f32 %v3128, %v3164
  %v3197 = vadd.f32 %v3129, %v3165
  %v3198 = vadd.f32 %v3130, %v3166
  %v3199 = vadd.f32 %v3131, %v3167
  %v3200 = vadd.f32 %v3132, %v3168
  %v3201 = vadd.f32 %v3133, %v3169
  %v3202 = vadd.f32 %v3134, %v3170
  %v3203 = vadd.f32 %v3135, %v3171
  %v3204 = vadd.f32 %v3136, %v3172
  %v3205 = vadd.f32 %v3137, %v3173
  %v3206 = vadd.f32 %v3138, %v3174
  %v3207 = vadd.f32 %v3139, %v3175
  %v3208 = vadd.f32 %v3140, %v3176
  %v3209 = vadd.f32 %v3141, %v3177
  %v3210 = vadd.f32 %v3142, %v3178
  %v3211 = vadd.f32 %v3143, %v3179
  %v3212 = vadd.f32 %v3144, %v3180
  %v3213 = vadd.f32 %v3145, %v3181
  %v3214 = vadd.f32 %v3146, %v3182
  %v3215 = vadd.f32 %v3147, %v3183
  %v3216 = vadd.f32 %v3148, %v3184
  %v3217 = vadd.f32 %v3149, %v3185
  %v3218 = vadd.f32 %v3150, %v3186
  %v3219 = vadd.f32 %v3151, %v3187
  %v3220 = vadd.f32 %v3152, %v3188
  %v3221 = vadd.f32 %v3153, %v3189
  %v3222 = vadd.f32 %v3154, %v3190
  %v3223 = vadd.f32 %v3155, %v3191
  %v3224 = vadd.f32 %v3156, %v3192
  %v3225 = vadd.f32 %v3157, %v3193
  %v3226 = vadd.f32 %v3158, %v3194
  %v3227 = vld [vmem:[%s0 + $0x10] sm:$0x1]
  %v3228 = vld [vmem:[%s0 + $0x41] sm:$0x1]
  %v3229 = vlaneseq
  %v3230 = vshrl.u32 %v3229, 7
  %v3231 = vsub.s32 0, %v3230
  %v3232 = vrot.slane %v3227, %v3231
  %v3233 = vmul.f32 %v3232, %v2867
  %v3234 = vmul.f32 %v3232, %v2868
  %v3235 = vmul.f32 %v3232, %v2869
  %v3236 = vmul.f32 %v3232, %v2870
  %v3237 = vmul.f32 %v3232, %v2871
  %v3238 = vmul.f32 %v3232, %v2872
  %v3239 = vmul.f32 %v3232, %v2873
  %v3240 = vmul.f32 %v3232, %v2874
  %v3241 = vmul.f32 %v3232, %v2875
  %v3242 = vmul.f32 %v3232, %v2876
  %v3243 = vmul.f32 %v3232, %v2877
  %v3244 = vmul.f32 %v3232, %v2878
  %v3245 = vmul.f32 %v3232, %v2879
  %v3246 = vmul.f32 %v3232, %v2880
  %v3247 = vmul.f32 %v3232, %v2881
  %v3248 = vmul.f32 %v3232, %v2882
  %v3249 = vmul.f32 %v3232, %v2883
  %v3250 = vmul.f32 %v3232, %v2884
  %v3251 = vmul.f32 %v3232, %v2885
  %v3252 = vmul.f32 %v3232, %v2886
  %v3253 = vmul.f32 %v3232, %v2887
  %v3254 = vmul.f32 %v3232, %v2888
  %v3255 = vmul.f32 %v3232, %v2889
  %v3256 = vmul.f32 %v3232, %v2890
  %v3257 = vmul.f32 %v3232, %v2891
  %v3258 = vmul.f32 %v3232, %v2892
  %v3259 = vmul.f32 %v3232, %v2893
  %v3260 = vmul.f32 %v3232, %v2894
  %v3261 = vmul.f32 %v3232, %v2895
  %v3262 = vmul.f32 %v3232, %v2896
  %v3263 = vmul.f32 %v3232, %v2897
  %v3264 = vmul.f32 %v3232, %v2898
  %v3265 = vadd.f32 %v3195, %v3233
  %v3266 = vadd.f32 %v3196, %v3234
  %v3267 = vadd.f32 %v3197, %v3235
  %v3268 = vadd.f32 %v3198, %v3236
  %v3269 = vadd.f32 %v3199, %v3237
  %v3270 = vadd.f32 %v3200, %v3238
  %v3271 = vadd.f32 %v3201, %v3239
  %v3272 = vadd.f32 %v3202, %v3240
  %v3273 = vadd.f32 %v3203, %v3241
  %v3274 = vadd.f32 %v3204, %v3242
  %v3275 = vadd.f32 %v3205, %v3243
  %v3276 = vadd.f32 %v3206, %v3244
  %v3277 = vadd.f32 %v3207, %v3245
  %v3278 = vadd.f32 %v3208, %v3246
  %v3279 = vadd.f32 %v3209, %v3247
  %v3280 = vadd.f32 %v3210, %v3248
  %v3281 = vadd.f32 %v3211, %v3249
  %v3282 = vadd.f32 %v3212, %v3250
  %v3283 = vadd.f32 %v3213, %v3251
  %v3284 = vadd.f32 %v3214, %v3252
  %v3285 = vadd.f32 %v3215, %v3253
  %v3286 = vadd.f32 %v3216, %v3254
  %v3287 = vadd.f32 %v3217, %v3255
  %v3288 = vadd.f32 %v3218, %v3256
  %v3289 = vadd.f32 %v3219, %v3257
  %v3290 = vadd.f32 %v3220, %v3258
  %v3291 = vadd.f32 %v3221, %v3259
  %v3292 = vadd.f32 %v3222, %v3260
  %v3293 = vadd.f32 %v3223, %v3261
  %v3294 = vadd.f32 %v3224, %v3262
  %v3295 = vadd.f32 %v3225, %v3263
  %v3296 = vadd.f32 %v3226, %v3264
  %v3297 = vlaneseq
  %v3298 = vshrl.u32 %v3297, 7
  %v3299 = vsub.s32 0, %v3298
  %v3300 = vrot.slane %v3228, %v3299
  %v3301 = vmul.f32 %v3300, %v2911
  %v3302 = vmul.f32 %v3300, %v2912
  %v3303 = vmul.f32 %v3300, %v2913
  %v3304 = vmul.f32 %v3300, %v2914
  %v3305 = vmul.f32 %v3300, %v2915
  %v3306 = vmul.f32 %v3300, %v2916
  %v3307 = vmul.f32 %v3300, %v2917
  %v3308 = vmul.f32 %v3300, %v2918
  %v3309 = vmul.f32 %v3300, %v2919
  %v3310 = vmul.f32 %v3300, %v2920
  %v3311 = vmul.f32 %v3300, %v2921
  %v3312 = vmul.f32 %v3300, %v2922
  %v3313 = vmul.f32 %v3300, %v2923
  %v3314 = vmul.f32 %v3300, %v2924
  %v3315 = vmul.f32 %v3300, %v2925
  %v3316 = vmul.f32 %v3300, %v2926
  %v3317 = vmul.f32 %v3300, %v2927
  %v3318 = vmul.f32 %v3300, %v2928
  %v3319 = vmul.f32 %v3300, %v2929
  %v3320 = vmul.f32 %v3300, %v2930
  %v3321 = vmul.f32 %v3300, %v2931
  %v3322 = vmul.f32 %v3300, %v2932
  %v3323 = vmul.f32 %v3300, %v2933
  %v3324 = vmul.f32 %v3300, %v2934
  %v3325 = vmul.f32 %v3300, %v2935
  %v3326 = vmul.f32 %v3300, %v2936
  %v3327 = vmul.f32 %v3300, %v2937
  %v3328 = vmul.f32 %v3300, %v2938
  %v3329 = vmul.f32 %v3300, %v2939
  %v3330 = vmul.f32 %v3300, %v2940
  %v3331 = vmul.f32 %v3300, %v2941
  %v3332 = vmul.f32 %v3300, %v2942
  %v3333 = vadd.f32 %v3265, %v3301
  %v3334 = vadd.f32 %v3266, %v3302
  %v3335 = vadd.f32 %v3267, %v3303
  %v3336 = vadd.f32 %v3268, %v3304
  %v3337 = vadd.f32 %v3269, %v3305
  %v3338 = vadd.f32 %v3270, %v3306
  %v3339 = vadd.f32 %v3271, %v3307
  %v3340 = vadd.f32 %v3272, %v3308
  %v3341 = vadd.f32 %v3273, %v3309
  %v3342 = vadd.f32 %v3274, %v3310
  %v3343 = vadd.f32 %v3275, %v3311
  %v3344 = vadd.f32 %v3276, %v3312
  %v3345 = vadd.f32 %v3277, %v3313
  %v3346 = vadd.f32 %v3278, %v3314
  %v3347 = vadd.f32 %v3279, %v3315
  %v3348 = vadd.f32 %v3280, %v3316
  %v3349 = vadd.f32 %v3281, %v3317
  %v3350 = vadd.f32 %v3282, %v3318
  %v3351 = vadd.f32 %v3283, %v3319
  %v3352 = vadd.f32 %v3284, %v3320
  %v3353 = vadd.f32 %v3285, %v3321
  %v3354 = vadd.f32 %v3286, %v3322
  %v3355 = vadd.f32 %v3287, %v3323
  %v3356 = vadd.f32 %v3288, %v3324
  %v3357 = vadd.f32 %v3289, %v3325
  %v3358 = vadd.f32 %v3290, %v3326
  %v3359 = vadd.f32 %v3291, %v3327
  %v3360 = vadd.f32 %v3292, %v3328
  %v3361 = vadd.f32 %v3293, %v3329
  %v3362 = vadd.f32 %v3294, %v3330
  %v3363 = vadd.f32 %v3295, %v3331
  %v3364 = vadd.f32 %v3296, %v3332
  %v3365 = vld [vmem:[%s0 + $0x17] sm:$0x1]
  %v3366 = vld [vmem:[%s0 + $0x48] sm:$0x1]
  %v3367 = vlaneseq
  %v3368 = vshrl.u32 %v3367, 7
  %v3369 = vsub.s32 0, %v3368
  %v3370 = vrot.slane %v3365, %v3369
  %v3371 = vmul.f32 %v3370, %v2869
  %v3372 = vmul.f32 %v3370, %v2870
  %v3373 = vmul.f32 %v3370, %v2871
  %v3374 = vmul.f32 %v3370, %v2872
  %v3375 = vmul.f32 %v3370, %v2873
  %v3376 = vmul.f32 %v3370, %v2874
  %v3377 = vmul.f32 %v3370, %v2875
  %v3378 = vmul.f32 %v3370, %v2876
  %v3379 = vmul.f32 %v3370, %v2877
  %v3380 = vmul.f32 %v3370, %v2878
  %v3381 = vmul.f32 %v3370, %v2879
  %v3382 = vmul.f32 %v3370, %v2880
  %v3383 = vmul.f32 %v3370, %v2881
  %v3384 = vmul.f32 %v3370, %v2882
  %v3385 = vmul.f32 %v3370, %v2883
  %v3386 = vmul.f32 %v3370, %v2884
  %v3387 = vmul.f32 %v3370, %v2885
  %v3388 = vmul.f32 %v3370, %v2886
  %v3389 = vmul.f32 %v3370, %v2887
  %v3390 = vmul.f32 %v3370, %v2888
  %v3391 = vmul.f32 %v3370, %v2889
  %v3392 = vmul.f32 %v3370, %v2890
  %v3393 = vmul.f32 %v3370, %v2891
  %v3394 = vmul.f32 %v3370, %v2892
  %v3395 = vmul.f32 %v3370, %v2893
  %v3396 = vmul.f32 %v3370, %v2894
  %v3397 = vmul.f32 %v3370, %v2895
  %v3398 = vmul.f32 %v3370, %v2896
  %v3399 = vmul.f32 %v3370, %v2897
  %v3400 = vmul.f32 %v3370, %v2898
  %v3401 = vmul.f32 %v3370, %v2899
  %v3402 = vmul.f32 %v3370, %v2900
  %v3403 = vadd.f32 %v3333, %v3371
  %v3404 = vadd.f32 %v3334, %v3372
  %v3405 = vadd.f32 %v3335, %v3373
  %v3406 = vadd.f32 %v3336, %v3374
  %v3407 = vadd.f32 %v3337, %v3375
  %v3408 = vadd.f32 %v3338, %v3376
  %v3409 = vadd.f32 %v3339, %v3377
  %v3410 = vadd.f32 %v3340, %v3378
  %v3411 = vadd.f32 %v3341, %v3379
  %v3412 = vadd.f32 %v3342, %v3380
  %v3413 = vadd.f32 %v3343, %v3381
  %v3414 = vadd.f32 %v3344, %v3382
  %v3415 = vadd.f32 %v3345, %v3383
  %v3416 = vadd.f32 %v3346, %v3384
  %v3417 = vadd.f32 %v3347, %v3385
  %v3418 = vadd.f32 %v3348, %v3386
  %v3419 = vadd.f32 %v3349, %v3387
  %v3420 = vadd.f32 %v3350, %v3388
  %v3421 = vadd.f32 %v3351, %v3389
  %v3422 = vadd.f32 %v3352, %v3390
  %v3423 = vadd.f32 %v3353, %v3391
  %v3424 = vadd.f32 %v3354, %v3392
  %v3425 = vadd.f32 %v3355, %v3393
  %v3426 = vadd.f32 %v3356, %v3394
  %v3427 = vadd.f32 %v3357, %v3395
  %v3428 = vadd.f32 %v3358, %v3396
  %v3429 = vadd.f32 %v3359, %v3397
  %v3430 = vadd.f32 %v3360, %v3398
  %v3431 = vadd.f32 %v3361, %v3399
  %v3432 = vadd.f32 %v3362, %v3400
  %v3433 = vadd.f32 %v3363, %v3401
  %v3434 = vadd.f32 %v3364, %v3402
  %v3435 = vlaneseq
  %v3436 = vshrl.u32 %v3435, 7
  %v3437 = vsub.s32 0, %v3436
  %v3438 = vrot.slane %v3366, %v3437
  %v3439 = vmul.f32 %v3438, %v2913
  %v3440 = vmul.f32 %v3438, %v2914
  %v3441 = vmul.f32 %v3438, %v2915
  %v3442 = vmul.f32 %v3438, %v2916
  %v3443 = vmul.f32 %v3438, %v2917
  %v3444 = vmul.f32 %v3438, %v2918
  %v3445 = vmul.f32 %v3438, %v2919
  %v3446 = vmul.f32 %v3438, %v2920
  %v3447 = vmul.f32 %v3438, %v2921
  %v3448 = vmul.f32 %v3438, %v2922
  %v3449 = vmul.f32 %v3438, %v2923
  %v3450 = vmul.f32 %v3438, %v2924
  %v3451 = vmul.f32 %v3438, %v2925
  %v3452 = vmul.f32 %v3438, %v2926
  %v3453 = vmul.f32 %v3438, %v2927
  %v3454 = vmul.f32 %v3438, %v2928
  %v3455 = vmul.f32 %v3438, %v2929
  %v3456 = vmul.f32 %v3438, %v2930
  %v3457 = vmul.f32 %v3438, %v2931
  %v3458 = vmul.f32 %v3438, %v2932
  %v3459 = vmul.f32 %v3438, %v2933
  %v3460 = vmul.f32 %v3438, %v2934
  %v3461 = vmul.f32 %v3438, %v2935
  %v3462 = vmul.f32 %v3438, %v2936
  %v3463 = vmul.f32 %v3438, %v2937
  %v3464 = vmul.f32 %v3438, %v2938
  %v3465 = vmul.f32 %v3438, %v2939
  %v3466 = vmul.f32 %v3438, %v2940
  %v3467 = vmul.f32 %v3438, %v2941
  %v3468 = vmul.f32 %v3438, %v2942
  %v3469 = vmul.f32 %v3438, %v2943
  %v3470 = vmul.f32 %v3438, %v2944
  %v3471 = vadd.f32 %v3403, %v3439
  %v3472 = vadd.f32 %v3404, %v3440
  %v3473 = vadd.f32 %v3405, %v3441
  %v3474 = vadd.f32 %v3406, %v3442
  %v3475 = vadd.f32 %v3407, %v3443
  %v3476 = vadd.f32 %v3408, %v3444
  %v3477 = vadd.f32 %v3409, %v3445
  %v3478 = vadd.f32 %v3410, %v3446
  %v3479 = vadd.f32 %v3411, %v3447
  %v3480 = vadd.f32 %v3412, %v3448
  %v3481 = vadd.f32 %v3413, %v3449
  %v3482 = vadd.f32 %v3414, %v3450
  %v3483 = vadd.f32 %v3415, %v3451
  %v3484 = vadd.f32 %v3416, %v3452
  %v3485 = vadd.f32 %v3417, %v3453
  %v3486 = vadd.f32 %v3418, %v3454
  %v3487 = vadd.f32 %v3419, %v3455
  %v3488 = vadd.f32 %v3420, %v3456
  %v3489 = vadd.f32 %v3421, %v3457
  %v3490 = vadd.f32 %v3422, %v3458
  %v3491 = vadd.f32 %v3423, %v3459
  %v3492 = vadd.f32 %v3424, %v3460
  %v3493 = vadd.f32 %v3425, %v3461
  %v3494 = vadd.f32 %v3426, %v3462
  %v3495 = vadd.f32 %v3427, %v3463
  %v3496 = vadd.f32 %v3428, %v3464
  %v3497 = vadd.f32 %v3429, %v3465
  %v3498 = vadd.f32 %v3430, %v3466
  %v3499 = vadd.f32 %v3431, %v3467
  %v3500 = vadd.f32 %v3432, %v3468
  %v3501 = vadd.f32 %v3433, %v3469
  %v3502 = vadd.f32 %v3434, %v3470
  %v3503 = vld [vmem:[%s0 + $0x1e] sm:$0x1]
  %v3504 = vld [vmem:[%s0 + $0x4f] sm:$0x1]
  %v3505 = vlaneseq
  %v3506 = vshrl.u32 %v3505, 7
  %v3507 = vsub.s32 0, %v3506
  %v3508 = vrot.slane %v3503, %v3507
  %v3509 = vmul.f32 %v3508, %v2871
  %v3510 = vmul.f32 %v3508, %v2872
  %v3511 = vmul.f32 %v3508, %v2873
  %v3512 = vmul.f32 %v3508, %v2874
  %v3513 = vmul.f32 %v3508, %v2875
  %v3514 = vmul.f32 %v3508, %v2876
  %v3515 = vmul.f32 %v3508, %v2877
  %v3516 = vmul.f32 %v3508, %v2878
  %v3517 = vmul.f32 %v3508, %v2879
  %v3518 = vmul.f32 %v3508, %v2880
  %v3519 = vmul.f32 %v3508, %v2881
  %v3520 = vmul.f32 %v3508, %v2882
  %v3521 = vmul.f32 %v3508, %v2883
  %v3522 = vmul.f32 %v3508, %v2884
  %v3523 = vmul.f32 %v3508, %v2885
  %v3524 = vmul.f32 %v3508, %v2886
  %v3525 = vmul.f32 %v3508, %v2887
  %v3526 = vmul.f32 %v3508, %v2888
  %v3527 = vmul.f32 %v3508, %v2889
  %v3528 = vmul.f32 %v3508, %v2890
  %v3529 = vmul.f32 %v3508, %v2891
  %v3530 = vmul.f32 %v3508, %v2892
  %v3531 = vmul.f32 %v3508, %v2893
  %v3532 = vmul.f32 %v3508, %v2894
  %v3533 = vmul.f32 %v3508, %v2895
  %v3534 = vmul.f32 %v3508, %v2896
  %v3535 = vmul.f32 %v3508, %v2897
  %v3536 = vmul.f32 %v3508, %v2898
  %v3537 = vmul.f32 %v3508, %v2899
  %v3538 = vmul.f32 %v3508, %v2900
  %v3539 = vmul.f32 %v3508, %v2901
  %v3540 = vmul.f32 %v3508, %v2902
  %v3541 = vadd.f32 %v3471, %v3509
  %v3542 = vadd.f32 %v3472, %v3510
  %v3543 = vadd.f32 %v3473, %v3511
  %v3544 = vadd.f32 %v3474, %v3512
  %v3545 = vadd.f32 %v3475, %v3513
  %v3546 = vadd.f32 %v3476, %v3514
  %v3547 = vadd.f32 %v3477, %v3515
  %v3548 = vadd.f32 %v3478, %v3516
  %v3549 = vadd.f32 %v3479, %v3517
  %v3550 = vadd.f32 %v3480, %v3518
  %v3551 = vadd.f32 %v3481, %v3519
  %v3552 = vadd.f32 %v3482, %v3520
  %v3553 = vadd.f32 %v3483, %v3521
  %v3554 = vadd.f32 %v3484, %v3522
  %v3555 = vadd.f32 %v3485, %v3523
  %v3556 = vadd.f32 %v3486, %v3524
  %v3557 = vadd.f32 %v3487, %v3525
  %v3558 = vadd.f32 %v3488, %v3526
  %v3559 = vadd.f32 %v3489, %v3527
  %v3560 = vadd.f32 %v3490, %v3528
  %v3561 = vadd.f32 %v3491, %v3529
  %v3562 = vadd.f32 %v3492, %v3530
  %v3563 = vadd.f32 %v3493, %v3531
  %v3564 = vadd.f32 %v3494, %v3532
  %v3565 = vadd.f32 %v3495, %v3533
  %v3566 = vadd.f32 %v3496, %v3534
  %v3567 = vadd.f32 %v3497, %v3535
  %v3568 = vadd.f32 %v3498, %v3536
  %v3569 = vadd.f32 %v3499, %v3537
  %v3570 = vadd.f32 %v3500, %v3538
  %v3571 = vadd.f32 %v3501, %v3539
  %v3572 = vadd.f32 %v3502, %v3540
  %v3573 = vlaneseq
  %v3574 = vshrl.u32 %v3573, 7
  %v3575 = vsub.s32 0, %v3574
  %v3576 = vrot.slane %v3504, %v3575
  %v3577 = vmul.f32 %v3576, %v2915
  %v3578 = vmul.f32 %v3576, %v2916
  %v3579 = vmul.f32 %v3576, %v2917
  %v3580 = vmul.f32 %v3576, %v2918
  %v3581 = vmul.f32 %v3576, %v2919
  %v3582 = vmul.f32 %v3576, %v2920
  %v3583 = vmul.f32 %v3576, %v2921
  %v3584 = vmul.f32 %v3576, %v2922
  %v3585 = vmul.f32 %v3576, %v2923
  %v3586 = vmul.f32 %v3576, %v2924
  %v3587 = vmul.f32 %v3576, %v2925
  %v3588 = vmul.f32 %v3576, %v2926
  %v3589 = vmul.f32 %v3576, %v2927
  %v3590 = vmul.f32 %v3576, %v2928
  %v3591 = vmul.f32 %v3576, %v2929
  %v3592 = vmul.f32 %v3576, %v2930
  %v3593 = vmul.f32 %v3576, %v2931
  %v3594 = vmul.f32 %v3576, %v2932
  %v3595 = vmul.f32 %v3576, %v2933
  %v3596 = vmul.f32 %v3576, %v2934
  %v3597 = vmul.f32 %v3576, %v2935
  %v3598 = vmul.f32 %v3576, %v2936
  %v3599 = vmul.f32 %v3576, %v2937
  %v3600 = vmul.f32 %v3576, %v2938
  %v3601 = vmul.f32 %v3576, %v2939
  %v3602 = vmul.f32 %v3576, %v2940
  %v3603 = vmul.f32 %v3576, %v2941
  %v3604 = vmul.f32 %v3576, %v2942
  %v3605 = vmul.f32 %v3576, %v2943
  %v3606 = vmul.f32 %v3576, %v2944
  %v3607 = vmul.f32 %v3576, %v2945
  %v3608 = vmul.f32 %v3576, %v2946
  %v3609 = vadd.f32 %v3541, %v3577
  %v3610 = vadd.f32 %v3542, %v3578
  %v3611 = vadd.f32 %v3543, %v3579
  %v3612 = vadd.f32 %v3544, %v3580
  %v3613 = vadd.f32 %v3545, %v3581
  %v3614 = vadd.f32 %v3546, %v3582
  %v3615 = vadd.f32 %v3547, %v3583
  %v3616 = vadd.f32 %v3548, %v3584
  %v3617 = vadd.f32 %v3549, %v3585
  %v3618 = vadd.f32 %v3550, %v3586
  %v3619 = vadd.f32 %v3551, %v3587
  %v3620 = vadd.f32 %v3552, %v3588
  %v3621 = vadd.f32 %v3553, %v3589
  %v3622 = vadd.f32 %v3554, %v3590
  %v3623 = vadd.f32 %v3555, %v3591
  %v3624 = vadd.f32 %v3556, %v3592
  %v3625 = vadd.f32 %v3557, %v3593
  %v3626 = vadd.f32 %v3558, %v3594
  %v3627 = vadd.f32 %v3559, %v3595
  %v3628 = vadd.f32 %v3560, %v3596
  %v3629 = vadd.f32 %v3561, %v3597
  %v3630 = vadd.f32 %v3562, %v3598
  %v3631 = vadd.f32 %v3563, %v3599
  %v3632 = vadd.f32 %v3564, %v3600
  %v3633 = vadd.f32 %v3565, %v3601
  %v3634 = vadd.f32 %v3566, %v3602
  %v3635 = vadd.f32 %v3567, %v3603
  %v3636 = vadd.f32 %v3568, %v3604
  %v3637 = vadd.f32 %v3569, %v3605
  %v3638 = vadd.f32 %v3570, %v3606
  %v3639 = vadd.f32 %v3571, %v3607
  %v3640 = vadd.f32 %v3572, %v3608
  %v3641 = vld [vmem:[%s0 + $0x25] sm:$0x1]
  %v3642 = vld [vmem:[%s0 + $0x56] sm:$0x1]
  %v3643 = vlaneseq
  %v3644 = vshrl.u32 %v3643, 7
  %v3645 = vsub.s32 0, %v3644
  %v3646 = vrot.slane %v3641, %v3645
  %v3647 = vmul.f32 %v3646, %v2873
  %v3648 = vmul.f32 %v3646, %v2874
  %v3649 = vmul.f32 %v3646, %v2875
  %v3650 = vmul.f32 %v3646, %v2876
  %v3651 = vmul.f32 %v3646, %v2877
  %v3652 = vmul.f32 %v3646, %v2878
  %v3653 = vmul.f32 %v3646, %v2879
  %v3654 = vmul.f32 %v3646, %v2880
  %v3655 = vmul.f32 %v3646, %v2881
  %v3656 = vmul.f32 %v3646, %v2882
  %v3657 = vmul.f32 %v3646, %v2883
  %v3658 = vmul.f32 %v3646, %v2884
  %v3659 = vmul.f32 %v3646, %v2885
  %v3660 = vmul.f32 %v3646, %v2886
  %v3661 = vmul.f32 %v3646, %v2887
  %v3662 = vmul.f32 %v3646, %v2888
  %v3663 = vmul.f32 %v3646, %v2889
  %v3664 = vmul.f32 %v3646, %v2890
  %v3665 = vmul.f32 %v3646, %v2891
  %v3666 = vmul.f32 %v3646, %v2892
  %v3667 = vmul.f32 %v3646, %v2893
  %v3668 = vmul.f32 %v3646, %v2894
  %v3669 = vmul.f32 %v3646, %v2895
  %v3670 = vmul.f32 %v3646, %v2896
  %v3671 = vmul.f32 %v3646, %v2897
  %v3672 = vmul.f32 %v3646, %v2898
  %v3673 = vmul.f32 %v3646, %v2899
  %v3674 = vmul.f32 %v3646, %v2900
  %v3675 = vmul.f32 %v3646, %v2901
  %v3676 = vmul.f32 %v3646, %v2902
  %v3677 = vmul.f32 %v3646, %v2903
  %v3678 = vmul.f32 %v3646, %v2904
  %v3679 = vadd.f32 %v3609, %v3647
  %v3680 = vadd.f32 %v3610, %v3648
  %v3681 = vadd.f32 %v3611, %v3649
  %v3682 = vadd.f32 %v3612, %v3650
  %v3683 = vadd.f32 %v3613, %v3651
  %v3684 = vadd.f32 %v3614, %v3652
  %v3685 = vadd.f32 %v3615, %v3653
  %v3686 = vadd.f32 %v3616, %v3654
  %v3687 = vadd.f32 %v3617, %v3655
  %v3688 = vadd.f32 %v3618, %v3656
  %v3689 = vadd.f32 %v3619, %v3657
  %v3690 = vadd.f32 %v3620, %v3658
  %v3691 = vadd.f32 %v3621, %v3659
  %v3692 = vadd.f32 %v3622, %v3660
  %v3693 = vadd.f32 %v3623, %v3661
  %v3694 = vadd.f32 %v3624, %v3662
  %v3695 = vadd.f32 %v3625, %v3663
  %v3696 = vadd.f32 %v3626, %v3664
  %v3697 = vadd.f32 %v3627, %v3665
  %v3698 = vadd.f32 %v3628, %v3666
  %v3699 = vadd.f32 %v3629, %v3667
  %v3700 = vadd.f32 %v3630, %v3668
  %v3701 = vadd.f32 %v3631, %v3669
  %v3702 = vadd.f32 %v3632, %v3670
  %v3703 = vadd.f32 %v3633, %v3671
  %v3704 = vadd.f32 %v3634, %v3672
  %v3705 = vadd.f32 %v3635, %v3673
  %v3706 = vadd.f32 %v3636, %v3674
  %v3707 = vadd.f32 %v3637, %v3675
  %v3708 = vadd.f32 %v3638, %v3676
  %v3709 = vadd.f32 %v3639, %v3677
  %v3710 = vadd.f32 %v3640, %v3678
  %v3711 = vlaneseq
  %v3712 = vshrl.u32 %v3711, 7
  %v3713 = vsub.s32 0, %v3712
  %v3714 = vrot.slane %v3642, %v3713
  %v3715 = vmul.f32 %v3714, %v2917
  %v3716 = vmul.f32 %v3714, %v2918
  %v3717 = vmul.f32 %v3714, %v2919
  %v3718 = vmul.f32 %v3714, %v2920
  %v3719 = vmul.f32 %v3714, %v2921
  %v3720 = vmul.f32 %v3714, %v2922
  %v3721 = vmul.f32 %v3714, %v2923
  %v3722 = vmul.f32 %v3714, %v2924
  %v3723 = vmul.f32 %v3714, %v2925
  %v3724 = vmul.f32 %v3714, %v2926
  %v3725 = vmul.f32 %v3714, %v2927
  %v3726 = vmul.f32 %v3714, %v2928
  %v3727 = vmul.f32 %v3714, %v2929
  %v3728 = vmul.f32 %v3714, %v2930
  %v3729 = vmul.f32 %v3714, %v2931
  %v3730 = vmul.f32 %v3714, %v2932
  %v3731 = vmul.f32 %v3714, %v2933
  %v3732 = vmul.f32 %v3714, %v2934
  %v3733 = vmul.f32 %v3714, %v2935
  %v3734 = vmul.f32 %v3714, %v2936
  %v3735 = vmul.f32 %v3714, %v2937
  %v3736 = vmul.f32 %v3714, %v2938
  %v3737 = vmul.f32 %v3714, %v2939
  %v3738 = vmul.f32 %v3714, %v2940
  %v3739 = vmul.f32 %v3714, %v2941
  %v3740 = vmul.f32 %v3714, %v2942
  %v3741 = vmul.f32 %v3714, %v2943
  %v3742 = vmul.f32 %v3714, %v2944
  %v3743 = vmul.f32 %v3714, %v2945
  %v3744 = vmul.f32 %v3714, %v2946
  %v3745 = vmul.f32 %v3714, %v2947
  %v3746 = vmul.f32 %v3714, %v2948
  %v3747 = vadd.f32 %v3679, %v3715
  %v3748 = vadd.f32 %v3680, %v3716
  %v3749 = vadd.f32 %v3681, %v3717
  %v3750 = vadd.f32 %v3682, %v3718
  %v3751 = vadd.f32 %v3683, %v3719
  %v3752 = vadd.f32 %v3684, %v3720
  %v3753 = vadd.f32 %v3685, %v3721
  %v3754 = vadd.f32 %v3686, %v3722
  %v3755 = vadd.f32 %v3687, %v3723
  %v3756 = vadd.f32 %v3688, %v3724
  %v3757 = vadd.f32 %v3689, %v3725
  %v3758 = vadd.f32 %v3690, %v3726
  %v3759 = vadd.f32 %v3691, %v3727
  %v3760 = vadd.f32 %v3692, %v3728
  %v3761 = vadd.f32 %v3693, %v3729
  %v3762 = vadd.f32 %v3694, %v3730
  %v3763 = vadd.f32 %v3695, %v3731
  %v3764 = vadd.f32 %v3696, %v3732
  %v3765 = vadd.f32 %v3697, %v3733
  %v3766 = vadd.f32 %v3698, %v3734
  %v3767 = vadd.f32 %v3699, %v3735
  %v3768 = vadd.f32 %v3700, %v3736
  %v3769 = vadd.f32 %v3701, %v3737
  %v3770 = vadd.f32 %v3702, %v3738
  %v3771 = vadd.f32 %v3703, %v3739
  %v3772 = vadd.f32 %v3704, %v3740
  %v3773 = vadd.f32 %v3705, %v3741
  %v3774 = vadd.f32 %v3706, %v3742
  %v3775 = vadd.f32 %v3707, %v3743
  %v3776 = vadd.f32 %v3708, %v3744
  %v3777 = vadd.f32 %v3709, %v3745
  %v3778 = vadd.f32 %v3710, %v3746
  %v3779 = vld [vmem:[%s0 + $0x2c] sm:$0x1]
  %v3780 = vld [vmem:[%s0 + $0x5d] sm:$0x1]
  %v3781 = vlaneseq
  %v3782 = vshrl.u32 %v3781, 7
  %v3783 = vsub.s32 0, %v3782
  %v3784 = vrot.slane %v3779, %v3783
  %v3785 = vmul.f32 %v3784, %v2875
  %v3786 = vmul.f32 %v3784, %v2876
  %v3787 = vmul.f32 %v3784, %v2877
  %v3788 = vmul.f32 %v3784, %v2878
  %v3789 = vmul.f32 %v3784, %v2879
  %v3790 = vmul.f32 %v3784, %v2880
  %v3791 = vmul.f32 %v3784, %v2881
  %v3792 = vmul.f32 %v3784, %v2882
  %v3793 = vmul.f32 %v3784, %v2883
  %v3794 = vmul.f32 %v3784, %v2884
  %v3795 = vmul.f32 %v3784, %v2885
  %v3796 = vmul.f32 %v3784, %v2886
  %v3797 = vmul.f32 %v3784, %v2887
  %v3798 = vmul.f32 %v3784, %v2888
  %v3799 = vmul.f32 %v3784, %v2889
  %v3800 = vmul.f32 %v3784, %v2890
  %v3801 = vmul.f32 %v3784, %v2891
  %v3802 = vmul.f32 %v3784, %v2892
  %v3803 = vmul.f32 %v3784, %v2893
  %v3804 = vmul.f32 %v3784, %v2894
  %v3805 = vmul.f32 %v3784, %v2895
  %v3806 = vmul.f32 %v3784, %v2896
  %v3807 = vmul.f32 %v3784, %v2897
  %v3808 = vmul.f32 %v3784, %v2898
  %v3809 = vmul.f32 %v3784, %v2899
  %v3810 = vmul.f32 %v3784, %v2900
  %v3811 = vmul.f32 %v3784, %v2901
  %v3812 = vmul.f32 %v3784, %v2902
  %v3813 = vmul.f32 %v3784, %v2903
  %v3814 = vmul.f32 %v3784, %v2904
  %v3815 = vmul.f32 %v3784, %v2905
  %v3816 = vmul.f32 %v3784, %v2906
  %v3817 = vadd.f32 %v3747, %v3785
  %v3818 = vadd.f32 %v3748, %v3786
  %v3819 = vadd.f32 %v3749, %v3787
  %v3820 = vadd.f32 %v3750, %v3788
  %v3821 = vadd.f32 %v3751, %v3789
  %v3822 = vadd.f32 %v3752, %v3790
  %v3823 = vadd.f32 %v3753, %v3791
  %v3824 = vadd.f32 %v3754, %v3792
  %v3825 = vadd.f32 %v3755, %v3793
  %v3826 = vadd.f32 %v3756, %v3794
  %v3827 = vadd.f32 %v3757, %v3795
  %v3828 = vadd.f32 %v3758, %v3796
  %v3829 = vadd.f32 %v3759, %v3797
  %v3830 = vadd.f32 %v3760, %v3798
  %v3831 = vadd.f32 %v3761, %v3799
  %v3832 = vadd.f32 %v3762, %v3800
  %v3833 = vadd.f32 %v3763, %v3801
  %v3834 = vadd.f32 %v3764, %v3802
  %v3835 = vadd.f32 %v3765, %v3803
  %v3836 = vadd.f32 %v3766, %v3804
  %v3837 = vadd.f32 %v3767, %v3805
  %v3838 = vadd.f32 %v3768, %v3806
  %v3839 = vadd.f32 %v3769, %v3807
  %v3840 = vadd.f32 %v3770, %v3808
  %v3841 = vadd.f32 %v3771, %v3809
  %v3842 = vadd.f32 %v3772, %v3810
  %v3843 = vadd.f32 %v3773, %v3811
  %v3844 = vadd.f32 %v3774, %v3812
  %v3845 = vadd.f32 %v3775, %v3813
  %v3846 = vadd.f32 %v3776, %v3814
  %v3847 = vadd.f32 %v3777, %v3815
  %v3848 = vadd.f32 %v3778, %v3816
  %v3849 = vlaneseq
  %v3850 = vshrl.u32 %v3849, 7
  %v3851 = vsub.s32 0, %v3850
  %v3852 = vrot.slane %v3780, %v3851
  %v3853 = vmul.f32 %v3852, %v2919
  %v3854 = vmul.f32 %v3852, %v2920
  %v3855 = vmul.f32 %v3852, %v2921
  %v3856 = vmul.f32 %v3852, %v2922
  %v3857 = vmul.f32 %v3852, %v2923
  %v3858 = vmul.f32 %v3852, %v2924
  %v3859 = vmul.f32 %v3852, %v2925
  %v3860 = vmul.f32 %v3852, %v2926
  %v3861 = vmul.f32 %v3852, %v2927
  %v3862 = vmul.f32 %v3852, %v2928
  %v3863 = vmul.f32 %v3852, %v2929
  %v3864 = vmul.f32 %v3852, %v2930
  %v3865 = vmul.f32 %v3852, %v2931
  %v3866 = vmul.f32 %v3852, %v2932
  %v3867 = vmul.f32 %v3852, %v2933
  %v3868 = vmul.f32 %v3852, %v2934
  %v3869 = vmul.f32 %v3852, %v2935
  %v3870 = vmul.f32 %v3852, %v2936
  %v3871 = vmul.f32 %v3852, %v2937
  %v3872 = vmul.f32 %v3852, %v2938
  %v3873 = vmul.f32 %v3852, %v2939
  %v3874 = vmul.f32 %v3852, %v2940
  %v3875 = vmul.f32 %v3852, %v2941
  %v3876 = vmul.f32 %v3852, %v2942
  %v3877 = vmul.f32 %v3852, %v2943
  %v3878 = vmul.f32 %v3852, %v2944
  %v3879 = vmul.f32 %v3852, %v2945
  %v3880 = vmul.f32 %v3852, %v2946
  %v3881 = vmul.f32 %v3852, %v2947
  %v3882 = vmul.f32 %v3852, %v2948
  %v3883 = vmul.f32 %v3852, %v2949
  %v3884 = vmul.f32 %v3852, %v2950
  %v3885 = vadd.f32 %v3817, %v3853
  %v3886 = vadd.f32 %v3818, %v3854
  %v3887 = vadd.f32 %v3819, %v3855
  %v3888 = vadd.f32 %v3820, %v3856
  %v3889 = vadd.f32 %v3821, %v3857
  %v3890 = vadd.f32 %v3822, %v3858
  %v3891 = vadd.f32 %v3823, %v3859
  %v3892 = vadd.f32 %v3824, %v3860
  %v3893 = vadd.f32 %v3825, %v3861
  %v3894 = vadd.f32 %v3826, %v3862
  %v3895 = vadd.f32 %v3827, %v3863
  %v3896 = vadd.f32 %v3828, %v3864
  %v3897 = vadd.f32 %v3829, %v3865
  %v3898 = vadd.f32 %v3830, %v3866
  %v3899 = vadd.f32 %v3831, %v3867
  %v3900 = vadd.f32 %v3832, %v3868
  %v3901 = vadd.f32 %v3833, %v3869
  %v3902 = vadd.f32 %v3834, %v3870
  %v3903 = vadd.f32 %v3835, %v3871
  %v3904 = vadd.f32 %v3836, %v3872
  %v3905 = vadd.f32 %v3837, %v3873
  %v3906 = vadd.f32 %v3838, %v3874
  %v3907 = vadd.f32 %v3839, %v3875
  %v3908 = vadd.f32 %v3840, %v3876
  %v3909 = vadd.f32 %v3841, %v3877
  %v3910 = vadd.f32 %v3842, %v3878
  %v3911 = vadd.f32 %v3843, %v3879
  %v3912 = vadd.f32 %v3844, %v3880
  %v3913 = vadd.f32 %v3845, %v3881
  %v3914 = vadd.f32 %v3846, %v3882
  %v3915 = vadd.f32 %v3847, %v3883
  %v3916 = vadd.f32 %v3848, %v3884
  %v3917 = vld [vmem:[#allocation2 + $0x3] sm:$0xff]
  %v3918 = vld [vmem:[#allocation2 + $0xb] sm:$0xff]
  %v3919 = vld [vmem:[#allocation2 + $0x1b] sm:$0xff]
  %v3920 = vld [vmem:[#allocation2 + $0x23] sm:$0xff]
  %v3921 = vld [vmem:[#allocation2 + $0x33] sm:$0xff]
  %v3922 = vld [vmem:[#allocation2 + $0x3b] sm:$0xff]
  %v3923 = vld [vmem:[#allocation2 + $0x4b] sm:$0xff]
  %v3924 = vld [vmem:[#allocation2 + $0x53] sm:$0xff]
  %v3925 = vld [vmem:[#allocation2 + $0x63] sm:$0xff]
  %v3926 = vld [vmem:[#allocation2 + $0x6b] sm:$0xff]
  %v3927 = vld [vmem:[#allocation2 + $0x7b] sm:$0xff]
  %v3928 = vld [vmem:[#allocation2 + $0x83] sm:$0xff]
  %v3929 = vld [vmem:[#allocation2 + $0x93] sm:$0xff]
  %v3930 = vld [vmem:[#allocation2 + $0x9b] sm:$0xff]
  %v3931 = vld [vmem:[#allocation2 + $0xab] sm:$0xff]
  %v3932 = vld [vmem:[#allocation2 + $0xb3] sm:$0xff]
  %v3933 = vld [vmem:[#allocation2 + $0xc3] sm:$0xff]
  %v3934 = vld [vmem:[#allocation2 + $0xcb] sm:$0xff]
  %v3935 = vld [vmem:[#allocation2 + $0xdb] sm:$0xff]
  %v3936 = vld [vmem:[#allocation2 + $0xe3] sm:$0xff]
  %v3937 = vld [vmem:[#allocation2 + $0xf3] sm:$0xff]
  %v3938 = vld [vmem:[#allocation2 + $0xfb] sm:$0xff]
  %v3939 = vld [vmem:[#allocation2 + $0x10b] sm:$0xff]
  %v3940 = vld [vmem:[#allocation2 + $0x113] sm:$0xff]
  %v3941 = vld [vmem:[#allocation2 + $0x123] sm:$0xff]
  %v3942 = vld [vmem:[#allocation2 + $0x12b] sm:$0xff]
  %v3943 = vld [vmem:[#allocation2 + $0x13b] sm:$0xff]
  %v3944 = vld [vmem:[#allocation2 + $0x143] sm:$0xff]
  %v3945 = vld [vmem:[#allocation2 + $0x153] sm:$0xff]
  %v3946 = vld [vmem:[#allocation2 + $0x15b] sm:$0xff]
  %v3947 = vld [vmem:[#allocation2 + $0x16b] sm:$0xff]
  %v3948 = vld [vmem:[#allocation2 + $0x173] sm:$0xff]
  %v3949 = vld [vmem:[#allocation2 + $0x183] sm:$0xff]
  %v3950 = vld [vmem:[#allocation2 + $0x18b] sm:$0xff]
  %v3951 = vld [vmem:[#allocation2 + $0x19b] sm:$0xff]
  %v3952 = vld [vmem:[#allocation2 + $0x1a3] sm:$0xff]
  %v3953 = vld [vmem:[#allocation2 + $0x1b3] sm:$0xff]
  %v3954 = vld [vmem:[#allocation2 + $0x1bb] sm:$0xff]
  %v3955 = vld [vmem:[#allocation2 + $0x1cb] sm:$0xff]
  %v3956 = vld [vmem:[#allocation2 + $0x1d3] sm:$0xff]
  %v3957 = vld [vmem:[#allocation2 + $0x1e3] sm:$0xff]
  %v3958 = vld [vmem:[#allocation2 + $0x1eb] sm:$0xff]
  %v3959 = vld [vmem:[#allocation2 + $0x1fb] sm:$0xff]
  %v3960 = vld [vmem:[#allocation2 + $0x203] sm:$0xff]
  %v3961 = vld [vmem:[#allocation3 + $0x3] sm:$0xff]
  %v3962 = vld [vmem:[#allocation3 + $0xb] sm:$0xff]
  %v3963 = vld [vmem:[#allocation3 + $0x1b] sm:$0xff]
  %v3964 = vld [vmem:[#allocation3 + $0x23] sm:$0xff]
  %v3965 = vld [vmem:[#allocation3 + $0x33] sm:$0xff]
  %v3966 = vld [vmem:[#allocation3 + $0x3b] sm:$0xff]
  %v3967 = vld [vmem:[#allocation3 + $0x4b] sm:$0xff]
  %v3968 = vld [vmem:[#allocation3 + $0x53] sm:$0xff]
  %v3969 = vld [vmem:[#allocation3 + $0x63] sm:$0xff]
  %v3970 = vld [vmem:[#allocation3 + $0x6b] sm:$0xff]
  %v3971 = vld [vmem:[#allocation3 + $0x7b] sm:$0xff]
  %v3972 = vld [vmem:[#allocation3 + $0x83] sm:$0xff]
  %v3973 = vld [vmem:[#allocation3 + $0x93] sm:$0xff]
  %v3974 = vld [vmem:[#allocation3 + $0x9b] sm:$0xff]
  %v3975 = vld [vmem:[#allocation3 + $0xab] sm:$0xff]
  %v3976 = vld [vmem:[#allocation3 + $0xb3] sm:$0xff]
  %v3977 = vld [vmem:[#allocation3 + $0xc3] sm:$0xff]
  %v3978 = vld [vmem:[#allocation3 + $0xcb] sm:$0xff]
  %v3979 = vld [vmem:[#allocation3 + $0xdb] sm:$0xff]
  %v3980 = vld [vmem:[#allocation3 + $0xe3] sm:$0xff]
  %v3981 = vld [vmem:[#allocation3 + $0xf3] sm:$0xff]
  %v3982 = vld [vmem:[#allocation3 + $0xfb] sm:$0xff]
  %v3983 = vld [vmem:[#allocation3 + $0x10b] sm:$0xff]
  %v3984 = vld [vmem:[#allocation3 + $0x113] sm:$0xff]
  %v3985 = vld [vmem:[#allocation3 + $0x123] sm:$0xff]
  %v3986 = vld [vmem:[#allocation3 + $0x12b] sm:$0xff]
  %v3987 = vld [vmem:[#allocation3 + $0x13b] sm:$0xff]
  %v3988 = vld [vmem:[#allocation3 + $0x143] sm:$0xff]
  %v3989 = vld [vmem:[#allocation3 + $0x153] sm:$0xff]
  %v3990 = vld [vmem:[#allocation3 + $0x15b] sm:$0xff]
  %v3991 = vld [vmem:[#allocation3 + $0x16b] sm:$0xff]
  %v3992 = vld [vmem:[#allocation3 + $0x173] sm:$0xff]
  %v3993 = vld [vmem:[#allocation3 + $0x183] sm:$0xff]
  %v3994 = vld [vmem:[#allocation3 + $0x18b] sm:$0xff]
  %v3995 = vld [vmem:[#allocation3 + $0x19b] sm:$0xff]
  %v3996 = vld [vmem:[#allocation3 + $0x1a3] sm:$0xff]
  %v3997 = vld [vmem:[#allocation3 + $0x1b3] sm:$0xff]
  %v3998 = vld [vmem:[#allocation3 + $0x1bb] sm:$0xff]
  %v3999 = vld [vmem:[#allocation3 + $0x1cb] sm:$0xff]
  %v4000 = vld [vmem:[#allocation3 + $0x1d3] sm:$0xff]
  %v4001 = vld [vmem:[#allocation3 + $0x1e3] sm:$0xff]
  %v4002 = vld [vmem:[#allocation3 + $0x1eb] sm:$0xff]
  %v4003 = vld [vmem:[#allocation3 + $0x1fb] sm:$0xff]
  %v4004 = vld [vmem:[#allocation3 + $0x203] sm:$0xff]
  %v4005 = vld [vmem:[%s0 + $0x3] sm:$0x1]
  %v4006 = vld [vmem:[%s0 + $0x34] sm:$0x1]
  %v4007 = vlaneseq
  %v4008 = vshrl.u32 %v4007, 7
  %v4009 = vsub.s32 0, %v4008
  %v4010 = vrot.slane %v4005, %v4009
  %v4011 = vmul.f32 %v4010, %v3917
  %v4012 = vmul.f32 %v4010, %v3918
  %v4013 = vmul.f32 %v4010, %v3919
  %v4014 = vmul.f32 %v4010, %v3920
  %v4015 = vmul.f32 %v4010, %v3921
  %v4016 = vmul.f32 %v4010, %v3922
  %v4017 = vmul.f32 %v4010, %v3923
  %v4018 = vmul.f32 %v4010, %v3924
  %v4019 = vmul.f32 %v4010, %v3925
  %v4020 = vmul.f32 %v4010, %v3926
  %v4021 = vmul.f32 %v4010, %v3927
  %v4022 = vmul.f32 %v4010, %v3928
  %v4023 = vmul.f32 %v4010, %v3929
  %v4024 = vmul.f32 %v4010, %v3930
  %v4025 = vmul.f32 %v4010, %v3931
  %v4026 = vmul.f32 %v4010, %v3932
  %v4027 = vmul.f32 %v4010, %v3933
  %v4028 = vmul.f32 %v4010, %v3934
  %v4029 = vmul.f32 %v4010, %v3935
  %v4030 = vmul.f32 %v4010, %v3936
  %v4031 = vmul.f32 %v4010, %v3937
  %v4032 = vmul.f32 %v4010, %v3938
  %v4033 = vmul.f32 %v4010, %v3939
  %v4034 = vmul.f32 %v4010, %v3940
  %v4035 = vmul.f32 %v4010, %v3941
  %v4036 = vmul.f32 %v4010, %v3942
  %v4037 = vmul.f32 %v4010, %v3943
  %v4038 = vmul.f32 %v4010, %v3944
  %v4039 = vmul.f32 %v4010, %v3945
  %v4040 = vmul.f32 %v4010, %v3946
  %v4041 = vmul.f32 %v4010, %v3947
  %v4042 = vmul.f32 %v4010, %v3948
  %v4043 = vadd.f32 %v3885, %v4011
  %v4044 = vadd.f32 %v3886, %v4012
  %v4045 = vadd.f32 %v3887, %v4013
  %v4046 = vadd.f32 %v3888, %v4014
  %v4047 = vadd.f32 %v3889, %v4015
  %v4048 = vadd.f32 %v3890, %v4016
  %v4049 = vadd.f32 %v3891, %v4017
  %v4050 = vadd.f32 %v3892, %v4018
  %v4051 = vadd.f32 %v3893, %v4019
  %v4052 = vadd.f32 %v3894, %v4020
  %v4053 = vadd.f32 %v3895, %v4021
  %v4054 = vadd.f32 %v3896, %v4022
  %v4055 = vadd.f32 %v3897, %v4023
  %v4056 = vadd.f32 %v3898, %v4024
  %v4057 = vadd.f32 %v3899, %v4025
  %v4058 = vadd.f32 %v3900, %v4026
  %v4059 = vadd.f32 %v3901, %v4027
  %v4060 = vadd.f32 %v3902, %v4028
  %v4061 = vadd.f32 %v3903, %v4029
  %v4062 = vadd.f32 %v3904, %v4030
  %v4063 = vadd.f32 %v3905, %v4031
  %v4064 = vadd.f32 %v3906, %v4032
  %v4065 = vadd.f32 %v3907, %v4033
  %v4066 = vadd.f32 %v3908, %v4034
  %v4067 = vadd.f32 %v3909, %v4035
  %v4068 = vadd.f32 %v3910, %v4036
  %v4069 = vadd.f32 %v3911, %v4037
  %v4070 = vadd.f32 %v3912, %v4038
  %v4071 = vadd.f32 %v3913, %v4039
  %v4072 = vadd.f32 %v3914, %v4040
  %v4073 = vadd.f32 %v3915, %v4041
  %v4074 = vadd.f32 %v3916, %v4042
  %v4075 = vlaneseq
  %v4076 = vshrl.u32 %v4075, 7
  %v4077 = vsub.s32 0, %v4076
  %v4078 = vrot.slane %v4006, %v4077
  %v4079 = vmul.f32 %v4078, %v3961
  %v4080 = vmul.f32 %v4078, %v3962
  %v4081 = vmul.f32 %v4078, %v3963
  %v4082 = vmul.f32 %v4078, %v3964
  %v4083 = vmul.f32 %v4078, %v3965
  %v4084 = vmul.f32 %v4078, %v3966
  %v4085 = vmul.f32 %v4078, %v3967
  %v4086 = vmul.f32 %v4078, %v3968
  %v4087 = vmul.f32 %v4078, %v3969
  %v4088 = vmul.f32 %v4078, %v3970
  %v4089 = vmul.f32 %v4078, %v3971
  %v4090 = vmul.f32 %v4078, %v3972
  %v4091 = vmul.f32 %v4078, %v3973
  %v4092 = vmul.f32 %v4078, %v3974
  %v4093 = vmul.f32 %v4078, %v3975
  %v4094 = vmul.f32 %v4078, %v3976
  %v4095 = vmul.f32 %v4078, %v3977
  %v4096 = vmul.f32 %v4078, %v3978
  %v4097 = vmul.f32 %v4078, %v3979
  %v4098 = vmul.f32 %v4078, %v3980
  %v4099 = vmul.f32 %v4078, %v3981
  %v4100 = vmul.f32 %v4078, %v3982
  %v4101 = vmul.f32 %v4078, %v3983
  %v4102 = vmul.f32 %v4078, %v3984
  %v4103 = vmul.f32 %v4078, %v3985
  %v4104 = vmul.f32 %v4078, %v3986
  %v4105 = vmul.f32 %v4078, %v3987
  %v4106 = vmul.f32 %v4078, %v3988
  %v4107 = vmul.f32 %v4078, %v3989
  %v4108 = vmul.f32 %v4078, %v3990
  %v4109 = vmul.f32 %v4078, %v3991
  %v4110 = vmul.f32 %v4078, %v3992
  %v4111 = vadd.f32 %v4043, %v4079
  %v4112 = vadd.f32 %v4044, %v4080
  %v4113 = vadd.f32 %v4045, %v4081
  %v4114 = vadd.f32 %v4046, %v4082
  %v4115 = vadd.f32 %v4047, %v4083
  %v4116 = vadd.f32 %v4048, %v4084
  %v4117 = vadd.f32 %v4049, %v4085
  %v4118 = vadd.f32 %v4050, %v4086
  %v4119 = vadd.f32 %v4051, %v4087
  %v4120 = vadd.f32 %v4052, %v4088
  %v4121 = vadd.f32 %v4053, %v4089
  %v4122 = vadd.f32 %v4054, %v4090
  %v4123 = vadd.f32 %v4055, %v4091
  %v4124 = vadd.f32 %v4056, %v4092
  %v4125 = vadd.f32 %v4057, %v4093
  %v4126 = vadd.f32 %v4058, %v4094
  %v4127 = vadd.f32 %v4059, %v4095
  %v4128 = vadd.f32 %v4060, %v4096
  %v4129 = vadd.f32 %v4061, %v4097
  %v4130 = vadd.f32 %v4062, %v4098
  %v4131 = vadd.f32 %v4063, %v4099
  %v4132 = vadd.f32 %v4064, %v4100
  %v4133 = vadd.f32 %v4065, %v4101
  %v4134 = vadd.f32 %v4066, %v4102
  %v4135 = vadd.f32 %v4067, %v4103
  %v4136 = vadd.f32 %v4068, %v4104
  %v4137 = vadd.f32 %v4069, %v4105
  %v4138 = vadd.f32 %v4070, %v4106
  %v4139 = vadd.f32 %v4071, %v4107
  %v4140 = vadd.f32 %v4072, %v4108
  %v4141 = vadd.f32 %v4073, %v4109
  %v4142 = vadd.f32 %v4074, %v4110
  %v4143 = vld [vmem:[%s0 + $0xa] sm:$0x1]
  %v4144 = vld [vmem:[%s0 + $0x3b] sm:$0x1]
  %v4145 = vlaneseq
  %v4146 = vshrl.u32 %v4145, 7
  %v4147 = vsub.s32 0, %v4146
  %v4148 = vrot.slane %v4143, %v4147
  %v4149 = vmul.f32 %v4148, %v3919
  %v4150 = vmul.f32 %v4148, %v3920
  %v4151 = vmul.f32 %v4148, %v3921
  %v4152 = vmul.f32 %v4148, %v3922
  %v4153 = vmul.f32 %v4148, %v3923
  %v4154 = vmul.f32 %v4148, %v3924
  %v4155 = vmul.f32 %v4148, %v3925
  %v4156 = vmul.f32 %v4148, %v3926
  %v4157 = vmul.f32 %v4148, %v3927
  %v4158 = vmul.f32 %v4148, %v3928
  %v4159 = vmul.f32 %v4148, %v3929
  %v4160 = vmul.f32 %v4148, %v3930
  %v4161 = vmul.f32 %v4148, %v3931
  %v4162 = vmul.f32 %v4148, %v3932
  %v4163 = vmul.f32 %v4148, %v3933
  %v4164 = vmul.f32 %v4148, %v3934
  %v4165 = vmul.f32 %v4148, %v3935
  %v4166 = vmul.f32 %v4148, %v3936
  %v4167 = vmul.f32 %v4148, %v3937
  %v4168 = vmul.f32 %v4148, %v3938
  %v4169 = vmul.f32 %v4148, %v3939
  %v4170 = vmul.f32 %v4148, %v3940
  %v4171 = vmul.f32 %v4148, %v3941
  %v4172 = vmul.f32 %v4148, %v3942
  %v4173 = vmul.f32 %v4148, %v3943
  %v4174 = vmul.f32 %v4148, %v3944
  %v4175 = vmul.f32 %v4148, %v3945
  %v4176 = vmul.f32 %v4148, %v3946
  %v4177 = vmul.f32 %v4148, %v3947
  %v4178 = vmul.f32 %v4148, %v3948
  %v4179 = vmul.f32 %v4148, %v3949
  %v4180 = vmul.f32 %v4148, %v3950
  %v4181 = vadd.f32 %v4111, %v4149
  %v4182 = vadd.f32 %v4112, %v4150
  %v4183 = vadd.f32 %v4113, %v4151
  %v4184 = vadd.f32 %v4114, %v4152
  %v4185 = vadd.f32 %v4115, %v4153
  %v4186 = vadd.f32 %v4116, %v4154
  %v4187 = vadd.f32 %v4117, %v4155
  %v4188 = vadd.f32 %v4118, %v4156
  %v4189 = vadd.f32 %v4119, %v4157
  %v4190 = vadd.f32 %v4120, %v4158
  %v4191 = vadd.f32 %v4121, %v4159
  %v4192 = vadd.f32 %v4122, %v4160
  %v4193 = vadd.f32 %v4123, %v4161
  %v4194 = vadd.f32 %v4124, %v4162
  %v4195 = vadd.f32 %v4125, %v4163
  %v4196 = vadd.f32 %v4126, %v4164
  %v4197 = vadd.f32 %v4127, %v4165
  %v4198 = vadd.f32 %v4128, %v4166
  %v4199 = vadd.f32 %v4129, %v4167
  %v4200 = vadd.f32 %v4130, %v4168
  %v4201 = vadd.f32 %v4131, %v4169
  %v4202 = vadd.f32 %v4132, %v4170
  %v4203 = vadd.f32 %v4133, %v4171
  %v4204 = vadd.f32 %v4134, %v4172
  %v4205 = vadd.f32 %v4135, %v4173
  %v4206 = vadd.f32 %v4136, %v4174
  %v4207 = vadd.f32 %v4137, %v4175
  %v4208 = vadd.f32 %v4138, %v4176
  %v4209 = vadd.f32 %v4139, %v4177
  %v4210 = vadd.f32 %v4140, %v4178
  %v4211 = vadd.f32 %v4141, %v4179
  %v4212 = vadd.f32 %v4142, %v4180
  %v4213 = vlaneseq
  %v4214 = vshrl.u32 %v4213, 7
  %v4215 = vsub.s32 0, %v4214
  %v4216 = vrot.slane %v4144, %v4215
  %v4217 = vmul.f32 %v4216, %v3963
  %v4218 = vmul.f32 %v4216, %v3964
  %v4219 = vmul.f32 %v4216, %v3965
  %v4220 = vmul.f32 %v4216, %v3966
  %v4221 = vmul.f32 %v4216, %v3967
  %v4222 = vmul.f32 %v4216, %v3968
  %v4223 = vmul.f32 %v4216, %v3969
  %v4224 = vmul.f32 %v4216, %v3970
  %v4225 = vmul.f32 %v4216, %v3971
  %v4226 = vmul.f32 %v4216, %v3972
  %v4227 = vmul.f32 %v4216, %v3973
  %v4228 = vmul.f32 %v4216, %v3974
  %v4229 = vmul.f32 %v4216, %v3975
  %v4230 = vmul.f32 %v4216, %v3976
  %v4231 = vmul.f32 %v4216, %v3977
  %v4232 = vmul.f32 %v4216, %v3978
  %v4233 = vmul.f32 %v4216, %v3979
  %v4234 = vmul.f32 %v4216, %v3980
  %v4235 = vmul.f32 %v4216, %v3981
  %v4236 = vmul.f32 %v4216, %v3982
  %v4237 = vmul.f32 %v4216, %v3983
  %v4238 = vmul.f32 %v4216, %v3984
  %v4239 = vmul.f32 %v4216, %v3985
  %v4240 = vmul.f32 %v4216, %v3986
  %v4241 = vmul.f32 %v4216, %v3987
  %v4242 = vmul.f32 %v4216, %v3988
  %v4243 = vmul.f32 %v4216, %v3989
  %v4244 = vmul.f32 %v4216, %v3990
  %v4245 = vmul.f32 %v4216, %v3991
  %v4246 = vmul.f32 %v4216, %v3992
  %v4247 = vmul.f32 %v4216, %v3993
  %v4248 = vmul.f32 %v4216, %v3994
  %v4249 = vadd.f32 %v4181, %v4217
  %v4250 = vadd.f32 %v4182, %v4218
  %v4251 = vadd.f32 %v4183, %v4219
  %v4252 = vadd.f32 %v4184, %v4220
  %v4253 = vadd.f32 %v4185, %v4221
  %v4254 = vadd.f32 %v4186, %v4222
  %v4255 = vadd.f32 %v4187, %v4223
  %v4256 = vadd.f32 %v4188, %v4224
  %v4257 = vadd.f32 %v4189, %v4225
  %v4258 = vadd.f32 %v4190, %v4226
  %v4259 = vadd.f32 %v4191, %v4227
  %v4260 = vadd.f32 %v4192, %v4228
  %v4261 = vadd.f32 %v4193, %v4229
  %v4262 = vadd.f32 %v4194, %v4230
  %v4263 = vadd.f32 %v4195, %v4231
  %v4264 = vadd.f32 %v4196, %v4232
  %v4265 = vadd.f32 %v4197, %v4233
  %v4266 = vadd.f32 %v4198, %v4234
  %v4267 = vadd.f32 %v4199, %v4235
  %v4268 = vadd.f32 %v4200, %v4236
  %v4269 = vadd.f32 %v4201, %v4237
  %v4270 = vadd.f32 %v4202, %v4238
  %v4271 = vadd.f32 %v4203, %v4239
  %v4272 = vadd.f32 %v4204, %v4240
  %v4273 = vadd.f32 %v4205, %v4241
  %v4274 = vadd.f32 %v4206, %v4242
  %v4275 = vadd.f32 %v4207, %v4243
  %v4276 = vadd.f32 %v4208, %v4244
  %v4277 = vadd.f32 %v4209, %v4245
  %v4278 = vadd.f32 %v4210, %v4246
  %v4279 = vadd.f32 %v4211, %v4247
  %v4280 = vadd.f32 %v4212, %v4248
  %v4281 = vld [vmem:[%s0 + $0x11] sm:$0x1]
  %v4282 = vld [vmem:[%s0 + $0x42] sm:$0x1]
  %v4283 = vlaneseq
  %v4284 = vshrl.u32 %v4283, 7
  %v4285 = vsub.s32 0, %v4284
  %v4286 = vrot.slane %v4281, %v4285
  %v4287 = vmul.f32 %v4286, %v3921
  %v4288 = vmul.f32 %v4286, %v3922
  %v4289 = vmul.f32 %v4286, %v3923
  %v4290 = vmul.f32 %v4286, %v3924
  %v4291 = vmul.f32 %v4286, %v3925
  %v4292 = vmul.f32 %v4286, %v3926
  %v4293 = vmul.f32 %v4286, %v3927
  %v4294 = vmul.f32 %v4286, %v3928
  %v4295 = vmul.f32 %v4286, %v3929
  %v4296 = vmul.f32 %v4286, %v3930
  %v4297 = vmul.f32 %v4286, %v3931
  %v4298 = vmul.f32 %v4286, %v3932
  %v4299 = vmul.f32 %v4286, %v3933
  %v4300 = vmul.f32 %v4286, %v3934
  %v4301 = vmul.f32 %v4286, %v3935
  %v4302 = vmul.f32 %v4286, %v3936
  %v4303 = vmul.f32 %v4286, %v3937
  %v4304 = vmul.f32 %v4286, %v3938
  %v4305 = vmul.f32 %v4286, %v3939
  %v4306 = vmul.f32 %v4286, %v3940
  %v4307 = vmul.f32 %v4286, %v3941
  %v4308 = vmul.f32 %v4286, %v3942
  %v4309 = vmul.f32 %v4286, %v3943
  %v4310 = vmul.f32 %v4286, %v3944
  %v4311 = vmul.f32 %v4286, %v3945
  %v4312 = vmul.f32 %v4286, %v3946
  %v4313 = vmul.f32 %v4286, %v3947
  %v4314 = vmul.f32 %v4286, %v3948
  %v4315 = vmul.f32 %v4286, %v3949
  %v4316 = vmul.f32 %v4286, %v3950
  %v4317 = vmul.f32 %v4286, %v3951
  %v4318 = vmul.f32 %v4286, %v3952
  %v4319 = vadd.f32 %v4249, %v4287
  %v4320 = vadd.f32 %v4250, %v4288
  %v4321 = vadd.f32 %v4251, %v4289
  %v4322 = vadd.f32 %v4252, %v4290
  %v4323 = vadd.f32 %v4253, %v4291
  %v4324 = vadd.f32 %v4254, %v4292
  %v4325 = vadd.f32 %v4255, %v4293
  %v4326 = vadd.f32 %v4256, %v4294
  %v4327 = vadd.f32 %v4257, %v4295
  %v4328 = vadd.f32 %v4258, %v4296
  %v4329 = vadd.f32 %v4259, %v4297
  %v4330 = vadd.f32 %v4260, %v4298
  %v4331 = vadd.f32 %v4261, %v4299
  %v4332 = vadd.f32 %v4262, %v4300
  %v4333 = vadd.f32 %v4263, %v4301
  %v4334 = vadd.f32 %v4264, %v4302
  %v4335 = vadd.f32 %v4265, %v4303
  %v4336 = vadd.f32 %v4266, %v4304
  %v4337 = vadd.f32 %v4267, %v4305
  %v4338 = vadd.f32 %v4268, %v4306
  %v4339 = vadd.f32 %v4269, %v4307
  %v4340 = vadd.f32 %v4270, %v4308
  %v4341 = vadd.f32 %v4271, %v4309
  %v4342 = vadd.f32 %v4272, %v4310
  %v4343 = vadd.f32 %v4273, %v4311
  %v4344 = vadd.f32 %v4274, %v4312
  %v4345 = vadd.f32 %v4275, %v4313
  %v4346 = vadd.f32 %v4276, %v4314
  %v4347 = vadd.f32 %v4277, %v4315
  %v4348 = vadd.f32 %v4278, %v4316
  %v4349 = vadd.f32 %v4279, %v4317
  %v4350 = vadd.f32 %v4280, %v4318
  %v4351 = vlaneseq
  %v4352 = vshrl.u32 %v4351, 7
  %v4353 = vsub.s32 0, %v4352
  %v4354 = vrot.slane %v4282, %v4353
  %v4355 = vmul.f32 %v4354, %v3965
  %v4356 = vmul.f32 %v4354, %v3966
  %v4357 = vmul.f32 %v4354, %v3967
  %v4358 = vmul.f32 %v4354, %v3968
  %v4359 = vmul.f32 %v4354, %v3969
  %v4360 = vmul.f32 %v4354, %v3970
  %v4361 = vmul.f32 %v4354, %v3971
  %v4362 = vmul.f32 %v4354, %v3972
  %v4363 = vmul.f32 %v4354, %v3973
  %v4364 = vmul.f32 %v4354, %v3974
  %v4365 = vmul.f32 %v4354, %v3975
  %v4366 = vmul.f32 %v4354, %v3976
  %v4367 = vmul.f32 %v4354, %v3977
  %v4368 = vmul.f32 %v4354, %v3978
  %v4369 = vmul.f32 %v4354, %v3979
  %v4370 = vmul.f32 %v4354, %v3980
  %v4371 = vmul.f32 %v4354, %v3981
  %v4372 = vmul.f32 %v4354, %v3982
  %v4373 = vmul.f32 %v4354, %v3983
  %v4374 = vmul.f32 %v4354, %v3984
  %v4375 = vmul.f32 %v4354, %v3985
  %v4376 = vmul.f32 %v4354, %v3986
  %v4377 = vmul.f32 %v4354, %v3987
  %v4378 = vmul.f32 %v4354, %v3988
  %v4379 = vmul.f32 %v4354, %v3989
  %v4380 = vmul.f32 %v4354, %v3990
  %v4381 = vmul.f32 %v4354, %v3991
  %v4382 = vmul.f32 %v4354, %v3992
  %v4383 = vmul.f32 %v4354, %v3993
  %v4384 = vmul.f32 %v4354, %v3994
  %v4385 = vmul.f32 %v4354, %v3995
  %v4386 = vmul.f32 %v4354, %v3996
  %v4387 = vadd.f32 %v4319, %v4355
  %v4388 = vadd.f32 %v4320, %v4356
  %v4389 = vadd.f32 %v4321, %v4357
  %v4390 = vadd.f32 %v4322, %v4358
  %v4391 = vadd.f32 %v4323, %v4359
  %v4392 = vadd.f32 %v4324, %v4360
  %v4393 = vadd.f32 %v4325, %v4361
  %v4394 = vadd.f32 %v4326, %v4362
  %v4395 = vadd.f32 %v4327, %v4363
  %v4396 = vadd.f32 %v4328, %v4364
  %v4397 = vadd.f32 %v4329, %v4365
  %v4398 = vadd.f32 %v4330, %v4366
  %v4399 = vadd.f32 %v4331, %v4367
  %v4400 = vadd.f32 %v4332, %v4368
  %v4401 = vadd.f32 %v4333, %v4369
  %v4402 = vadd.f32 %v4334, %v4370
  %v4403 = vadd.f32 %v4335, %v4371
  %v4404 = vadd.f32 %v4336, %v4372
  %v4405 = vadd.f32 %v4337, %v4373
  %v4406 = vadd.f32 %v4338, %v4374
  %v4407 = vadd.f32 %v4339, %v4375
  %v4408 = vadd.f32 %v4340, %v4376
  %v4409 = vadd.f32 %v4341, %v4377
  %v4410 = vadd.f32 %v4342, %v4378
  %v4411 = vadd.f32 %v4343, %v4379
  %v4412 = vadd.f32 %v4344, %v4380
  %v4413 = vadd.f32 %v4345, %v4381
  %v4414 = vadd.f32 %v4346, %v4382
  %v4415 = vadd.f32 %v4347, %v4383
  %v4416 = vadd.f32 %v4348, %v4384
  %v4417 = vadd.f32 %v4349, %v4385
  %v4418 = vadd.f32 %v4350, %v4386
  %v4419 = vld [vmem:[%s0 + $0x18] sm:$0x1]
  %v4420 = vld [vmem:[%s0 + $0x49] sm:$0x1]
  %v4421 = vlaneseq
  %v4422 = vshrl.u32 %v4421, 7
  %v4423 = vsub.s32 0, %v4422
  %v4424 = vrot.slane %v4419, %v4423
  %v4425 = vmul.f32 %v4424, %v3923
  %v4426 = vmul.f32 %v4424, %v3924
  %v4427 = vmul.f32 %v4424, %v3925
  %v4428 = vmul.f32 %v4424, %v3926
  %v4429 = vmul.f32 %v4424, %v3927
  %v4430 = vmul.f32 %v4424, %v3928
  %v4431 = vmul.f32 %v4424, %v3929
  %v4432 = vmul.f32 %v4424, %v3930
  %v4433 = vmul.f32 %v4424, %v3931
  %v4434 = vmul.f32 %v4424, %v3932
  %v4435 = vmul.f32 %v4424, %v3933
  %v4436 = vmul.f32 %v4424, %v3934
  %v4437 = vmul.f32 %v4424, %v3935
  %v4438 = vmul.f32 %v4424, %v3936
  %v4439 = vmul.f32 %v4424, %v3937
  %v4440 = vmul.f32 %v4424, %v3938
  %v4441 = vmul.f32 %v4424, %v3939
  %v4442 = vmul.f32 %v4424, %v3940
  %v4443 = vmul.f32 %v4424, %v3941
  %v4444 = vmul.f32 %v4424, %v3942
  %v4445 = vmul.f32 %v4424, %v3943
  %v4446 = vmul.f32 %v4424, %v3944
  %v4447 = vmul.f32 %v4424, %v3945
  %v4448 = vmul.f32 %v4424, %v3946
  %v4449 = vmul.f32 %v4424, %v3947
  %v4450 = vmul.f32 %v4424, %v3948
  %v4451 = vmul.f32 %v4424, %v3949
  %v4452 = vmul.f32 %v4424, %v3950
  %v4453 = vmul.f32 %v4424, %v3951
  %v4454 = vmul.f32 %v4424, %v3952
  %v4455 = vmul.f32 %v4424, %v3953
  %v4456 = vmul.f32 %v4424, %v3954
  %v4457 = vadd.f32 %v4387, %v4425
  %v4458 = vadd.f32 %v4388, %v4426
  %v4459 = vadd.f32 %v4389, %v4427
  %v4460 = vadd.f32 %v4390, %v4428
  %v4461 = vadd.f32 %v4391, %v4429
  %v4462 = vadd.f32 %v4392, %v4430
  %v4463 = vadd.f32 %v4393, %v4431
  %v4464 = vadd.f32 %v4394, %v4432
  %v4465 = vadd.f32 %v4395, %v4433
  %v4466 = vadd.f32 %v4396, %v4434
  %v4467 = vadd.f32 %v4397, %v4435
  %v4468 = vadd.f32 %v4398, %v4436
  %v4469 = vadd.f32 %v4399, %v4437
  %v4470 = vadd.f32 %v4400, %v4438
  %v4471 = vadd.f32 %v4401, %v4439
  %v4472 = vadd.f32 %v4402, %v4440
  %v4473 = vadd.f32 %v4403, %v4441
  %v4474 = vadd.f32 %v4404, %v4442
  %v4475 = vadd.f32 %v4405, %v4443
  %v4476 = vadd.f32 %v4406, %v4444
  %v4477 = vadd.f32 %v4407, %v4445
  %v4478 = vadd.f32 %v4408, %v4446
  %v4479 = vadd.f32 %v4409, %v4447
  %v4480 = vadd.f32 %v4410, %v4448
  %v4481 = vadd.f32 %v4411, %v4449
  %v4482 = vadd.f32 %v4412, %v4450
  %v4483 = vadd.f32 %v4413, %v4451
  %v4484 = vadd.f32 %v4414, %v4452
  %v4485 = vadd.f32 %v4415, %v4453
  %v4486 = vadd.f32 %v4416, %v4454
  %v4487 = vadd.f32 %v4417, %v4455
  %v4488 = vadd.f32 %v4418, %v4456
  %v4489 = vlaneseq
  %v4490 = vshrl.u32 %v4489, 7
  %v4491 = vsub.s32 0, %v4490
  %v4492 = vrot.slane %v4420, %v4491
  %v4493 = vmul.f32 %v4492, %v3967
  %v4494 = vmul.f32 %v4492, %v3968
  %v4495 = vmul.f32 %v4492, %v3969
  %v4496 = vmul.f32 %v4492, %v3970
  %v4497 = vmul.f32 %v4492, %v3971
  %v4498 = vmul.f32 %v4492, %v3972
  %v4499 = vmul.f32 %v4492, %v3973
  %v4500 = vmul.f32 %v4492, %v3974
  %v4501 = vmul.f32 %v4492, %v3975
  %v4502 = vmul.f32 %v4492, %v3976
  %v4503 = vmul.f32 %v4492, %v3977
  %v4504 = vmul.f32 %v4492, %v3978
  %v4505 = vmul.f32 %v4492, %v3979
  %v4506 = vmul.f32 %v4492, %v3980
  %v4507 = vmul.f32 %v4492, %v3981
  %v4508 = vmul.f32 %v4492, %v3982
  %v4509 = vmul.f32 %v4492, %v3983
  %v4510 = vmul.f32 %v4492, %v3984
  %v4511 = vmul.f32 %v4492, %v3985
  %v4512 = vmul.f32 %v4492, %v3986
  %v4513 = vmul.f32 %v4492, %v3987
  %v4514 = vmul.f32 %v4492, %v3988
  %v4515 = vmul.f32 %v4492, %v3989
  %v4516 = vmul.f32 %v4492, %v3990
  %v4517 = vmul.f32 %v4492, %v3991
  %v4518 = vmul.f32 %v4492, %v3992
  %v4519 = vmul.f32 %v4492, %v3993
  %v4520 = vmul.f32 %v4492, %v3994
  %v4521 = vmul.f32 %v4492, %v3995
  %v4522 = vmul.f32 %v4492, %v3996
  %v4523 = vmul.f32 %v4492, %v3997
  %v4524 = vmul.f32 %v4492, %v3998
  %v4525 = vadd.f32 %v4457, %v4493
  %v4526 = vadd.f32 %v4458, %v4494
  %v4527 = vadd.f32 %v4459, %v4495
  %v4528 = vadd.f32 %v4460, %v4496
  %v4529 = vadd.f32 %v4461, %v4497
  %v4530 = vadd.f32 %v4462, %v4498
  %v4531 = vadd.f32 %v4463, %v4499
  %v4532 = vadd.f32 %v4464, %v4500
  %v4533 = vadd.f32 %v4465, %v4501
  %v4534 = vadd.f32 %v4466, %v4502
  %v4535 = vadd.f32 %v4467, %v4503
  %v4536 = vadd.f32 %v4468, %v4504
  %v4537 = vadd.f32 %v4469, %v4505
  %v4538 = vadd.f32 %v4470, %v4506
  %v4539 = vadd.f32 %v4471, %v4507
  %v4540 = vadd.f32 %v4472, %v4508
  %v4541 = vadd.f32 %v4473, %v4509
  %v4542 = vadd.f32 %v4474, %v4510
  %v4543 = vadd.f32 %v4475, %v4511
  %v4544 = vadd.f32 %v4476, %v4512
  %v4545 = vadd.f32 %v4477, %v4513
  %v4546 = vadd.f32 %v4478, %v4514
  %v4547 = vadd.f32 %v4479, %v4515
  %v4548 = vadd.f32 %v4480, %v4516
  %v4549 = vadd.f32 %v4481, %v4517
  %v4550 = vadd.f32 %v4482, %v4518
  %v4551 = vadd.f32 %v4483, %v4519
  %v4552 = vadd.f32 %v4484, %v4520
  %v4553 = vadd.f32 %v4485, %v4521
  %v4554 = vadd.f32 %v4486, %v4522
  %v4555 = vadd.f32 %v4487, %v4523
  %v4556 = vadd.f32 %v4488, %v4524
  %v4557 = vld [vmem:[%s0 + $0x1f] sm:$0x1]
  %v4558 = vld [vmem:[%s0 + $0x50] sm:$0x1]
  %v4559 = vlaneseq
  %v4560 = vshrl.u32 %v4559, 7
  %v4561 = vsub.s32 0, %v4560
  %v4562 = vrot.slane %v4557, %v4561
  %v4563 = vmul.f32 %v4562, %v3925
  %v4564 = vmul.f32 %v4562, %v3926
  %v4565 = vmul.f32 %v4562, %v3927
  %v4566 = vmul.f32 %v4562, %v3928
  %v4567 = vmul.f32 %v4562, %v3929
  %v4568 = vmul.f32 %v4562, %v3930
  %v4569 = vmul.f32 %v4562, %v3931
  %v4570 = vmul.f32 %v4562, %v3932
  %v4571 = vmul.f32 %v4562, %v3933
  %v4572 = vmul.f32 %v4562, %v3934
  %v4573 = vmul.f32 %v4562, %v3935
  %v4574 = vmul.f32 %v4562, %v3936
  %v4575 = vmul.f32 %v4562, %v3937
  %v4576 = vmul.f32 %v4562, %v3938
  %v4577 = vmul.f32 %v4562, %v3939
  %v4578 = vmul.f32 %v4562, %v3940
  %v4579 = vmul.f32 %v4562, %v3941
  %v4580 = vmul.f32 %v4562, %v3942
  %v4581 = vmul.f32 %v4562, %v3943
  %v4582 = vmul.f32 %v4562, %v3944
  %v4583 = vmul.f32 %v4562, %v3945
  %v4584 = vmul.f32 %v4562, %v3946
  %v4585 = vmul.f32 %v4562, %v3947
  %v4586 = vmul.f32 %v4562, %v3948
  %v4587 = vmul.f32 %v4562, %v3949
  %v4588 = vmul.f32 %v4562, %v3950
  %v4589 = vmul.f32 %v4562, %v3951
  %v4590 = vmul.f32 %v4562, %v3952
  %v4591 = vmul.f32 %v4562, %v3953
  %v4592 = vmul.f32 %v4562, %v3954
  %v4593 = vmul.f32 %v4562, %v3955
  %v4594 = vmul.f32 %v4562, %v3956
  %v4595 = vadd.f32 %v4525, %v4563
  %v4596 = vadd.f32 %v4526, %v4564
  %v4597 = vadd.f32 %v4527, %v4565
  %v4598 = vadd.f32 %v4528, %v4566
  %v4599 = vadd.f32 %v4529, %v4567
  %v4600 = vadd.f32 %v4530, %v4568
  %v4601 = vadd.f32 %v4531, %v4569
  %v4602 = vadd.f32 %v4532, %v4570
  %v4603 = vadd.f32 %v4533, %v4571
  %v4604 = vadd.f32 %v4534, %v4572
  %v4605 = vadd.f32 %v4535, %v4573
  %v4606 = vadd.f32 %v4536, %v4574
  %v4607 = vadd.f32 %v4537, %v4575
  %v4608 = vadd.f32 %v4538, %v4576
  %v4609 = vadd.f32 %v4539, %v4577
  %v4610 = vadd.f32 %v4540, %v4578
  %v4611 = vadd.f32 %v4541, %v4579
  %v4612 = vadd.f32 %v4542, %v4580
  %v4613 = vadd.f32 %v4543, %v4581
  %v4614 = vadd.f32 %v4544, %v4582
  %v4615 = vadd.f32 %v4545, %v4583
  %v4616 = vadd.f32 %v4546, %v4584
  %v4617 = vadd.f32 %v4547, %v4585
  %v4618 = vadd.f32 %v4548, %v4586
  %v4619 = vadd.f32 %v4549, %v4587
  %v4620 = vadd.f32 %v4550, %v4588
  %v4621 = vadd.f32 %v4551, %v4589
  %v4622 = vadd.f32 %v4552, %v4590
  %v4623 = vadd.f32 %v4553, %v4591
  %v4624 = vadd.f32 %v4554, %v4592
  %v4625 = vadd.f32 %v4555, %v4593
  %v4626 = vadd.f32 %v4556, %v4594
  %v4627 = vlaneseq
  %v4628 = vshrl.u32 %v4627, 7
  %v4629 = vsub.s32 0, %v4628
  %v4630 = vrot.slane %v4558, %v4629
  %v4631 = vmul.f32 %v4630, %v3969
  %v4632 = vmul.f32 %v4630, %v3970
  %v4633 = vmul.f32 %v4630, %v3971
  %v4634 = vmul.f32 %v4630, %v3972
  %v4635 = vmul.f32 %v4630, %v3973
  %v4636 = vmul.f32 %v4630, %v3974
  %v4637 = vmul.f32 %v4630, %v3975
  %v4638 = vmul.f32 %v4630, %v3976
  %v4639 = vmul.f32 %v4630, %v3977
  %v4640 = vmul.f32 %v4630, %v3978
  %v4641 = vmul.f32 %v4630, %v3979
  %v4642 = vmul.f32 %v4630, %v3980
  %v4643 = vmul.f32 %v4630, %v3981
  %v4644 = vmul.f32 %v4630, %v3982
  %v4645 = vmul.f32 %v4630, %v3983
  %v4646 = vmul.f32 %v4630, %v3984
  %v4647 = vmul.f32 %v4630, %v3985
  %v4648 = vmul.f32 %v4630, %v3986
  %v4649 = vmul.f32 %v4630, %v3987
  %v4650 = vmul.f32 %v4630, %v3988
  %v4651 = vmul.f32 %v4630, %v3989
  %v4652 = vmul.f32 %v4630, %v3990
  %v4653 = vmul.f32 %v4630, %v3991
  %v4654 = vmul.f32 %v4630, %v3992
  %v4655 = vmul.f32 %v4630, %v3993
  %v4656 = vmul.f32 %v4630, %v3994
  %v4657 = vmul.f32 %v4630, %v3995
  %v4658 = vmul.f32 %v4630, %v3996
  %v4659 = vmul.f32 %v4630, %v3997
  %v4660 = vmul.f32 %v4630, %v3998
  %v4661 = vmul.f32 %v4630, %v3999
  %v4662 = vmul.f32 %v4630, %v4000
  %v4663 = vadd.f32 %v4595, %v4631
  %v4664 = vadd.f32 %v4596, %v4632
  %v4665 = vadd.f32 %v4597, %v4633
  %v4666 = vadd.f32 %v4598, %v4634
  %v4667 = vadd.f32 %v4599, %v4635
  %v4668 = vadd.f32 %v4600, %v4636
  %v4669 = vadd.f32 %v4601, %v4637
  %v4670 = vadd.f32 %v4602, %v4638
  %v4671 = vadd.f32 %v4603, %v4639
  %v4672 = vadd.f32 %v4604, %v4640
  %v4673 = vadd.f32 %v4605, %v4641
  %v4674 = vadd.f32 %v4606, %v4642
  %v4675 = vadd.f32 %v4607, %v4643
  %v4676 = vadd.f32 %v4608, %v4644
  %v4677 = vadd.f32 %v4609, %v4645
  %v4678 = vadd.f32 %v4610, %v4646
  %v4679 = vadd.f32 %v4611, %v4647
  %v4680 = vadd.f32 %v4612, %v4648
  %v4681 = vadd.f32 %v4613, %v4649
  %v4682 = vadd.f32 %v4614, %v4650
  %v4683 = vadd.f32 %v4615, %v4651
  %v4684 = vadd.f32 %v4616, %v4652
  %v4685 = vadd.f32 %v4617, %v4653
  %v4686 = vadd.f32 %v4618, %v4654
  %v4687 = vadd.f32 %v4619, %v4655
  %v4688 = vadd.f32 %v4620, %v4656
  %v4689 = vadd.f32 %v4621, %v4657
  %v4690 = vadd.f32 %v4622, %v4658
  %v4691 = vadd.f32 %v4623, %v4659
  %v4692 = vadd.f32 %v4624, %v4660
  %v4693 = vadd.f32 %v4625, %v4661
  %v4694 = vadd.f32 %v4626, %v4662
  %v4695 = vld [vmem:[%s0 + $0x26] sm:$0x1]
  %v4696 = vld [vmem:[%s0 + $0x57] sm:$0x1]
  %v4697 = vlaneseq
  %v4698 = vshrl.u32 %v4697, 7
  %v4699 = vsub.s32 0, %v4698
  %v4700 = vrot.slane %v4695, %v4699
  %v4701 = vmul.f32 %v4700, %v3927
  %v4702 = vmul.f32 %v4700, %v3928
  %v4703 = vmul.f32 %v4700, %v3929
  %v4704 = vmul.f32 %v4700, %v3930
  %v4705 = vmul.f32 %v4700, %v3931
  %v4706 = vmul.f32 %v4700, %v3932
  %v4707 = vmul.f32 %v4700, %v3933
  %v4708 = vmul.f32 %v4700, %v3934
  %v4709 = vmul.f32 %v4700, %v3935
  %v4710 = vmul.f32 %v4700, %v3936
  %v4711 = vmul.f32 %v4700, %v3937
  %v4712 = vmul.f32 %v4700, %v3938
  %v4713 = vmul.f32 %v4700, %v3939
  %v4714 = vmul.f32 %v4700, %v3940
  %v4715 = vmul.f32 %v4700, %v3941
  %v4716 = vmul.f32 %v4700, %v3942
  %v4717 = vmul.f32 %v4700, %v3943
  %v4718 = vmul.f32 %v4700, %v3944
  %v4719 = vmul.f32 %v4700, %v3945
  %v4720 = vmul.f32 %v4700, %v3946
  %v4721 = vmul.f32 %v4700, %v3947
  %v4722 = vmul.f32 %v4700, %v3948
  %v4723 = vmul.f32 %v4700, %v3949
  %v4724 = vmul.f32 %v4700, %v3950
  %v4725 = vmul.f32 %v4700, %v3951
  %v4726 = vmul.f32 %v4700, %v3952
  %v4727 = vmul.f32 %v4700, %v3953
  %v4728 = vmul.f32 %v4700, %v3954
  %v4729 = vmul.f32 %v4700, %v3955
  %v4730 = vmul.f32 %v4700, %v3956
  %v4731 = vmul.f32 %v4700, %v3957
  %v4732 = vmul.f32 %v4700, %v3958
  %v4733 = vadd.f32 %v4663, %v4701
  %v4734 = vadd.f32 %v4664, %v4702
  %v4735 = vadd.f32 %v4665, %v4703
  %v4736 = vadd.f32 %v4666, %v4704
  %v4737 = vadd.f32 %v4667, %v4705
  %v4738 = vadd.f32 %v4668, %v4706
  %v4739 = vadd.f32 %v4669, %v4707
  %v4740 = vadd.f32 %v4670, %v4708
  %v4741 = vadd.f32 %v4671, %v4709
  %v4742 = vadd.f32 %v4672, %v4710
  %v4743 = vadd.f32 %v4673, %v4711
  %v4744 = vadd.f32 %v4674, %v4712
  %v4745 = vadd.f32 %v4675, %v4713
  %v4746 = vadd.f32 %v4676, %v4714
  %v4747 = vadd.f32 %v4677, %v4715
  %v4748 = vadd.f32 %v4678, %v4716
  %v4749 = vadd.f32 %v4679, %v4717
  %v4750 = vadd.f32 %v4680, %v4718
  %v4751 = vadd.f32 %v4681, %v4719
  %v4752 = vadd.f32 %v4682, %v4720
  %v4753 = vadd.f32 %v4683, %v4721
  %v4754 = vadd.f32 %v4684, %v4722
  %v4755 = vadd.f32 %v4685, %v4723
  %v4756 = vadd.f32 %v4686, %v4724
  %v4757 = vadd.f32 %v4687, %v4725
  %v4758 = vadd.f32 %v4688, %v4726
  %v4759 = vadd.f32 %v4689, %v4727
  %v4760 = vadd.f32 %v4690, %v4728
  %v4761 = vadd.f32 %v4691, %v4729
  %v4762 = vadd.f32 %v4692, %v4730
  %v4763 = vadd.f32 %v4693, %v4731
  %v4764 = vadd.f32 %v4694, %v4732
  %v4765 = vlaneseq
  %v4766 = vshrl.u32 %v4765, 7
  %v4767 = vsub.s32 0, %v4766
  %v4768 = vrot.slane %v4696, %v4767
  %v4769 = vmul.f32 %v4768, %v3971
  %v4770 = vmul.f32 %v4768, %v3972
  %v4771 = vmul.f32 %v4768, %v3973
  %v4772 = vmul.f32 %v4768, %v3974
  %v4773 = vmul.f32 %v4768, %v3975
  %v4774 = vmul.f32 %v4768, %v3976
  %v4775 = vmul.f32 %v4768, %v3977
  %v4776 = vmul.f32 %v4768, %v3978
  %v4777 = vmul.f32 %v4768, %v3979
  %v4778 = vmul.f32 %v4768, %v3980
  %v4779 = vmul.f32 %v4768, %v3981
  %v4780 = vmul.f32 %v4768, %v3982
  %v4781 = vmul.f32 %v4768, %v3983
  %v4782 = vmul.f32 %v4768, %v3984
  %v4783 = vmul.f32 %v4768, %v3985
  %v4784 = vmul.f32 %v4768, %v3986
  %v4785 = vmul.f32 %v4768, %v3987
  %v4786 = vmul.f32 %v4768, %v3988
  %v4787 = vmul.f32 %v4768, %v3989
  %v4788 = vmul.f32 %v4768, %v3990
  %v4789 = vmul.f32 %v4768, %v3991
  %v4790 = vmul.f32 %v4768, %v3992
  %v4791 = vmul.f32 %v4768, %v3993
  %v4792 = vmul.f32 %v4768, %v3994
  %v4793 = vmul.f32 %v4768, %v3995
  %v4794 = vmul.f32 %v4768, %v3996
  %v4795 = vmul.f32 %v4768, %v3997
  %v4796 = vmul.f32 %v4768, %v3998
  %v4797 = vmul.f32 %v4768, %v3999
  %v4798 = vmul.f32 %v4768, %v4000
  %v4799 = vmul.f32 %v4768, %v4001
  %v4800 = vmul.f32 %v4768, %v4002
  %v4801 = vadd.f32 %v4733, %v4769
  %v4802 = vadd.f32 %v4734, %v4770
  %v4803 = vadd.f32 %v4735, %v4771
  %v4804 = vadd.f32 %v4736, %v4772
  %v4805 = vadd.f32 %v4737, %v4773
  %v4806 = vadd.f32 %v4738, %v4774
  %v4807 = vadd.f32 %v4739, %v4775
  %v4808 = vadd.f32 %v4740, %v4776
  %v4809 = vadd.f32 %v4741, %v4777
  %v4810 = vadd.f32 %v4742, %v4778
  %v4811 = vadd.f32 %v4743, %v4779
  %v4812 = vadd.f32 %v4744, %v4780
  %v4813 = vadd.f32 %v4745, %v4781
  %v4814 = vadd.f32 %v4746, %v4782
  %v4815 = vadd.f32 %v4747, %v4783
  %v4816 = vadd.f32 %v4748, %v4784
  %v4817 = vadd.f32 %v4749, %v4785
  %v4818 = vadd.f32 %v4750, %v4786
  %v4819 = vadd.f32 %v4751, %v4787
  %v4820 = vadd.f32 %v4752, %v4788
  %v4821 = vadd.f32 %v4753, %v4789
  %v4822 = vadd.f32 %v4754, %v4790
  %v4823 = vadd.f32 %v4755, %v4791
  %v4824 = vadd.f32 %v4756, %v4792
  %v4825 = vadd.f32 %v4757, %v4793
  %v4826 = vadd.f32 %v4758, %v4794
  %v4827 = vadd.f32 %v4759, %v4795
  %v4828 = vadd.f32 %v4760, %v4796
  %v4829 = vadd.f32 %v4761, %v4797
  %v4830 = vadd.f32 %v4762, %v4798
  %v4831 = vadd.f32 %v4763, %v4799
  %v4832 = vadd.f32 %v4764, %v4800
  %v4833 = vld [vmem:[%s0 + $0x2d] sm:$0x1]
  %v4834 = vld [vmem:[%s0 + $0x5e] sm:$0x1]
  %v4835 = vlaneseq
  %v4836 = vshrl.u32 %v4835, 7
  %v4837 = vsub.s32 0, %v4836
  %v4838 = vrot.slane %v4833, %v4837
  %v4839 = vmul.f32 %v4838, %v3929
  %v4840 = vmul.f32 %v4838, %v3930
  %v4841 = vmul.f32 %v4838, %v3931
  %v4842 = vmul.f32 %v4838, %v3932
  %v4843 = vmul.f32 %v4838, %v3933
  %v4844 = vmul.f32 %v4838, %v3934
  %v4845 = vmul.f32 %v4838, %v3935
  %v4846 = vmul.f32 %v4838, %v3936
  %v4847 = vmul.f32 %v4838, %v3937
  %v4848 = vmul.f32 %v4838, %v3938
  %v4849 = vmul.f32 %v4838, %v3939
  %v4850 = vmul.f32 %v4838, %v3940
  %v4851 = vmul.f32 %v4838, %v3941
  %v4852 = vmul.f32 %v4838, %v3942
  %v4853 = vmul.f32 %v4838, %v3943
  %v4854 = vmul.f32 %v4838, %v3944
  %v4855 = vmul.f32 %v4838, %v3945
  %v4856 = vmul.f32 %v4838, %v3946
  %v4857 = vmul.f32 %v4838, %v3947
  %v4858 = vmul.f32 %v4838, %v3948
  %v4859 = vmul.f32 %v4838, %v3949
  %v4860 = vmul.f32 %v4838, %v3950
  %v4861 = vmul.f32 %v4838, %v3951
  %v4862 = vmul.f32 %v4838, %v3952
  %v4863 = vmul.f32 %v4838, %v3953
  %v4864 = vmul.f32 %v4838, %v3954
  %v4865 = vmul.f32 %v4838, %v3955
  %v4866 = vmul.f32 %v4838, %v3956
  %v4867 = vmul.f32 %v4838, %v3957
  %v4868 = vmul.f32 %v4838, %v3958
  %v4869 = vmul.f32 %v4838, %v3959
  %v4870 = vmul.f32 %v4838, %v3960
  %v4871 = vadd.f32 %v4801, %v4839
  %v4872 = vadd.f32 %v4802, %v4840
  %v4873 = vadd.f32 %v4803, %v4841
  %v4874 = vadd.f32 %v4804, %v4842
  %v4875 = vadd.f32 %v4805, %v4843
  %v4876 = vadd.f32 %v4806, %v4844
  %v4877 = vadd.f32 %v4807, %v4845
  %v4878 = vadd.f32 %v4808, %v4846
  %v4879 = vadd.f32 %v4809, %v4847
  %v4880 = vadd.f32 %v4810, %v4848
  %v4881 = vadd.f32 %v4811, %v4849
  %v4882 = vadd.f32 %v4812, %v4850
  %v4883 = vadd.f32 %v4813, %v4851
  %v4884 = vadd.f32 %v4814, %v4852
  %v4885 = vadd.f32 %v4815, %v4853
  %v4886 = vadd.f32 %v4816, %v4854
  %v4887 = vadd.f32 %v4817, %v4855
  %v4888 = vadd.f32 %v4818, %v4856
  %v4889 = vadd.f32 %v4819, %v4857
  %v4890 = vadd.f32 %v4820, %v4858
  %v4891 = vadd.f32 %v4821, %v4859
  %v4892 = vadd.f32 %v4822, %v4860
  %v4893 = vadd.f32 %v4823, %v4861
  %v4894 = vadd.f32 %v4824, %v4862
  %v4895 = vadd.f32 %v4825, %v4863
  %v4896 = vadd.f32 %v4826, %v4864
  %v4897 = vadd.f32 %v4827, %v4865
  %v4898 = vadd.f32 %v4828, %v4866
  %v4899 = vadd.f32 %v4829, %v4867
  %v4900 = vadd.f32 %v4830, %v4868
  %v4901 = vadd.f32 %v4831, %v4869
  %v4902 = vadd.f32 %v4832, %v4870
  %v4903 = vlaneseq
  %v4904 = vshrl.u32 %v4903, 7
  %v4905 = vsub.s32 0, %v4904
  %v4906 = vrot.slane %v4834, %v4905
  %v4907 = vmul.f32 %v4906, %v3973
  %v4908 = vmul.f32 %v4906, %v3974
  %v4909 = vmul.f32 %v4906, %v3975
  %v4910 = vmul.f32 %v4906, %v3976
  %v4911 = vmul.f32 %v4906, %v3977
  %v4912 = vmul.f32 %v4906, %v3978
  %v4913 = vmul.f32 %v4906, %v3979
  %v4914 = vmul.f32 %v4906, %v3980
  %v4915 = vmul.f32 %v4906, %v3981
  %v4916 = vmul.f32 %v4906, %v3982
  %v4917 = vmul.f32 %v4906, %v3983
  %v4918 = vmul.f32 %v4906, %v3984
  %v4919 = vmul.f32 %v4906, %v3985
  %v4920 = vmul.f32 %v4906, %v3986
  %v4921 = vmul.f32 %v4906, %v3987
  %v4922 = vmul.f32 %v4906, %v3988
  %v4923 = vmul.f32 %v4906, %v3989
  %v4924 = vmul.f32 %v4906, %v3990
  %v4925 = vmul.f32 %v4906, %v3991
  %v4926 = vmul.f32 %v4906, %v3992
  %v4927 = vmul.f32 %v4906, %v3993
  %v4928 = vmul.f32 %v4906, %v3994
  %v4929 = vmul.f32 %v4906, %v3995
  %v4930 = vmul.f32 %v4906, %v3996
  %v4931 = vmul.f32 %v4906, %v3997
  %v4932 = vmul.f32 %v4906, %v3998
  %v4933 = vmul.f32 %v4906, %v3999
  %v4934 = vmul.f32 %v4906, %v4000
  %v4935 = vmul.f32 %v4906, %v4001
  %v4936 = vmul.f32 %v4906, %v4002
  %v4937 = vmul.f32 %v4906, %v4003
  %v4938 = vmul.f32 %v4906, %v4004
  %v4939 = vadd.f32 %v4871, %v4907
  %v4940 = vadd.f32 %v4872, %v4908
  %v4941 = vadd.f32 %v4873, %v4909
  %v4942 = vadd.f32 %v4874, %v4910
  %v4943 = vadd.f32 %v4875, %v4911
  %v4944 = vadd.f32 %v4876, %v4912
  %v4945 = vadd.f32 %v4877, %v4913
  %v4946 = vadd.f32 %v4878, %v4914
  %v4947 = vadd.f32 %v4879, %v4915
  %v4948 = vadd.f32 %v4880, %v4916
  %v4949 = vadd.f32 %v4881, %v4917
  %v4950 = vadd.f32 %v4882, %v4918
  %v4951 = vadd.f32 %v4883, %v4919
  %v4952 = vadd.f32 %v4884, %v4920
  %v4953 = vadd.f32 %v4885, %v4921
  %v4954 = vadd.f32 %v4886, %v4922
  %v4955 = vadd.f32 %v4887, %v4923
  %v4956 = vadd.f32 %v4888, %v4924
  %v4957 = vadd.f32 %v4889, %v4925
  %v4958 = vadd.f32 %v4890, %v4926
  %v4959 = vadd.f32 %v4891, %v4927
  %v4960 = vadd.f32 %v4892, %v4928
  %v4961 = vadd.f32 %v4893, %v4929
  %v4962 = vadd.f32 %v4894, %v4930
  %v4963 = vadd.f32 %v4895, %v4931
  %v4964 = vadd.f32 %v4896, %v4932
  %v4965 = vadd.f32 %v4897, %v4933
  %v4966 = vadd.f32 %v4898, %v4934
  %v4967 = vadd.f32 %v4899, %v4935
  %v4968 = vadd.f32 %v4900, %v4936
  %v4969 = vadd.f32 %v4901, %v4937
  %v4970 = vadd.f32 %v4902, %v4938
  %v4971 = vld [vmem:[#allocation2 + $0x4] sm:$0xff]
  %v4972 = vld [vmem:[#allocation2 + $0xc] sm:$0xff]
  %v4973 = vld [vmem:[#allocation2 + $0x1c] sm:$0xff]
  %v4974 = vld [vmem:[#allocation2 + $0x24] sm:$0xff]
  %v4975 = vld [vmem:[#allocation2 + $0x34] sm:$0xff]
  %v4976 = vld [vmem:[#allocation2 + $0x3c] sm:$0xff]
  %v4977 = vld [vmem:[#allocation2 + $0x4c] sm:$0xff]
  %v4978 = vld [vmem:[#allocation2 + $0x54] sm:$0xff]
  %v4979 = vld [vmem:[#allocation2 + $0x64] sm:$0xff]
  %v4980 = vld [vmem:[#allocation2 + $0x6c] sm:$0xff]
  %v4981 = vld [vmem:[#allocation2 + $0x7c] sm:$0xff]
  %v4982 = vld [vmem:[#allocation2 + $0x84] sm:$0xff]
  %v4983 = vld [vmem:[#allocation2 + $0x94] sm:$0xff]
  %v4984 = vld [vmem:[#allocation2 + $0x9c] sm:$0xff]
  %v4985 = vld [vmem:[#allocation2 + $0xac] sm:$0xff]
  %v4986 = vld [vmem:[#allocation2 + $0xb4] sm:$0xff]
  %v4987 = vld [vmem:[#allocation2 + $0xc4] sm:$0xff]
  %v4988 = vld [vmem:[#allocation2 + $0xcc] sm:$0xff]
  %v4989 = vld [vmem:[#allocation2 + $0xdc] sm:$0xff]
  %v4990 = vld [vmem:[#allocation2 + $0xe4] sm:$0xff]
  %v4991 = vld [vmem:[#allocation2 + $0xf4] sm:$0xff]
  %v4992 = vld [vmem:[#allocation2 + $0xfc] sm:$0xff]
  %v4993 = vld [vmem:[#allocation2 + $0x10c] sm:$0xff]
  %v4994 = vld [vmem:[#allocation2 + $0x114] sm:$0xff]
  %v4995 = vld [vmem:[#allocation2 + $0x124] sm:$0xff]
  %v4996 = vld [vmem:[#allocation2 + $0x12c] sm:$0xff]
  %v4997 = vld [vmem:[#allocation2 + $0x13c] sm:$0xff]
  %v4998 = vld [vmem:[#allocation2 + $0x144] sm:$0xff]
  %v4999 = vld [vmem:[#allocation2 + $0x154] sm:$0xff]
  %v5000 = vld [vmem:[#allocation2 + $0x15c] sm:$0xff]
  %v5001 = vld [vmem:[#allocation2 + $0x16c] sm:$0xff]
  %v5002 = vld [vmem:[#allocation2 + $0x174] sm:$0xff]
  %v5003 = vld [vmem:[#allocation2 + $0x184] sm:$0xff]
  %v5004 = vld [vmem:[#allocation2 + $0x18c] sm:$0xff]
  %v5005 = vld [vmem:[#allocation2 + $0x19c] sm:$0xff]
  %v5006 = vld [vmem:[#allocation2 + $0x1a4] sm:$0xff]
  %v5007 = vld [vmem:[#allocation2 + $0x1b4] sm:$0xff]
  %v5008 = vld [vmem:[#allocation2 + $0x1bc] sm:$0xff]
  %v5009 = vld [vmem:[#allocation2 + $0x1cc] sm:$0xff]
  %v5010 = vld [vmem:[#allocation2 + $0x1d4] sm:$0xff]
  %v5011 = vld [vmem:[#allocation2 + $0x1e4] sm:$0xff]
  %v5012 = vld [vmem:[#allocation2 + $0x1ec] sm:$0xff]
  %v5013 = vld [vmem:[#allocation2 + $0x1fc] sm:$0xff]
  %v5014 = vld [vmem:[#allocation2 + $0x204] sm:$0xff]
  %v5015 = vld [vmem:[#allocation3 + $0x4] sm:$0xff]
  %v5016 = vld [vmem:[#allocation3 + $0xc] sm:$0xff]
  %v5017 = vld [vmem:[#allocation3 + $0x1c] sm:$0xff]
  %v5018 = vld [vmem:[#allocation3 + $0x24] sm:$0xff]
  %v5019 = vld [vmem:[#allocation3 + $0x34] sm:$0xff]
  %v5020 = vld [vmem:[#allocation3 + $0x3c] sm:$0xff]
  %v5021 = vld [vmem:[#allocation3 + $0x4c] sm:$0xff]
  %v5022 = vld [vmem:[#allocation3 + $0x54] sm:$0xff]
  %v5023 = vld [vmem:[#allocation3 + $0x64] sm:$0xff]
  %v5024 = vld [vmem:[#allocation3 + $0x6c] sm:$0xff]
  %v5025 = vld [vmem:[#allocation3 + $0x7c] sm:$0xff]
  %v5026 = vld [vmem:[#allocation3 + $0x84] sm:$0xff]
  %v5027 = vld [vmem:[#allocation3 + $0x94] sm:$0xff]
  %v5028 = vld [vmem:[#allocation3 + $0x9c] sm:$0xff]
  %v5029 = vld [vmem:[#allocation3 + $0xac] sm:$0xff]
  %v5030 = vld [vmem:[#allocation3 + $0xb4] sm:$0xff]
  %v5031 = vld [vmem:[#allocation3 + $0xc4] sm:$0xff]
  %v5032 = vld [vmem:[#allocation3 + $0xcc] sm:$0xff]
  %v5033 = vld [vmem:[#allocation3 + $0xdc] sm:$0xff]
  %v5034 = vld [vmem:[#allocation3 + $0xe4] sm:$0xff]
  %v5035 = vld [vmem:[#allocation3 + $0xf4] sm:$0xff]
  %v5036 = vld [vmem:[#allocation3 + $0xfc] sm:$0xff]
  %v5037 = vld [vmem:[#allocation3 + $0x10c] sm:$0xff]
  %v5038 = vld [vmem:[#allocation3 + $0x114] sm:$0xff]
  %v5039 = vld [vmem:[#allocation3 + $0x124] sm:$0xff]
  %v5040 = vld [vmem:[#allocation3 + $0x12c] sm:$0xff]
  %v5041 = vld [vmem:[#allocation3 + $0x13c] sm:$0xff]
  %v5042 = vld [vmem:[#allocation3 + $0x144] sm:$0xff]
  %v5043 = vld [vmem:[#allocation3 + $0x154] sm:$0xff]
  %v5044 = vld [vmem:[#allocation3 + $0x15c] sm:$0xff]
  %v5045 = vld [vmem:[#allocation3 + $0x16c] sm:$0xff]
  %v5046 = vld [vmem:[#allocation3 + $0x174] sm:$0xff]
  %v5047 = vld [vmem:[#allocation3 + $0x184] sm:$0xff]
  %v5048 = vld [vmem:[#allocation3 + $0x18c] sm:$0xff]
  %v5049 = vld [vmem:[#allocation3 + $0x19c] sm:$0xff]
  %v5050 = vld [vmem:[#allocation3 + $0x1a4] sm:$0xff]
  %v5051 = vld [vmem:[#allocation3 + $0x1b4] sm:$0xff]
  %v5052 = vld [vmem:[#allocation3 + $0x1bc] sm:$0xff]
  %v5053 = vld [vmem:[#allocation3 + $0x1cc] sm:$0xff]
  %v5054 = vld [vmem:[#allocation3 + $0x1d4] sm:$0xff]
  %v5055 = vld [vmem:[#allocation3 + $0x1e4] sm:$0xff]
  %v5056 = vld [vmem:[#allocation3 + $0x1ec] sm:$0xff]
  %v5057 = vld [vmem:[#allocation3 + $0x1fc] sm:$0xff]
  %v5058 = vld [vmem:[#allocation3 + $0x204] sm:$0xff]
  %v5059 = vld [vmem:[%s0 + $0x4] sm:$0x1]
  %v5060 = vld [vmem:[%s0 + $0x35] sm:$0x1]
  %v5061 = vlaneseq
  %v5062 = vshrl.u32 %v5061, 7
  %v5063 = vsub.s32 0, %v5062
  %v5064 = vrot.slane %v5059, %v5063
  %v5065 = vmul.f32 %v5064, %v4971
  %v5066 = vmul.f32 %v5064, %v4972
  %v5067 = vmul.f32 %v5064, %v4973
  %v5068 = vmul.f32 %v5064, %v4974
  %v5069 = vmul.f32 %v5064, %v4975
  %v5070 = vmul.f32 %v5064, %v4976
  %v5071 = vmul.f32 %v5064, %v4977
  %v5072 = vmul.f32 %v5064, %v4978
  %v5073 = vmul.f32 %v5064, %v4979
  %v5074 = vmul.f32 %v5064, %v4980
  %v5075 = vmul.f32 %v5064, %v4981
  %v5076 = vmul.f32 %v5064, %v4982
  %v5077 = vmul.f32 %v5064, %v4983
  %v5078 = vmul.f32 %v5064, %v4984
  %v5079 = vmul.f32 %v5064, %v4985
  %v5080 = vmul.f32 %v5064, %v4986
  %v5081 = vmul.f32 %v5064, %v4987
  %v5082 = vmul.f32 %v5064, %v4988
  %v5083 = vmul.f32 %v5064, %v4989
  %v5084 = vmul.f32 %v5064, %v4990
  %v5085 = vmul.f32 %v5064, %v4991
  %v5086 = vmul.f32 %v5064, %v4992
  %v5087 = vmul.f32 %v5064, %v4993
  %v5088 = vmul.f32 %v5064, %v4994
  %v5089 = vmul.f32 %v5064, %v4995
  %v5090 = vmul.f32 %v5064, %v4996
  %v5091 = vmul.f32 %v5064, %v4997
  %v5092 = vmul.f32 %v5064, %v4998
  %v5093 = vmul.f32 %v5064, %v4999
  %v5094 = vmul.f32 %v5064, %v5000
  %v5095 = vmul.f32 %v5064, %v5001
  %v5096 = vmul.f32 %v5064, %v5002
  %v5097 = vadd.f32 %v4939, %v5065
  %v5098 = vadd.f32 %v4940, %v5066
  %v5099 = vadd.f32 %v4941, %v5067
  %v5100 = vadd.f32 %v4942, %v5068
  %v5101 = vadd.f32 %v4943, %v5069
  %v5102 = vadd.f32 %v4944, %v5070
  %v5103 = vadd.f32 %v4945, %v5071
  %v5104 = vadd.f32 %v4946, %v5072
  %v5105 = vadd.f32 %v4947, %v5073
  %v5106 = vadd.f32 %v4948, %v5074
  %v5107 = vadd.f32 %v4949, %v5075
  %v5108 = vadd.f32 %v4950, %v5076
  %v5109 = vadd.f32 %v4951, %v5077
  %v5110 = vadd.f32 %v4952, %v5078
  %v5111 = vadd.f32 %v4953, %v5079
  %v5112 = vadd.f32 %v4954, %v5080
  %v5113 = vadd.f32 %v4955, %v5081
  %v5114 = vadd.f32 %v4956, %v5082
  %v5115 = vadd.f32 %v4957, %v5083
  %v5116 = vadd.f32 %v4958, %v5084
  %v5117 = vadd.f32 %v4959, %v5085
  %v5118 = vadd.f32 %v4960, %v5086
  %v5119 = vadd.f32 %v4961, %v5087
  %v5120 = vadd.f32 %v4962, %v5088
  %v5121 = vadd.f32 %v4963, %v5089
  %v5122 = vadd.f32 %v4964, %v5090
  %v5123 = vadd.f32 %v4965, %v5091
  %v5124 = vadd.f32 %v4966, %v5092
  %v5125 = vadd.f32 %v4967, %v5093
  %v5126 = vadd.f32 %v4968, %v5094
  %v5127 = vadd.f32 %v4969, %v5095
  %v5128 = vadd.f32 %v4970, %v5096
  %v5129 = vlaneseq
  %v5130 = vshrl.u32 %v5129, 7
  %v5131 = vsub.s32 0, %v5130
  %v5132 = vrot.slane %v5060, %v5131
  %v5133 = vmul.f32 %v5132, %v5015
  %v5134 = vmul.f32 %v5132, %v5016
  %v5135 = vmul.f32 %v5132, %v5017
  %v5136 = vmul.f32 %v5132, %v5018
  %v5137 = vmul.f32 %v5132, %v5019
  %v5138 = vmul.f32 %v5132, %v5020
  %v5139 = vmul.f32 %v5132, %v5021
  %v5140 = vmul.f32 %v5132, %v5022
  %v5141 = vmul.f32 %v5132, %v5023
  %v5142 = vmul.f32 %v5132, %v5024
  %v5143 = vmul.f32 %v5132, %v5025
  %v5144 = vmul.f32 %v5132, %v5026
  %v5145 = vmul.f32 %v5132, %v5027
  %v5146 = vmul.f32 %v5132, %v5028
  %v5147 = vmul.f32 %v5132, %v5029
  %v5148 = vmul.f32 %v5132, %v5030
  %v5149 = vmul.f32 %v5132, %v5031
  %v5150 = vmul.f32 %v5132, %v5032
  %v5151 = vmul.f32 %v5132, %v5033
  %v5152 = vmul.f32 %v5132, %v5034
  %v5153 = vmul.f32 %v5132, %v5035
  %v5154 = vmul.f32 %v5132, %v5036
  %v5155 = vmul.f32 %v5132, %v5037
  %v5156 = vmul.f32 %v5132, %v5038
  %v5157 = vmul.f32 %v5132, %v5039
  %v5158 = vmul.f32 %v5132, %v5040
  %v5159 = vmul.f32 %v5132, %v5041
  %v5160 = vmul.f32 %v5132, %v5042
  %v5161 = vmul.f32 %v5132, %v5043
  %v5162 = vmul.f32 %v5132, %v5044
  %v5163 = vmul.f32 %v5132, %v5045
  %v5164 = vmul.f32 %v5132, %v5046
  %v5165 = vadd.f32 %v5097, %v5133
  %v5166 = vadd.f32 %v5098, %v5134
  %v5167 = vadd.f32 %v5099, %v5135
  %v5168 = vadd.f32 %v5100, %v5136
  %v5169 = vadd.f32 %v5101, %v5137
  %v5170 = vadd.f32 %v5102, %v5138
  %v5171 = vadd.f32 %v5103, %v5139
  %v5172 = vadd.f32 %v5104, %v5140
  %v5173 = vadd.f32 %v5105, %v5141
  %v5174 = vadd.f32 %v5106, %v5142
  %v5175 = vadd.f32 %v5107, %v5143
  %v5176 = vadd.f32 %v5108, %v5144
  %v5177 = vadd.f32 %v5109, %v5145
  %v5178 = vadd.f32 %v5110, %v5146
  %v5179 = vadd.f32 %v5111, %v5147
  %v5180 = vadd.f32 %v5112, %v5148
  %v5181 = vadd.f32 %v5113, %v5149
  %v5182 = vadd.f32 %v5114, %v5150
  %v5183 = vadd.f32 %v5115, %v5151
  %v5184 = vadd.f32 %v5116, %v5152
  %v5185 = vadd.f32 %v5117, %v5153
  %v5186 = vadd.f32 %v5118, %v5154
  %v5187 = vadd.f32 %v5119, %v5155
  %v5188 = vadd.f32 %v5120, %v5156
  %v5189 = vadd.f32 %v5121, %v5157
  %v5190 = vadd.f32 %v5122, %v5158
  %v5191 = vadd.f32 %v5123, %v5159
  %v5192 = vadd.f32 %v5124, %v5160
  %v5193 = vadd.f32 %v5125, %v5161
  %v5194 = vadd.f32 %v5126, %v5162
  %v5195 = vadd.f32 %v5127, %v5163
  %v5196 = vadd.f32 %v5128, %v5164
  %v5197 = vld [vmem:[%s0 + $0xb] sm:$0x1]
  %v5198 = vld [vmem:[%s0 + $0x3c] sm:$0x1]
  %v5199 = vlaneseq
  %v5200 = vshrl.u32 %v5199, 7
  %v5201 = vsub.s32 0, %v5200
  %v5202 = vrot.slane %v5197, %v5201
  %v5203 = vmul.f32 %v5202, %v4973
  %v5204 = vmul.f32 %v5202, %v4974
  %v5205 = vmul.f32 %v5202, %v4975
  %v5206 = vmul.f32 %v5202, %v4976
  %v5207 = vmul.f32 %v5202, %v4977
  %v5208 = vmul.f32 %v5202, %v4978
  %v5209 = vmul.f32 %v5202, %v4979
  %v5210 = vmul.f32 %v5202, %v4980
  %v5211 = vmul.f32 %v5202, %v4981
  %v5212 = vmul.f32 %v5202, %v4982
  %v5213 = vmul.f32 %v5202, %v4983
  %v5214 = vmul.f32 %v5202, %v4984
  %v5215 = vmul.f32 %v5202, %v4985
  %v5216 = vmul.f32 %v5202, %v4986
  %v5217 = vmul.f32 %v5202, %v4987
  %v5218 = vmul.f32 %v5202, %v4988
  %v5219 = vmul.f32 %v5202, %v4989
  %v5220 = vmul.f32 %v5202, %v4990
  %v5221 = vmul.f32 %v5202, %v4991
  %v5222 = vmul.f32 %v5202, %v4992
  %v5223 = vmul.f32 %v5202, %v4993
  %v5224 = vmul.f32 %v5202, %v4994
  %v5225 = vmul.f32 %v5202, %v4995
  %v5226 = vmul.f32 %v5202, %v4996
  %v5227 = vmul.f32 %v5202, %v4997
  %v5228 = vmul.f32 %v5202, %v4998
  %v5229 = vmul.f32 %v5202, %v4999
  %v5230 = vmul.f32 %v5202, %v5000
  %v5231 = vmul.f32 %v5202, %v5001
  %v5232 = vmul.f32 %v5202, %v5002
  %v5233 = vmul.f32 %v5202, %v5003
  %v5234 = vmul.f32 %v5202, %v5004
  %v5235 = vadd.f32 %v5165, %v5203
  %v5236 = vadd.f32 %v5166, %v5204
  %v5237 = vadd.f32 %v5167, %v5205
  %v5238 = vadd.f32 %v5168, %v5206
  %v5239 = vadd.f32 %v5169, %v5207
  %v5240 = vadd.f32 %v5170, %v5208
  %v5241 = vadd.f32 %v5171, %v5209
  %v5242 = vadd.f32 %v5172, %v5210
  %v5243 = vadd.f32 %v5173, %v5211
  %v5244 = vadd.f32 %v5174, %v5212
  %v5245 = vadd.f32 %v5175, %v5213
  %v5246 = vadd.f32 %v5176, %v5214
  %v5247 = vadd.f32 %v5177, %v5215
  %v5248 = vadd.f32 %v5178, %v5216
  %v5249 = vadd.f32 %v5179, %v5217
  %v5250 = vadd.f32 %v5180, %v5218
  %v5251 = vadd.f32 %v5181, %v5219
  %v5252 = vadd.f32 %v5182, %v5220
  %v5253 = vadd.f32 %v5183, %v5221
  %v5254 = vadd.f32 %v5184, %v5222
  %v5255 = vadd.f32 %v5185, %v5223
  %v5256 = vadd.f32 %v5186, %v5224
  %v5257 = vadd.f32 %v5187, %v5225
  %v5258 = vadd.f32 %v5188, %v5226
  %v5259 = vadd.f32 %v5189, %v5227
  %v5260 = vadd.f32 %v5190, %v5228
  %v5261 = vadd.f32 %v5191, %v5229
  %v5262 = vadd.f32 %v5192, %v5230
  %v5263 = vadd.f32 %v5193, %v5231
  %v5264 = vadd.f32 %v5194, %v5232
  %v5265 = vadd.f32 %v5195, %v5233
  %v5266 = vadd.f32 %v5196, %v5234
  %v5267 = vlaneseq
  %v5268 = vshrl.u32 %v5267, 7
  %v5269 = vsub.s32 0, %v5268
  %v5270 = vrot.slane %v5198, %v5269
  %v5271 = vmul.f32 %v5270, %v5017
  %v5272 = vmul.f32 %v5270, %v5018
  %v5273 = vmul.f32 %v5270, %v5019
  %v5274 = vmul.f32 %v5270, %v5020
  %v5275 = vmul.f32 %v5270, %v5021
  %v5276 = vmul.f32 %v5270, %v5022
  %v5277 = vmul.f32 %v5270, %v5023
  %v5278 = vmul.f32 %v5270, %v5024
  %v5279 = vmul.f32 %v5270, %v5025
  %v5280 = vmul.f32 %v5270, %v5026
  %v5281 = vmul.f32 %v5270, %v5027
  %v5282 = vmul.f32 %v5270, %v5028
  %v5283 = vmul.f32 %v5270, %v5029
  %v5284 = vmul.f32 %v5270, %v5030
  %v5285 = vmul.f32 %v5270, %v5031
  %v5286 = vmul.f32 %v5270, %v5032
  %v5287 = vmul.f32 %v5270, %v5033
  %v5288 = vmul.f32 %v5270, %v5034
  %v5289 = vmul.f32 %v5270, %v5035
  %v5290 = vmul.f32 %v5270, %v5036
  %v5291 = vmul.f32 %v5270, %v5037
  %v5292 = vmul.f32 %v5270, %v5038
  %v5293 = vmul.f32 %v5270, %v5039
  %v5294 = vmul.f32 %v5270, %v5040
  %v5295 = vmul.f32 %v5270, %v5041
  %v5296 = vmul.f32 %v5270, %v5042
  %v5297 = vmul.f32 %v5270, %v5043
  %v5298 = vmul.f32 %v5270, %v5044
  %v5299 = vmul.f32 %v5270, %v5045
  %v5300 = vmul.f32 %v5270, %v5046
  %v5301 = vmul.f32 %v5270, %v5047
  %v5302 = vmul.f32 %v5270, %v5048
  %v5303 = vadd.f32 %v5235, %v5271
  %v5304 = vadd.f32 %v5236, %v5272
  %v5305 = vadd.f32 %v5237, %v5273
  %v5306 = vadd.f32 %v5238, %v5274
  %v5307 = vadd.f32 %v5239, %v5275
  %v5308 = vadd.f32 %v5240, %v5276
  %v5309 = vadd.f32 %v5241, %v5277
  %v5310 = vadd.f32 %v5242, %v5278
  %v5311 = vadd.f32 %v5243, %v5279
  %v5312 = vadd.f32 %v5244, %v5280
  %v5313 = vadd.f32 %v5245, %v5281
  %v5314 = vadd.f32 %v5246, %v5282
  %v5315 = vadd.f32 %v5247, %v5283
  %v5316 = vadd.f32 %v5248, %v5284
  %v5317 = vadd.f32 %v5249, %v5285
  %v5318 = vadd.f32 %v5250, %v5286
  %v5319 = vadd.f32 %v5251, %v5287
  %v5320 = vadd.f32 %v5252, %v5288
  %v5321 = vadd.f32 %v5253, %v5289
  %v5322 = vadd.f32 %v5254, %v5290
  %v5323 = vadd.f32 %v5255, %v5291
  %v5324 = vadd.f32 %v5256, %v5292
  %v5325 = vadd.f32 %v5257, %v5293
  %v5326 = vadd.f32 %v5258, %v5294
  %v5327 = vadd.f32 %v5259, %v5295
  %v5328 = vadd.f32 %v5260, %v5296
  %v5329 = vadd.f32 %v5261, %v5297
  %v5330 = vadd.f32 %v5262, %v5298
  %v5331 = vadd.f32 %v5263, %v5299
  %v5332 = vadd.f32 %v5264, %v5300
  %v5333 = vadd.f32 %v5265, %v5301
  %v5334 = vadd.f32 %v5266, %v5302
  %v5335 = vld [vmem:[%s0 + $0x12] sm:$0x1]
  %v5336 = vld [vmem:[%s0 + $0x43] sm:$0x1]
  %v5337 = vlaneseq
  %v5338 = vshrl.u32 %v5337, 7
  %v5339 = vsub.s32 0, %v5338
  %v5340 = vrot.slane %v5335, %v5339
  %v5341 = vmul.f32 %v5340, %v4975
  %v5342 = vmul.f32 %v5340, %v4976
  %v5343 = vmul.f32 %v5340, %v4977
  %v5344 = vmul.f32 %v5340, %v4978
  %v5345 = vmul.f32 %v5340, %v4979
  %v5346 = vmul.f32 %v5340, %v4980
  %v5347 = vmul.f32 %v5340, %v4981
  %v5348 = vmul.f32 %v5340, %v4982
  %v5349 = vmul.f32 %v5340, %v4983
  %v5350 = vmul.f32 %v5340, %v4984
  %v5351 = vmul.f32 %v5340, %v4985
  %v5352 = vmul.f32 %v5340, %v4986
  %v5353 = vmul.f32 %v5340, %v4987
  %v5354 = vmul.f32 %v5340, %v4988
  %v5355 = vmul.f32 %v5340, %v4989
  %v5356 = vmul.f32 %v5340, %v4990
  %v5357 = vmul.f32 %v5340, %v4991
  %v5358 = vmul.f32 %v5340, %v4992
  %v5359 = vmul.f32 %v5340, %v4993
  %v5360 = vmul.f32 %v5340, %v4994
  %v5361 = vmul.f32 %v5340, %v4995
  %v5362 = vmul.f32 %v5340, %v4996
  %v5363 = vmul.f32 %v5340, %v4997
  %v5364 = vmul.f32 %v5340, %v4998
  %v5365 = vmul.f32 %v5340, %v4999
  %v5366 = vmul.f32 %v5340, %v5000
  %v5367 = vmul.f32 %v5340, %v5001
  %v5368 = vmul.f32 %v5340, %v5002
  %v5369 = vmul.f32 %v5340, %v5003
  %v5370 = vmul.f32 %v5340, %v5004
  %v5371 = vmul.f32 %v5340, %v5005
  %v5372 = vmul.f32 %v5340, %v5006
  %v5373 = vadd.f32 %v5303, %v5341
  %v5374 = vadd.f32 %v5304, %v5342
  %v5375 = vadd.f32 %v5305, %v5343
  %v5376 = vadd.f32 %v5306, %v5344
  %v5377 = vadd.f32 %v5307, %v5345
  %v5378 = vadd.f32 %v5308, %v5346
  %v5379 = vadd.f32 %v5309, %v5347
  %v5380 = vadd.f32 %v5310, %v5348
  %v5381 = vadd.f32 %v5311, %v5349
  %v5382 = vadd.f32 %v5312, %v5350
  %v5383 = vadd.f32 %v5313, %v5351
  %v5384 = vadd.f32 %v5314, %v5352
  %v5385 = vadd.f32 %v5315, %v5353
  %v5386 = vadd.f32 %v5316, %v5354
  %v5387 = vadd.f32 %v5317, %v5355
  %v5388 = vadd.f32 %v5318, %v5356
  %v5389 = vadd.f32 %v5319, %v5357
  %v5390 = vadd.f32 %v5320, %v5358
  %v5391 = vadd.f32 %v5321, %v5359
  %v5392 = vadd.f32 %v5322, %v5360
  %v5393 = vadd.f32 %v5323, %v5361
  %v5394 = vadd.f32 %v5324, %v5362
  %v5395 = vadd.f32 %v5325, %v5363
  %v5396 = vadd.f32 %v5326, %v5364
  %v5397 = vadd.f32 %v5327, %v5365
  %v5398 = vadd.f32 %v5328, %v5366
  %v5399 = vadd.f32 %v5329, %v5367
  %v5400 = vadd.f32 %v5330, %v5368
  %v5401 = vadd.f32 %v5331, %v5369
  %v5402 = vadd.f32 %v5332, %v5370
  %v5403 = vadd.f32 %v5333, %v5371
  %v5404 = vadd.f32 %v5334, %v5372
  %v5405 = vlaneseq
  %v5406 = vshrl.u32 %v5405, 7
  %v5407 = vsub.s32 0, %v5406
  %v5408 = vrot.slane %v5336, %v5407
  %v5409 = vmul.f32 %v5408, %v5019
  %v5410 = vmul.f32 %v5408, %v5020
  %v5411 = vmul.f32 %v5408, %v5021
  %v5412 = vmul.f32 %v5408, %v5022
  %v5413 = vmul.f32 %v5408, %v5023
  %v5414 = vmul.f32 %v5408, %v5024
  %v5415 = vmul.f32 %v5408, %v5025
  %v5416 = vmul.f32 %v5408, %v5026
  %v5417 = vmul.f32 %v5408, %v5027
  %v5418 = vmul.f32 %v5408, %v5028
  %v5419 = vmul.f32 %v5408, %v5029
  %v5420 = vmul.f32 %v5408, %v5030
  %v5421 = vmul.f32 %v5408, %v5031
  %v5422 = vmul.f32 %v5408, %v5032
  %v5423 = vmul.f32 %v5408, %v5033
  %v5424 = vmul.f32 %v5408, %v5034
  %v5425 = vmul.f32 %v5408, %v5035
  %v5426 = vmul.f32 %v5408, %v5036
  %v5427 = vmul.f32 %v5408, %v5037
  %v5428 = vmul.f32 %v5408, %v5038
  %v5429 = vmul.f32 %v5408, %v5039
  %v5430 = vmul.f32 %v5408, %v5040
  %v5431 = vmul.f32 %v5408, %v5041
  %v5432 = vmul.f32 %v5408, %v5042
  %v5433 = vmul.f32 %v5408, %v5043
  %v5434 = vmul.f32 %v5408, %v5044
  %v5435 = vmul.f32 %v5408, %v5045
  %v5436 = vmul.f32 %v5408, %v5046
  %v5437 = vmul.f32 %v5408, %v5047
  %v5438 = vmul.f32 %v5408, %v5048
  %v5439 = vmul.f32 %v5408, %v5049
  %v5440 = vmul.f32 %v5408, %v5050
  %v5441 = vadd.f32 %v5373, %v5409
  %v5442 = vadd.f32 %v5374, %v5410
  %v5443 = vadd.f32 %v5375, %v5411
  %v5444 = vadd.f32 %v5376, %v5412
  %v5445 = vadd.f32 %v5377, %v5413
  %v5446 = vadd.f32 %v5378, %v5414
  %v5447 = vadd.f32 %v5379, %v5415
  %v5448 = vadd.f32 %v5380, %v5416
  %v5449 = vadd.f32 %v5381, %v5417
  %v5450 = vadd.f32 %v5382, %v5418
  %v5451 = vadd.f32 %v5383, %v5419
  %v5452 = vadd.f32 %v5384, %v5420
  %v5453 = vadd.f32 %v5385, %v5421
  %v5454 = vadd.f32 %v5386, %v5422
  %v5455 = vadd.f32 %v5387, %v5423
  %v5456 = vadd.f32 %v5388, %v5424
  %v5457 = vadd.f32 %v5389, %v5425
  %v5458 = vadd.f32 %v5390, %v5426
  %v5459 = vadd.f32 %v5391, %v5427
  %v5460 = vadd.f32 %v5392, %v5428
  %v5461 = vadd.f32 %v5393, %v5429
  %v5462 = vadd.f32 %v5394, %v5430
  %v5463 = vadd.f32 %v5395, %v5431
  %v5464 = vadd.f32 %v5396, %v5432
  %v5465 = vadd.f32 %v5397, %v5433
  %v5466 = vadd.f32 %v5398, %v5434
  %v5467 = vadd.f32 %v5399, %v5435
  %v5468 = vadd.f32 %v5400, %v5436
  %v5469 = vadd.f32 %v5401, %v5437
  %v5470 = vadd.f32 %v5402, %v5438
  %v5471 = vadd.f32 %v5403, %v5439
  %v5472 = vadd.f32 %v5404, %v5440
  %v5473 = vld [vmem:[%s0 + $0x19] sm:$0x1]
  %v5474 = vld [vmem:[%s0 + $0x4a] sm:$0x1]
  %v5475 = vlaneseq
  %v5476 = vshrl.u32 %v5475, 7
  %v5477 = vsub.s32 0, %v5476
  %v5478 = vrot.slane %v5473, %v5477
  %v5479 = vmul.f32 %v5478, %v4977
  %v5480 = vmul.f32 %v5478, %v4978
  %v5481 = vmul.f32 %v5478, %v4979
  %v5482 = vmul.f32 %v5478, %v4980
  %v5483 = vmul.f32 %v5478, %v4981
  %v5484 = vmul.f32 %v5478, %v4982
  %v5485 = vmul.f32 %v5478, %v4983
  %v5486 = vmul.f32 %v5478, %v4984
  %v5487 = vmul.f32 %v5478, %v4985
  %v5488 = vmul.f32 %v5478, %v4986
  %v5489 = vmul.f32 %v5478, %v4987
  %v5490 = vmul.f32 %v5478, %v4988
  %v5491 = vmul.f32 %v5478, %v4989
  %v5492 = vmul.f32 %v5478, %v4990
  %v5493 = vmul.f32 %v5478, %v4991
  %v5494 = vmul.f32 %v5478, %v4992
  %v5495 = vmul.f32 %v5478, %v4993
  %v5496 = vmul.f32 %v5478, %v4994
  %v5497 = vmul.f32 %v5478, %v4995
  %v5498 = vmul.f32 %v5478, %v4996
  %v5499 = vmul.f32 %v5478, %v4997
  %v5500 = vmul.f32 %v5478, %v4998
  %v5501 = vmul.f32 %v5478, %v4999
  %v5502 = vmul.f32 %v5478, %v5000
  %v5503 = vmul.f32 %v5478, %v5001
  %v5504 = vmul.f32 %v5478, %v5002
  %v5505 = vmul.f32 %v5478, %v5003
  %v5506 = vmul.f32 %v5478, %v5004
  %v5507 = vmul.f32 %v5478, %v5005
  %v5508 = vmul.f32 %v5478, %v5006
  %v5509 = vmul.f32 %v5478, %v5007
  %v5510 = vmul.f32 %v5478, %v5008
  %v5511 = vadd.f32 %v5441, %v5479
  %v5512 = vadd.f32 %v5442, %v5480
  %v5513 = vadd.f32 %v5443, %v5481
  %v5514 = vadd.f32 %v5444, %v5482
  %v5515 = vadd.f32 %v5445, %v5483
  %v5516 = vadd.f32 %v5446, %v5484
  %v5517 = vadd.f32 %v5447, %v5485
  %v5518 = vadd.f32 %v5448, %v5486
  %v5519 = vadd.f32 %v5449, %v5487
  %v5520 = vadd.f32 %v5450, %v5488
  %v5521 = vadd.f32 %v5451, %v5489
  %v5522 = vadd.f32 %v5452, %v5490
  %v5523 = vadd.f32 %v5453, %v5491
  %v5524 = vadd.f32 %v5454, %v5492
  %v5525 = vadd.f32 %v5455, %v5493
  %v5526 = vadd.f32 %v5456, %v5494
  %v5527 = vadd.f32 %v5457, %v5495
  %v5528 = vadd.f32 %v5458, %v5496
  %v5529 = vadd.f32 %v5459, %v5497
  %v5530 = vadd.f32 %v5460, %v5498
  %v5531 = vadd.f32 %v5461, %v5499
  %v5532 = vadd.f32 %v5462, %v5500
  %v5533 = vadd.f32 %v5463, %v5501
  %v5534 = vadd.f32 %v5464, %v5502
  %v5535 = vadd.f32 %v5465, %v5503
  %v5536 = vadd.f32 %v5466, %v5504
  %v5537 = vadd.f32 %v5467, %v5505
  %v5538 = vadd.f32 %v5468, %v5506
  %v5539 = vadd.f32 %v5469, %v5507
  %v5540 = vadd.f32 %v5470, %v5508
  %v5541 = vadd.f32 %v5471, %v5509
  %v5542 = vadd.f32 %v5472, %v5510
  %v5543 = vlaneseq
  %v5544 = vshrl.u32 %v5543, 7
  %v5545 = vsub.s32 0, %v5544
  %v5546 = vrot.slane %v5474, %v5545
  %v5547 = vmul.f32 %v5546, %v5021
  %v5548 = vmul.f32 %v5546, %v5022
  %v5549 = vmul.f32 %v5546, %v5023
  %v5550 = vmul.f32 %v5546, %v5024
  %v5551 = vmul.f32 %v5546, %v5025
  %v5552 = vmul.f32 %v5546, %v5026
  %v5553 = vmul.f32 %v5546, %v5027
  %v5554 = vmul.f32 %v5546, %v5028
  %v5555 = vmul.f32 %v5546, %v5029
  %v5556 = vmul.f32 %v5546, %v5030
  %v5557 = vmul.f32 %v5546, %v5031
  %v5558 = vmul.f32 %v5546, %v5032
  %v5559 = vmul.f32 %v5546, %v5033
  %v5560 = vmul.f32 %v5546, %v5034
  %v5561 = vmul.f32 %v5546, %v5035
  %v5562 = vmul.f32 %v5546, %v5036
  %v5563 = vmul.f32 %v5546, %v5037
  %v5564 = vmul.f32 %v5546, %v5038
  %v5565 = vmul.f32 %v5546, %v5039
  %v5566 = vmul.f32 %v5546, %v5040
  %v5567 = vmul.f32 %v5546, %v5041
  %v5568 = vmul.f32 %v5546, %v5042
  %v5569 = vmul.f32 %v5546, %v5043
  %v5570 = vmul.f32 %v5546, %v5044
  %v5571 = vmul.f32 %v5546, %v5045
  %v5572 = vmul.f32 %v5546, %v5046
  %v5573 = vmul.f32 %v5546, %v5047
  %v5574 = vmul.f32 %v5546, %v5048
  %v5575 = vmul.f32 %v5546, %v5049
  %v5576 = vmul.f32 %v5546, %v5050
  %v5577 = vmul.f32 %v5546, %v5051
  %v5578 = vmul.f32 %v5546, %v5052
  %v5579 = vadd.f32 %v5511, %v5547
  %v5580 = vadd.f32 %v5512, %v5548
  %v5581 = vadd.f32 %v5513, %v5549
  %v5582 = vadd.f32 %v5514, %v5550
  %v5583 = vadd.f32 %v5515, %v5551
  %v5584 = vadd.f32 %v5516, %v5552
  %v5585 = vadd.f32 %v5517, %v5553
  %v5586 = vadd.f32 %v5518, %v5554
  %v5587 = vadd.f32 %v5519, %v5555
  %v5588 = vadd.f32 %v5520, %v5556
  %v5589 = vadd.f32 %v5521, %v5557
  %v5590 = vadd.f32 %v5522, %v5558
  %v5591 = vadd.f32 %v5523, %v5559
  %v5592 = vadd.f32 %v5524, %v5560
  %v5593 = vadd.f32 %v5525, %v5561
  %v5594 = vadd.f32 %v5526, %v5562
  %v5595 = vadd.f32 %v5527, %v5563
  %v5596 = vadd.f32 %v5528, %v5564
  %v5597 = vadd.f32 %v5529, %v5565
  %v5598 = vadd.f32 %v5530, %v5566
  %v5599 = vadd.f32 %v5531, %v5567
  %v5600 = vadd.f32 %v5532, %v5568
  %v5601 = vadd.f32 %v5533, %v5569
  %v5602 = vadd.f32 %v5534, %v5570
  %v5603 = vadd.f32 %v5535, %v5571
  %v5604 = vadd.f32 %v5536, %v5572
  %v5605 = vadd.f32 %v5537, %v5573
  %v5606 = vadd.f32 %v5538, %v5574
  %v5607 = vadd.f32 %v5539, %v5575
  %v5608 = vadd.f32 %v5540, %v5576
  %v5609 = vadd.f32 %v5541, %v5577
  %v5610 = vadd.f32 %v5542, %v5578
  %v5611 = vld [vmem:[%s0 + $0x20] sm:$0x1]
  %v5612 = vld [vmem:[%s0 + $0x51] sm:$0x1]
  %v5613 = vlaneseq
  %v5614 = vshrl.u32 %v5613, 7
  %v5615 = vsub.s32 0, %v5614
  %v5616 = vrot.slane %v5611, %v5615
  %v5617 = vmul.f32 %v5616, %v4979
  %v5618 = vmul.f32 %v5616, %v4980
  %v5619 = vmul.f32 %v5616, %v4981
  %v5620 = vmul.f32 %v5616, %v4982
  %v5621 = vmul.f32 %v5616, %v4983
  %v5622 = vmul.f32 %v5616, %v4984
  %v5623 = vmul.f32 %v5616, %v4985
  %v5624 = vmul.f32 %v5616, %v4986
  %v5625 = vmul.f32 %v5616, %v4987
  %v5626 = vmul.f32 %v5616, %v4988
  %v5627 = vmul.f32 %v5616, %v4989
  %v5628 = vmul.f32 %v5616, %v4990
  %v5629 = vmul.f32 %v5616, %v4991
  %v5630 = vmul.f32 %v5616, %v4992
  %v5631 = vmul.f32 %v5616, %v4993
  %v5632 = vmul.f32 %v5616, %v4994
  %v5633 = vmul.f32 %v5616, %v4995
  %v5634 = vmul.f32 %v5616, %v4996
  %v5635 = vmul.f32 %v5616, %v4997
  %v5636 = vmul.f32 %v5616, %v4998
  %v5637 = vmul.f32 %v5616, %v4999
  %v5638 = vmul.f32 %v5616, %v5000
  %v5639 = vmul.f32 %v5616, %v5001
  %v5640 = vmul.f32 %v5616, %v5002
  %v5641 = vmul.f32 %v5616, %v5003
  %v5642 = vmul.f32 %v5616, %v5004
  %v5643 = vmul.f32 %v5616, %v5005
  %v5644 = vmul.f32 %v5616, %v5006
  %v5645 = vmul.f32 %v5616, %v5007
  %v5646 = vmul.f32 %v5616, %v5008
  %v5647 = vmul.f32 %v5616, %v5009
  %v5648 = vmul.f32 %v5616, %v5010
  %v5649 = vadd.f32 %v5579, %v5617
  %v5650 = vadd.f32 %v5580, %v5618
  %v5651 = vadd.f32 %v5581, %v5619
  %v5652 = vadd.f32 %v5582, %v5620
  %v5653 = vadd.f32 %v5583, %v5621
  %v5654 = vadd.f32 %v5584, %v5622
  %v5655 = vadd.f32 %v5585, %v5623
  %v5656 = vadd.f32 %v5586, %v5624
  %v5657 = vadd.f32 %v5587, %v5625
  %v5658 = vadd.f32 %v5588, %v5626
  %v5659 = vadd.f32 %v5589, %v5627
  %v5660 = vadd.f32 %v5590, %v5628
  %v5661 = vadd.f32 %v5591, %v5629
  %v5662 = vadd.f32 %v5592, %v5630
  %v5663 = vadd.f32 %v5593, %v5631
  %v5664 = vadd.f32 %v5594, %v5632
  %v5665 = vadd.f32 %v5595, %v5633
  %v5666 = vadd.f32 %v5596, %v5634
  %v5667 = vadd.f32 %v5597, %v5635
  %v5668 = vadd.f32 %v5598, %v5636
  %v5669 = vadd.f32 %v5599, %v5637
  %v5670 = vadd.f32 %v5600, %v5638
  %v5671 = vadd.f32 %v5601, %v5639
  %v5672 = vadd.f32 %v5602, %v5640
  %v5673 = vadd.f32 %v5603, %v5641
  %v5674 = vadd.f32 %v5604, %v5642
  %v5675 = vadd.f32 %v5605, %v5643
  %v5676 = vadd.f32 %v5606, %v5644
  %v5677 = vadd.f32 %v5607, %v5645
  %v5678 = vadd.f32 %v5608, %v5646
  %v5679 = vadd.f32 %v5609, %v5647
  %v5680 = vadd.f32 %v5610, %v5648
  %v5681 = vlaneseq
  %v5682 = vshrl.u32 %v5681, 7
  %v5683 = vsub.s32 0, %v5682
  %v5684 = vrot.slane %v5612, %v5683
  %v5685 = vmul.f32 %v5684, %v5023
  %v5686 = vmul.f32 %v5684, %v5024
  %v5687 = vmul.f32 %v5684, %v5025
  %v5688 = vmul.f32 %v5684, %v5026
  %v5689 = vmul.f32 %v5684, %v5027
  %v5690 = vmul.f32 %v5684, %v5028
  %v5691 = vmul.f32 %v5684, %v5029
  %v5692 = vmul.f32 %v5684, %v5030
  %v5693 = vmul.f32 %v5684, %v5031
  %v5694 = vmul.f32 %v5684, %v5032
  %v5695 = vmul.f32 %v5684, %v5033
  %v5696 = vmul.f32 %v5684, %v5034
  %v5697 = vmul.f32 %v5684, %v5035
  %v5698 = vmul.f32 %v5684, %v5036
  %v5699 = vmul.f32 %v5684, %v5037
  %v5700 = vmul.f32 %v5684, %v5038
  %v5701 = vmul.f32 %v5684, %v5039
  %v5702 = vmul.f32 %v5684, %v5040
  %v5703 = vmul.f32 %v5684, %v5041
  %v5704 = vmul.f32 %v5684, %v5042
  %v5705 = vmul.f32 %v5684, %v5043
  %v5706 = vmul.f32 %v5684, %v5044
  %v5707 = vmul.f32 %v5684, %v5045
  %v5708 = vmul.f32 %v5684, %v5046
  %v5709 = vmul.f32 %v5684, %v5047
  %v5710 = vmul.f32 %v5684, %v5048
  %v5711 = vmul.f32 %v5684, %v5049
  %v5712 = vmul.f32 %v5684, %v5050
  %v5713 = vmul.f32 %v5684, %v5051
  %v5714 = vmul.f32 %v5684, %v5052
  %v5715 = vmul.f32 %v5684, %v5053
  %v5716 = vmul.f32 %v5684, %v5054
  %v5717 = vadd.f32 %v5649, %v5685
  %v5718 = vadd.f32 %v5650, %v5686
  %v5719 = vadd.f32 %v5651, %v5687
  %v5720 = vadd.f32 %v5652, %v5688
  %v5721 = vadd.f32 %v5653, %v5689
  %v5722 = vadd.f32 %v5654, %v5690
  %v5723 = vadd.f32 %v5655, %v5691
  %v5724 = vadd.f32 %v5656, %v5692
  %v5725 = vadd.f32 %v5657, %v5693
  %v5726 = vadd.f32 %v5658, %v5694
  %v5727 = vadd.f32 %v5659, %v5695
  %v5728 = vadd.f32 %v5660, %v5696
  %v5729 = vadd.f32 %v5661, %v5697
  %v5730 = vadd.f32 %v5662, %v5698
  %v5731 = vadd.f32 %v5663, %v5699
  %v5732 = vadd.f32 %v5664, %v5700
  %v5733 = vadd.f32 %v5665, %v5701
  %v5734 = vadd.f32 %v5666, %v5702
  %v5735 = vadd.f32 %v5667, %v5703
  %v5736 = vadd.f32 %v5668, %v5704
  %v5737 = vadd.f32 %v5669, %v5705
  %v5738 = vadd.f32 %v5670, %v5706
  %v5739 = vadd.f32 %v5671, %v5707
  %v5740 = vadd.f32 %v5672, %v5708
  %v5741 = vadd.f32 %v5673, %v5709
  %v5742 = vadd.f32 %v5674, %v5710
  %v5743 = vadd.f32 %v5675, %v5711
  %v5744 = vadd.f32 %v5676, %v5712
  %v5745 = vadd.f32 %v5677, %v5713
  %v5746 = vadd.f32 %v5678, %v5714
  %v5747 = vadd.f32 %v5679, %v5715
  %v5748 = vadd.f32 %v5680, %v5716
  %v5749 = vld [vmem:[%s0 + $0x27] sm:$0x1]
  %v5750 = vld [vmem:[%s0 + $0x58] sm:$0x1]
  %v5751 = vlaneseq
  %v5752 = vshrl.u32 %v5751, 7
  %v5753 = vsub.s32 0, %v5752
  %v5754 = vrot.slane %v5749, %v5753
  %v5755 = vmul.f32 %v5754, %v4981
  %v5756 = vmul.f32 %v5754, %v4982
  %v5757 = vmul.f32 %v5754, %v4983
  %v5758 = vmul.f32 %v5754, %v4984
  %v5759 = vmul.f32 %v5754, %v4985
  %v5760 = vmul.f32 %v5754, %v4986
  %v5761 = vmul.f32 %v5754, %v4987
  %v5762 = vmul.f32 %v5754, %v4988
  %v5763 = vmul.f32 %v5754, %v4989
  %v5764 = vmul.f32 %v5754, %v4990
  %v5765 = vmul.f32 %v5754, %v4991
  %v5766 = vmul.f32 %v5754, %v4992
  %v5767 = vmul.f32 %v5754, %v4993
  %v5768 = vmul.f32 %v5754, %v4994
  %v5769 = vmul.f32 %v5754, %v4995
  %v5770 = vmul.f32 %v5754, %v4996
  %v5771 = vmul.f32 %v5754, %v4997
  %v5772 = vmul.f32 %v5754, %v4998
  %v5773 = vmul.f32 %v5754, %v4999
  %v5774 = vmul.f32 %v5754, %v5000
  %v5775 = vmul.f32 %v5754, %v5001
  %v5776 = vmul.f32 %v5754, %v5002
  %v5777 = vmul.f32 %v5754, %v5003
  %v5778 = vmul.f32 %v5754, %v5004
  %v5779 = vmul.f32 %v5754, %v5005
  %v5780 = vmul.f32 %v5754, %v5006
  %v5781 = vmul.f32 %v5754, %v5007
  %v5782 = vmul.f32 %v5754, %v5008
  %v5783 = vmul.f32 %v5754, %v5009
  %v5784 = vmul.f32 %v5754, %v5010
  %v5785 = vmul.f32 %v5754, %v5011
  %v5786 = vmul.f32 %v5754, %v5012
  %v5787 = vadd.f32 %v5717, %v5755
  %v5788 = vadd.f32 %v5718, %v5756
  %v5789 = vadd.f32 %v5719, %v5757
  %v5790 = vadd.f32 %v5720, %v5758
  %v5791 = vadd.f32 %v5721, %v5759
  %v5792 = vadd.f32 %v5722, %v5760
  %v5793 = vadd.f32 %v5723, %v5761
  %v5794 = vadd.f32 %v5724, %v5762
  %v5795 = vadd.f32 %v5725, %v5763
  %v5796 = vadd.f32 %v5726, %v5764
  %v5797 = vadd.f32 %v5727, %v5765
  %v5798 = vadd.f32 %v5728, %v5766
  %v5799 = vadd.f32 %v5729, %v5767
  %v5800 = vadd.f32 %v5730, %v5768
  %v5801 = vadd.f32 %v5731, %v5769
  %v5802 = vadd.f32 %v5732, %v5770
  %v5803 = vadd.f32 %v5733, %v5771
  %v5804 = vadd.f32 %v5734, %v5772
  %v5805 = vadd.f32 %v5735, %v5773
  %v5806 = vadd.f32 %v5736, %v5774
  %v5807 = vadd.f32 %v5737, %v5775
  %v5808 = vadd.f32 %v5738, %v5776
  %v5809 = vadd.f32 %v5739, %v5777
  %v5810 = vadd.f32 %v5740, %v5778
  %v5811 = vadd.f32 %v5741, %v5779
  %v5812 = vadd.f32 %v5742, %v5780
  %v5813 = vadd.f32 %v5743, %v5781
  %v5814 = vadd.f32 %v5744, %v5782
  %v5815 = vadd.f32 %v5745, %v5783
  %v5816 = vadd.f32 %v5746, %v5784
  %v5817 = vadd.f32 %v5747, %v5785
  %v5818 = vadd.f32 %v5748, %v5786
  %v5819 = vlaneseq
  %v5820 = vshrl.u32 %v5819, 7
  %v5821 = vsub.s32 0, %v5820
  %v5822 = vrot.slane %v5750, %v5821
  %v5823 = vmul.f32 %v5822, %v5025
  %v5824 = vmul.f32 %v5822, %v5026
  %v5825 = vmul.f32 %v5822, %v5027
  %v5826 = vmul.f32 %v5822, %v5028
  %v5827 = vmul.f32 %v5822, %v5029
  %v5828 = vmul.f32 %v5822, %v5030
  %v5829 = vmul.f32 %v5822, %v5031
  %v5830 = vmul.f32 %v5822, %v5032
  %v5831 = vmul.f32 %v5822, %v5033
  %v5832 = vmul.f32 %v5822, %v5034
  %v5833 = vmul.f32 %v5822, %v5035
  %v5834 = vmul.f32 %v5822, %v5036
  %v5835 = vmul.f32 %v5822, %v5037
  %v5836 = vmul.f32 %v5822, %v5038
  %v5837 = vmul.f32 %v5822, %v5039
  %v5838 = vmul.f32 %v5822, %v5040
  %v5839 = vmul.f32 %v5822, %v5041
  %v5840 = vmul.f32 %v5822, %v5042
  %v5841 = vmul.f32 %v5822, %v5043
  %v5842 = vmul.f32 %v5822, %v5044
  %v5843 = vmul.f32 %v5822, %v5045
  %v5844 = vmul.f32 %v5822, %v5046
  %v5845 = vmul.f32 %v5822, %v5047
  %v5846 = vmul.f32 %v5822, %v5048
  %v5847 = vmul.f32 %v5822, %v5049
  %v5848 = vmul.f32 %v5822, %v5050
  %v5849 = vmul.f32 %v5822, %v5051
  %v5850 = vmul.f32 %v5822, %v5052
  %v5851 = vmul.f32 %v5822, %v5053
  %v5852 = vmul.f32 %v5822, %v5054
  %v5853 = vmul.f32 %v5822, %v5055
  %v5854 = vmul.f32 %v5822, %v5056
  %v5855 = vadd.f32 %v5787, %v5823
  %v5856 = vadd.f32 %v5788, %v5824
  %v5857 = vadd.f32 %v5789, %v5825
  %v5858 = vadd.f32 %v5790, %v5826
  %v5859 = vadd.f32 %v5791, %v5827
  %v5860 = vadd.f32 %v5792, %v5828
  %v5861 = vadd.f32 %v5793, %v5829
  %v5862 = vadd.f32 %v5794, %v5830
  %v5863 = vadd.f32 %v5795, %v5831
  %v5864 = vadd.f32 %v5796, %v5832
  %v5865 = vadd.f32 %v5797, %v5833
  %v5866 = vadd.f32 %v5798, %v5834
  %v5867 = vadd.f32 %v5799, %v5835
  %v5868 = vadd.f32 %v5800, %v5836
  %v5869 = vadd.f32 %v5801, %v5837
  %v5870 = vadd.f32 %v5802, %v5838
  %v5871 = vadd.f32 %v5803, %v5839
  %v5872 = vadd.f32 %v5804, %v5840
  %v5873 = vadd.f32 %v5805, %v5841
  %v5874 = vadd.f32 %v5806, %v5842
  %v5875 = vadd.f32 %v5807, %v5843
  %v5876 = vadd.f32 %v5808, %v5844
  %v5877 = vadd.f32 %v5809, %v5845
  %v5878 = vadd.f32 %v5810, %v5846
  %v5879 = vadd.f32 %v5811, %v5847
  %v5880 = vadd.f32 %v5812, %v5848
  %v5881 = vadd.f32 %v5813, %v5849
  %v5882 = vadd.f32 %v5814, %v5850
  %v5883 = vadd.f32 %v5815, %v5851
  %v5884 = vadd.f32 %v5816, %v5852
  %v5885 = vadd.f32 %v5817, %v5853
  %v5886 = vadd.f32 %v5818, %v5854
  %v5887 = vld [vmem:[%s0 + $0x2e] sm:$0x1]
  %v5888 = vld [vmem:[%s0 + $0x5f] sm:$0x1]
  %v5889 = vlaneseq
  %v5890 = vshrl.u32 %v5889, 7
  %v5891 = vsub.s32 0, %v5890
  %v5892 = vrot.slane %v5887, %v5891
  %v5893 = vmul.f32 %v5892, %v4983
  %v5894 = vmul.f32 %v5892, %v4984
  %v5895 = vmul.f32 %v5892, %v4985
  %v5896 = vmul.f32 %v5892, %v4986
  %v5897 = vmul.f32 %v5892, %v4987
  %v5898 = vmul.f32 %v5892, %v4988
  %v5899 = vmul.f32 %v5892, %v4989
  %v5900 = vmul.f32 %v5892, %v4990
  %v5901 = vmul.f32 %v5892, %v4991
  %v5902 = vmul.f32 %v5892, %v4992
  %v5903 = vmul.f32 %v5892, %v4993
  %v5904 = vmul.f32 %v5892, %v4994
  %v5905 = vmul.f32 %v5892, %v4995
  %v5906 = vmul.f32 %v5892, %v4996
  %v5907 = vmul.f32 %v5892, %v4997
  %v5908 = vmul.f32 %v5892, %v4998
  %v5909 = vmul.f32 %v5892, %v4999
  %v5910 = vmul.f32 %v5892, %v5000
  %v5911 = vmul.f32 %v5892, %v5001
  %v5912 = vmul.f32 %v5892, %v5002
  %v5913 = vmul.f32 %v5892, %v5003
  %v5914 = vmul.f32 %v5892, %v5004
  %v5915 = vmul.f32 %v5892, %v5005
  %v5916 = vmul.f32 %v5892, %v5006
  %v5917 = vmul.f32 %v5892, %v5007
  %v5918 = vmul.f32 %v5892, %v5008
  %v5919 = vmul.f32 %v5892, %v5009
  %v5920 = vmul.f32 %v5892, %v5010
  %v5921 = vmul.f32 %v5892, %v5011
  %v5922 = vmul.f32 %v5892, %v5012
  %v5923 = vmul.f32 %v5892, %v5013
  %v5924 = vmul.f32 %v5892, %v5014
  %v5925 = vadd.f32 %v5855, %v5893
  %v5926 = vadd.f32 %v5856, %v5894
  %v5927 = vadd.f32 %v5857, %v5895
  %v5928 = vadd.f32 %v5858, %v5896
  %v5929 = vadd.f32 %v5859, %v5897
  %v5930 = vadd.f32 %v5860, %v5898
  %v5931 = vadd.f32 %v5861, %v5899
  %v5932 = vadd.f32 %v5862, %v5900
  %v5933 = vadd.f32 %v5863, %v5901
  %v5934 = vadd.f32 %v5864, %v5902
  %v5935 = vadd.f32 %v5865, %v5903
  %v5936 = vadd.f32 %v5866, %v5904
  %v5937 = vadd.f32 %v5867, %v5905
  %v5938 = vadd.f32 %v5868, %v5906
  %v5939 = vadd.f32 %v5869, %v5907
  %v5940 = vadd.f32 %v5870, %v5908
  %v5941 = vadd.f32 %v5871, %v5909
  %v5942 = vadd.f32 %v5872, %v5910
  %v5943 = vadd.f32 %v5873, %v5911
  %v5944 = vadd.f32 %v5874, %v5912
  %v5945 = vadd.f32 %v5875, %v5913
  %v5946 = vadd.f32 %v5876, %v5914
  %v5947 = vadd.f32 %v5877, %v5915
  %v5948 = vadd.f32 %v5878, %v5916
  %v5949 = vadd.f32 %v5879, %v5917
  %v5950 = vadd.f32 %v5880, %v5918
  %v5951 = vadd.f32 %v5881, %v5919
  %v5952 = vadd.f32 %v5882, %v5920
  %v5953 = vadd.f32 %v5883, %v5921
  %v5954 = vadd.f32 %v5884, %v5922
  %v5955 = vadd.f32 %v5885, %v5923
  %v5956 = vadd.f32 %v5886, %v5924
  %v5957 = vlaneseq
  %v5958 = vshrl.u32 %v5957, 7
  %v5959 = vsub.s32 0, %v5958
  %v5960 = vrot.slane %v5888, %v5959
  %v5961 = vmul.f32 %v5960, %v5027
  %v5962 = vmul.f32 %v5960, %v5028
  %v5963 = vmul.f32 %v5960, %v5029
  %v5964 = vmul.f32 %v5960, %v5030
  %v5965 = vmul.f32 %v5960, %v5031
  %v5966 = vmul.f32 %v5960, %v5032
  %v5967 = vmul.f32 %v5960, %v5033
  %v5968 = vmul.f32 %v5960, %v5034
  %v5969 = vmul.f32 %v5960, %v5035
  %v5970 = vmul.f32 %v5960, %v5036
  %v5971 = vmul.f32 %v5960, %v5037
  %v5972 = vmul.f32 %v5960, %v5038
  %v5973 = vmul.f32 %v5960, %v5039
  %v5974 = vmul.f32 %v5960, %v5040
  %v5975 = vmul.f32 %v5960, %v5041
  %v5976 = vmul.f32 %v5960, %v5042
  %v5977 = vmul.f32 %v5960, %v5043
  %v5978 = vmul.f32 %v5960, %v5044
  %v5979 = vmul.f32 %v5960, %v5045
  %v5980 = vmul.f32 %v5960, %v5046
  %v5981 = vmul.f32 %v5960, %v5047
  %v5982 = vmul.f32 %v5960, %v5048
  %v5983 = vmul.f32 %v5960, %v5049
  %v5984 = vmul.f32 %v5960, %v5050
  %v5985 = vmul.f32 %v5960, %v5051
  %v5986 = vmul.f32 %v5960, %v5052
  %v5987 = vmul.f32 %v5960, %v5053
  %v5988 = vmul.f32 %v5960, %v5054
  %v5989 = vmul.f32 %v5960, %v5055
  %v5990 = vmul.f32 %v5960, %v5056
  %v5991 = vmul.f32 %v5960, %v5057
  %v5992 = vmul.f32 %v5960, %v5058
  %v5993 = vadd.f32 %v5925, %v5961
  %v5994 = vadd.f32 %v5926, %v5962
  %v5995 = vadd.f32 %v5927, %v5963
  %v5996 = vadd.f32 %v5928, %v5964
  %v5997 = vadd.f32 %v5929, %v5965
  %v5998 = vadd.f32 %v5930, %v5966
  %v5999 = vadd.f32 %v5931, %v5967
  %v6000 = vadd.f32 %v5932, %v5968
  %v6001 = vadd.f32 %v5933, %v5969
  %v6002 = vadd.f32 %v5934, %v5970
  %v6003 = vadd.f32 %v5935, %v5971
  %v6004 = vadd.f32 %v5936, %v5972
  %v6005 = vadd.f32 %v5937, %v5973
  %v6006 = vadd.f32 %v5938, %v5974
  %v6007 = vadd.f32 %v5939, %v5975
  %v6008 = vadd.f32 %v5940, %v5976
  %v6009 = vadd.f32 %v5941, %v5977
  %v6010 = vadd.f32 %v5942, %v5978
  %v6011 = vadd.f32 %v5943, %v5979
  %v6012 = vadd.f32 %v5944, %v5980
  %v6013 = vadd.f32 %v5945, %v5981
  %v6014 = vadd.f32 %v5946, %v5982
  %v6015 = vadd.f32 %v5947, %v5983
  %v6016 = vadd.f32 %v5948, %v5984
  %v6017 = vadd.f32 %v5949, %v5985
  %v6018 = vadd.f32 %v5950, %v5986
  %v6019 = vadd.f32 %v5951, %v5987
  %v6020 = vadd.f32 %v5952, %v5988
  %v6021 = vadd.f32 %v5953, %v5989
  %v6022 = vadd.f32 %v5954, %v5990
  %v6023 = vadd.f32 %v5955, %v5991
  %v6024 = vadd.f32 %v5956, %v5992
  %v6025 = vld [vmem:[#allocation2 + $0x5] sm:$0xff]
  %v6026 = vld [vmem:[#allocation2 + $0xd] sm:$0xff]
  %v6027 = vld [vmem:[#allocation2 + $0x1d] sm:$0xff]
  %v6028 = vld [vmem:[#allocation2 + $0x25] sm:$0xff]
  %v6029 = vld [vmem:[#allocation2 + $0x35] sm:$0xff]
  %v6030 = vld [vmem:[#allocation2 + $0x3d] sm:$0xff]
  %v6031 = vld [vmem:[#allocation2 + $0x4d] sm:$0xff]
  %v6032 = vld [vmem:[#allocation2 + $0x55] sm:$0xff]
  %v6033 = vld [vmem:[#allocation2 + $0x65] sm:$0xff]
  %v6034 = vld [vmem:[#allocation2 + $0x6d] sm:$0xff]
  %v6035 = vld [vmem:[#allocation2 + $0x7d] sm:$0xff]
  %v6036 = vld [vmem:[#allocation2 + $0x85] sm:$0xff]
  %v6037 = vld [vmem:[#allocation2 + $0x95] sm:$0xff]
  %v6038 = vld [vmem:[#allocation2 + $0x9d] sm:$0xff]
  %v6039 = vld [vmem:[#allocation2 + $0xad] sm:$0xff]
  %v6040 = vld [vmem:[#allocation2 + $0xb5] sm:$0xff]
  %v6041 = vld [vmem:[#allocation2 + $0xc5] sm:$0xff]
  %v6042 = vld [vmem:[#allocation2 + $0xcd] sm:$0xff]
  %v6043 = vld [vmem:[#allocation2 + $0xdd] sm:$0xff]
  %v6044 = vld [vmem:[#allocation2 + $0xe5] sm:$0xff]
  %v6045 = vld [vmem:[#allocation2 + $0xf5] sm:$0xff]
  %v6046 = vld [vmem:[#allocation2 + $0xfd] sm:$0xff]
  %v6047 = vld [vmem:[#allocation2 + $0x10d] sm:$0xff]
  %v6048 = vld [vmem:[#allocation2 + $0x115] sm:$0xff]
  %v6049 = vld [vmem:[#allocation2 + $0x125] sm:$0xff]
  %v6050 = vld [vmem:[#allocation2 + $0x12d] sm:$0xff]
  %v6051 = vld [vmem:[#allocation2 + $0x13d] sm:$0xff]
  %v6052 = vld [vmem:[#allocation2 + $0x145] sm:$0xff]
  %v6053 = vld [vmem:[#allocation2 + $0x155] sm:$0xff]
  %v6054 = vld [vmem:[#allocation2 + $0x15d] sm:$0xff]
  %v6055 = vld [vmem:[#allocation2 + $0x16d] sm:$0xff]
  %v6056 = vld [vmem:[#allocation2 + $0x175] sm:$0xff]
  %v6057 = vld [vmem:[#allocation2 + $0x185] sm:$0xff]
  %v6058 = vld [vmem:[#allocation2 + $0x18d] sm:$0xff]
  %v6059 = vld [vmem:[#allocation2 + $0x19d] sm:$0xff]
  %v6060 = vld [vmem:[#allocation2 + $0x1a5] sm:$0xff]
  %v6061 = vld [vmem:[#allocation2 + $0x1b5] sm:$0xff]
  %v6062 = vld [vmem:[#allocation2 + $0x1bd] sm:$0xff]
  %v6063 = vld [vmem:[#allocation2 + $0x1cd] sm:$0xff]
  %v6064 = vld [vmem:[#allocation2 + $0x1d5] sm:$0xff]
  %v6065 = vld [vmem:[#allocation2 + $0x1e5] sm:$0xff]
  %v6066 = vld [vmem:[#allocation2 + $0x1ed] sm:$0xff]
  %v6067 = vld [vmem:[#allocation2 + $0x1fd] sm:$0xff]
  %v6068 = vld [vmem:[#allocation2 + $0x205] sm:$0xff]
  %v6069 = vld [vmem:[#allocation3 + $0x5] sm:$0xff]
  %v6070 = vld [vmem:[#allocation3 + $0xd] sm:$0xff]
  %v6071 = vld [vmem:[#allocation3 + $0x1d] sm:$0xff]
  %v6072 = vld [vmem:[#allocation3 + $0x25] sm:$0xff]
  %v6073 = vld [vmem:[#allocation3 + $0x35] sm:$0xff]
  %v6074 = vld [vmem:[#allocation3 + $0x3d] sm:$0xff]
  %v6075 = vld [vmem:[#allocation3 + $0x4d] sm:$0xff]
  %v6076 = vld [vmem:[#allocation3 + $0x55] sm:$0xff]
  %v6077 = vld [vmem:[#allocation3 + $0x65] sm:$0xff]
  %v6078 = vld [vmem:[#allocation3 + $0x6d] sm:$0xff]
  %v6079 = vld [vmem:[#allocation3 + $0x7d] sm:$0xff]
  %v6080 = vld [vmem:[#allocation3 + $0x85] sm:$0xff]
  %v6081 = vld [vmem:[#allocation3 + $0x95] sm:$0xff]
  %v6082 = vld [vmem:[#allocation3 + $0x9d] sm:$0xff]
  %v6083 = vld [vmem:[#allocation3 + $0xad] sm:$0xff]
  %v6084 = vld [vmem:[#allocation3 + $0xb5] sm:$0xff]
  %v6085 = vld [vmem:[#allocation3 + $0xc5] sm:$0xff]
  %v6086 = vld [vmem:[#allocation3 + $0xcd] sm:$0xff]
  %v6087 = vld [vmem:[#allocation3 + $0xdd] sm:$0xff]
  %v6088 = vld [vmem:[#allocation3 + $0xe5] sm:$0xff]
  %v6089 = vld [vmem:[#allocation3 + $0xf5] sm:$0xff]
  %v6090 = vld [vmem:[#allocation3 + $0xfd] sm:$0xff]
  %v6091 = vld [vmem:[#allocation3 + $0x10d] sm:$0xff]
  %v6092 = vld [vmem:[#allocation3 + $0x115] sm:$0xff]
  %v6093 = vld [vmem:[#allocation3 + $0x125] sm:$0xff]
  %v6094 = vld [vmem:[#allocation3 + $0x12d] sm:$0xff]
  %v6095 = vld [vmem:[#allocation3 + $0x13d] sm:$0xff]
  %v6096 = vld [vmem:[#allocation3 + $0x145] sm:$0xff]
  %v6097 = vld [vmem:[#allocation3 + $0x155] sm:$0xff]
  %v6098 = vld [vmem:[#allocation3 + $0x15d] sm:$0xff]
  %v6099 = vld [vmem:[#allocation3 + $0x16d] sm:$0xff]
  %v6100 = vld [vmem:[#allocation3 + $0x175] sm:$0xff]
  %v6101 = vld [vmem:[#allocation3 + $0x185] sm:$0xff]
  %v6102 = vld [vmem:[#allocation3 + $0x18d] sm:$0xff]
  %v6103 = vld [vmem:[#allocation3 + $0x19d] sm:$0xff]
  %v6104 = vld [vmem:[#allocation3 + $0x1a5] sm:$0xff]
  %v6105 = vld [vmem:[#allocation3 + $0x1b5] sm:$0xff]
  %v6106 = vld [vmem:[#allocation3 + $0x1bd] sm:$0xff]
  %v6107 = vld [vmem:[#allocation3 + $0x1cd] sm:$0xff]
  %v6108 = vld [vmem:[#allocation3 + $0x1d5] sm:$0xff]
  %v6109 = vld [vmem:[#allocation3 + $0x1e5] sm:$0xff]
  %v6110 = vld [vmem:[#allocation3 + $0x1ed] sm:$0xff]
  %v6111 = vld [vmem:[#allocation3 + $0x1fd] sm:$0xff]
  %v6112 = vld [vmem:[#allocation3 + $0x205] sm:$0xff]
  %v6113 = vld [vmem:[%s0 + $0x5] sm:$0x1]
  %v6114 = vld [vmem:[%s0 + $0x36] sm:$0x1]
  %v6115 = vlaneseq
  %v6116 = vshrl.u32 %v6115, 7
  %v6117 = vsub.s32 0, %v6116
  %v6118 = vrot.slane %v6113, %v6117
  %v6119 = vmul.f32 %v6118, %v6025
  %v6120 = vmul.f32 %v6118, %v6026
  %v6121 = vmul.f32 %v6118, %v6027
  %v6122 = vmul.f32 %v6118, %v6028
  %v6123 = vmul.f32 %v6118, %v6029
  %v6124 = vmul.f32 %v6118, %v6030
  %v6125 = vmul.f32 %v6118, %v6031
  %v6126 = vmul.f32 %v6118, %v6032
  %v6127 = vmul.f32 %v6118, %v6033
  %v6128 = vmul.f32 %v6118, %v6034
  %v6129 = vmul.f32 %v6118, %v6035
  %v6130 = vmul.f32 %v6118, %v6036
  %v6131 = vmul.f32 %v6118, %v6037
  %v6132 = vmul.f32 %v6118, %v6038
  %v6133 = vmul.f32 %v6118, %v6039
  %v6134 = vmul.f32 %v6118, %v6040
  %v6135 = vmul.f32 %v6118, %v6041
  %v6136 = vmul.f32 %v6118, %v6042
  %v6137 = vmul.f32 %v6118, %v6043
  %v6138 = vmul.f32 %v6118, %v6044
  %v6139 = vmul.f32 %v6118, %v6045
  %v6140 = vmul.f32 %v6118, %v6046
  %v6141 = vmul.f32 %v6118, %v6047
  %v6142 = vmul.f32 %v6118, %v6048
  %v6143 = vmul.f32 %v6118, %v6049
  %v6144 = vmul.f32 %v6118, %v6050
  %v6145 = vmul.f32 %v6118, %v6051
  %v6146 = vmul.f32 %v6118, %v6052
  %v6147 = vmul.f32 %v6118, %v6053
  %v6148 = vmul.f32 %v6118, %v6054
  %v6149 = vmul.f32 %v6118, %v6055
  %v6150 = vmul.f32 %v6118, %v6056
  %v6151 = vadd.f32 %v5993, %v6119
  %v6152 = vadd.f32 %v5994, %v6120
  %v6153 = vadd.f32 %v5995, %v6121
  %v6154 = vadd.f32 %v5996, %v6122
  %v6155 = vadd.f32 %v5997, %v6123
  %v6156 = vadd.f32 %v5998, %v6124
  %v6157 = vadd.f32 %v5999, %v6125
  %v6158 = vadd.f32 %v6000, %v6126
  %v6159 = vadd.f32 %v6001, %v6127
  %v6160 = vadd.f32 %v6002, %v6128
  %v6161 = vadd.f32 %v6003, %v6129
  %v6162 = vadd.f32 %v6004, %v6130
  %v6163 = vadd.f32 %v6005, %v6131
  %v6164 = vadd.f32 %v6006, %v6132
  %v6165 = vadd.f32 %v6007, %v6133
  %v6166 = vadd.f32 %v6008, %v6134
  %v6167 = vadd.f32 %v6009, %v6135
  %v6168 = vadd.f32 %v6010, %v6136
  %v6169 = vadd.f32 %v6011, %v6137
  %v6170 = vadd.f32 %v6012, %v6138
  %v6171 = vadd.f32 %v6013, %v6139
  %v6172 = vadd.f32 %v6014, %v6140
  %v6173 = vadd.f32 %v6015, %v6141
  %v6174 = vadd.f32 %v6016, %v6142
  %v6175 = vadd.f32 %v6017, %v6143
  %v6176 = vadd.f32 %v6018, %v6144
  %v6177 = vadd.f32 %v6019, %v6145
  %v6178 = vadd.f32 %v6020, %v6146
  %v6179 = vadd.f32 %v6021, %v6147
  %v6180 = vadd.f32 %v6022, %v6148
  %v6181 = vadd.f32 %v6023, %v6149
  %v6182 = vadd.f32 %v6024, %v6150
  %v6183 = vlaneseq
  %v6184 = vshrl.u32 %v6183, 7
  %v6185 = vsub.s32 0, %v6184
  %v6186 = vrot.slane %v6114, %v6185
  %v6187 = vmul.f32 %v6186, %v6069
  %v6188 = vmul.f32 %v6186, %v6070
  %v6189 = vmul.f32 %v6186, %v6071
  %v6190 = vmul.f32 %v6186, %v6072
  %v6191 = vmul.f32 %v6186, %v6073
  %v6192 = vmul.f32 %v6186, %v6074
  %v6193 = vmul.f32 %v6186, %v6075
  %v6194 = vmul.f32 %v6186, %v6076
  %v6195 = vmul.f32 %v6186, %v6077
  %v6196 = vmul.f32 %v6186, %v6078
  %v6197 = vmul.f32 %v6186, %v6079
  %v6198 = vmul.f32 %v6186, %v6080
  %v6199 = vmul.f32 %v6186, %v6081
  %v6200 = vmul.f32 %v6186, %v6082
  %v6201 = vmul.f32 %v6186, %v6083
  %v6202 = vmul.f32 %v6186, %v6084
  %v6203 = vmul.f32 %v6186, %v6085
  %v6204 = vmul.f32 %v6186, %v6086
  %v6205 = vmul.f32 %v6186, %v6087
  %v6206 = vmul.f32 %v6186, %v6088
  %v6207 = vmul.f32 %v6186, %v6089
  %v6208 = vmul.f32 %v6186, %v6090
  %v6209 = vmul.f32 %v6186, %v6091
  %v6210 = vmul.f32 %v6186, %v6092
  %v6211 = vmul.f32 %v6186, %v6093
  %v6212 = vmul.f32 %v6186, %v6094
  %v6213 = vmul.f32 %v6186, %v6095
  %v6214 = vmul.f32 %v6186, %v6096
  %v6215 = vmul.f32 %v6186, %v6097
  %v6216 = vmul.f32 %v6186, %v6098
  %v6217 = vmul.f32 %v6186, %v6099
  %v6218 = vmul.f32 %v6186, %v6100
  %v6219 = vadd.f32 %v6151, %v6187
  %v6220 = vadd.f32 %v6152, %v6188
  %v6221 = vadd.f32 %v6153, %v6189
  %v6222 = vadd.f32 %v6154, %v6190
  %v6223 = vadd.f32 %v6155, %v6191
  %v6224 = vadd.f32 %v6156, %v6192
  %v6225 = vadd.f32 %v6157, %v6193
  %v6226 = vadd.f32 %v6158, %v6194
  %v6227 = vadd.f32 %v6159, %v6195
  %v6228 = vadd.f32 %v6160, %v6196
  %v6229 = vadd.f32 %v6161, %v6197
  %v6230 = vadd.f32 %v6162, %v6198
  %v6231 = vadd.f32 %v6163, %v6199
  %v6232 = vadd.f32 %v6164, %v6200
  %v6233 = vadd.f32 %v6165, %v6201
  %v6234 = vadd.f32 %v6166, %v6202
  %v6235 = vadd.f32 %v6167, %v6203
  %v6236 = vadd.f32 %v6168, %v6204
  %v6237 = vadd.f32 %v6169, %v6205
  %v6238 = vadd.f32 %v6170, %v6206
  %v6239 = vadd.f32 %v6171, %v6207
  %v6240 = vadd.f32 %v6172, %v6208
  %v6241 = vadd.f32 %v6173, %v6209
  %v6242 = vadd.f32 %v6174, %v6210
  %v6243 = vadd.f32 %v6175, %v6211
  %v6244 = vadd.f32 %v6176, %v6212
  %v6245 = vadd.f32 %v6177, %v6213
  %v6246 = vadd.f32 %v6178, %v6214
  %v6247 = vadd.f32 %v6179, %v6215
  %v6248 = vadd.f32 %v6180, %v6216
  %v6249 = vadd.f32 %v6181, %v6217
  %v6250 = vadd.f32 %v6182, %v6218
  %v6251 = vld [vmem:[%s0 + $0xc] sm:$0x1]
  %v6252 = vld [vmem:[%s0 + $0x3d] sm:$0x1]
  %v6253 = vlaneseq
  %v6254 = vshrl.u32 %v6253, 7
  %v6255 = vsub.s32 0, %v6254
  %v6256 = vrot.slane %v6251, %v6255
  %v6257 = vmul.f32 %v6256, %v6027
  %v6258 = vmul.f32 %v6256, %v6028
  %v6259 = vmul.f32 %v6256, %v6029
  %v6260 = vmul.f32 %v6256, %v6030
  %v6261 = vmul.f32 %v6256, %v6031
  %v6262 = vmul.f32 %v6256, %v6032
  %v6263 = vmul.f32 %v6256, %v6033
  %v6264 = vmul.f32 %v6256, %v6034
  %v6265 = vmul.f32 %v6256, %v6035
  %v6266 = vmul.f32 %v6256, %v6036
  %v6267 = vmul.f32 %v6256, %v6037
  %v6268 = vmul.f32 %v6256, %v6038
  %v6269 = vmul.f32 %v6256, %v6039
  %v6270 = vmul.f32 %v6256, %v6040
  %v6271 = vmul.f32 %v6256, %v6041
  %v6272 = vmul.f32 %v6256, %v6042
  %v6273 = vmul.f32 %v6256, %v6043
  %v6274 = vmul.f32 %v6256, %v6044
  %v6275 = vmul.f32 %v6256, %v6045
  %v6276 = vmul.f32 %v6256, %v6046
  %v6277 = vmul.f32 %v6256, %v6047
  %v6278 = vmul.f32 %v6256, %v6048
  %v6279 = vmul.f32 %v6256, %v6049
  %v6280 = vmul.f32 %v6256, %v6050
  %v6281 = vmul.f32 %v6256, %v6051
  %v6282 = vmul.f32 %v6256, %v6052
  %v6283 = vmul.f32 %v6256, %v6053
  %v6284 = vmul.f32 %v6256, %v6054
  %v6285 = vmul.f32 %v6256, %v6055
  %v6286 = vmul.f32 %v6256, %v6056
  %v6287 = vmul.f32 %v6256, %v6057
  %v6288 = vmul.f32 %v6256, %v6058
  %v6289 = vadd.f32 %v6219, %v6257
  %v6290 = vadd.f32 %v6220, %v6258
  %v6291 = vadd.f32 %v6221, %v6259
  %v6292 = vadd.f32 %v6222, %v6260
  %v6293 = vadd.f32 %v6223, %v6261
  %v6294 = vadd.f32 %v6224, %v6262
  %v6295 = vadd.f32 %v6225, %v6263
  %v6296 = vadd.f32 %v6226, %v6264
  %v6297 = vadd.f32 %v6227, %v6265
  %v6298 = vadd.f32 %v6228, %v6266
  %v6299 = vadd.f32 %v6229, %v6267
  %v6300 = vadd.f32 %v6230, %v6268
  %v6301 = vadd.f32 %v6231, %v6269
  %v6302 = vadd.f32 %v6232, %v6270
  %v6303 = vadd.f32 %v6233, %v6271
  %v6304 = vadd.f32 %v6234, %v6272
  %v6305 = vadd.f32 %v6235, %v6273
  %v6306 = vadd.f32 %v6236, %v6274
  %v6307 = vadd.f32 %v6237, %v6275
  %v6308 = vadd.f32 %v6238, %v6276
  %v6309 = vadd.f32 %v6239, %v6277
  %v6310 = vadd.f32 %v6240, %v6278
  %v6311 = vadd.f32 %v6241, %v6279
  %v6312 = vadd.f32 %v6242, %v6280
  %v6313 = vadd.f32 %v6243, %v6281
  %v6314 = vadd.f32 %v6244, %v6282
  %v6315 = vadd.f32 %v6245, %v6283
  %v6316 = vadd.f32 %v6246, %v6284
  %v6317 = vadd.f32 %v6247, %v6285
  %v6318 = vadd.f32 %v6248, %v6286
  %v6319 = vadd.f32 %v6249, %v6287
  %v6320 = vadd.f32 %v6250, %v6288
  %v6321 = vlaneseq
  %v6322 = vshrl.u32 %v6321, 7
  %v6323 = vsub.s32 0, %v6322
  %v6324 = vrot.slane %v6252, %v6323
  %v6325 = vmul.f32 %v6324, %v6071
  %v6326 = vmul.f32 %v6324, %v6072
  %v6327 = vmul.f32 %v6324, %v6073
  %v6328 = vmul.f32 %v6324, %v6074
  %v6329 = vmul.f32 %v6324, %v6075
  %v6330 = vmul.f32 %v6324, %v6076
  %v6331 = vmul.f32 %v6324, %v6077
  %v6332 = vmul.f32 %v6324, %v6078
  %v6333 = vmul.f32 %v6324, %v6079
  %v6334 = vmul.f32 %v6324, %v6080
  %v6335 = vmul.f32 %v6324, %v6081
  %v6336 = vmul.f32 %v6324, %v6082
  %v6337 = vmul.f32 %v6324, %v6083
  %v6338 = vmul.f32 %v6324, %v6084
  %v6339 = vmul.f32 %v6324, %v6085
  %v6340 = vmul.f32 %v6324, %v6086
  %v6341 = vmul.f32 %v6324, %v6087
  %v6342 = vmul.f32 %v6324, %v6088
  %v6343 = vmul.f32 %v6324, %v6089
  %v6344 = vmul.f32 %v6324, %v6090
  %v6345 = vmul.f32 %v6324, %v6091
  %v6346 = vmul.f32 %v6324, %v6092
  %v6347 = vmul.f32 %v6324, %v6093
  %v6348 = vmul.f32 %v6324, %v6094
  %v6349 = vmul.f32 %v6324, %v6095
  %v6350 = vmul.f32 %v6324, %v6096
  %v6351 = vmul.f32 %v6324, %v6097
  %v6352 = vmul.f32 %v6324, %v6098
  %v6353 = vmul.f32 %v6324, %v6099
  %v6354 = vmul.f32 %v6324, %v6100
  %v6355 = vmul.f32 %v6324, %v6101
  %v6356 = vmul.f32 %v6324, %v6102
  %v6357 = vadd.f32 %v6289, %v6325
  %v6358 = vadd.f32 %v6290, %v6326
  %v6359 = vadd.f32 %v6291, %v6327
  %v6360 = vadd.f32 %v6292, %v6328
  %v6361 = vadd.f32 %v6293, %v6329
  %v6362 = vadd.f32 %v6294, %v6330
  %v6363 = vadd.f32 %v6295, %v6331
  %v6364 = vadd.f32 %v6296, %v6332
  %v6365 = vadd.f32 %v6297, %v6333
  %v6366 = vadd.f32 %v6298, %v6334
  %v6367 = vadd.f32 %v6299, %v6335
  %v6368 = vadd.f32 %v6300, %v6336
  %v6369 = vadd.f32 %v6301, %v6337
  %v6370 = vadd.f32 %v6302, %v6338
  %v6371 = vadd.f32 %v6303, %v6339
  %v6372 = vadd.f32 %v6304, %v6340
  %v6373 = vadd.f32 %v6305, %v6341
  %v6374 = vadd.f32 %v6306, %v6342
  %v6375 = vadd.f32 %v6307, %v6343
  %v6376 = vadd.f32 %v6308, %v6344
  %v6377 = vadd.f32 %v6309, %v6345
  %v6378 = vadd.f32 %v6310, %v6346
  %v6379 = vadd.f32 %v6311, %v6347
  %v6380 = vadd.f32 %v6312, %v6348
  %v6381 = vadd.f32 %v6313, %v6349
  %v6382 = vadd.f32 %v6314, %v6350
  %v6383 = vadd.f32 %v6315, %v6351
  %v6384 = vadd.f32 %v6316, %v6352
  %v6385 = vadd.f32 %v6317, %v6353
  %v6386 = vadd.f32 %v6318, %v6354
  %v6387 = vadd.f32 %v6319, %v6355
  %v6388 = vadd.f32 %v6320, %v6356
  %v6389 = vld [vmem:[%s0 + $0x13] sm:$0x1]
  %v6390 = vld [vmem:[%s0 + $0x44] sm:$0x1]
  %v6391 = vlaneseq
  %v6392 = vshrl.u32 %v6391, 7
  %v6393 = vsub.s32 0, %v6392
  %v6394 = vrot.slane %v6389, %v6393
  %v6395 = vmul.f32 %v6394, %v6029
  %v6396 = vmul.f32 %v6394, %v6030
  %v6397 = vmul.f32 %v6394, %v6031
  %v6398 = vmul.f32 %v6394, %v6032
  %v6399 = vmul.f32 %v6394, %v6033
  %v6400 = vmul.f32 %v6394, %v6034
  %v6401 = vmul.f32 %v6394, %v6035
  %v6402 = vmul.f32 %v6394, %v6036
  %v6403 = vmul.f32 %v6394, %v6037
  %v6404 = vmul.f32 %v6394, %v6038
  %v6405 = vmul.f32 %v6394, %v6039
  %v6406 = vmul.f32 %v6394, %v6040
  %v6407 = vmul.f32 %v6394, %v6041
  %v6408 = vmul.f32 %v6394, %v6042
  %v6409 = vmul.f32 %v6394, %v6043
  %v6410 = vmul.f32 %v6394, %v6044
  %v6411 = vmul.f32 %v6394, %v6045
  %v6412 = vmul.f32 %v6394, %v6046
  %v6413 = vmul.f32 %v6394, %v6047
  %v6414 = vmul.f32 %v6394, %v6048
  %v6415 = vmul.f32 %v6394, %v6049
  %v6416 = vmul.f32 %v6394, %v6050
  %v6417 = vmul.f32 %v6394, %v6051
  %v6418 = vmul.f32 %v6394, %v6052
  %v6419 = vmul.f32 %v6394, %v6053
  %v6420 = vmul.f32 %v6394, %v6054
  %v6421 = vmul.f32 %v6394, %v6055
  %v6422 = vmul.f32 %v6394, %v6056
  %v6423 = vmul.f32 %v6394, %v6057
  %v6424 = vmul.f32 %v6394, %v6058
  %v6425 = vmul.f32 %v6394, %v6059
  %v6426 = vmul.f32 %v6394, %v6060
  %v6427 = vadd.f32 %v6357, %v6395
  %v6428 = vadd.f32 %v6358, %v6396
  %v6429 = vadd.f32 %v6359, %v6397
  %v6430 = vadd.f32 %v6360, %v6398
  %v6431 = vadd.f32 %v6361, %v6399
  %v6432 = vadd.f32 %v6362, %v6400
  %v6433 = vadd.f32 %v6363, %v6401
  %v6434 = vadd.f32 %v6364, %v6402
  %v6435 = vadd.f32 %v6365, %v6403
  %v6436 = vadd.f32 %v6366, %v6404
  %v6437 = vadd.f32 %v6367, %v6405
  %v6438 = vadd.f32 %v6368, %v6406
  %v6439 = vadd.f32 %v6369, %v6407
  %v6440 = vadd.f32 %v6370, %v6408
  %v6441 = vadd.f32 %v6371, %v6409
  %v6442 = vadd.f32 %v6372, %v6410
  %v6443 = vadd.f32 %v6373, %v6411
  %v6444 = vadd.f32 %v6374, %v6412
  %v6445 = vadd.f32 %v6375, %v6413
  %v6446 = vadd.f32 %v6376, %v6414
  %v6447 = vadd.f32 %v6377, %v6415
  %v6448 = vadd.f32 %v6378, %v6416
  %v6449 = vadd.f32 %v6379, %v6417
  %v6450 = vadd.f32 %v6380, %v6418
  %v6451 = vadd.f32 %v6381, %v6419
  %v6452 = vadd.f32 %v6382, %v6420
  %v6453 = vadd.f32 %v6383, %v6421
  %v6454 = vadd.f32 %v6384, %v6422
  %v6455 = vadd.f32 %v6385, %v6423
  %v6456 = vadd.f32 %v6386, %v6424
  %v6457 = vadd.f32 %v6387, %v6425
  %v6458 = vadd.f32 %v6388, %v6426
  %v6459 = vlaneseq
  %v6460 = vshrl.u32 %v6459, 7
  %v6461 = vsub.s32 0, %v6460
  %v6462 = vrot.slane %v6390, %v6461
  %v6463 = vmul.f32 %v6462, %v6073
  %v6464 = vmul.f32 %v6462, %v6074
  %v6465 = vmul.f32 %v6462, %v6075
  %v6466 = vmul.f32 %v6462, %v6076
  %v6467 = vmul.f32 %v6462, %v6077
  %v6468 = vmul.f32 %v6462, %v6078
  %v6469 = vmul.f32 %v6462, %v6079
  %v6470 = vmul.f32 %v6462, %v6080
  %v6471 = vmul.f32 %v6462, %v6081
  %v6472 = vmul.f32 %v6462, %v6082
  %v6473 = vmul.f32 %v6462, %v6083
  %v6474 = vmul.f32 %v6462, %v6084
  %v6475 = vmul.f32 %v6462, %v6085
  %v6476 = vmul.f32 %v6462, %v6086
  %v6477 = vmul.f32 %v6462, %v6087
  %v6478 = vmul.f32 %v6462, %v6088
  %v6479 = vmul.f32 %v6462, %v6089
  %v6480 = vmul.f32 %v6462, %v6090
  %v6481 = vmul.f32 %v6462, %v6091
  %v6482 = vmul.f32 %v6462, %v6092
  %v6483 = vmul.f32 %v6462, %v6093
  %v6484 = vmul.f32 %v6462, %v6094
  %v6485 = vmul.f32 %v6462, %v6095
  %v6486 = vmul.f32 %v6462, %v6096
  %v6487 = vmul.f32 %v6462, %v6097
  %v6488 = vmul.f32 %v6462, %v6098
  %v6489 = vmul.f32 %v6462, %v6099
  %v6490 = vmul.f32 %v6462, %v6100
  %v6491 = vmul.f32 %v6462, %v6101
  %v6492 = vmul.f32 %v6462, %v6102
  %v6493 = vmul.f32 %v6462, %v6103
  %v6494 = vmul.f32 %v6462, %v6104
  %v6495 = vadd.f32 %v6427, %v6463
  %v6496 = vadd.f32 %v6428, %v6464
  %v6497 = vadd.f32 %v6429, %v6465
  %v6498 = vadd.f32 %v6430, %v6466
  %v6499 = vadd.f32 %v6431, %v6467
  %v6500 = vadd.f32 %v6432, %v6468
  %v6501 = vadd.f32 %v6433, %v6469
  %v6502 = vadd.f32 %v6434, %v6470
  %v6503 = vadd.f32 %v6435, %v6471
  %v6504 = vadd.f32 %v6436, %v6472
  %v6505 = vadd.f32 %v6437, %v6473
  %v6506 = vadd.f32 %v6438, %v6474
  %v6507 = vadd.f32 %v6439, %v6475
  %v6508 = vadd.f32 %v6440, %v6476
  %v6509 = vadd.f32 %v6441, %v6477
  %v6510 = vadd.f32 %v6442, %v6478
  %v6511 = vadd.f32 %v6443, %v6479
  %v6512 = vadd.f32 %v6444, %v6480
  %v6513 = vadd.f32 %v6445, %v6481
  %v6514 = vadd.f32 %v6446, %v6482
  %v6515 = vadd.f32 %v6447, %v6483
  %v6516 = vadd.f32 %v6448, %v6484
  %v6517 = vadd.f32 %v6449, %v6485
  %v6518 = vadd.f32 %v6450, %v6486
  %v6519 = vadd.f32 %v6451, %v6487
  %v6520 = vadd.f32 %v6452, %v6488
  %v6521 = vadd.f32 %v6453, %v6489
  %v6522 = vadd.f32 %v6454, %v6490
  %v6523 = vadd.f32 %v6455, %v6491
  %v6524 = vadd.f32 %v6456, %v6492
  %v6525 = vadd.f32 %v6457, %v6493
  %v6526 = vadd.f32 %v6458, %v6494
  %v6527 = vld [vmem:[%s0 + $0x1a] sm:$0x1]
  %v6528 = vld [vmem:[%s0 + $0x4b] sm:$0x1]
  %v6529 = vlaneseq
  %v6530 = vshrl.u32 %v6529, 7
  %v6531 = vsub.s32 0, %v6530
  %v6532 = vrot.slane %v6527, %v6531
  %v6533 = vmul.f32 %v6532, %v6031
  %v6534 = vmul.f32 %v6532, %v6032
  %v6535 = vmul.f32 %v6532, %v6033
  %v6536 = vmul.f32 %v6532, %v6034
  %v6537 = vmul.f32 %v6532, %v6035
  %v6538 = vmul.f32 %v6532, %v6036
  %v6539 = vmul.f32 %v6532, %v6037
  %v6540 = vmul.f32 %v6532, %v6038
  %v6541 = vmul.f32 %v6532, %v6039
  %v6542 = vmul.f32 %v6532, %v6040
  %v6543 = vmul.f32 %v6532, %v6041
  %v6544 = vmul.f32 %v6532, %v6042
  %v6545 = vmul.f32 %v6532, %v6043
  %v6546 = vmul.f32 %v6532, %v6044
  %v6547 = vmul.f32 %v6532, %v6045
  %v6548 = vmul.f32 %v6532, %v6046
  %v6549 = vmul.f32 %v6532, %v6047
  %v6550 = vmul.f32 %v6532, %v6048
  %v6551 = vmul.f32 %v6532, %v6049
  %v6552 = vmul.f32 %v6532, %v6050
  %v6553 = vmul.f32 %v6532, %v6051
  %v6554 = vmul.f32 %v6532, %v6052
  %v6555 = vmul.f32 %v6532, %v6053
  %v6556 = vmul.f32 %v6532, %v6054
  %v6557 = vmul.f32 %v6532, %v6055
  %v6558 = vmul.f32 %v6532, %v6056
  %v6559 = vmul.f32 %v6532, %v6057
  %v6560 = vmul.f32 %v6532, %v6058
  %v6561 = vmul.f32 %v6532, %v6059
  %v6562 = vmul.f32 %v6532, %v6060
  %v6563 = vmul.f32 %v6532, %v6061
  %v6564 = vmul.f32 %v6532, %v6062
  %v6565 = vadd.f32 %v6495, %v6533
  %v6566 = vadd.f32 %v6496, %v6534
  %v6567 = vadd.f32 %v6497, %v6535
  %v6568 = vadd.f32 %v6498, %v6536
  %v6569 = vadd.f32 %v6499, %v6537
  %v6570 = vadd.f32 %v6500, %v6538
  %v6571 = vadd.f32 %v6501, %v6539
  %v6572 = vadd.f32 %v6502, %v6540
  %v6573 = vadd.f32 %v6503, %v6541
  %v6574 = vadd.f32 %v6504, %v6542
  %v6575 = vadd.f32 %v6505, %v6543
  %v6576 = vadd.f32 %v6506, %v6544
  %v6577 = vadd.f32 %v6507, %v6545
  %v6578 = vadd.f32 %v6508, %v6546
  %v6579 = vadd.f32 %v6509, %v6547
  %v6580 = vadd.f32 %v6510, %v6548
  %v6581 = vadd.f32 %v6511, %v6549
  %v6582 = vadd.f32 %v6512, %v6550
  %v6583 = vadd.f32 %v6513, %v6551
  %v6584 = vadd.f32 %v6514, %v6552
  %v6585 = vadd.f32 %v6515, %v6553
  %v6586 = vadd.f32 %v6516, %v6554
  %v6587 = vadd.f32 %v6517, %v6555
  %v6588 = vadd.f32 %v6518, %v6556
  %v6589 = vadd.f32 %v6519, %v6557
  %v6590 = vadd.f32 %v6520, %v6558
  %v6591 = vadd.f32 %v6521, %v6559
  %v6592 = vadd.f32 %v6522, %v6560
  %v6593 = vadd.f32 %v6523, %v6561
  %v6594 = vadd.f32 %v6524, %v6562
  %v6595 = vadd.f32 %v6525, %v6563
  %v6596 = vadd.f32 %v6526, %v6564
  %v6597 = vlaneseq
  %v6598 = vshrl.u32 %v6597, 7
  %v6599 = vsub.s32 0, %v6598
  %v6600 = vrot.slane %v6528, %v6599
  %v6601 = vmul.f32 %v6600, %v6075
  %v6602 = vmul.f32 %v6600, %v6076
  %v6603 = vmul.f32 %v6600, %v6077
  %v6604 = vmul.f32 %v6600, %v6078
  %v6605 = vmul.f32 %v6600, %v6079
  %v6606 = vmul.f32 %v6600, %v6080
  %v6607 = vmul.f32 %v6600, %v6081
  %v6608 = vmul.f32 %v6600, %v6082
  %v6609 = vmul.f32 %v6600, %v6083
  %v6610 = vmul.f32 %v6600, %v6084
  %v6611 = vmul.f32 %v6600, %v6085
  %v6612 = vmul.f32 %v6600, %v6086
  %v6613 = vmul.f32 %v6600, %v6087
  %v6614 = vmul.f32 %v6600, %v6088
  %v6615 = vmul.f32 %v6600, %v6089
  %v6616 = vmul.f32 %v6600, %v6090
  %v6617 = vmul.f32 %v6600, %v6091
  %v6618 = vmul.f32 %v6600, %v6092
  %v6619 = vmul.f32 %v6600, %v6093
  %v6620 = vmul.f32 %v6600, %v6094
  %v6621 = vmul.f32 %v6600, %v6095
  %v6622 = vmul.f32 %v6600, %v6096
  %v6623 = vmul.f32 %v6600, %v6097
  %v6624 = vmul.f32 %v6600, %v6098
  %v6625 = vmul.f32 %v6600, %v6099
  %v6626 = vmul.f32 %v6600, %v6100
  %v6627 = vmul.f32 %v6600, %v6101
  %v6628 = vmul.f32 %v6600, %v6102
  %v6629 = vmul.f32 %v6600, %v6103
  %v6630 = vmul.f32 %v6600, %v6104
  %v6631 = vmul.f32 %v6600, %v6105
  %v6632 = vmul.f32 %v6600, %v6106
  %v6633 = vadd.f32 %v6565, %v6601
  %v6634 = vadd.f32 %v6566, %v6602
  %v6635 = vadd.f32 %v6567, %v6603
  %v6636 = vadd.f32 %v6568, %v6604
  %v6637 = vadd.f32 %v6569, %v6605
  %v6638 = vadd.f32 %v6570, %v6606
  %v6639 = vadd.f32 %v6571, %v6607
  %v6640 = vadd.f32 %v6572, %v6608
  %v6641 = vadd.f32 %v6573, %v6609
  %v6642 = vadd.f32 %v6574, %v6610
  %v6643 = vadd.f32 %v6575, %v6611
  %v6644 = vadd.f32 %v6576, %v6612
  %v6645 = vadd.f32 %v6577, %v6613
  %v6646 = vadd.f32 %v6578, %v6614
  %v6647 = vadd.f32 %v6579, %v6615
  %v6648 = vadd.f32 %v6580, %v6616
  %v6649 = vadd.f32 %v6581, %v6617
  %v6650 = vadd.f32 %v6582, %v6618
  %v6651 = vadd.f32 %v6583, %v6619
  %v6652 = vadd.f32 %v6584, %v6620
  %v6653 = vadd.f32 %v6585, %v6621
  %v6654 = vadd.f32 %v6586, %v6622
  %v6655 = vadd.f32 %v6587, %v6623
  %v6656 = vadd.f32 %v6588, %v6624
  %v6657 = vadd.f32 %v6589, %v6625
  %v6658 = vadd.f32 %v6590, %v6626
  %v6659 = vadd.f32 %v6591, %v6627
  %v6660 = vadd.f32 %v6592, %v6628
  %v6661 = vadd.f32 %v6593, %v6629
  %v6662 = vadd.f32 %v6594, %v6630
  %v6663 = vadd.f32 %v6595, %v6631
  %v6664 = vadd.f32 %v6596, %v6632
  %v6665 = vld [vmem:[%s0 + $0x21] sm:$0x1]
  %v6666 = vld [vmem:[%s0 + $0x52] sm:$0x1]
  %v6667 = vlaneseq
  %v6668 = vshrl.u32 %v6667, 7
  %v6669 = vsub.s32 0, %v6668
  %v6670 = vrot.slane %v6665, %v6669
  %v6671 = vmul.f32 %v6670, %v6033
  %v6672 = vmul.f32 %v6670, %v6034
  %v6673 = vmul.f32 %v6670, %v6035
  %v6674 = vmul.f32 %v6670, %v6036
  %v6675 = vmul.f32 %v6670, %v6037
  %v6676 = vmul.f32 %v6670, %v6038
  %v6677 = vmul.f32 %v6670, %v6039
  %v6678 = vmul.f32 %v6670, %v6040
  %v6679 = vmul.f32 %v6670, %v6041
  %v6680 = vmul.f32 %v6670, %v6042
  %v6681 = vmul.f32 %v6670, %v6043
  %v6682 = vmul.f32 %v6670, %v6044
  %v6683 = vmul.f32 %v6670, %v6045
  %v6684 = vmul.f32 %v6670, %v6046
  %v6685 = vmul.f32 %v6670, %v6047
  %v6686 = vmul.f32 %v6670, %v6048
  %v6687 = vmul.f32 %v6670, %v6049
  %v6688 = vmul.f32 %v6670, %v6050
  %v6689 = vmul.f32 %v6670, %v6051
  %v6690 = vmul.f32 %v6670, %v6052
  %v6691 = vmul.f32 %v6670, %v6053
  %v6692 = vmul.f32 %v6670, %v6054
  %v6693 = vmul.f32 %v6670, %v6055
  %v6694 = vmul.f32 %v6670, %v6056
  %v6695 = vmul.f32 %v6670, %v6057
  %v6696 = vmul.f32 %v6670, %v6058
  %v6697 = vmul.f32 %v6670, %v6059
  %v6698 = vmul.f32 %v6670, %v6060
  %v6699 = vmul.f32 %v6670, %v6061
  %v6700 = vmul.f32 %v6670, %v6062
  %v6701 = vmul.f32 %v6670, %v6063
  %v6702 = vmul.f32 %v6670, %v6064
  %v6703 = vadd.f32 %v6633, %v6671
  %v6704 = vadd.f32 %v6634, %v6672
  %v6705 = vadd.f32 %v6635, %v6673
  %v6706 = vadd.f32 %v6636, %v6674
  %v6707 = vadd.f32 %v6637, %v6675
  %v6708 = vadd.f32 %v6638, %v6676
  %v6709 = vadd.f32 %v6639, %v6677
  %v6710 = vadd.f32 %v6640, %v6678
  %v6711 = vadd.f32 %v6641, %v6679
  %v6712 = vadd.f32 %v6642, %v6680
  %v6713 = vadd.f32 %v6643, %v6681
  %v6714 = vadd.f32 %v6644, %v6682
  %v6715 = vadd.f32 %v6645, %v6683
  %v6716 = vadd.f32 %v6646, %v6684
  %v6717 = vadd.f32 %v6647, %v6685
  %v6718 = vadd.f32 %v6648, %v6686
  %v6719 = vadd.f32 %v6649, %v6687
  %v6720 = vadd.f32 %v6650, %v6688
  %v6721 = vadd.f32 %v6651, %v6689
  %v6722 = vadd.f32 %v6652, %v6690
  %v6723 = vadd.f32 %v6653, %v6691
  %v6724 = vadd.f32 %v6654, %v6692
  %v6725 = vadd.f32 %v6655, %v6693
  %v6726 = vadd.f32 %v6656, %v6694
  %v6727 = vadd.f32 %v6657, %v6695
  %v6728 = vadd.f32 %v6658, %v6696
  %v6729 = vadd.f32 %v6659, %v6697
  %v6730 = vadd.f32 %v6660, %v6698
  %v6731 = vadd.f32 %v6661, %v6699
  %v6732 = vadd.f32 %v6662, %v6700
  %v6733 = vadd.f32 %v6663, %v6701
  %v6734 = vadd.f32 %v6664, %v6702
  %v6735 = vlaneseq
  %v6736 = vshrl.u32 %v6735, 7
  %v6737 = vsub.s32 0, %v6736
  %v6738 = vrot.slane %v6666, %v6737
  %v6739 = vmul.f32 %v6738, %v6077
  %v6740 = vmul.f32 %v6738, %v6078
  %v6741 = vmul.f32 %v6738, %v6079
  %v6742 = vmul.f32 %v6738, %v6080
  %v6743 = vmul.f32 %v6738, %v6081
  %v6744 = vmul.f32 %v6738, %v6082
  %v6745 = vmul.f32 %v6738, %v6083
  %v6746 = vmul.f32 %v6738, %v6084
  %v6747 = vmul.f32 %v6738, %v6085
  %v6748 = vmul.f32 %v6738, %v6086
  %v6749 = vmul.f32 %v6738, %v6087
  %v6750 = vmul.f32 %v6738, %v6088
  %v6751 = vmul.f32 %v6738, %v6089
  %v6752 = vmul.f32 %v6738, %v6090
  %v6753 = vmul.f32 %v6738, %v6091
  %v6754 = vmul.f32 %v6738, %v6092
  %v6755 = vmul.f32 %v6738, %v6093
  %v6756 = vmul.f32 %v6738, %v6094
  %v6757 = vmul.f32 %v6738, %v6095
  %v6758 = vmul.f32 %v6738, %v6096
  %v6759 = vmul.f32 %v6738, %v6097
  %v6760 = vmul.f32 %v6738, %v6098
  %v6761 = vmul.f32 %v6738, %v6099
  %v6762 = vmul.f32 %v6738, %v6100
  %v6763 = vmul.f32 %v6738, %v6101
  %v6764 = vmul.f32 %v6738, %v6102
  %v6765 = vmul.f32 %v6738, %v6103
  %v6766 = vmul.f32 %v6738, %v6104
  %v6767 = vmul.f32 %v6738, %v6105
  %v6768 = vmul.f32 %v6738, %v6106
  %v6769 = vmul.f32 %v6738, %v6107
  %v6770 = vmul.f32 %v6738, %v6108
  %v6771 = vadd.f32 %v6703, %v6739
  %v6772 = vadd.f32 %v6704, %v6740
  %v6773 = vadd.f32 %v6705, %v6741
  %v6774 = vadd.f32 %v6706, %v6742
  %v6775 = vadd.f32 %v6707, %v6743
  %v6776 = vadd.f32 %v6708, %v6744
  %v6777 = vadd.f32 %v6709, %v6745
  %v6778 = vadd.f32 %v6710, %v6746
  %v6779 = vadd.f32 %v6711, %v6747
  %v6780 = vadd.f32 %v6712, %v6748
  %v6781 = vadd.f32 %v6713, %v6749
  %v6782 = vadd.f32 %v6714, %v6750
  %v6783 = vadd.f32 %v6715, %v6751
  %v6784 = vadd.f32 %v6716, %v6752
  %v6785 = vadd.f32 %v6717, %v6753
  %v6786 = vadd.f32 %v6718, %v6754
  %v6787 = vadd.f32 %v6719, %v6755
  %v6788 = vadd.f32 %v6720, %v6756
  %v6789 = vadd.f32 %v6721, %v6757
  %v6790 = vadd.f32 %v6722, %v6758
  %v6791 = vadd.f32 %v6723, %v6759
  %v6792 = vadd.f32 %v6724, %v6760
  %v6793 = vadd.f32 %v6725, %v6761
  %v6794 = vadd.f32 %v6726, %v6762
  %v6795 = vadd.f32 %v6727, %v6763
  %v6796 = vadd.f32 %v6728, %v6764
  %v6797 = vadd.f32 %v6729, %v6765
  %v6798 = vadd.f32 %v6730, %v6766
  %v6799 = vadd.f32 %v6731, %v6767
  %v6800 = vadd.f32 %v6732, %v6768
  %v6801 = vadd.f32 %v6733, %v6769
  %v6802 = vadd.f32 %v6734, %v6770
  %v6803 = vld [vmem:[%s0 + $0x28] sm:$0x1]
  %v6804 = vld [vmem:[%s0 + $0x59] sm:$0x1]
  %v6805 = vlaneseq
  %v6806 = vshrl.u32 %v6805, 7
  %v6807 = vsub.s32 0, %v6806
  %v6808 = vrot.slane %v6803, %v6807
  %v6809 = vmul.f32 %v6808, %v6035
  %v6810 = vmul.f32 %v6808, %v6036
  %v6811 = vmul.f32 %v6808, %v6037
  %v6812 = vmul.f32 %v6808, %v6038
  %v6813 = vmul.f32 %v6808, %v6039
  %v6814 = vmul.f32 %v6808, %v6040
  %v6815 = vmul.f32 %v6808, %v6041
  %v6816 = vmul.f32 %v6808, %v6042
  %v6817 = vmul.f32 %v6808, %v6043
  %v6818 = vmul.f32 %v6808, %v6044
  %v6819 = vmul.f32 %v6808, %v6045
  %v6820 = vmul.f32 %v6808, %v6046
  %v6821 = vmul.f32 %v6808, %v6047
  %v6822 = vmul.f32 %v6808, %v6048
  %v6823 = vmul.f32 %v6808, %v6049
  %v6824 = vmul.f32 %v6808, %v6050
  %v6825 = vmul.f32 %v6808, %v6051
  %v6826 = vmul.f32 %v6808, %v6052
  %v6827 = vmul.f32 %v6808, %v6053
  %v6828 = vmul.f32 %v6808, %v6054
  %v6829 = vmul.f32 %v6808, %v6055
  %v6830 = vmul.f32 %v6808, %v6056
  %v6831 = vmul.f32 %v6808, %v6057
  %v6832 = vmul.f32 %v6808, %v6058
  %v6833 = vmul.f32 %v6808, %v6059
  %v6834 = vmul.f32 %v6808, %v6060
  %v6835 = vmul.f32 %v6808, %v6061
  %v6836 = vmul.f32 %v6808, %v6062
  %v6837 = vmul.f32 %v6808, %v6063
  %v6838 = vmul.f32 %v6808, %v6064
  %v6839 = vmul.f32 %v6808, %v6065
  %v6840 = vmul.f32 %v6808, %v6066
  %v6841 = vadd.f32 %v6771, %v6809
  %v6842 = vadd.f32 %v6772, %v6810
  %v6843 = vadd.f32 %v6773, %v6811
  %v6844 = vadd.f32 %v6774, %v6812
  %v6845 = vadd.f32 %v6775, %v6813
  %v6846 = vadd.f32 %v6776, %v6814
  %v6847 = vadd.f32 %v6777, %v6815
  %v6848 = vadd.f32 %v6778, %v6816
  %v6849 = vadd.f32 %v6779, %v6817
  %v6850 = vadd.f32 %v6780, %v6818
  %v6851 = vadd.f32 %v6781, %v6819
  %v6852 = vadd.f32 %v6782, %v6820
  %v6853 = vadd.f32 %v6783, %v6821
  %v6854 = vadd.f32 %v6784, %v6822
  %v6855 = vadd.f32 %v6785, %v6823
  %v6856 = vadd.f32 %v6786, %v6824
  %v6857 = vadd.f32 %v6787, %v6825
  %v6858 = vadd.f32 %v6788, %v6826
  %v6859 = vadd.f32 %v6789, %v6827
  %v6860 = vadd.f32 %v6790, %v6828
  %v6861 = vadd.f32 %v6791, %v6829
  %v6862 = vadd.f32 %v6792, %v6830
  %v6863 = vadd.f32 %v6793, %v6831
  %v6864 = vadd.f32 %v6794, %v6832
  %v6865 = vadd.f32 %v6795, %v6833
  %v6866 = vadd.f32 %v6796, %v6834
  %v6867 = vadd.f32 %v6797, %v6835
  %v6868 = vadd.f32 %v6798, %v6836
  %v6869 = vadd.f32 %v6799, %v6837
  %v6870 = vadd.f32 %v6800, %v6838
  %v6871 = vadd.f32 %v6801, %v6839
  %v6872 = vadd.f32 %v6802, %v6840
  %v6873 = vlaneseq
  %v6874 = vshrl.u32 %v6873, 7
  %v6875 = vsub.s32 0, %v6874
  %v6876 = vrot.slane %v6804, %v6875
  %v6877 = vmul.f32 %v6876, %v6079
  %v6878 = vmul.f32 %v6876, %v6080
  %v6879 = vmul.f32 %v6876, %v6081
  %v6880 = vmul.f32 %v6876, %v6082
  %v6881 = vmul.f32 %v6876, %v6083
  %v6882 = vmul.f32 %v6876, %v6084
  %v6883 = vmul.f32 %v6876, %v6085
  %v6884 = vmul.f32 %v6876, %v6086
  %v6885 = vmul.f32 %v6876, %v6087
  %v6886 = vmul.f32 %v6876, %v6088
  %v6887 = vmul.f32 %v6876, %v6089
  %v6888 = vmul.f32 %v6876, %v6090
  %v6889 = vmul.f32 %v6876, %v6091
  %v6890 = vmul.f32 %v6876, %v6092
  %v6891 = vmul.f32 %v6876, %v6093
  %v6892 = vmul.f32 %v6876, %v6094
  %v6893 = vmul.f32 %v6876, %v6095
  %v6894 = vmul.f32 %v6876, %v6096
  %v6895 = vmul.f32 %v6876, %v6097
  %v6896 = vmul.f32 %v6876, %v6098
  %v6897 = vmul.f32 %v6876, %v6099
  %v6898 = vmul.f32 %v6876, %v6100
  %v6899 = vmul.f32 %v6876, %v6101
  %v6900 = vmul.f32 %v6876, %v6102
  %v6901 = vmul.f32 %v6876, %v6103
  %v6902 = vmul.f32 %v6876, %v6104
  %v6903 = vmul.f32 %v6876, %v6105
  %v6904 = vmul.f32 %v6876, %v6106
  %v6905 = vmul.f32 %v6876, %v6107
  %v6906 = vmul.f32 %v6876, %v6108
  %v6907 = vmul.f32 %v6876, %v6109
  %v6908 = vmul.f32 %v6876, %v6110
  %v6909 = vadd.f32 %v6841, %v6877
  %v6910 = vadd.f32 %v6842, %v6878
  %v6911 = vadd.f32 %v6843, %v6879
  %v6912 = vadd.f32 %v6844, %v6880
  %v6913 = vadd.f32 %v6845, %v6881
  %v6914 = vadd.f32 %v6846, %v6882
  %v6915 = vadd.f32 %v6847, %v6883
  %v6916 = vadd.f32 %v6848, %v6884
  %v6917 = vadd.f32 %v6849, %v6885
  %v6918 = vadd.f32 %v6850, %v6886
  %v6919 = vadd.f32 %v6851, %v6887
  %v6920 = vadd.f32 %v6852, %v6888
  %v6921 = vadd.f32 %v6853, %v6889
  %v6922 = vadd.f32 %v6854, %v6890
  %v6923 = vadd.f32 %v6855, %v6891
  %v6924 = vadd.f32 %v6856, %v6892
  %v6925 = vadd.f32 %v6857, %v6893
  %v6926 = vadd.f32 %v6858, %v6894
  %v6927 = vadd.f32 %v6859, %v6895
  %v6928 = vadd.f32 %v6860, %v6896
  %v6929 = vadd.f32 %v6861, %v6897
  %v6930 = vadd.f32 %v6862, %v6898
  %v6931 = vadd.f32 %v6863, %v6899
  %v6932 = vadd.f32 %v6864, %v6900
  %v6933 = vadd.f32 %v6865, %v6901
  %v6934 = vadd.f32 %v6866, %v6902
  %v6935 = vadd.f32 %v6867, %v6903
  %v6936 = vadd.f32 %v6868, %v6904
  %v6937 = vadd.f32 %v6869, %v6905
  %v6938 = vadd.f32 %v6870, %v6906
  %v6939 = vadd.f32 %v6871, %v6907
  %v6940 = vadd.f32 %v6872, %v6908
  %v6941 = vld [vmem:[%s0 + $0x2f] sm:$0x1]
  %v6942 = vld [vmem:[%s0 + $0x60] sm:$0x1]
  %v6943 = vlaneseq
  %v6944 = vshrl.u32 %v6943, 7
  %v6945 = vsub.s32 0, %v6944
  %v6946 = vrot.slane %v6941, %v6945
  %v6947 = vmul.f32 %v6946, %v6037
  %v6948 = vmul.f32 %v6946, %v6038
  %v6949 = vmul.f32 %v6946, %v6039
  %v6950 = vmul.f32 %v6946, %v6040
  %v6951 = vmul.f32 %v6946, %v6041
  %v6952 = vmul.f32 %v6946, %v6042
  %v6953 = vmul.f32 %v6946, %v6043
  %v6954 = vmul.f32 %v6946, %v6044
  %v6955 = vmul.f32 %v6946, %v6045
  %v6956 = vmul.f32 %v6946, %v6046
  %v6957 = vmul.f32 %v6946, %v6047
  %v6958 = vmul.f32 %v6946, %v6048
  %v6959 = vmul.f32 %v6946, %v6049
  %v6960 = vmul.f32 %v6946, %v6050
  %v6961 = vmul.f32 %v6946, %v6051
  %v6962 = vmul.f32 %v6946, %v6052
  %v6963 = vmul.f32 %v6946, %v6053
  %v6964 = vmul.f32 %v6946, %v6054
  %v6965 = vmul.f32 %v6946, %v6055
  %v6966 = vmul.f32 %v6946, %v6056
  %v6967 = vmul.f32 %v6946, %v6057
  %v6968 = vmul.f32 %v6946, %v6058
  %v6969 = vmul.f32 %v6946, %v6059
  %v6970 = vmul.f32 %v6946, %v6060
  %v6971 = vmul.f32 %v6946, %v6061
  %v6972 = vmul.f32 %v6946, %v6062
  %v6973 = vmul.f32 %v6946, %v6063
  %v6974 = vmul.f32 %v6946, %v6064
  %v6975 = vmul.f32 %v6946, %v6065
  %v6976 = vmul.f32 %v6946, %v6066
  %v6977 = vmul.f32 %v6946, %v6067
  %v6978 = vmul.f32 %v6946, %v6068
  %v6979 = vadd.f32 %v6909, %v6947
  %v6980 = vadd.f32 %v6910, %v6948
  %v6981 = vadd.f32 %v6911, %v6949
  %v6982 = vadd.f32 %v6912, %v6950
  %v6983 = vadd.f32 %v6913, %v6951
  %v6984 = vadd.f32 %v6914, %v6952
  %v6985 = vadd.f32 %v6915, %v6953
  %v6986 = vadd.f32 %v6916, %v6954
  %v6987 = vadd.f32 %v6917, %v6955
  %v6988 = vadd.f32 %v6918, %v6956
  %v6989 = vadd.f32 %v6919, %v6957
  %v6990 = vadd.f32 %v6920, %v6958
  %v6991 = vadd.f32 %v6921, %v6959
  %v6992 = vadd.f32 %v6922, %v6960
  %v6993 = vadd.f32 %v6923, %v6961
  %v6994 = vadd.f32 %v6924, %v6962
  %v6995 = vadd.f32 %v6925, %v6963
  %v6996 = vadd.f32 %v6926, %v6964
  %v6997 = vadd.f32 %v6927, %v6965
  %v6998 = vadd.f32 %v6928, %v6966
  %v6999 = vadd.f32 %v6929, %v6967
  %v7000 = vadd.f32 %v6930, %v6968
  %v7001 = vadd.f32 %v6931, %v6969
  %v7002 = vadd.f32 %v6932, %v6970
  %v7003 = vadd.f32 %v6933, %v6971
  %v7004 = vadd.f32 %v6934, %v6972
  %v7005 = vadd.f32 %v6935, %v6973
  %v7006 = vadd.f32 %v6936, %v6974
  %v7007 = vadd.f32 %v6937, %v6975
  %v7008 = vadd.f32 %v6938, %v6976
  %v7009 = vadd.f32 %v6939, %v6977
  %v7010 = vadd.f32 %v6940, %v6978
  %v7011 = vlaneseq
  %v7012 = vshrl.u32 %v7011, 7
  %v7013 = vsub.s32 0, %v7012
  %v7014 = vrot.slane %v6942, %v7013
  %v7015 = vmul.f32 %v7014, %v6081
  %v7016 = vmul.f32 %v7014, %v6082
  %v7017 = vmul.f32 %v7014, %v6083
  %v7018 = vmul.f32 %v7014, %v6084
  %v7019 = vmul.f32 %v7014, %v6085
  %v7020 = vmul.f32 %v7014, %v6086
  %v7021 = vmul.f32 %v7014, %v6087
  %v7022 = vmul.f32 %v7014, %v6088
  %v7023 = vmul.f32 %v7014, %v6089
  %v7024 = vmul.f32 %v7014, %v6090
  %v7025 = vmul.f32 %v7014, %v6091
  %v7026 = vmul.f32 %v7014, %v6092
  %v7027 = vmul.f32 %v7014, %v6093
  %v7028 = vmul.f32 %v7014, %v6094
  %v7029 = vmul.f32 %v7014, %v6095
  %v7030 = vmul.f32 %v7014, %v6096
  %v7031 = vmul.f32 %v7014, %v6097
  %v7032 = vmul.f32 %v7014, %v6098
  %v7033 = vmul.f32 %v7014, %v6099
  %v7034 = vmul.f32 %v7014, %v6100
  %v7035 = vmul.f32 %v7014, %v6101
  %v7036 = vmul.f32 %v7014, %v6102
  %v7037 = vmul.f32 %v7014, %v6103
  %v7038 = vmul.f32 %v7014, %v6104
  %v7039 = vmul.f32 %v7014, %v6105
  %v7040 = vmul.f32 %v7014, %v6106
  %v7041 = vmul.f32 %v7014, %v6107
  %v7042 = vmul.f32 %v7014, %v6108
  %v7043 = vmul.f32 %v7014, %v6109
  %v7044 = vmul.f32 %v7014, %v6110
  %v7045 = vmul.f32 %v7014, %v6111
  %v7046 = vmul.f32 %v7014, %v6112
  %v7047 = vadd.f32 %v6979, %v7015
  %v7048 = vadd.f32 %v6980, %v7016
  %v7049 = vadd.f32 %v6981, %v7017
  %v7050 = vadd.f32 %v6982, %v7018
  %v7051 = vadd.f32 %v6983, %v7019
  %v7052 = vadd.f32 %v6984, %v7020
  %v7053 = vadd.f32 %v6985, %v7021
  %v7054 = vadd.f32 %v6986, %v7022
  %v7055 = vadd.f32 %v6987, %v7023
  %v7056 = vadd.f32 %v6988, %v7024
  %v7057 = vadd.f32 %v6989, %v7025
  %v7058 = vadd.f32 %v6990, %v7026
  %v7059 = vadd.f32 %v6991, %v7027
  %v7060 = vadd.f32 %v6992, %v7028
  %v7061 = vadd.f32 %v6993, %v7029
  %v7062 = vadd.f32 %v6994, %v7030
  %v7063 = vadd.f32 %v6995, %v7031
  %v7064 = vadd.f32 %v6996, %v7032
  %v7065 = vadd.f32 %v6997, %v7033
  %v7066 = vadd.f32 %v6998, %v7034
  %v7067 = vadd.f32 %v6999, %v7035
  %v7068 = vadd.f32 %v7000, %v7036
  %v7069 = vadd.f32 %v7001, %v7037
  %v7070 = vadd.f32 %v7002, %v7038
  %v7071 = vadd.f32 %v7003, %v7039
  %v7072 = vadd.f32 %v7004, %v7040
  %v7073 = vadd.f32 %v7005, %v7041
  %v7074 = vadd.f32 %v7006, %v7042
  %v7075 = vadd.f32 %v7007, %v7043
  %v7076 = vadd.f32 %v7008, %v7044
  %v7077 = vadd.f32 %v7009, %v7045
  %v7078 = vadd.f32 %v7010, %v7046
  %v7079 = vld [vmem:[#allocation2 + $0x6] sm:$0xff]
  %v7080 = vld [vmem:[#allocation2 + $0xe] sm:$0xff]
  %v7081 = vld [vmem:[#allocation2 + $0x1e] sm:$0xff]
  %v7082 = vld [vmem:[#allocation2 + $0x26] sm:$0xff]
  %v7083 = vld [vmem:[#allocation2 + $0x36] sm:$0xff]
  %v7084 = vld [vmem:[#allocation2 + $0x3e] sm:$0xff]
  %v7085 = vld [vmem:[#allocation2 + $0x4e] sm:$0xff]
  %v7086 = vld [vmem:[#allocation2 + $0x56] sm:$0xff]
  %v7087 = vld [vmem:[#allocation2 + $0x66] sm:$0xff]
  %v7088 = vld [vmem:[#allocation2 + $0x6e] sm:$0xff]
  %v7089 = vld [vmem:[#allocation2 + $0x7e] sm:$0xff]
  %v7090 = vld [vmem:[#allocation2 + $0x86] sm:$0xff]
  %v7091 = vld [vmem:[#allocation2 + $0x96] sm:$0xff]
  %v7092 = vld [vmem:[#allocation2 + $0x9e] sm:$0xff]
  %v7093 = vld [vmem:[#allocation2 + $0xae] sm:$0xff]
  %v7094 = vld [vmem:[#allocation2 + $0xb6] sm:$0xff]
  %v7095 = vld [vmem:[#allocation2 + $0xc6] sm:$0xff]
  %v7096 = vld [vmem:[#allocation2 + $0xce] sm:$0xff]
  %v7097 = vld [vmem:[#allocation2 + $0xde] sm:$0xff]
  %v7098 = vld [vmem:[#allocation2 + $0xe6] sm:$0xff]
  %v7099 = vld [vmem:[#allocation2 + $0xf6] sm:$0xff]
  %v7100 = vld [vmem:[#allocation2 + $0xfe] sm:$0xff]
  %v7101 = vld [vmem:[#allocation2 + $0x10e] sm:$0xff]
  %v7102 = vld [vmem:[#allocation2 + $0x116] sm:$0xff]
  %v7103 = vld [vmem:[#allocation2 + $0x126] sm:$0xff]
  %v7104 = vld [vmem:[#allocation2 + $0x12e] sm:$0xff]
  %v7105 = vld [vmem:[#allocation2 + $0x13e] sm:$0xff]
  %v7106 = vld [vmem:[#allocation2 + $0x146] sm:$0xff]
  %v7107 = vld [vmem:[#allocation2 + $0x156] sm:$0xff]
  %v7108 = vld [vmem:[#allocation2 + $0x15e] sm:$0xff]
  %v7109 = vld [vmem:[#allocation2 + $0x16e] sm:$0xff]
  %v7110 = vld [vmem:[#allocation2 + $0x176] sm:$0xff]
  %v7111 = vld [vmem:[#allocation2 + $0x186] sm:$0xff]
  %v7112 = vld [vmem:[#allocation2 + $0x18e] sm:$0xff]
  %v7113 = vld [vmem:[#allocation2 + $0x19e] sm:$0xff]
  %v7114 = vld [vmem:[#allocation2 + $0x1a6] sm:$0xff]
  %v7115 = vld [vmem:[#allocation2 + $0x1b6] sm:$0xff]
  %v7116 = vld [vmem:[#allocation2 + $0x1be] sm:$0xff]
  %v7117 = vld [vmem:[#allocation2 + $0x1ce] sm:$0xff]
  %v7118 = vld [vmem:[#allocation2 + $0x1d6] sm:$0xff]
  %v7119 = vld [vmem:[#allocation2 + $0x1e6] sm:$0xff]
  %v7120 = vld [vmem:[#allocation2 + $0x1ee] sm:$0xff]
  %v7121 = vld [vmem:[#allocation2 + $0x1fe] sm:$0xff]
  %v7122 = vld [vmem:[#allocation2 + $0x206] sm:$0xff]
  %v7123 = vld [vmem:[#allocation3 + $0x6] sm:$0xff]
  %v7124 = vld [vmem:[#allocation3 + $0xe] sm:$0xff]
  %v7125 = vld [vmem:[#allocation3 + $0x1e] sm:$0xff]
  %v7126 = vld [vmem:[#allocation3 + $0x26] sm:$0xff]
  %v7127 = vld [vmem:[#allocation3 + $0x36] sm:$0xff]
  %v7128 = vld [vmem:[#allocation3 + $0x3e] sm:$0xff]
  %v7129 = vld [vmem:[#allocation3 + $0x4e] sm:$0xff]
  %v7130 = vld [vmem:[#allocation3 + $0x56] sm:$0xff]
  %v7131 = vld [vmem:[#allocation3 + $0x66] sm:$0xff]
  %v7132 = vld [vmem:[#allocation3 + $0x6e] sm:$0xff]
  %v7133 = vld [vmem:[#allocation3 + $0x7e] sm:$0xff]
  %v7134 = vld [vmem:[#allocation3 + $0x86] sm:$0xff]
  %v7135 = vld [vmem:[#allocation3 + $0x96] sm:$0xff]
  %v7136 = vld [vmem:[#allocation3 + $0x9e] sm:$0xff]
  %v7137 = vld [vmem:[#allocation3 + $0xae] sm:$0xff]
  %v7138 = vld [vmem:[#allocation3 + $0xb6] sm:$0xff]
  %v7139 = vld [vmem:[#allocation3 + $0xc6] sm:$0xff]
  %v7140 = vld [vmem:[#allocation3 + $0xce] sm:$0xff]
  %v7141 = vld [vmem:[#allocation3 + $0xde] sm:$0xff]
  %v7142 = vld [vmem:[#allocation3 + $0xe6] sm:$0xff]
  %v7143 = vld [vmem:[#allocation3 + $0xf6] sm:$0xff]
  %v7144 = vld [vmem:[#allocation3 + $0xfe] sm:$0xff]
  %v7145 = vld [vmem:[#allocation3 + $0x10e] sm:$0xff]
  %v7146 = vld [vmem:[#allocation3 + $0x116] sm:$0xff]
  %v7147 = vld [vmem:[#allocation3 + $0x126] sm:$0xff]
  %v7148 = vld [vmem:[#allocation3 + $0x12e] sm:$0xff]
  %v7149 = vld [vmem:[#allocation3 + $0x13e] sm:$0xff]
  %v7150 = vld [vmem:[#allocation3 + $0x146] sm:$0xff]
  %v7151 = vld [vmem:[#allocation3 + $0x156] sm:$0xff]
  %v7152 = vld [vmem:[#allocation3 + $0x15e] sm:$0xff]
  %v7153 = vld [vmem:[#allocation3 + $0x16e] sm:$0xff]
  %v7154 = vld [vmem:[#allocation3 + $0x176] sm:$0xff]
  %v7155 = vld [vmem:[#allocation3 + $0x186] sm:$0xff]
  %v7156 = vld [vmem:[#allocation3 + $0x18e] sm:$0xff]
  %v7157 = vld [vmem:[#allocation3 + $0x19e] sm:$0xff]
  %v7158 = vld [vmem:[#allocation3 + $0x1a6] sm:$0xff]
  %v7159 = vld [vmem:[#allocation3 + $0x1b6] sm:$0xff]
  %v7160 = vld [vmem:[#allocation3 + $0x1be] sm:$0xff]
  %v7161 = vld [vmem:[#allocation3 + $0x1ce] sm:$0xff]
  %v7162 = vld [vmem:[#allocation3 + $0x1d6] sm:$0xff]
  %v7163 = vld [vmem:[#allocation3 + $0x1e6] sm:$0xff]
  %v7164 = vld [vmem:[#allocation3 + $0x1ee] sm:$0xff]
  %v7165 = vld [vmem:[#allocation3 + $0x1fe] sm:$0xff]
  %v7166 = vld [vmem:[#allocation3 + $0x206] sm:$0xff]
  %v7167 = vld [vmem:[%s0 + $0x6] sm:$0x1]
  %v7168 = vld [vmem:[%s0 + $0x37] sm:$0x1]
  %v7169 = vlaneseq
  %v7170 = vshrl.u32 %v7169, 7
  %v7171 = vsub.s32 0, %v7170
  %v7172 = vrot.slane %v7167, %v7171
  %v7173 = vmul.f32 %v7172, %v7079
  %v7174 = vmul.f32 %v7172, %v7080
  %v7175 = vmul.f32 %v7172, %v7081
  %v7176 = vmul.f32 %v7172, %v7082
  %v7177 = vmul.f32 %v7172, %v7083
  %v7178 = vmul.f32 %v7172, %v7084
  %v7179 = vmul.f32 %v7172, %v7085
  %v7180 = vmul.f32 %v7172, %v7086
  %v7181 = vmul.f32 %v7172, %v7087
  %v7182 = vmul.f32 %v7172, %v7088
  %v7183 = vmul.f32 %v7172, %v7089
  %v7184 = vmul.f32 %v7172, %v7090
  %v7185 = vmul.f32 %v7172, %v7091
  %v7186 = vmul.f32 %v7172, %v7092
  %v7187 = vmul.f32 %v7172, %v7093
  %v7188 = vmul.f32 %v7172, %v7094
  %v7189 = vmul.f32 %v7172, %v7095
  %v7190 = vmul.f32 %v7172, %v7096
  %v7191 = vmul.f32 %v7172, %v7097
  %v7192 = vmul.f32 %v7172, %v7098
  %v7193 = vmul.f32 %v7172, %v7099
  %v7194 = vmul.f32 %v7172, %v7100
  %v7195 = vmul.f32 %v7172, %v7101
  %v7196 = vmul.f32 %v7172, %v7102
  %v7197 = vmul.f32 %v7172, %v7103
  %v7198 = vmul.f32 %v7172, %v7104
  %v7199 = vmul.f32 %v7172, %v7105
  %v7200 = vmul.f32 %v7172, %v7106
  %v7201 = vmul.f32 %v7172, %v7107
  %v7202 = vmul.f32 %v7172, %v7108
  %v7203 = vmul.f32 %v7172, %v7109
  %v7204 = vmul.f32 %v7172, %v7110
  %v7205 = vadd.f32 %v7047, %v7173
  %v7206 = vadd.f32 %v7048, %v7174
  %v7207 = vadd.f32 %v7049, %v7175
  %v7208 = vadd.f32 %v7050, %v7176
  %v7209 = vadd.f32 %v7051, %v7177
  %v7210 = vadd.f32 %v7052, %v7178
  %v7211 = vadd.f32 %v7053, %v7179
  %v7212 = vadd.f32 %v7054, %v7180
  %v7213 = vadd.f32 %v7055, %v7181
  %v7214 = vadd.f32 %v7056, %v7182
  %v7215 = vadd.f32 %v7057, %v7183
  %v7216 = vadd.f32 %v7058, %v7184
  %v7217 = vadd.f32 %v7059, %v7185
  %v7218 = vadd.f32 %v7060, %v7186
  %v7219 = vadd.f32 %v7061, %v7187
  %v7220 = vadd.f32 %v7062, %v7188
  %v7221 = vadd.f32 %v7063, %v7189
  %v7222 = vadd.f32 %v7064, %v7190
  %v7223 = vadd.f32 %v7065, %v7191
  %v7224 = vadd.f32 %v7066, %v7192
  %v7225 = vadd.f32 %v7067, %v7193
  %v7226 = vadd.f32 %v7068, %v7194
  %v7227 = vadd.f32 %v7069, %v7195
  %v7228 = vadd.f32 %v7070, %v7196
  %v7229 = vadd.f32 %v7071, %v7197
  %v7230 = vadd.f32 %v7072, %v7198
  %v7231 = vadd.f32 %v7073, %v7199
  %v7232 = vadd.f32 %v7074, %v7200
  %v7233 = vadd.f32 %v7075, %v7201
  %v7234 = vadd.f32 %v7076, %v7202
  %v7235 = vadd.f32 %v7077, %v7203
  %v7236 = vadd.f32 %v7078, %v7204
  %v7237 = vlaneseq
  %v7238 = vshrl.u32 %v7237, 7
  %v7239 = vsub.s32 0, %v7238
  %v7240 = vrot.slane %v7168, %v7239
  %v7241 = vmul.f32 %v7240, %v7123
  %v7242 = vmul.f32 %v7240, %v7124
  %v7243 = vmul.f32 %v7240, %v7125
  %v7244 = vmul.f32 %v7240, %v7126
  %v7245 = vmul.f32 %v7240, %v7127
  %v7246 = vmul.f32 %v7240, %v7128
  %v7247 = vmul.f32 %v7240, %v7129
  %v7248 = vmul.f32 %v7240, %v7130
  %v7249 = vmul.f32 %v7240, %v7131
  %v7250 = vmul.f32 %v7240, %v7132
  %v7251 = vmul.f32 %v7240, %v7133
  %v7252 = vmul.f32 %v7240, %v7134
  %v7253 = vmul.f32 %v7240, %v7135
  %v7254 = vmul.f32 %v7240, %v7136
  %v7255 = vmul.f32 %v7240, %v7137
  %v7256 = vmul.f32 %v7240, %v7138
  %v7257 = vmul.f32 %v7240, %v7139
  %v7258 = vmul.f32 %v7240, %v7140
  %v7259 = vmul.f32 %v7240, %v7141
  %v7260 = vmul.f32 %v7240, %v7142
  %v7261 = vmul.f32 %v7240, %v7143
  %v7262 = vmul.f32 %v7240, %v7144
  %v7263 = vmul.f32 %v7240, %v7145
  %v7264 = vmul.f32 %v7240, %v7146
  %v7265 = vmul.f32 %v7240, %v7147
  %v7266 = vmul.f32 %v7240, %v7148
  %v7267 = vmul.f32 %v7240, %v7149
  %v7268 = vmul.f32 %v7240, %v7150
  %v7269 = vmul.f32 %v7240, %v7151
  %v7270 = vmul.f32 %v7240, %v7152
  %v7271 = vmul.f32 %v7240, %v7153
  %v7272 = vmul.f32 %v7240, %v7154
  %v7273 = vadd.f32 %v7205, %v7241
  %v7274 = vadd.f32 %v7206, %v7242
  %v7275 = vadd.f32 %v7207, %v7243
  %v7276 = vadd.f32 %v7208, %v7244
  %v7277 = vadd.f32 %v7209, %v7245
  %v7278 = vadd.f32 %v7210, %v7246
  %v7279 = vadd.f32 %v7211, %v7247
  %v7280 = vadd.f32 %v7212, %v7248
  %v7281 = vadd.f32 %v7213, %v7249
  %v7282 = vadd.f32 %v7214, %v7250
  %v7283 = vadd.f32 %v7215, %v7251
  %v7284 = vadd.f32 %v7216, %v7252
  %v7285 = vadd.f32 %v7217, %v7253
  %v7286 = vadd.f32 %v7218, %v7254
  %v7287 = vadd.f32 %v7219, %v7255
  %v7288 = vadd.f32 %v7220, %v7256
  %v7289 = vadd.f32 %v7221, %v7257
  %v7290 = vadd.f32 %v7222, %v7258
  %v7291 = vadd.f32 %v7223, %v7259
  %v7292 = vadd.f32 %v7224, %v7260
  %v7293 = vadd.f32 %v7225, %v7261
  %v7294 = vadd.f32 %v7226, %v7262
  %v7295 = vadd.f32 %v7227, %v7263
  %v7296 = vadd.f32 %v7228, %v7264
  %v7297 = vadd.f32 %v7229, %v7265
  %v7298 = vadd.f32 %v7230, %v7266
  %v7299 = vadd.f32 %v7231, %v7267
  %v7300 = vadd.f32 %v7232, %v7268
  %v7301 = vadd.f32 %v7233, %v7269
  %v7302 = vadd.f32 %v7234, %v7270
  %v7303 = vadd.f32 %v7235, %v7271
  %v7304 = vadd.f32 %v7236, %v7272
  %v7305 = vld [vmem:[%s0 + $0xd] sm:$0x1]
  %v7306 = vld [vmem:[%s0 + $0x3e] sm:$0x1]
  %v7307 = vlaneseq
  %v7308 = vshrl.u32 %v7307, 7
  %v7309 = vsub.s32 0, %v7308
  %v7310 = vrot.slane %v7305, %v7309
  %v7311 = vmul.f32 %v7310, %v7081
  %v7312 = vmul.f32 %v7310, %v7082
  %v7313 = vmul.f32 %v7310, %v7083
  %v7314 = vmul.f32 %v7310, %v7084
  %v7315 = vmul.f32 %v7310, %v7085
  %v7316 = vmul.f32 %v7310, %v7086
  %v7317 = vmul.f32 %v7310, %v7087
  %v7318 = vmul.f32 %v7310, %v7088
  %v7319 = vmul.f32 %v7310, %v7089
  %v7320 = vmul.f32 %v7310, %v7090
  %v7321 = vmul.f32 %v7310, %v7091
  %v7322 = vmul.f32 %v7310, %v7092
  %v7323 = vmul.f32 %v7310, %v7093
  %v7324 = vmul.f32 %v7310, %v7094
  %v7325 = vmul.f32 %v7310, %v7095
  %v7326 = vmul.f32 %v7310, %v7096
  %v7327 = vmul.f32 %v7310, %v7097
  %v7328 = vmul.f32 %v7310, %v7098
  %v7329 = vmul.f32 %v7310, %v7099
  %v7330 = vmul.f32 %v7310, %v7100
  %v7331 = vmul.f32 %v7310, %v7101
  %v7332 = vmul.f32 %v7310, %v7102
  %v7333 = vmul.f32 %v7310, %v7103
  %v7334 = vmul.f32 %v7310, %v7104
  %v7335 = vmul.f32 %v7310, %v7105
  %v7336 = vmul.f32 %v7310, %v7106
  %v7337 = vmul.f32 %v7310, %v7107
  %v7338 = vmul.f32 %v7310, %v7108
  %v7339 = vmul.f32 %v7310, %v7109
  %v7340 = vmul.f32 %v7310, %v7110
  %v7341 = vmul.f32 %v7310, %v7111
  %v7342 = vmul.f32 %v7310, %v7112
  %v7343 = vadd.f32 %v7273, %v7311
  %v7344 = vadd.f32 %v7274, %v7312
  %v7345 = vadd.f32 %v7275, %v7313
  %v7346 = vadd.f32 %v7276, %v7314
  %v7347 = vadd.f32 %v7277, %v7315
  %v7348 = vadd.f32 %v7278, %v7316
  %v7349 = vadd.f32 %v7279, %v7317
  %v7350 = vadd.f32 %v7280, %v7318
  %v7351 = vadd.f32 %v7281, %v7319
  %v7352 = vadd.f32 %v7282, %v7320
  %v7353 = vadd.f32 %v7283, %v7321
  %v7354 = vadd.f32 %v7284, %v7322
  %v7355 = vadd.f32 %v7285, %v7323
  %v7356 = vadd.f32 %v7286, %v7324
  %v7357 = vadd.f32 %v7287, %v7325
  %v7358 = vadd.f32 %v7288, %v7326
  %v7359 = vadd.f32 %v7289, %v7327
  %v7360 = vadd.f32 %v7290, %v7328
  %v7361 = vadd.f32 %v7291, %v7329
  %v7362 = vadd.f32 %v7292, %v7330
  %v7363 = vadd.f32 %v7293, %v7331
  %v7364 = vadd.f32 %v7294, %v7332
  %v7365 = vadd.f32 %v7295, %v7333
  %v7366 = vadd.f32 %v7296, %v7334
  %v7367 = vadd.f32 %v7297, %v7335
  %v7368 = vadd.f32 %v7298, %v7336
  %v7369 = vadd.f32 %v7299, %v7337
  %v7370 = vadd.f32 %v7300, %v7338
  %v7371 = vadd.f32 %v7301, %v7339
  %v7372 = vadd.f32 %v7302, %v7340
  %v7373 = vadd.f32 %v7303, %v7341
  %v7374 = vadd.f32 %v7304, %v7342
  %v7375 = vlaneseq
  %v7376 = vshrl.u32 %v7375, 7
  %v7377 = vsub.s32 0, %v7376
  %v7378 = vrot.slane %v7306, %v7377
  %v7379 = vmul.f32 %v7378, %v7125
  %v7380 = vmul.f32 %v7378, %v7126
  %v7381 = vmul.f32 %v7378, %v7127
  %v7382 = vmul.f32 %v7378, %v7128
  %v7383 = vmul.f32 %v7378, %v7129
  %v7384 = vmul.f32 %v7378, %v7130
  %v7385 = vmul.f32 %v7378, %v7131
  %v7386 = vmul.f32 %v7378, %v7132
  %v7387 = vmul.f32 %v7378, %v7133
  %v7388 = vmul.f32 %v7378, %v7134
  %v7389 = vmul.f32 %v7378, %v7135
  %v7390 = vmul.f32 %v7378, %v7136
  %v7391 = vmul.f32 %v7378, %v7137
  %v7392 = vmul.f32 %v7378, %v7138
  %v7393 = vmul.f32 %v7378, %v7139
  %v7394 = vmul.f32 %v7378, %v7140
  %v7395 = vmul.f32 %v7378, %v7141
  %v7396 = vmul.f32 %v7378, %v7142
  %v7397 = vmul.f32 %v7378, %v7143
  %v7398 = vmul.f32 %v7378, %v7144
  %v7399 = vmul.f32 %v7378, %v7145
  %v7400 = vmul.f32 %v7378, %v7146
  %v7401 = vmul.f32 %v7378, %v7147
  %v7402 = vmul.f32 %v7378, %v7148
  %v7403 = vmul.f32 %v7378, %v7149
  %v7404 = vmul.f32 %v7378, %v7150
  %v7405 = vmul.f32 %v7378, %v7151
  %v7406 = vmul.f32 %v7378, %v7152
  %v7407 = vmul.f32 %v7378, %v7153
  %v7408 = vmul.f32 %v7378, %v7154
  %v7409 = vmul.f32 %v7378, %v7155
  %v7410 = vmul.f32 %v7378, %v7156
  %v7411 = vadd.f32 %v7343, %v7379
  %v7412 = vadd.f32 %v7344, %v7380
  %v7413 = vadd.f32 %v7345, %v7381
  %v7414 = vadd.f32 %v7346, %v7382
  %v7415 = vadd.f32 %v7347, %v7383
  %v7416 = vadd.f32 %v7348, %v7384
  %v7417 = vadd.f32 %v7349, %v7385
  %v7418 = vadd.f32 %v7350, %v7386
  %v7419 = vadd.f32 %v7351, %v7387
  %v7420 = vadd.f32 %v7352, %v7388
  %v7421 = vadd.f32 %v7353, %v7389
  %v7422 = vadd.f32 %v7354, %v7390
  %v7423 = vadd.f32 %v7355, %v7391
  %v7424 = vadd.f32 %v7356, %v7392
  %v7425 = vadd.f32 %v7357, %v7393
  %v7426 = vadd.f32 %v7358, %v7394
  %v7427 = vadd.f32 %v7359, %v7395
  %v7428 = vadd.f32 %v7360, %v7396
  %v7429 = vadd.f32 %v7361, %v7397
  %v7430 = vadd.f32 %v7362, %v7398
  %v7431 = vadd.f32 %v7363, %v7399
  %v7432 = vadd.f32 %v7364, %v7400
  %v7433 = vadd.f32 %v7365, %v7401
  %v7434 = vadd.f32 %v7366, %v7402
  %v7435 = vadd.f32 %v7367, %v7403
  %v7436 = vadd.f32 %v7368, %v7404
  %v7437 = vadd.f32 %v7369, %v7405
  %v7438 = vadd.f32 %v7370, %v7406
  %v7439 = vadd.f32 %v7371, %v7407
  %v7440 = vadd.f32 %v7372, %v7408
  %v7441 = vadd.f32 %v7373, %v7409
  %v7442 = vadd.f32 %v7374, %v7410
  %v7443 = vld [vmem:[%s0 + $0x14] sm:$0x1]
  %v7444 = vld [vmem:[%s0 + $0x45] sm:$0x1]
  %v7445 = vlaneseq
  %v7446 = vshrl.u32 %v7445, 7
  %v7447 = vsub.s32 0, %v7446
  %v7448 = vrot.slane %v7443, %v7447
  %v7449 = vmul.f32 %v7448, %v7083
  %v7450 = vmul.f32 %v7448, %v7084
  %v7451 = vmul.f32 %v7448, %v7085
  %v7452 = vmul.f32 %v7448, %v7086
  %v7453 = vmul.f32 %v7448, %v7087
  %v7454 = vmul.f32 %v7448, %v7088
  %v7455 = vmul.f32 %v7448, %v7089
  %v7456 = vmul.f32 %v7448, %v7090
  %v7457 = vmul.f32 %v7448, %v7091
  %v7458 = vmul.f32 %v7448, %v7092
  %v7459 = vmul.f32 %v7448, %v7093
  %v7460 = vmul.f32 %v7448, %v7094
  %v7461 = vmul.f32 %v7448, %v7095
  %v7462 = vmul.f32 %v7448, %v7096
  %v7463 = vmul.f32 %v7448, %v7097
  %v7464 = vmul.f32 %v7448, %v7098
  %v7465 = vmul.f32 %v7448, %v7099
  %v7466 = vmul.f32 %v7448, %v7100
  %v7467 = vmul.f32 %v7448, %v7101
  %v7468 = vmul.f32 %v7448, %v7102
  %v7469 = vmul.f32 %v7448, %v7103
  %v7470 = vmul.f32 %v7448, %v7104
  %v7471 = vmul.f32 %v7448, %v7105
  %v7472 = vmul.f32 %v7448, %v7106
  %v7473 = vmul.f32 %v7448, %v7107
  %v7474 = vmul.f32 %v7448, %v7108
  %v7475 = vmul.f32 %v7448, %v7109
  %v7476 = vmul.f32 %v7448, %v7110
  %v7477 = vmul.f32 %v7448, %v7111
  %v7478 = vmul.f32 %v7448, %v7112
  %v7479 = vmul.f32 %v7448, %v7113
  %v7480 = vmul.f32 %v7448, %v7114
  %v7481 = vadd.f32 %v7411, %v7449
  %v7482 = vadd.f32 %v7412, %v7450
  %v7483 = vadd.f32 %v7413, %v7451
  %v7484 = vadd.f32 %v7414, %v7452
  %v7485 = vadd.f32 %v7415, %v7453
  %v7486 = vadd.f32 %v7416, %v7454
  %v7487 = vadd.f32 %v7417, %v7455
  %v7488 = vadd.f32 %v7418, %v7456
  %v7489 = vadd.f32 %v7419, %v7457
  %v7490 = vadd.f32 %v7420, %v7458
  %v7491 = vadd.f32 %v7421, %v7459
  %v7492 = vadd.f32 %v7422, %v7460
  %v7493 = vadd.f32 %v7423, %v7461
  %v7494 = vadd.f32 %v7424, %v7462
  %v7495 = vadd.f32 %v7425, %v7463
  %v7496 = vadd.f32 %v7426, %v7464
  %v7497 = vadd.f32 %v7427, %v7465
  %v7498 = vadd.f32 %v7428, %v7466
  %v7499 = vadd.f32 %v7429, %v7467
  %v7500 = vadd.f32 %v7430, %v7468
  %v7501 = vadd.f32 %v7431, %v7469
  %v7502 = vadd.f32 %v7432, %v7470
  %v7503 = vadd.f32 %v7433, %v7471
  %v7504 = vadd.f32 %v7434, %v7472
  %v7505 = vadd.f32 %v7435, %v7473
  %v7506 = vadd.f32 %v7436, %v7474
  %v7507 = vadd.f32 %v7437, %v7475
  %v7508 = vadd.f32 %v7438, %v7476
  %v7509 = vadd.f32 %v7439, %v7477
  %v7510 = vadd.f32 %v7440, %v7478
  %v7511 = vadd.f32 %v7441, %v7479
  %v7512 = vadd.f32 %v7442, %v7480
  %v7513 = vlaneseq
  %v7514 = vshrl.u32 %v7513, 7
  %v7515 = vsub.s32 0, %v7514
  %v7516 = vrot.slane %v7444, %v7515
  %v7517 = vmul.f32 %v7516, %v7127
  %v7518 = vmul.f32 %v7516, %v7128
  %v7519 = vmul.f32 %v7516, %v7129
  %v7520 = vmul.f32 %v7516, %v7130
  %v7521 = vmul.f32 %v7516, %v7131
  %v7522 = vmul.f32 %v7516, %v7132
  %v7523 = vmul.f32 %v7516, %v7133
  %v7524 = vmul.f32 %v7516, %v7134
  %v7525 = vmul.f32 %v7516, %v7135
  %v7526 = vmul.f32 %v7516, %v7136
  %v7527 = vmul.f32 %v7516, %v7137
  %v7528 = vmul.f32 %v7516, %v7138
  %v7529 = vmul.f32 %v7516, %v7139
  %v7530 = vmul.f32 %v7516, %v7140
  %v7531 = vmul.f32 %v7516, %v7141
  %v7532 = vmul.f32 %v7516, %v7142
  %v7533 = vmul.f32 %v7516, %v7143
  %v7534 = vmul.f32 %v7516, %v7144
  %v7535 = vmul.f32 %v7516, %v7145
  %v7536 = vmul.f32 %v7516, %v7146
  %v7537 = vmul.f32 %v7516, %v7147
  %v7538 = vmul.f32 %v7516, %v7148
  %v7539 = vmul.f32 %v7516, %v7149
  %v7540 = vmul.f32 %v7516, %v7150
  %v7541 = vmul.f32 %v7516, %v7151
  %v7542 = vmul.f32 %v7516, %v7152
  %v7543 = vmul.f32 %v7516, %v7153
  %v7544 = vmul.f32 %v7516, %v7154
  %v7545 = vmul.f32 %v7516, %v7155
  %v7546 = vmul.f32 %v7516, %v7156
  %v7547 = vmul.f32 %v7516, %v7157
  %v7548 = vmul.f32 %v7516, %v7158
  %v7549 = vadd.f32 %v7481, %v7517
  %v7550 = vadd.f32 %v7482, %v7518
  %v7551 = vadd.f32 %v7483, %v7519
  %v7552 = vadd.f32 %v7484, %v7520
  %v7553 = vadd.f32 %v7485, %v7521
  %v7554 = vadd.f32 %v7486, %v7522
  %v7555 = vadd.f32 %v7487, %v7523
  %v7556 = vadd.f32 %v7488, %v7524
  %v7557 = vadd.f32 %v7489, %v7525
  %v7558 = vadd.f32 %v7490, %v7526
  %v7559 = vadd.f32 %v7491, %v7527
  %v7560 = vadd.f32 %v7492, %v7528
  %v7561 = vadd.f32 %v7493, %v7529
  %v7562 = vadd.f32 %v7494, %v7530
  %v7563 = vadd.f32 %v7495, %v7531
  %v7564 = vadd.f32 %v7496, %v7532
  %v7565 = vadd.f32 %v7497, %v7533
  %v7566 = vadd.f32 %v7498, %v7534
  %v7567 = vadd.f32 %v7499, %v7535
  %v7568 = vadd.f32 %v7500, %v7536
  %v7569 = vadd.f32 %v7501, %v7537
  %v7570 = vadd.f32 %v7502, %v7538
  %v7571 = vadd.f32 %v7503, %v7539
  %v7572 = vadd.f32 %v7504, %v7540
  %v7573 = vadd.f32 %v7505, %v7541
  %v7574 = vadd.f32 %v7506, %v7542
  %v7575 = vadd.f32 %v7507, %v7543
  %v7576 = vadd.f32 %v7508, %v7544
  %v7577 = vadd.f32 %v7509, %v7545
  %v7578 = vadd.f32 %v7510, %v7546
  %v7579 = vadd.f32 %v7511, %v7547
  %v7580 = vadd.f32 %v7512, %v7548
  %v7581 = vld [vmem:[%s0 + $0x1b] sm:$0x1]
  %v7582 = vld [vmem:[%s0 + $0x4c] sm:$0x1]
  %v7583 = vlaneseq
  %v7584 = vshrl.u32 %v7583, 7
  %v7585 = vsub.s32 0, %v7584
  %v7586 = vrot.slane %v7581, %v7585
  %v7587 = vmul.f32 %v7586, %v7085
  %v7588 = vmul.f32 %v7586, %v7086
  %v7589 = vmul.f32 %v7586, %v7087
  %v7590 = vmul.f32 %v7586, %v7088
  %v7591 = vmul.f32 %v7586, %v7089
  %v7592 = vmul.f32 %v7586, %v7090
  %v7593 = vmul.f32 %v7586, %v7091
  %v7594 = vmul.f32 %v7586, %v7092
  %v7595 = vmul.f32 %v7586, %v7093
  %v7596 = vmul.f32 %v7586, %v7094
  %v7597 = vmul.f32 %v7586, %v7095
  %v7598 = vmul.f32 %v7586, %v7096
  %v7599 = vmul.f32 %v7586, %v7097
  %v7600 = vmul.f32 %v7586, %v7098
  %v7601 = vmul.f32 %v7586, %v7099
  %v7602 = vmul.f32 %v7586, %v7100
  %v7603 = vmul.f32 %v7586, %v7101
  %v7604 = vmul.f32 %v7586, %v7102
  %v7605 = vmul.f32 %v7586, %v7103
  %v7606 = vmul.f32 %v7586, %v7104
  %v7607 = vmul.f32 %v7586, %v7105
  %v7608 = vmul.f32 %v7586, %v7106
  %v7609 = vmul.f32 %v7586, %v7107
  %v7610 = vmul.f32 %v7586, %v7108
  %v7611 = vmul.f32 %v7586, %v7109
  %v7612 = vmul.f32 %v7586, %v7110
  %v7613 = vmul.f32 %v7586, %v7111
  %v7614 = vmul.f32 %v7586, %v7112
  %v7615 = vmul.f32 %v7586, %v7113
  %v7616 = vmul.f32 %v7586, %v7114
  %v7617 = vmul.f32 %v7586, %v7115
  %v7618 = vmul.f32 %v7586, %v7116
  %v7619 = vadd.f32 %v7549, %v7587
  %v7620 = vadd.f32 %v7550, %v7588
  %v7621 = vadd.f32 %v7551, %v7589
  %v7622 = vadd.f32 %v7552, %v7590
  %v7623 = vadd.f32 %v7553, %v7591
  %v7624 = vadd.f32 %v7554, %v7592
  %v7625 = vadd.f32 %v7555, %v7593
  %v7626 = vadd.f32 %v7556, %v7594
  %v7627 = vadd.f32 %v7557, %v7595
  %v7628 = vadd.f32 %v7558, %v7596
  %v7629 = vadd.f32 %v7559, %v7597
  %v7630 = vadd.f32 %v7560, %v7598
  %v7631 = vadd.f32 %v7561, %v7599
  %v7632 = vadd.f32 %v7562, %v7600
  %v7633 = vadd.f32 %v7563, %v7601
  %v7634 = vadd.f32 %v7564, %v7602
  %v7635 = vadd.f32 %v7565, %v7603
  %v7636 = vadd.f32 %v7566, %v7604
  %v7637 = vadd.f32 %v7567, %v7605
  %v7638 = vadd.f32 %v7568, %v7606
  %v7639 = vadd.f32 %v7569, %v7607
  %v7640 = vadd.f32 %v7570, %v7608
  %v7641 = vadd.f32 %v7571, %v7609
  %v7642 = vadd.f32 %v7572, %v7610
  %v7643 = vadd.f32 %v7573, %v7611
  %v7644 = vadd.f32 %v7574, %v7612
  %v7645 = vadd.f32 %v7575, %v7613
  %v7646 = vadd.f32 %v7576, %v7614
  %v7647 = vadd.f32 %v7577, %v7615
  %v7648 = vadd.f32 %v7578, %v7616
  %v7649 = vadd.f32 %v7579, %v7617
  %v7650 = vadd.f32 %v7580, %v7618
  %v7651 = vlaneseq
  %v7652 = vshrl.u32 %v7651, 7
  %v7653 = vsub.s32 0, %v7652
  %v7654 = vrot.slane %v7582, %v7653
  %v7655 = vmul.f32 %v7654, %v7129
  %v7656 = vmul.f32 %v7654, %v7130
  %v7657 = vmul.f32 %v7654, %v7131
  %v7658 = vmul.f32 %v7654, %v7132
  %v7659 = vmul.f32 %v7654, %v7133
  %v7660 = vmul.f32 %v7654, %v7134
  %v7661 = vmul.f32 %v7654, %v7135
  %v7662 = vmul.f32 %v7654, %v7136
  %v7663 = vmul.f32 %v7654, %v7137
  %v7664 = vmul.f32 %v7654, %v7138
  %v7665 = vmul.f32 %v7654, %v7139
  %v7666 = vmul.f32 %v7654, %v7140
  %v7667 = vmul.f32 %v7654, %v7141
  %v7668 = vmul.f32 %v7654, %v7142
  %v7669 = vmul.f32 %v7654, %v7143
  %v7670 = vmul.f32 %v7654, %v7144
  %v7671 = vmul.f32 %v7654, %v7145
  %v7672 = vmul.f32 %v7654, %v7146
  %v7673 = vmul.f32 %v7654, %v7147
  %v7674 = vmul.f32 %v7654, %v7148
  %v7675 = vmul.f32 %v7654, %v7149
  %v7676 = vmul.f32 %v7654, %v7150
  %v7677 = vmul.f32 %v7654, %v7151
  %v7678 = vmul.f32 %v7654, %v7152
  %v7679 = vmul.f32 %v7654, %v7153
  %v7680 = vmul.f32 %v7654, %v7154
  %v7681 = vmul.f32 %v7654, %v7155
  %v7682 = vmul.f32 %v7654, %v7156
  %v7683 = vmul.f32 %v7654, %v7157
  %v7684 = vmul.f32 %v7654, %v7158
  %v7685 = vmul.f32 %v7654, %v7159
  %v7686 = vmul.f32 %v7654, %v7160
  %v7687 = vadd.f32 %v7619, %v7655
  %v7688 = vadd.f32 %v7620, %v7656
  %v7689 = vadd.f32 %v7621, %v7657
  %v7690 = vadd.f32 %v7622, %v7658
  %v7691 = vadd.f32 %v7623, %v7659
  %v7692 = vadd.f32 %v7624, %v7660
  %v7693 = vadd.f32 %v7625, %v7661
  %v7694 = vadd.f32 %v7626, %v7662
  %v7695 = vadd.f32 %v7627, %v7663
  %v7696 = vadd.f32 %v7628, %v7664
  %v7697 = vadd.f32 %v7629, %v7665
  %v7698 = vadd.f32 %v7630, %v7666
  %v7699 = vadd.f32 %v7631, %v7667
  %v7700 = vadd.f32 %v7632, %v7668
  %v7701 = vadd.f32 %v7633, %v7669
  %v7702 = vadd.f32 %v7634, %v7670
  %v7703 = vadd.f32 %v7635, %v7671
  %v7704 = vadd.f32 %v7636, %v7672
  %v7705 = vadd.f32 %v7637, %v7673
  %v7706 = vadd.f32 %v7638, %v7674
  %v7707 = vadd.f32 %v7639, %v7675
  %v7708 = vadd.f32 %v7640, %v7676
  %v7709 = vadd.f32 %v7641, %v7677
  %v7710 = vadd.f32 %v7642, %v7678
  %v7711 = vadd.f32 %v7643, %v7679
  %v7712 = vadd.f32 %v7644, %v7680
  %v7713 = vadd.f32 %v7645, %v7681
  %v7714 = vadd.f32 %v7646, %v7682
  %v7715 = vadd.f32 %v7647, %v7683
  %v7716 = vadd.f32 %v7648, %v7684
  %v7717 = vadd.f32 %v7649, %v7685
  %v7718 = vadd.f32 %v7650, %v7686
  %v7719 = vld [vmem:[%s0 + $0x22] sm:$0x1]
  %v7720 = vld [vmem:[%s0 + $0x53] sm:$0x1]
  %v7721 = vlaneseq
  %v7722 = vshrl.u32 %v7721, 7
  %v7723 = vsub.s32 0, %v7722
  %v7724 = vrot.slane %v7719, %v7723
  %v7725 = vmul.f32 %v7724, %v7087
  %v7726 = vmul.f32 %v7724, %v7088
  %v7727 = vmul.f32 %v7724, %v7089
  %v7728 = vmul.f32 %v7724, %v7090
  %v7729 = vmul.f32 %v7724, %v7091
  %v7730 = vmul.f32 %v7724, %v7092
  %v7731 = vmul.f32 %v7724, %v7093
  %v7732 = vmul.f32 %v7724, %v7094
  %v7733 = vmul.f32 %v7724, %v7095
  %v7734 = vmul.f32 %v7724, %v7096
  %v7735 = vmul.f32 %v7724, %v7097
  %v7736 = vmul.f32 %v7724, %v7098
  %v7737 = vmul.f32 %v7724, %v7099
  %v7738 = vmul.f32 %v7724, %v7100
  %v7739 = vmul.f32 %v7724, %v7101
  %v7740 = vmul.f32 %v7724, %v7102
  %v7741 = vmul.f32 %v7724, %v7103
  %v7742 = vmul.f32 %v7724, %v7104
  %v7743 = vmul.f32 %v7724, %v7105
  %v7744 = vmul.f32 %v7724, %v7106
  %v7745 = vmul.f32 %v7724, %v7107
  %v7746 = vmul.f32 %v7724, %v7108
  %v7747 = vmul.f32 %v7724, %v7109
  %v7748 = vmul.f32 %v7724, %v7110
  %v7749 = vmul.f32 %v7724, %v7111
  %v7750 = vmul.f32 %v7724, %v7112
  %v7751 = vmul.f32 %v7724, %v7113
  %v7752 = vmul.f32 %v7724, %v7114
  %v7753 = vmul.f32 %v7724, %v7115
  %v7754 = vmul.f32 %v7724, %v7116
  %v7755 = vmul.f32 %v7724, %v7117
  %v7756 = vmul.f32 %v7724, %v7118
  %v7757 = vadd.f32 %v7687, %v7725
  %v7758 = vadd.f32 %v7688, %v7726
  %v7759 = vadd.f32 %v7689, %v7727
  %v7760 = vadd.f32 %v7690, %v7728
  %v7761 = vadd.f32 %v7691, %v7729
  %v7762 = vadd.f32 %v7692, %v7730
  %v7763 = vadd.f32 %v7693, %v7731
  %v7764 = vadd.f32 %v7694, %v7732
  %v7765 = vadd.f32 %v7695, %v7733
  %v7766 = vadd.f32 %v7696, %v7734
  %v7767 = vadd.f32 %v7697, %v7735
  %v7768 = vadd.f32 %v7698, %v7736
  %v7769 = vadd.f32 %v7699, %v7737
  %v7770 = vadd.f32 %v7700, %v7738
  %v7771 = vadd.f32 %v7701, %v7739
  %v7772 = vadd.f32 %v7702, %v7740
  %v7773 = vadd.f32 %v7703, %v7741
  %v7774 = vadd.f32 %v7704, %v7742
  %v7775 = vadd.f32 %v7705, %v7743
  %v7776 = vadd.f32 %v7706, %v7744
  %v7777 = vadd.f32 %v7707, %v7745
  %v7778 = vadd.f32 %v7708, %v7746
  %v7779 = vadd.f32 %v7709, %v7747
  %v7780 = vadd.f32 %v7710, %v7748
  %v7781 = vadd.f32 %v7711, %v7749
  %v7782 = vadd.f32 %v7712, %v7750
  %v7783 = vadd.f32 %v7713, %v7751
  %v7784 = vadd.f32 %v7714, %v7752
  %v7785 = vadd.f32 %v7715, %v7753
  %v7786 = vadd.f32 %v7716, %v7754
  %v7787 = vadd.f32 %v7717, %v7755
  %v7788 = vadd.f32 %v7718, %v7756
  %v7789 = vlaneseq
  %v7790 = vshrl.u32 %v7789, 7
  %v7791 = vsub.s32 0, %v7790
  %v7792 = vrot.slane %v7720, %v7791
  %v7793 = vmul.f32 %v7792, %v7131
  %v7794 = vmul.f32 %v7792, %v7132
  %v7795 = vmul.f32 %v7792, %v7133
  %v7796 = vmul.f32 %v7792, %v7134
  %v7797 = vmul.f32 %v7792, %v7135
  %v7798 = vmul.f32 %v7792, %v7136
  %v7799 = vmul.f32 %v7792, %v7137
  %v7800 = vmul.f32 %v7792, %v7138
  %v7801 = vmul.f32 %v7792, %v7139
  %v7802 = vmul.f32 %v7792, %v7140
  %v7803 = vmul.f32 %v7792, %v7141
  %v7804 = vmul.f32 %v7792, %v7142
  %v7805 = vmul.f32 %v7792, %v7143
  %v7806 = vmul.f32 %v7792, %v7144
  %v7807 = vmul.f32 %v7792, %v7145
  %v7808 = vmul.f32 %v7792, %v7146
  %v7809 = vmul.f32 %v7792, %v7147
  %v7810 = vmul.f32 %v7792, %v7148
  %v7811 = vmul.f32 %v7792, %v7149
  %v7812 = vmul.f32 %v7792, %v7150
  %v7813 = vmul.f32 %v7792, %v7151
  %v7814 = vmul.f32 %v7792, %v7152
  %v7815 = vmul.f32 %v7792, %v7153
  %v7816 = vmul.f32 %v7792, %v7154
  %v7817 = vmul.f32 %v7792, %v7155
  %v7818 = vmul.f32 %v7792, %v7156
  %v7819 = vmul.f32 %v7792, %v7157
  %v7820 = vmul.f32 %v7792, %v7158
  %v7821 = vmul.f32 %v7792, %v7159
  %v7822 = vmul.f32 %v7792, %v7160
  %v7823 = vmul.f32 %v7792, %v7161
  %v7824 = vmul.f32 %v7792, %v7162
  %v7825 = vadd.f32 %v7757, %v7793
  %v7826 = vadd.f32 %v7758, %v7794
  %v7827 = vadd.f32 %v7759, %v7795
  %v7828 = vadd.f32 %v7760, %v7796
  %v7829 = vadd.f32 %v7761, %v7797
  %v7830 = vadd.f32 %v7762, %v7798
  %v7831 = vadd.f32 %v7763, %v7799
  %v7832 = vadd.f32 %v7764, %v7800
  %v7833 = vadd.f32 %v7765, %v7801
  %v7834 = vadd.f32 %v7766, %v7802
  %v7835 = vadd.f32 %v7767, %v7803
  %v7836 = vadd.f32 %v7768, %v7804
  %v7837 = vadd.f32 %v7769, %v7805
  %v7838 = vadd.f32 %v7770, %v7806
  %v7839 = vadd.f32 %v7771, %v7807
  %v7840 = vadd.f32 %v7772, %v7808
  %v7841 = vadd.f32 %v7773, %v7809
  %v7842 = vadd.f32 %v7774, %v7810
  %v7843 = vadd.f32 %v7775, %v7811
  %v7844 = vadd.f32 %v7776, %v7812
  %v7845 = vadd.f32 %v7777, %v7813
  %v7846 = vadd.f32 %v7778, %v7814
  %v7847 = vadd.f32 %v7779, %v7815
  %v7848 = vadd.f32 %v7780, %v7816
  %v7849 = vadd.f32 %v7781, %v7817
  %v7850 = vadd.f32 %v7782, %v7818
  %v7851 = vadd.f32 %v7783, %v7819
  %v7852 = vadd.f32 %v7784, %v7820
  %v7853 = vadd.f32 %v7785, %v7821
  %v7854 = vadd.f32 %v7786, %v7822
  %v7855 = vadd.f32 %v7787, %v7823
  %v7856 = vadd.f32 %v7788, %v7824
  %v7857 = vld [vmem:[%s0 + $0x29] sm:$0x1]
  %v7858 = vld [vmem:[%s0 + $0x5a] sm:$0x1]
  %v7859 = vlaneseq
  %v7860 = vshrl.u32 %v7859, 7
  %v7861 = vsub.s32 0, %v7860
  %v7862 = vrot.slane %v7857, %v7861
  %v7863 = vmul.f32 %v7862, %v7089
  %v7864 = vmul.f32 %v7862, %v7090
  %v7865 = vmul.f32 %v7862, %v7091
  %v7866 = vmul.f32 %v7862, %v7092
  %v7867 = vmul.f32 %v7862, %v7093
  %v7868 = vmul.f32 %v7862, %v7094
  %v7869 = vmul.f32 %v7862, %v7095
  %v7870 = vmul.f32 %v7862, %v7096
  %v7871 = vmul.f32 %v7862, %v7097
  %v7872 = vmul.f32 %v7862, %v7098
  %v7873 = vmul.f32 %v7862, %v7099
  %v7874 = vmul.f32 %v7862, %v7100
  %v7875 = vmul.f32 %v7862, %v7101
  %v7876 = vmul.f32 %v7862, %v7102
  %v7877 = vmul.f32 %v7862, %v7103
  %v7878 = vmul.f32 %v7862, %v7104
  %v7879 = vmul.f32 %v7862, %v7105
  %v7880 = vmul.f32 %v7862, %v7106
  %v7881 = vmul.f32 %v7862, %v7107
  %v7882 = vmul.f32 %v7862, %v7108
  %v7883 = vmul.f32 %v7862, %v7109
  %v7884 = vmul.f32 %v7862, %v7110
  %v7885 = vmul.f32 %v7862, %v7111
  %v7886 = vmul.f32 %v7862, %v7112
  %v7887 = vmul.f32 %v7862, %v7113
  %v7888 = vmul.f32 %v7862, %v7114
  %v7889 = vmul.f32 %v7862, %v7115
  %v7890 = vmul.f32 %v7862, %v7116
  %v7891 = vmul.f32 %v7862, %v7117
  %v7892 = vmul.f32 %v7862, %v7118
  %v7893 = vmul.f32 %v7862, %v7119
  %v7894 = vmul.f32 %v7862, %v7120
  %v7895 = vadd.f32 %v7825, %v7863
  %v7896 = vadd.f32 %v7826, %v7864
  %v7897 = vadd.f32 %v7827, %v7865
  %v7898 = vadd.f32 %v7828, %v7866
  %v7899 = vadd.f32 %v7829, %v7867
  %v7900 = vadd.f32 %v7830, %v7868
  %v7901 = vadd.f32 %v7831, %v7869
  %v7902 = vadd.f32 %v7832, %v7870
  %v7903 = vadd.f32 %v7833, %v7871
  %v7904 = vadd.f32 %v7834, %v7872
  %v7905 = vadd.f32 %v7835, %v7873
  %v7906 = vadd.f32 %v7836, %v7874
  %v7907 = vadd.f32 %v7837, %v7875
  %v7908 = vadd.f32 %v7838, %v7876
  %v7909 = vadd.f32 %v7839, %v7877
  %v7910 = vadd.f32 %v7840, %v7878
  %v7911 = vadd.f32 %v7841, %v7879
  %v7912 = vadd.f32 %v7842, %v7880
  %v7913 = vadd.f32 %v7843, %v7881
  %v7914 = vadd.f32 %v7844, %v7882
  %v7915 = vadd.f32 %v7845, %v7883
  %v7916 = vadd.f32 %v7846, %v7884
  %v7917 = vadd.f32 %v7847, %v7885
  %v7918 = vadd.f32 %v7848, %v7886
  %v7919 = vadd.f32 %v7849, %v7887
  %v7920 = vadd.f32 %v7850, %v7888
  %v7921 = vadd.f32 %v7851, %v7889
  %v7922 = vadd.f32 %v7852, %v7890
  %v7923 = vadd.f32 %v7853, %v7891
  %v7924 = vadd.f32 %v7854, %v7892
  %v7925 = vadd.f32 %v7855, %v7893
  %v7926 = vadd.f32 %v7856, %v7894
  %v7927 = vlaneseq
  %v7928 = vshrl.u32 %v7927, 7
  %v7929 = vsub.s32 0, %v7928
  %v7930 = vrot.slane %v7858, %v7929
  %v7931 = vmul.f32 %v7930, %v7133
  %v7932 = vmul.f32 %v7930, %v7134
  %v7933 = vmul.f32 %v7930, %v7135
  %v7934 = vmul.f32 %v7930, %v7136
  %v7935 = vmul.f32 %v7930, %v7137
  %v7936 = vmul.f32 %v7930, %v7138
  %v7937 = vmul.f32 %v7930, %v7139
  %v7938 = vmul.f32 %v7930, %v7140
  %v7939 = vmul.f32 %v7930, %v7141
  %v7940 = vmul.f32 %v7930, %v7142
  %v7941 = vmul.f32 %v7930, %v7143
  %v7942 = vmul.f32 %v7930, %v7144
  %v7943 = vmul.f32 %v7930, %v7145
  %v7944 = vmul.f32 %v7930, %v7146
  %v7945 = vmul.f32 %v7930, %v7147
  %v7946 = vmul.f32 %v7930, %v7148
  %v7947 = vmul.f32 %v7930, %v7149
  %v7948 = vmul.f32 %v7930, %v7150
  %v7949 = vmul.f32 %v7930, %v7151
  %v7950 = vmul.f32 %v7930, %v7152
  %v7951 = vmul.f32 %v7930, %v7153
  %v7952 = vmul.f32 %v7930, %v7154
  %v7953 = vmul.f32 %v7930, %v7155
  %v7954 = vmul.f32 %v7930, %v7156
  %v7955 = vmul.f32 %v7930, %v7157
  %v7956 = vmul.f32 %v7930, %v7158
  %v7957 = vmul.f32 %v7930, %v7159
  %v7958 = vmul.f32 %v7930, %v7160
  %v7959 = vmul.f32 %v7930, %v7161
  %v7960 = vmul.f32 %v7930, %v7162
  %v7961 = vmul.f32 %v7930, %v7163
  %v7962 = vmul.f32 %v7930, %v7164
  %v7963 = vadd.f32 %v7895, %v7931
  %v7964 = vadd.f32 %v7896, %v7932
  %v7965 = vadd.f32 %v7897, %v7933
  %v7966 = vadd.f32 %v7898, %v7934
  %v7967 = vadd.f32 %v7899, %v7935
  %v7968 = vadd.f32 %v7900, %v7936
  %v7969 = vadd.f32 %v7901, %v7937
  %v7970 = vadd.f32 %v7902, %v7938
  %v7971 = vadd.f32 %v7903, %v7939
  %v7972 = vadd.f32 %v7904, %v7940
  %v7973 = vadd.f32 %v7905, %v7941
  %v7974 = vadd.f32 %v7906, %v7942
  %v7975 = vadd.f32 %v7907, %v7943
  %v7976 = vadd.f32 %v7908, %v7944
  %v7977 = vadd.f32 %v7909, %v7945
  %v7978 = vadd.f32 %v7910, %v7946
  %v7979 = vadd.f32 %v7911, %v7947
  %v7980 = vadd.f32 %v7912, %v7948
  %v7981 = vadd.f32 %v7913, %v7949
  %v7982 = vadd.f32 %v7914, %v7950
  %v7983 = vadd.f32 %v7915, %v7951
  %v7984 = vadd.f32 %v7916, %v7952
  %v7985 = vadd.f32 %v7917, %v7953
  %v7986 = vadd.f32 %v7918, %v7954
  %v7987 = vadd.f32 %v7919, %v7955
  %v7988 = vadd.f32 %v7920, %v7956
  %v7989 = vadd.f32 %v7921, %v7957
  %v7990 = vadd.f32 %v7922, %v7958
  %v7991 = vadd.f32 %v7923, %v7959
  %v7992 = vadd.f32 %v7924, %v7960
  %v7993 = vadd.f32 %v7925, %v7961
  %v7994 = vadd.f32 %v7926, %v7962
  %v7995 = vld [vmem:[%s0 + $0x30] sm:$0x1]
  %v7996 = vld [vmem:[%s0 + $0x61] sm:$0x1]
  %v7997 = vlaneseq
  %v7998 = vshrl.u32 %v7997, 7
  %v7999 = vsub.s32 0, %v7998
  %v8000 = vrot.slane %v7995, %v7999
  %v8001 = vmul.f32 %v8000, %v7091
  %v8002 = vmul.f32 %v8000, %v7092
  %v8003 = vmul.f32 %v8000, %v7093
  %v8004 = vmul.f32 %v8000, %v7094
  %v8005 = vmul.f32 %v8000, %v7095
  %v8006 = vmul.f32 %v8000, %v7096
  %v8007 = vmul.f32 %v8000, %v7097
  %v8008 = vmul.f32 %v8000, %v7098
  %v8009 = vmul.f32 %v8000, %v7099
  %v8010 = vmul.f32 %v8000, %v7100
  %v8011 = vmul.f32 %v8000, %v7101
  %v8012 = vmul.f32 %v8000, %v7102
  %v8013 = vmul.f32 %v8000, %v7103
  %v8014 = vmul.f32 %v8000, %v7104
  %v8015 = vmul.f32 %v8000, %v7105
  %v8016 = vmul.f32 %v8000, %v7106
  %v8017 = vmul.f32 %v8000, %v7107
  %v8018 = vmul.f32 %v8000, %v7108
  %v8019 = vmul.f32 %v8000, %v7109
  %v8020 = vmul.f32 %v8000, %v7110
  %v8021 = vmul.f32 %v8000, %v7111
  %v8022 = vmul.f32 %v8000, %v7112
  %v8023 = vmul.f32 %v8000, %v7113
  %v8024 = vmul.f32 %v8000, %v7114
  %v8025 = vmul.f32 %v8000, %v7115
  %v8026 = vmul.f32 %v8000, %v7116
  %v8027 = vmul.f32 %v8000, %v7117
  %v8028 = vmul.f32 %v8000, %v7118
  %v8029 = vmul.f32 %v8000, %v7119
  %v8030 = vmul.f32 %v8000, %v7120
  %v8031 = vmul.f32 %v8000, %v7121
  %v8032 = vmul.f32 %v8000, %v7122
  %v8033 = vadd.f32 %v7963, %v8001
  %v8034 = vadd.f32 %v7964, %v8002
  %v8035 = vadd.f32 %v7965, %v8003
  %v8036 = vadd.f32 %v7966, %v8004
  %v8037 = vadd.f32 %v7967, %v8005
  %v8038 = vadd.f32 %v7968, %v8006
  %v8039 = vadd.f32 %v7969, %v8007
  %v8040 = vadd.f32 %v7970, %v8008
  %v8041 = vadd.f32 %v7971, %v8009
  %v8042 = vadd.f32 %v7972, %v8010
  %v8043 = vadd.f32 %v7973, %v8011
  %v8044 = vadd.f32 %v7974, %v8012
  %v8045 = vadd.f32 %v7975, %v8013
  %v8046 = vadd.f32 %v7976, %v8014
  %v8047 = vadd.f32 %v7977, %v8015
  %v8048 = vadd.f32 %v7978, %v8016
  %v8049 = vadd.f32 %v7979, %v8017
  %v8050 = vadd.f32 %v7980, %v8018
  %v8051 = vadd.f32 %v7981, %v8019
  %v8052 = vadd.f32 %v7982, %v8020
  %v8053 = vadd.f32 %v7983, %v8021
  %v8054 = vadd.f32 %v7984, %v8022
  %v8055 = vadd.f32 %v7985, %v8023
  %v8056 = vadd.f32 %v7986, %v8024
  %v8057 = vadd.f32 %v7987, %v8025
  %v8058 = vadd.f32 %v7988, %v8026
  %v8059 = vadd.f32 %v7989, %v8027
  %v8060 = vadd.f32 %v7990, %v8028
  %v8061 = vadd.f32 %v7991, %v8029
  %v8062 = vadd.f32 %v7992, %v8030
  %v8063 = vadd.f32 %v7993, %v8031
  %v8064 = vadd.f32 %v7994, %v8032
  %v8065 = vlaneseq
  %v8066 = vshrl.u32 %v8065, 7
  %v8067 = vsub.s32 0, %v8066
  %v8068 = vrot.slane %v7996, %v8067
  %v8069 = vmul.f32 %v8068, %v7135
  %v8070 = vmul.f32 %v8068, %v7136
  %v8071 = vmul.f32 %v8068, %v7137
  %v8072 = vmul.f32 %v8068, %v7138
  %v8073 = vmul.f32 %v8068, %v7139
  %v8074 = vmul.f32 %v8068, %v7140
  %v8075 = vmul.f32 %v8068, %v7141
  %v8076 = vmul.f32 %v8068, %v7142
  %v8077 = vmul.f32 %v8068, %v7143
  %v8078 = vmul.f32 %v8068, %v7144
  %v8079 = vmul.f32 %v8068, %v7145
  %v8080 = vmul.f32 %v8068, %v7146
  %v8081 = vmul.f32 %v8068, %v7147
  %v8082 = vmul.f32 %v8068, %v7148
  %v8083 = vmul.f32 %v8068, %v7149
  %v8084 = vmul.f32 %v8068, %v7150
  %v8085 = vmul.f32 %v8068, %v7151
  %v8086 = vmul.f32 %v8068, %v7152
  %v8087 = vmul.f32 %v8068, %v7153
  %v8088 = vmul.f32 %v8068, %v7154
  %v8089 = vmul.f32 %v8068, %v7155
  %v8090 = vmul.f32 %v8068, %v7156
  %v8091 = vmul.f32 %v8068, %v7157
  %v8092 = vmul.f32 %v8068, %v7158
  %v8093 = vmul.f32 %v8068, %v7159
  %v8094 = vmul.f32 %v8068, %v7160
  %v8095 = vmul.f32 %v8068, %v7161
  %v8096 = vmul.f32 %v8068, %v7162
  %v8097 = vmul.f32 %v8068, %v7163
  %v8098 = vmul.f32 %v8068, %v7164
  %v8099 = vmul.f32 %v8068, %v7165
  %v8100 = vmul.f32 %v8068, %v7166
  %v8101 = vadd.f32 %v8033, %v8069
  %v8102 = vadd.f32 %v8034, %v8070
  %v8103 = vadd.f32 %v8035, %v8071
  %v8104 = vadd.f32 %v8036, %v8072
  %v8105 = vadd.f32 %v8037, %v8073
  %v8106 = vadd.f32 %v8038, %v8074
  %v8107 = vadd.f32 %v8039, %v8075
  %v8108 = vadd.f32 %v8040, %v8076
  %v8109 = vadd.f32 %v8041, %v8077
  %v8110 = vadd.f32 %v8042, %v8078
  %v8111 = vadd.f32 %v8043, %v8079
  %v8112 = vadd.f32 %v8044, %v8080
  %v8113 = vadd.f32 %v8045, %v8081
  %v8114 = vadd.f32 %v8046, %v8082
  %v8115 = vadd.f32 %v8047, %v8083
  %v8116 = vadd.f32 %v8048, %v8084
  %v8117 = vadd.f32 %v8049, %v8085
  %v8118 = vadd.f32 %v8050, %v8086
  %v8119 = vadd.f32 %v8051, %v8087
  %v8120 = vadd.f32 %v8052, %v8088
  %v8121 = vadd.f32 %v8053, %v8089
  %v8122 = vadd.f32 %v8054, %v8090
  %v8123 = vadd.f32 %v8055, %v8091
  %v8124 = vadd.f32 %v8056, %v8092
  %v8125 = vadd.f32 %v8057, %v8093
  %v8126 = vadd.f32 %v8058, %v8094
  %v8127 = vadd.f32 %v8059, %v8095
  %v8128 = vadd.f32 %v8060, %v8096
  %v8129 = vadd.f32 %v8061, %v8097
  %v8130 = vadd.f32 %v8062, %v8098
  %v8131 = vadd.f32 %v8063, %v8099
  %v8132 = vadd.f32 %v8064, %v8100
  %v8133 = vxor.u32 %v8101, 2147483648
  %v8134 = vxor.u32 %v8102, 2147483648
  %v8135 = vxor.u32 %v8103, 2147483648
  %v8136 = vxor.u32 %v8104, 2147483648
  %v8137 = vxor.u32 %v8105, 2147483648
  %v8138 = vxor.u32 %v8106, 2147483648
  %v8139 = vxor.u32 %v8107, 2147483648
  %v8140 = vxor.u32 %v8108, 2147483648
  %v8141 = vxor.u32 %v8109, 2147483648
  %v8142 = vxor.u32 %v8110, 2147483648
  %v8143 = vxor.u32 %v8111, 2147483648
  %v8144 = vxor.u32 %v8112, 2147483648
  %v8145 = vxor.u32 %v8113, 2147483648
  %v8146 = vxor.u32 %v8114, 2147483648
  %v8147 = vxor.u32 %v8115, 2147483648
  %v8148 = vxor.u32 %v8116, 2147483648
  %v8149 = vxor.u32 %v8117, 2147483648
  %v8150 = vxor.u32 %v8118, 2147483648
  %v8151 = vxor.u32 %v8119, 2147483648
  %v8152 = vxor.u32 %v8120, 2147483648
  %v8153 = vxor.u32 %v8121, 2147483648
  %v8154 = vxor.u32 %v8122, 2147483648
  %v8155 = vxor.u32 %v8123, 2147483648
  %v8156 = vxor.u32 %v8124, 2147483648
  %v8157 = vxor.u32 %v8125, 2147483648
  %v8158 = vxor.u32 %v8126, 2147483648
  %v8159 = vxor.u32 %v8127, 2147483648
  %v8160 = vxor.u32 %v8128, 2147483648
  %v8161 = vxor.u32 %v8129, 2147483648
  %v8162 = vxor.u32 %v8130, 2147483648
  %v8163 = vxor.u32 %v8131, 2147483648
  %v8164 = vxor.u32 %v8132, 2147483648
  %v8165 = vmul.f32 %v8133, 1.442695
  %v8166 = vpow.pop %v8165
  %v8167 = vmul.f32 %v8134, 1.442695
  %v8168 = vpow.pop %v8167
  %v8169 = vmul.f32 %v8135, 1.442695
  %v8170 = vpow.pop %v8169
  %v8171 = vmul.f32 %v8136, 1.442695
  %v8172 = vpow.pop %v8171
  %v8173 = vmul.f32 %v8137, 1.442695
  %v8174 = vpow.pop %v8173
  %v8175 = vmul.f32 %v8138, 1.442695
  %v8176 = vpow.pop %v8175
  %v8177 = vmul.f32 %v8139, 1.442695
  %v8178 = vpow.pop %v8177
  %v8179 = vmul.f32 %v8140, 1.442695
  %v8180 = vpow.pop %v8179
  %v8181 = vmul.f32 %v8141, 1.442695
  %v8182 = vpow.pop %v8181
  %v8183 = vmul.f32 %v8142, 1.442695
  %v8184 = vpow.pop %v8183
  %v8185 = vmul.f32 %v8143, 1.442695
  %v8186 = vpow.pop %v8185
  %v8187 = vmul.f32 %v8144, 1.442695
  %v8188 = vpow.pop %v8187
  %v8189 = vmul.f32 %v8145, 1.442695
  %v8190 = vpow.pop %v8189
  %v8191 = vmul.f32 %v8146, 1.442695
  %v8192 = vpow.pop %v8191
  %v8193 = vmul.f32 %v8147, 1.442695
  %v8194 = vpow.pop %v8193
  %v8195 = vmul.f32 %v8148, 1.442695
  %v8196 = vpow.pop %v8195
  %v8197 = vmul.f32 %v8149, 1.442695
  %v8198 = vpow.pop %v8197
  %v8199 = vmul.f32 %v8150, 1.442695
  %v8200 = vpow.pop %v8199
  %v8201 = vmul.f32 %v8151, 1.442695
  %v8202 = vpow.pop %v8201
  %v8203 = vmul.f32 %v8152, 1.442695
  %v8204 = vpow.pop %v8203
  %v8205 = vmul.f32 %v8153, 1.442695
  %v8206 = vpow.pop %v8205
  %v8207 = vmul.f32 %v8154, 1.442695
  %v8208 = vpow.pop %v8207
  %v8209 = vmul.f32 %v8155, 1.442695
  %v8210 = vpow.pop %v8209
  %v8211 = vmul.f32 %v8156, 1.442695
  %v8212 = vpow.pop %v8211
  %v8213 = vmul.f32 %v8157, 1.442695
  %v8214 = vpow.pop %v8213
  %v8215 = vmul.f32 %v8158, 1.442695
  %v8216 = vpow.pop %v8215
  %v8217 = vmul.f32 %v8159, 1.442695
  %v8218 = vpow.pop %v8217
  %v8219 = vmul.f32 %v8160, 1.442695
  %v8220 = vpow.pop %v8219
  %v8221 = vmul.f32 %v8161, 1.442695
  %v8222 = vpow.pop %v8221
  %v8223 = vmul.f32 %v8162, 1.442695
  %v8224 = vpow.pop %v8223
  %v8225 = vmul.f32 %v8163, 1.442695
  %v8226 = vpow.pop %v8225
  %v8227 = vmul.f32 %v8164, 1.442695
  %v8228 = vpow.pop %v8227
  %v8229 = vadd.f32 %v8166, 1.0
  %v8230 = vadd.f32 %v8168, 1.0
  %v8231 = vadd.f32 %v8170, 1.0
  %v8232 = vadd.f32 %v8172, 1.0
  %v8233 = vadd.f32 %v8174, 1.0
  %v8234 = vadd.f32 %v8176, 1.0
  %v8235 = vadd.f32 %v8178, 1.0
  %v8236 = vadd.f32 %v8180, 1.0
  %v8237 = vadd.f32 %v8182, 1.0
  %v8238 = vadd.f32 %v8184, 1.0
  %v8239 = vadd.f32 %v8186, 1.0
  %v8240 = vadd.f32 %v8188, 1.0
  %v8241 = vadd.f32 %v8190, 1.0
  %v8242 = vadd.f32 %v8192, 1.0
  %v8243 = vadd.f32 %v8194, 1.0
  %v8244 = vadd.f32 %v8196, 1.0
  %v8245 = vadd.f32 %v8198, 1.0
  %v8246 = vadd.f32 %v8200, 1.0
  %v8247 = vadd.f32 %v8202, 1.0
  %v8248 = vadd.f32 %v8204, 1.0
  %v8249 = vadd.f32 %v8206, 1.0
  %v8250 = vadd.f32 %v8208, 1.0
  %v8251 = vadd.f32 %v8210, 1.0
  %v8252 = vadd.f32 %v8212, 1.0
  %v8253 = vadd.f32 %v8214, 1.0
  %v8254 = vadd.f32 %v8216, 1.0
  %v8255 = vadd.f32 %v8218, 1.0
  %v8256 = vadd.f32 %v8220, 1.0
  %v8257 = vadd.f32 %v8222, 1.0
  %v8258 = vadd.f32 %v8224, 1.0
  %v8259 = vadd.f32 %v8226, 1.0
  %v8260 = vadd.f32 %v8228, 1.0
  %v8261 = vrcp.pop %v8229
  %v8262 = vmul.f32 1.0, %v8261
  %v8263 = vrcp.pop %v8230
  %v8264 = vmul.f32 1.0, %v8263
  %v8265 = vrcp.pop %v8231
  %v8266 = vmul.f32 1.0, %v8265
  %v8267 = vrcp.pop %v8232
  %v8268 = vmul.f32 1.0, %v8267
  %v8269 = vrcp.pop %v8233
  %v8270 = vmul.f32 1.0, %v8269
  %v8271 = vrcp.pop %v8234
  %v8272 = vmul.f32 1.0, %v8271
  %v8273 = vrcp.pop %v8235
  %v8274 = vmul.f32 1.0, %v8273
  %v8275 = vrcp.pop %v8236
  %v8276 = vmul.f32 1.0, %v8275
  %v8277 = vrcp.pop %v8237
  %v8278 = vmul.f32 1.0, %v8277
  %v8279 = vrcp.pop %v8238
  %v8280 = vmul.f32 1.0, %v8279
  %v8281 = vrcp.pop %v8239
  %v8282 = vmul.f32 1.0, %v8281
  %v8283 = vrcp.pop %v8240
  %v8284 = vmul.f32 1.0, %v8283
  %v8285 = vrcp.pop %v8241
  %v8286 = vmul.f32 1.0, %v8285
  %v8287 = vrcp.pop %v8242
  %v8288 = vmul.f32 1.0, %v8287
  %v8289 = vrcp.pop %v8243
  %v8290 = vmul.f32 1.0, %v8289
  %v8291 = vrcp.pop %v8244
  %v8292 = vmul.f32 1.0, %v8291
  %v8293 = vrcp.pop %v8245
  %v8294 = vmul.f32 1.0, %v8293
  %v8295 = vrcp.pop %v8246
  %v8296 = vmul.f32 1.0, %v8295
  %v8297 = vrcp.pop %v8247
  %v8298 = vmul.f32 1.0, %v8297
  %v8299 = vrcp.pop %v8248
  %v8300 = vmul.f32 1.0, %v8299
  %v8301 = vrcp.pop %v8249
  %v8302 = vmul.f32 1.0, %v8301
  %v8303 = vrcp.pop %v8250
  %v8304 = vmul.f32 1.0, %v8303
  %v8305 = vrcp.pop %v8251
  %v8306 = vmul.f32 1.0, %v8305
  %v8307 = vrcp.pop %v8252
  %v8308 = vmul.f32 1.0, %v8307
  %v8309 = vrcp.pop %v8253
  %v8310 = vmul.f32 1.0, %v8309
  %v8311 = vrcp.pop %v8254
  %v8312 = vmul.f32 1.0, %v8311
  %v8313 = vrcp.pop %v8255
  %v8314 = vmul.f32 1.0, %v8313
  %v8315 = vrcp.pop %v8256
  %v8316 = vmul.f32 1.0, %v8315
  %v8317 = vrcp.pop %v8257
  %v8318 = vmul.f32 1.0, %v8317
  %v8319 = vrcp.pop %v8258
  %v8320 = vmul.f32 1.0, %v8319
  %v8321 = vrcp.pop %v8259
  %v8322 = vmul.f32 1.0, %v8321
  %v8323 = vrcp.pop %v8260
  %v8324 = vmul.f32 1.0, %v8323
  %8325 = vst.msk [vmem:[%s4] sm:$0xff] %vm50, %v8262
  %8326 = vst.msk [vmem:[%s4 + $0x8] sm:$0xff] %vm50, %v8264
  %8327 = vst.msk [vmem:[%s4 + $0x10] sm:$0xff] %vm50, %v8266
  %8328 = vst.msk [vmem:[%s4 + $0x18] sm:$0xff] %vm50, %v8268
  %8329 = vst.msk [vmem:[%s4 + $0x20] sm:$0xff] %vm50, %v8270
  %8330 = vst.msk [vmem:[%s4 + $0x28] sm:$0xff] %vm50, %v8272
  %8331 = vst.msk [vmem:[%s4 + $0x30] sm:$0xff] %vm50, %v8274
  %8332 = vst.msk [vmem:[%s4 + $0x38] sm:$0xff] %vm50, %v8276
  %8333 = vst.msk [vmem:[%s4 + $0x40] sm:$0xff] %vm50, %v8278
  %8334 = vst.msk [vmem:[%s4 + $0x48] sm:$0xff] %vm50, %v8280
  %8335 = vst.msk [vmem:[%s4 + $0x50] sm:$0xff] %vm50, %v8282
  %8336 = vst.msk [vmem:[%s4 + $0x58] sm:$0xff] %vm50, %v8284
  %8337 = vst.msk [vmem:[%s4 + $0x60] sm:$0xff] %vm50, %v8286
  %8338 = vst.msk [vmem:[%s4 + $0x68] sm:$0xff] %vm50, %v8288
  %8339 = vst.msk [vmem:[%s4 + $0x70] sm:$0xff] %vm50, %v8290
  %8340 = vst.msk [vmem:[%s4 + $0x78] sm:$0xff] %vm50, %v8292
  %8341 = vst.msk [vmem:[%s4 + $0x80] sm:$0xff] %vm50, %v8294
  %8342 = vst.msk [vmem:[%s4 + $0x88] sm:$0xff] %vm50, %v8296
  %8343 = vst.msk [vmem:[%s4 + $0x90] sm:$0xff] %vm50, %v8298
  %8344 = vst.msk [vmem:[%s4 + $0x98] sm:$0xff] %vm50, %v8300
  %8345 = vst.msk [vmem:[%s4 + $0xa0] sm:$0xff] %vm50, %v8302
  %8346 = vst.msk [vmem:[%s4 + $0xa8] sm:$0xff] %vm50, %v8304
  %8347 = vst.msk [vmem:[%s4 + $0xb0] sm:$0xff] %vm50, %v8306
  %8348 = vst.msk [vmem:[%s4 + $0xb8] sm:$0xff] %vm50, %v8308
  %8349 = vst.msk [vmem:[%s4 + $0xc0] sm:$0xff] %vm50, %v8310
  %8350 = vst.msk [vmem:[%s4 + $0xc8] sm:$0xff] %vm50, %v8312
  %8351 = vst.msk [vmem:[%s4 + $0xd0] sm:$0xff] %vm50, %v8314
  %8352 = vst.msk [vmem:[%s4 + $0xd8] sm:$0xff] %vm50, %v8316
  %8353 = vst.msk [vmem:[%s4 + $0xe0] sm:$0xff] %vm50, %v8318
  %8354 = vst.msk [vmem:[%s4 + $0xe8] sm:$0xff] %vm50, %v8320
  %8355 = vst.msk [vmem:[%s4 + $0xf0] sm:$0xff] %vm50, %v8322
  %8356 = vst.msk [vmem:[%s4 + $0xf8] sm:$0xff] %vm50, %v8324
  // Predicated region
  $region18: #{tpu_custom_call.1} parent=0 // pred_check
    _
  $region19: #{tpu_custom_call.1} parent=0 // pred_check_branch
    %8358 = sbr.rel (0) target = $region21
  $region20: #{tpu_custom_call.1} parent=0 // pred_region
    _
  $region21: #{tpu_custom_call.1} parent=0 // pred_fallthru
    _
  // Predicated region
  $region22: #{tpu_custom_call.1} parent=0 // pred_check
    _
  $region23: #{tpu_custom_call.1} parent=0 // pred_check_branch
    %8360 = sbr.rel (0) target = $region25
  $region24: #{tpu_custom_call.1} parent=0 // pred_region
    _
  $region25: #{tpu_custom_call.1} parent=0 // pred_fallthru
    _

</llo_original>
